<compile_context>
chip_gen: v7x
topology: tpu7x:2x2x1
jax: 0.10.0
libtpu: 0.0.40
codegen_flags: <defaults>
</compile_context>

<pallas_src>
import math
import jax
import jax.numpy as jnp
from jax.experimental import pallas as pl
from jax.experimental.pallas import tpu as pltpu

F32 = jnp.float32
BF16 = jnp.bfloat16
LN_EPS = 1e-5


def _conformer_kernel(
    # ---- inputs ----
    x_ref,                      # (M, C)  VMEM, M = b_blk * T
    bias_ref,                   # (H, T, T) bf16 VMEM (relative positional bias)
    ln1_g, ln1_b, ln2_g, ln2_b, ln3_g, ln3_b, ln4_g, ln4_b,
    f1_w1, f1_b1, f1_w2, f1_b2,
    w_qkv, b_qkv, w_out, b_out,
    car_wi, car_bi,
    cw0, cb0, cw1, cb1, cw2, cb2,
    car_wo, car_bo,
    f2_w1, f2_b1, f2_w2, f2_b2,
    # ---- outputs ----
    o_ref,                      # (M, C)
):
    M, C = x_ref.shape
    H, T, _ = bias_ref.shape
    b_blk = M // T
    E = w_out.shape[0]          # H * dh
    dh = E // H
    D = car_wi.shape[1]

    def ln(v, g_r, b_r):
        mu = jnp.mean(v, axis=-1, keepdims=True)
        var = jnp.mean(jnp.square(v - mu), axis=-1, keepdims=True)
        return (v - mu) * jax.lax.rsqrt(var + LN_EPS) * g_r[...] + b_r[...]

    def mm(a, w_ref):
        # bf16 operands, f32 accumulation on the MXU.
        w = w_ref[...]
        return jnp.dot(a.astype(w.dtype), w, preferred_element_type=F32)

    def ffn(v, w1_r, b1_r, w2_r, b2_r):
        h = jnp.maximum(mm(v, w1_r) + b1_r[...], 0.0)   # relu
        return mm(h, w2_r) + b2_r[...]

    x = x_ref[...].astype(F32)                           # (M, C) f32 working copy

    # ---- macaron FFN1: x = x + 0.5 * ffn1(LN(x)) ------------------------------
    x = x + 0.5 * ffn(ln(x, ln1_g, ln1_b), f1_w1, f1_b1, f1_w2, f1_b2)

    # ---- self-attention with relative positional bias -------------------------
    # Batched QKV projection over all b_blk sequences at once.
    xn = ln(x, ln2_g, ln2_b)
    qkv = mm(xn, w_qkv) + b_qkv[...]                     # (M, 3E) f32; 1/sqrt(dh) folded
    q = qkv[:, 0 * E:1 * E].astype(BF16)
    k = qkv[:, 1 * E:2 * E].astype(BF16)
    v = qkv[:, 2 * E:3 * E].astype(BF16)
    bias_all = bias_ref[...]                             # (H, T, T) bf16, loaded once

    ctx_rows = []
    for b in range(b_blk):                               # small loop: only score/PV per head
        r0, r1 = b * T, (b + 1) * T
        head_outs = []
        for h in range(H):
            c0, c1 = h * dh, (h + 1) * dh
            qh = q[r0:r1, c0:c1]
            kh = k[r0:r1, c0:c1]
            vh = v[r0:r1, c0:c1]
            s = jax.lax.dot_general(qh, kh, (((1,), (1,)), ((), ())),
                                    preferred_element_type=F32)
            s = s + bias_all[h]                          # bf16 bias promotes to f32
            s = s - jnp.max(s, axis=-1, keepdims=True)
            p = jnp.exp(s)
            l = jnp.sum(p, axis=-1, keepdims=True)
            oh = jnp.dot(p.astype(BF16), vh, preferred_element_type=F32)
            head_outs.append((oh * pl.reciprocal(l, approx=True)).astype(BF16))
        ctx_rows.append(jnp.concatenate(head_outs, axis=1))          # (T, E) bf16
    ctx = jnp.concatenate(ctx_rows, axis=0) if b_blk > 1 else ctx_rows[0]   # (M, E)
    x = x + jnp.dot(ctx, w_out[...], preferred_element_type=F32) + b_out[...]

    # ---- multi-scale CAR block (depthwise convs via masked in-register shifts) -
    xn = ln(x, ln3_g, ln3_b)
    hc = jnp.maximum(mm(xn, car_wi) + car_bi[...], 0.0)              # (M, D)
    conv_params = ((cw0, cb0), (cw1, cb1), (cw2, cb2))
    P = max(cw_r.shape[0] for cw_r, _ in conv_params) // 2

    # Per-offset taps built once for the whole (b_blk*T, D) block.  The shift is a
    # whole-block zero-padded shift; the mask zeroes rows whose within-sequence index
    # t + off falls outside [0, T), which implements per-sequence "same" zero padding
    # (an equivalent formulation uses pltpu.roll + the same mask).
    t_idx = jax.lax.broadcasted_iota(jnp.int32, (M, 1), 0) % T
    taps = {}
    for off in range(-P, P + 1):
        if off == 0:
            shifted = hc
        elif off > 0:
            shifted = jnp.concatenate([hc[off:, :], jnp.zeros((off, D), F32)], axis=0)
        else:
            shifted = jnp.concatenate([jnp.zeros((-off, D), F32), hc[:off, :]], axis=0)
        valid = jnp.logical_and(t_idx + off >= 0, t_idx + off < T)
        taps[off] = jnp.where(valid, shifted, 0.0)

    acc_total = jnp.zeros((M, D), F32)
    for cw_r, cb_r in conv_params:
        kk = cw_r.shape[0]
        half = kk // 2
        cw = cw_r[...]                                               # (kk, 1, D), loaded once
        cb = cb_r[...]
        acc = jnp.zeros((M, D), F32)
        for j in range(kk):
            acc = acc + taps[j - half] * cw[j]
        acc_total = acc_total + jnp.maximum(acc + cb, 0.0)
    car = acc_total * (1.0 / len(conv_params))
    x = x + mm(car, car_wo) + car_bo[...]

    # ---- macaron FFN2: x = x + 0.5 * ffn2(LN(x)) ------------------------------
    x = x + 0.5 * ffn(ln(x, ln4_g, ln4_b), f2_w1, f2_b1, f2_w2, f2_b2)

    o_ref[...] = x.astype(o_ref.dtype)


def conformer_layer(x, kparams, *, b_blk=None):
    B, T, C = x.shape
    bias = kparams[0]
    assert bias.shape[1] == T and bias.shape[2] == T

    if b_blk is None:
        # Keep >= 2 grid steps whenever B >= 2 so the "parallel" batch axis can be
        # sharded over both v7x TensorCores; cap the block size for VMEM.
        limit = max(1, B // 2)
        b_blk = max(c for c in (1, 2, 4, 8) if c <= limit and B % c == 0)
    assert B % b_blk == 0
    Mb = b_blk * T

    # Generation-aware VMEM limit: ~48 MiB on v7x (64 MiB physical), ~96 MiB on v5e/v6e.
    try:
        vmem_cap = pltpu.get_tpu_info().vmem_capacity_bytes
    except Exception:
        vmem_cap = 128 * 1024 * 1024
    vmem_limit = min((vmem_cap * 3) // 4, 112 * 1024 * 1024)

    xr = x.reshape(B * T, C)   # fuse batch into the matmul M dimension (free in HBM)

    def build(single_buffer_params):
        in_specs = [pl.BlockSpec((Mb, C), lambda b: (b, 0))]
        for p in kparams:
            kwargs = (dict(pipeline_mode=pl.Buffered(1))
                      if single_buffer_params else {})
            in_specs.append(
                pl.BlockSpec(p.shape, lambda b, _n=p.ndim: (0,) * _n, **kwargs))
        return pl.pallas_call(
            _conformer_kernel,
            out_shape=jax.ShapeDtypeStruct((B * T, C), x.dtype),
            grid=(B // b_blk,),
            in_specs=in_specs,
            out_specs=pl.BlockSpec((Mb, C), lambda b: (b, 0)),
            compiler_params=pltpu.CompilerParams(
                dimension_semantics=("parallel",),
                vmem_limit_bytes=int(vmem_limit),
            ),
        )

    try:
        out = build(True)(xr, *kparams)        # grid-invariant params single-buffered
    except Exception:
        # TODO(synk): pipeline_mode=pl.Buffered(1) not supported on this jax version;
        # fall back to default double-buffered parameter blocks.
        out = build(False)(xr, *kparams)
    return out.reshape(B, T, C)


# ----------------------------------------------------------------------------
# Parameter construction (module-style), kernel packing, and pure-JAX reference
# ----------------------------------------------------------------------------
def make_params(key, C, Fdim, H, dh, D, kernel_sizes, max_rel):
    keys = iter(jax.random.split(key, 64))

    def w(shape, scale=0.05):
        return jax.random.normal(next(keys), shape, F32) * scale

    ones = lambda s: jnp.ones(s, F32)
    zeros = lambda s: jnp.zeros(s, F32)

    p = {}
    for name in ("ffn1", "attn", "car", "ffn2"):
        p[f"ln_{name}_g"] = ones((1, C))
        p[f"ln_{name}_b"] = zeros((1, C))
    p["f1_w1"] = w((C, Fdim)); p["f1_b1"] = w((1, Fdim), 0.02)
    p["f1_w2"] = w((Fdim, C)); p["f1_b2"] = w((1, C), 0.02)
    p["wq"] = w((H, C, dh)); p["bq"] = w((H, 1, dh), 0.02)
    p["wk"] = w((H, C, dh)); p["bk"] = w((H, 1, dh), 0.02)
    p["wv"] = w((H, C, dh)); p["bv"] = w((H, 1, dh), 0.02)
    p["wo"] = w((H, dh, C)); p["bo"] = w((1, C), 0.02)
    p["rel_table"] = w((2 * max_rel + 1, H), 0.02)
    p["car_wi"] = w((C, D)); p["car_bi"] = w((1, D), 0.02)
    p["conv"] = [(w((k, 1, D)), w((1, D), 0.02)) for k in kernel_sizes]
    p["car_wo"] = w((D, C)); p["car_bo"] = w((1, C), 0.02)
    p["f2_w1"] = w((C, Fdim)); p["f2_b1"] = w((1, Fdim), 0.02)
    p["f2_w2"] = w((Fdim, C)); p["f2_b2"] = w((1, C), 0.02)
    return p


def prepare_kernel_params(p, T):
    """Pack QKV weights, fold 1/sqrt(dh) into Wq/bq, cast MXU weights to bf16,
    and precompute the per-head (H, T, T) bf16 relative positional bias."""
    wq, wk, wv, wo = p["wq"], p["wk"], p["wv"], p["wo"]
    H, C, dh = wq.shape
    E = H * dh
    scaling = 1.0 / math.sqrt(dh)

    def pack_w(wx):   # (H, C, dh) -> (C, H*dh), head-major along lanes
        return jnp.transpose(wx, (1, 0, 2)).reshape(C, E)

    def pack_b(bx):   # (H, 1, dh) -> (1, H*dh)
        return bx.reshape(1, E)

    w_qkv = jnp.concatenate(
        [pack_w(wq) * scaling, pack_w(wk), pack_w(wv)], axis=1).astype(BF16)
    b_qkv = jnp.concatenate(
        [pack_b(p["bq"]) * scaling, pack_b(p["bk"]), pack_b(p["bv"])], axis=1)
    w_out = wo.reshape(E, C).astype(BF16)

    table = p["rel_table"]                               # (2R+1, H)
    R = (table.shape[0] - 1) // 2
    rel = jnp.clip(jnp.arange(T)[None, :] - jnp.arange(T)[:, None], -R, R) + R
    rel_bias = jnp.transpose(table[rel], (2, 0, 1)).astype(BF16)   # (H, T, T)

    (cw0, cb0), (cw1, cb1), (cw2, cb2) = p["conv"]
    return (
        rel_bias,
        p["ln_ffn1_g"], p["ln_ffn1_b"], p["ln_attn_g"], p["ln_attn_b"],
        p["ln_car_g"], p["ln_car_b"], p["ln_ffn2_g"], p["ln_ffn2_b"],
        p["f1_w1"].astype(BF16), p["f1_b1"], p["f1_w2"].astype(BF16), p["f1_b2"],
        w_qkv, b_qkv, w_out, p["bo"],
        p["car_wi"].astype(BF16), p["car_bi"],
        cw0, cb0, cw1, cb1, cw2, cb2,
        p["car_wo"].astype(BF16), p["car_bo"],
        p["f2_w1"].astype(BF16), p["f2_b1"], p["f2_w2"].astype(BF16), p["f2_b2"],
    )


def reference_forward(x, p):
    """Pure-JAX f32 reference of the same forward pass (module semantics)."""
    def ln(v, g, b):
        mu = jnp.mean(v, axis=-1, keepdims=True)
        var = jnp.mean((v - mu) ** 2, axis=-1, keepdims=True)
        return (v - mu) * jax.lax.rsqrt(var + LN_EPS) * g + b

    def ffn(v, w1, b1, w2, b2):
        return jnp.maximum(v @ w1 + b1, 0.0) @ w2 + b2

    wq, wk, wv, wo = p["wq"], p["wk"], p["wv"], p["wo"]
    H, C, dh = wq.shape
    scaling = 1.0 / math.sqrt(dh)
    T = x.shape[1]

    table = p["rel_table"]
    R = (table.shape[0] - 1) // 2
    rel = jnp.clip(jnp.arange(T)[None, :] - jnp.arange(T)[:, None], -R, R) + R
    relb = jnp.transpose(table[rel], (2, 0, 1))       # (H, T, T)

    max_half = max(cw.shape[0] for cw, _ in p["conv"]) // 2
    n_conv = len(p["conv"])

    def single(xi):
        xx = xi
        xx = xx + 0.5 * ffn(ln(xx, p["ln_ffn1_g"], p["ln_ffn1_b"]),
                            p["f1_w1"], p["f1_b1"], p["f1_w2"], p["f1_b2"])
        xn = ln(xx, p["ln_attn_g"], p["ln_attn_b"])
        attn = jnp.zeros_like(xx)
        for h in range(H):
            qh = (xn @ wq[h] + p["bq"][h]) * scaling
            kh = xn @ wk[h] + p["bk"][h]
            vh = xn @ wv[h] + p["bv"][h]
            s = qh @ kh.T + relb[h]
            pm = jax.nn.softmax(s, axis=-1)
            attn = attn + (pm @ vh) @ wo[h]
        xx = xx + attn + p["bo"]

        xn = ln(xx, p["ln_car_g"], p["ln_car_b"])
        hc = jnp.maximum(xn @ p["car_wi"] + p["car_bi"], 0.0)
        hpad = jnp.pad(hc, ((max_half, max_half), (0, 0)))
        acc_total = jnp.zeros_like(hc)
        for cw, cb in p["conv"]:
            k = cw.shape[0]
            half = k // 2
            acc = jnp.zeros_like(hc)
            for j in range(k):
                off = j - half
                acc = acc + hpad[max_half + off:max_half + off + T] * cw[j]
            acc_total = acc_total + jnp.maximum(acc + cb, 0.0)
        xx = xx + (acc_total / n_conv) @ p["car_wo"] + p["car_bo"]

        xx = xx + 0.5 * ffn(ln(xx, p["ln_ffn2_g"], p["ln_ffn2_b"]),
                            p["f2_w1"], p["f2_b1"], p["f2_w2"], p["f2_b2"])
        return xx

    return jax.vmap(single)(x)


if __name__ == "__main__":
    B, T, C = 2, 8, 32            # batch, seq, embed_dim
    Fdim, H, D = 64, 4, 16        # ffn_embed_dim, attention_heads, car_compress_dim
    dh = C // H
    kernel_sizes = [3, 5, 7]
    max_rel = 8

    key = jax.random.PRNGKey(0)
    kx, kp = jax.random.split(key)
    x = jax.random.normal(kx, (B, T, C), F32)

    params = make_params(kp, C, Fdim, H, dh, D, kernel_sizes, max_rel)
    kparams = prepare_kernel_params(params, T)

    out = jax.block_until_ready(conformer_layer(x, kparams))
    ref = jax.block_until_ready(reference_forward(x, params))
    assert out.shape == (B, T, C)
    err = float(jnp.max(jnp.abs(out - ref)))
    if not jnp.allclose(out, ref, atol=3e-2, rtol=3e-2):
        raise AssertionError(f"mismatch, max abs err = {err}")
    print("KERNEL_OK")
</pallas_src>

<mosaic_0001>
module attributes {stable_mosaic.version = 11 : i64} {
  func.func @_conformer_kernel(%arg0: i32, %arg1: memref<8x32xf32, #tpu.memory_space<vmem>>, %arg2: memref<4x8x8xbf16, #tpu.memory_space<vmem>>, %arg3: memref<1x32xf32, #tpu.memory_space<vmem>>, %arg4: memref<1x32xf32, #tpu.memory_space<vmem>>, %arg5: memref<1x32xf32, #tpu.memory_space<vmem>>, %arg6: memref<1x32xf32, #tpu.memory_space<vmem>>, %arg7: memref<1x32xf32, #tpu.memory_space<vmem>>, %arg8: memref<1x32xf32, #tpu.memory_space<vmem>>, %arg9: memref<1x32xf32, #tpu.memory_space<vmem>>, %arg10: memref<1x32xf32, #tpu.memory_space<vmem>>, %arg11: memref<32x64xbf16, #tpu.memory_space<vmem>>, %arg12: memref<1x64xf32, #tpu.memory_space<vmem>>, %arg13: memref<64x32xbf16, #tpu.memory_space<vmem>>, %arg14: memref<1x32xf32, #tpu.memory_space<vmem>>, %arg15: memref<32x96xbf16, #tpu.memory_space<vmem>>, %arg16: memref<1x96xf32, #tpu.memory_space<vmem>>, %arg17: memref<32x32xbf16, #tpu.memory_space<vmem>>, %arg18: memref<1x32xf32, #tpu.memory_space<vmem>>, %arg19: memref<32x16xbf16, #tpu.memory_space<vmem>>, %arg20: memref<1x16xf32, #tpu.memory_space<vmem>>, %arg21: memref<3x1x16xf32, #tpu.memory_space<vmem>>, %arg22: memref<1x16xf32, #tpu.memory_space<vmem>>, %arg23: memref<5x1x16xf32, #tpu.memory_space<vmem>>, %arg24: memref<1x16xf32, #tpu.memory_space<vmem>>, %arg25: memref<7x1x16xf32, #tpu.memory_space<vmem>>, %arg26: memref<1x16xf32, #tpu.memory_space<vmem>>, %arg27: memref<16x32xbf16, #tpu.memory_space<vmem>>, %arg28: memref<1x32xf32, #tpu.memory_space<vmem>>, %arg29: memref<32x64xbf16, #tpu.memory_space<vmem>>, %arg30: memref<1x64xf32, #tpu.memory_space<vmem>>, %arg31: memref<64x32xbf16, #tpu.memory_space<vmem>>, %arg32: memref<1x32xf32, #tpu.memory_space<vmem>>, %arg33: memref<8x32xf32, #tpu.memory_space<vmem>>) attributes {dimension_semantics = [#tpu.dimension_semantics<parallel>], iteration_bounds = array<i64: 2>, scalar_prefetch = 0 : i64, scratch_operands = 0 : i64, tpu.core_type = #tpu.core_type<tc>, window_params = [{transform_indices = @transform_0, window_bounds = array<i64: 8, 32>}, {pipeline_mode = #tpu.pipeline_mode<synchronous>, transform_indices = @transform_1, window_bounds = array<i64: 4, 8, 8>}, {pipeline_mode = #tpu.pipeline_mode<synchronous>, transform_indices = @transform_2, window_bounds = array<i64: 1, 32>}, {pipeline_mode = #tpu.pipeline_mode<synchronous>, transform_indices = @transform_3, window_bounds = array<i64: 1, 32>}, {pipeline_mode = #tpu.pipeline_mode<synchronous>, transform_indices = @transform_4, window_bounds = array<i64: 1, 32>}, {pipeline_mode = #tpu.pipeline_mode<synchronous>, transform_indices = @transform_5, window_bounds = array<i64: 1, 32>}, {pipeline_mode = #tpu.pipeline_mode<synchronous>, transform_indices = @transform_6, window_bounds = array<i64: 1, 32>}, {pipeline_mode = #tpu.pipeline_mode<synchronous>, transform_indices = @transform_7, window_bounds = array<i64: 1, 32>}, {pipeline_mode = #tpu.pipeline_mode<synchronous>, transform_indices = @transform_8, window_bounds = array<i64: 1, 32>}, {pipeline_mode = #tpu.pipeline_mode<synchronous>, transform_indices = @transform_9, window_bounds = array<i64: 1, 32>}, {pipeline_mode = #tpu.pipeline_mode<synchronous>, transform_indices = @transform_10, window_bounds = array<i64: 32, 64>}, {pipeline_mode = #tpu.pipeline_mode<synchronous>, transform_indices = @transform_11, window_bounds = array<i64: 1, 64>}, {pipeline_mode = #tpu.pipeline_mode<synchronous>, transform_indices = @transform_12, window_bounds = array<i64: 64, 32>}, {pipeline_mode = #tpu.pipeline_mode<synchronous>, transform_indices = @transform_13, window_bounds = array<i64: 1, 32>}, {pipeline_mode = #tpu.pipeline_mode<synchronous>, transform_indices = @transform_14, window_bounds = array<i64: 32, 96>}, {pipeline_mode = #tpu.pipeline_mode<synchronous>, transform_indices = @transform_15, window_bounds = array<i64: 1, 96>}, {pipeline_mode = #tpu.pipeline_mode<synchronous>, transform_indices = @transform_16, window_bounds = array<i64: 32, 32>}, {pipeline_mode = #tpu.pipeline_mode<synchronous>, transform_indices = @transform_17, window_bounds = array<i64: 1, 32>}, {pipeline_mode = #tpu.pipeline_mode<synchronous>, transform_indices = @transform_18, window_bounds = array<i64: 32, 16>}, {pipeline_mode = #tpu.pipeline_mode<synchronous>, transform_indices = @transform_19, window_bounds = array<i64: 1, 16>}, {pipeline_mode = #tpu.pipeline_mode<synchronous>, transform_indices = @transform_20, window_bounds = array<i64: 3, 1, 16>}, {pipeline_mode = #tpu.pipeline_mode<synchronous>, transform_indices = @transform_21, window_bounds = array<i64: 1, 16>}, {pipeline_mode = #tpu.pipeline_mode<synchronous>, transform_indices = @transform_22, window_bounds = array<i64: 5, 1, 16>}, {pipeline_mode = #tpu.pipeline_mode<synchronous>, transform_indices = @transform_23, window_bounds = array<i64: 1, 16>}, {pipeline_mode = #tpu.pipeline_mode<synchronous>, transform_indices = @transform_24, window_bounds = array<i64: 7, 1, 16>}, {pipeline_mode = #tpu.pipeline_mode<synchronous>, transform_indices = @transform_25, window_bounds = array<i64: 1, 16>}, {pipeline_mode = #tpu.pipeline_mode<synchronous>, transform_indices = @transform_26, window_bounds = array<i64: 16, 32>}, {pipeline_mode = #tpu.pipeline_mode<synchronous>, transform_indices = @transform_27, window_bounds = array<i64: 1, 32>}, {pipeline_mode = #tpu.pipeline_mode<synchronous>, transform_indices = @transform_28, window_bounds = array<i64: 32, 64>}, {pipeline_mode = #tpu.pipeline_mode<synchronous>, transform_indices = @transform_29, window_bounds = array<i64: 1, 64>}, {pipeline_mode = #tpu.pipeline_mode<synchronous>, transform_indices = @transform_30, window_bounds = array<i64: 64, 32>}, {pipeline_mode = #tpu.pipeline_mode<synchronous>, transform_indices = @transform_31, window_bounds = array<i64: 1, 32>}, {transform_indices = @transform_32, window_bounds = array<i64: 8, 32>}]} {
    %c0 = arith.constant 0 : index
    %c0_0 = arith.constant 0 : index
    %0 = vector.load %arg1[%c0, %c0_0] : memref<8x32xf32, #tpu.memory_space<vmem>>, vector<8x32xf32>
    %cst = arith.constant dense<0.000000e+00> : vector<8xf32>
    %1 = vector.multi_reduction <add>, %0, %cst [1] : vector<8x32xf32> to vector<8xf32>
    %2 = vector.shape_cast %1 : vector<8xf32> to vector<8x1xf32>
    %cst_1 = arith.constant 3.200000e+01 : f32
    %3 = vector.broadcast %cst_1 : f32 to vector<8x1xf32>
    %4 = arith.divf %2, %3 : vector<8x1xf32>
    %5 = vector.broadcast %4 : vector<8x1xf32> to vector<8x32xf32>
    %6 = arith.subf %0, %5 : vector<8x32xf32>
    %7 = arith.mulf %6, %6 : vector<8x32xf32>
    %cst_2 = arith.constant dense<0.000000e+00> : vector<8xf32>
    %8 = vector.multi_reduction <add>, %7, %cst_2 [1] : vector<8x32xf32> to vector<8xf32>
    %9 = vector.shape_cast %8 : vector<8xf32> to vector<8x1xf32>
    %cst_3 = arith.constant 3.200000e+01 : f32
    %10 = vector.broadcast %cst_3 : f32 to vector<8x1xf32>
    %11 = arith.divf %9, %10 : vector<8x1xf32>
    %12 = vector.broadcast %4 : vector<8x1xf32> to vector<8x32xf32>
    %13 = arith.subf %0, %12 : vector<8x32xf32>
    %cst_4 = arith.constant 9.99999974E-6 : f32
    %14 = vector.broadcast %cst_4 : f32 to vector<8x1xf32>
    %15 = arith.addf %11, %14 : vector<8x1xf32>
    %16 = math.rsqrt %15 : vector<8x1xf32>
    %17 = vector.broadcast %16 : vector<8x1xf32> to vector<8x32xf32>
    %18 = arith.mulf %13, %17 : vector<8x32xf32>
    %c0_5 = arith.constant 0 : index
    %c0_6 = arith.constant 0 : index
    %19 = vector.load %arg3[%c0_5, %c0_6] : memref<1x32xf32, #tpu.memory_space<vmem>>, vector<1x32xf32>
    %20 = vector.broadcast %19 : vector<1x32xf32> to vector<8x32xf32>
    %21 = arith.mulf %18, %20 : vector<8x32xf32>
    %c0_7 = arith.constant 0 : index
    %c0_8 = arith.constant 0 : index
    %22 = vector.load %arg4[%c0_7, %c0_8] : memref<1x32xf32, #tpu.memory_space<vmem>>, vector<1x32xf32>
    %23 = vector.broadcast %22 : vector<1x32xf32> to vector<8x32xf32>
    %24 = arith.addf %21, %23 : vector<8x32xf32>
    %c0_9 = arith.constant 0 : index
    %c0_10 = arith.constant 0 : index
    %25 = vector.load %arg11[%c0_9, %c0_10] : memref<32x64xbf16, #tpu.memory_space<vmem>>, vector<32x64xbf16>
    %26 = arith.truncf %24 : vector<8x32xf32> to vector<8x32xbf16>
    %cst_11 = arith.constant dense<0.000000e+00> : vector<8x64xf32>
    %27 = tpu.matmul %26, %25, %cst_11 {dimension_numbers = #tpu.dot_dimension_numbers<[1], [0], [0], [1], [0, 0, 1, 1], [], []>} : vector<8x32xbf16>, vector<32x64xbf16>, vector<8x64xf32> -> vector<8x64xf32>
    %c0_12 = arith.constant 0 : index
    %c0_13 = arith.constant 0 : index
    %28 = vector.load %arg12[%c0_12, %c0_13] : memref<1x64xf32, #tpu.memory_space<vmem>>, vector<1x64xf32>
    %29 = vector.broadcast %28 : vector<1x64xf32> to vector<8x64xf32>
    %30 = arith.addf %27, %29 : vector<8x64xf32>
    %cst_14 = arith.constant 0.000000e+00 : f32
    %31 = vector.broadcast %cst_14 : f32 to vector<8x64xf32>
    %32 = arith.maximumf %30, %31 : vector<8x64xf32>
    %c0_15 = arith.constant 0 : index
    %c0_16 = arith.constant 0 : index
    %33 = vector.load %arg13[%c0_15, %c0_16] : memref<64x32xbf16, #tpu.memory_space<vmem>>, vector<64x32xbf16>
    %34 = arith.truncf %32 : vector<8x64xf32> to vector<8x64xbf16>
    %cst_17 = arith.constant dense<0.000000e+00> : vector<8x32xf32>
    %35 = tpu.matmul %34, %33, %cst_17 {dimension_numbers = #tpu.dot_dimension_numbers<[1], [0], [0], [1], [0, 0, 1, 1], [], []>} : vector<8x64xbf16>, vector<64x32xbf16>, vector<8x32xf32> -> vector<8x32xf32>
    %c0_18 = arith.constant 0 : index
    %c0_19 = arith.constant 0 : index
    %36 = vector.load %arg14[%c0_18, %c0_19] : memref<1x32xf32, #tpu.memory_space<vmem>>, vector<1x32xf32>
    %37 = vector.broadcast %36 : vector<1x32xf32> to vector<8x32xf32>
    %38 = arith.addf %35, %37 : vector<8x32xf32>
    %cst_20 = arith.constant 5.000000e-01 : f32
    %39 = vector.broadcast %cst_20 : f32 to vector<8x32xf32>
    %40 = arith.mulf %39, %38 : vector<8x32xf32>
    %41 = arith.addf %0, %40 : vector<8x32xf32>
    %cst_21 = arith.constant dense<0.000000e+00> : vector<8xf32>
    %42 = vector.multi_reduction <add>, %41, %cst_21 [1] : vector<8x32xf32> to vector<8xf32>
    %43 = vector.shape_cast %42 : vector<8xf32> to vector<8x1xf32>
    %cst_22 = arith.constant 3.200000e+01 : f32
    %44 = vector.broadcast %cst_22 : f32 to vector<8x1xf32>
    %45 = arith.divf %43, %44 : vector<8x1xf32>
    %46 = vector.broadcast %45 : vector<8x1xf32> to vector<8x32xf32>
    %47 = arith.subf %41, %46 : vector<8x32xf32>
    %48 = arith.mulf %47, %47 : vector<8x32xf32>
    %cst_23 = arith.constant dense<0.000000e+00> : vector<8xf32>
    %49 = vector.multi_reduction <add>, %48, %cst_23 [1] : vector<8x32xf32> to vector<8xf32>
    %50 = vector.shape_cast %49 : vector<8xf32> to vector<8x1xf32>
    %cst_24 = arith.constant 3.200000e+01 : f32
    %51 = vector.broadcast %cst_24 : f32 to vector<8x1xf32>
    %52 = arith.divf %50, %51 : vector<8x1xf32>
    %53 = vector.broadcast %45 : vector<8x1xf32> to vector<8x32xf32>
    %54 = arith.subf %41, %53 : vector<8x32xf32>
    %cst_25 = arith.constant 9.99999974E-6 : f32
    %55 = vector.broadcast %cst_25 : f32 to vector<8x1xf32>
    %56 = arith.addf %52, %55 : vector<8x1xf32>
    %57 = math.rsqrt %56 : vector<8x1xf32>
    %58 = vector.broadcast %57 : vector<8x1xf32> to vector<8x32xf32>
    %59 = arith.mulf %54, %58 : vector<8x32xf32>
    %c0_26 = arith.constant 0 : index
    %c0_27 = arith.constant 0 : index
    %60 = vector.load %arg5[%c0_26, %c0_27] : memref<1x32xf32, #tpu.memory_space<vmem>>, vector<1x32xf32>
    %61 = vector.broadcast %60 : vector<1x32xf32> to vector<8x32xf32>
    %62 = arith.mulf %59, %61 : vector<8x32xf32>
    %c0_28 = arith.constant 0 : index
    %c0_29 = arith.constant 0 : index
    %63 = vector.load %arg6[%c0_28, %c0_29] : memref<1x32xf32, #tpu.memory_space<vmem>>, vector<1x32xf32>
    %64 = vector.broadcast %63 : vector<1x32xf32> to vector<8x32xf32>
    %65 = arith.addf %62, %64 : vector<8x32xf32>
    %c0_30 = arith.constant 0 : index
    %c0_31 = arith.constant 0 : index
    %66 = vector.load %arg15[%c0_30, %c0_31] : memref<32x96xbf16, #tpu.memory_space<vmem>>, vector<32x96xbf16>
    %67 = arith.truncf %65 : vector<8x32xf32> to vector<8x32xbf16>
    %cst_32 = arith.constant dense<0.000000e+00> : vector<8x96xf32>
    %68 = tpu.matmul %67, %66, %cst_32 {dimension_numbers = #tpu.dot_dimension_numbers<[1], [0], [0], [1], [0, 0, 1, 1], [], []>} : vector<8x32xbf16>, vector<32x96xbf16>, vector<8x96xf32> -> vector<8x96xf32>
    %c0_33 = arith.constant 0 : index
    %c0_34 = arith.constant 0 : index
    %69 = vector.load %arg16[%c0_33, %c0_34] : memref<1x96xf32, #tpu.memory_space<vmem>>, vector<1x96xf32>
    %70 = vector.broadcast %69 : vector<1x96xf32> to vector<8x96xf32>
    %71 = arith.addf %68, %70 : vector<8x96xf32>
    %72 = vector.extract_strided_slice %71 {offsets = [0, 0], sizes = [8, 32], strides = [1, 1]} : vector<8x96xf32> to vector<8x32xf32>
    %73 = arith.truncf %72 : vector<8x32xf32> to vector<8x32xbf16>
    %74 = vector.extract_strided_slice %71 {offsets = [0, 32], sizes = [8, 32], strides = [1, 1]} : vector<8x96xf32> to vector<8x32xf32>
    %75 = arith.truncf %74 : vector<8x32xf32> to vector<8x32xbf16>
    %76 = vector.extract_strided_slice %71 {offsets = [0, 64], sizes = [8, 32], strides = [1, 1]} : vector<8x96xf32> to vector<8x32xf32>
    %77 = arith.truncf %76 : vector<8x32xf32> to vector<8x32xbf16>
    %c0_35 = arith.constant 0 : index
    %c0_36 = arith.constant 0 : index
    %c0_37 = arith.constant 0 : index
    %78 = vector.load %arg2[%c0_35, %c0_36, %c0_37] : memref<4x8x8xbf16, #tpu.memory_space<vmem>>, vector<4x8x8xbf16>
    %79 = vector.extract_strided_slice %73 {offsets = [0, 0], sizes = [8, 8], strides = [1, 1]} : vector<8x32xbf16> to vector<8x8xbf16>
    %80 = vector.extract_strided_slice %75 {offsets = [0, 0], sizes = [8, 8], strides = [1, 1]} : vector<8x32xbf16> to vector<8x8xbf16>
    %81 = vector.extract_strided_slice %77 {offsets = [0, 0], sizes = [8, 8], strides = [1, 1]} : vector<8x32xbf16> to vector<8x8xbf16>
    %cst_38 = arith.constant dense<0.000000e+00> : vector<8x8xf32>
    %82 = tpu.matmul %79, %80, %cst_38 {dimension_numbers = #tpu.dot_dimension_numbers<[1], [1], [0], [0], [0, 0, 1, 0], [], []>} : vector<8x8xbf16>, vector<8x8xbf16>, vector<8x8xf32> -> vector<8x8xf32>
    %83 = vector.extract_strided_slice %78 {offsets = [0, 0, 0], sizes = [1, 8, 8], strides = [1, 1, 1]} : vector<4x8x8xbf16> to vector<1x8x8xbf16>
    %84 = vector.shape_cast %83 : vector<1x8x8xbf16> to vector<8x8xbf16>
    %85 = arith.extf %84 : vector<8x8xbf16> to vector<8x8xf32>
    %86 = arith.addf %82, %85 : vector<8x8xf32>
    %cst_39 = arith.constant dense<0xFF800000> : vector<8xf32>
    %87 = vector.multi_reduction <maximumf>, %86, %cst_39 [1] : vector<8x8xf32> to vector<8xf32>
    %88 = vector.shape_cast %87 : vector<8xf32> to vector<8x1xf32>
    %89 = vector.broadcast %88 : vector<8x1xf32> to vector<8x8xf32>
    %90 = arith.subf %86, %89 : vector<8x8xf32>
    %91 = math.exp %90 : vector<8x8xf32>
    %cst_40 = arith.constant dense<0.000000e+00> : vector<8xf32>
    %92 = vector.multi_reduction <add>, %91, %cst_40 [1] : vector<8x8xf32> to vector<8xf32>
    %93 = vector.shape_cast %92 : vector<8xf32> to vector<8x1xf32>
    %94 = arith.truncf %91 : vector<8x8xf32> to vector<8x8xbf16>
    %cst_41 = arith.constant dense<0.000000e+00> : vector<8x8xf32>
    %95 = tpu.matmul %94, %81, %cst_41 {dimension_numbers = #tpu.dot_dimension_numbers<[1], [0], [0], [1], [0, 0, 1, 1], [], []>} : vector<8x8xbf16>, vector<8x8xbf16>, vector<8x8xf32> -> vector<8x8xf32>
    %96 = tpu.reciprocal %93 {approx = true} : vector<8x1xf32> -> vector<8x1xf32>
    %97 = vector.broadcast %96 : vector<8x1xf32> to vector<8x8xf32>
    %98 = arith.mulf %95, %97 : vector<8x8xf32>
    %99 = arith.truncf %98 : vector<8x8xf32> to vector<8x8xbf16>
    %100 = vector.extract_strided_slice %73 {offsets = [0, 8], sizes = [8, 8], strides = [1, 1]} : vector<8x32xbf16> to vector<8x8xbf16>
    %101 = vector.extract_strided_slice %75 {offsets = [0, 8], sizes = [8, 8], strides = [1, 1]} : vector<8x32xbf16> to vector<8x8xbf16>
    %102 = vector.extract_strided_slice %77 {offsets = [0, 8], sizes = [8, 8], strides = [1, 1]} : vector<8x32xbf16> to vector<8x8xbf16>
    %cst_42 = arith.constant dense<0.000000e+00> : vector<8x8xf32>
    %103 = tpu.matmul %100, %101, %cst_42 {dimension_numbers = #tpu.dot_dimension_numbers<[1], [1], [0], [0], [0, 0, 1, 0], [], []>} : vector<8x8xbf16>, vector<8x8xbf16>, vector<8x8xf32> -> vector<8x8xf32>
    %104 = vector.extract_strided_slice %78 {offsets = [1, 0, 0], sizes = [1, 8, 8], strides = [1, 1, 1]} : vector<4x8x8xbf16> to vector<1x8x8xbf16>
    %105 = vector.shape_cast %104 : vector<1x8x8xbf16> to vector<8x8xbf16>
    %106 = arith.extf %105 : vector<8x8xbf16> to vector<8x8xf32>
    %107 = arith.addf %103, %106 : vector<8x8xf32>
    %cst_43 = arith.constant dense<0xFF800000> : vector<8xf32>
    %108 = vector.multi_reduction <maximumf>, %107, %cst_43 [1] : vector<8x8xf32> to vector<8xf32>
    %109 = vector.shape_cast %108 : vector<8xf32> to vector<8x1xf32>
    %110 = vector.broadcast %109 : vector<8x1xf32> to vector<8x8xf32>
    %111 = arith.subf %107, %110 : vector<8x8xf32>
    %112 = math.exp %111 : vector<8x8xf32>
    %cst_44 = arith.constant dense<0.000000e+00> : vector<8xf32>
    %113 = vector.multi_reduction <add>, %112, %cst_44 [1] : vector<8x8xf32> to vector<8xf32>
    %114 = vector.shape_cast %113 : vector<8xf32> to vector<8x1xf32>
    %115 = arith.truncf %112 : vector<8x8xf32> to vector<8x8xbf16>
    %cst_45 = arith.constant dense<0.000000e+00> : vector<8x8xf32>
    %116 = tpu.matmul %115, %102, %cst_45 {dimension_numbers = #tpu.dot_dimension_numbers<[1], [0], [0], [1], [0, 0, 1, 1], [], []>} : vector<8x8xbf16>, vector<8x8xbf16>, vector<8x8xf32> -> vector<8x8xf32>
    %117 = tpu.reciprocal %114 {approx = true} : vector<8x1xf32> -> vector<8x1xf32>
    %118 = vector.broadcast %117 : vector<8x1xf32> to vector<8x8xf32>
    %119 = arith.mulf %116, %118 : vector<8x8xf32>
    %120 = arith.truncf %119 : vector<8x8xf32> to vector<8x8xbf16>
    %121 = vector.extract_strided_slice %73 {offsets = [0, 16], sizes = [8, 8], strides = [1, 1]} : vector<8x32xbf16> to vector<8x8xbf16>
    %122 = vector.extract_strided_slice %75 {offsets = [0, 16], sizes = [8, 8], strides = [1, 1]} : vector<8x32xbf16> to vector<8x8xbf16>
    %123 = vector.extract_strided_slice %77 {offsets = [0, 16], sizes = [8, 8], strides = [1, 1]} : vector<8x32xbf16> to vector<8x8xbf16>
    %cst_46 = arith.constant dense<0.000000e+00> : vector<8x8xf32>
    %124 = tpu.matmul %121, %122, %cst_46 {dimension_numbers = #tpu.dot_dimension_numbers<[1], [1], [0], [0], [0, 0, 1, 0], [], []>} : vector<8x8xbf16>, vector<8x8xbf16>, vector<8x8xf32> -> vector<8x8xf32>
    %125 = vector.extract_strided_slice %78 {offsets = [2, 0, 0], sizes = [1, 8, 8], strides = [1, 1, 1]} : vector<4x8x8xbf16> to vector<1x8x8xbf16>
    %126 = vector.shape_cast %125 : vector<1x8x8xbf16> to vector<8x8xbf16>
    %127 = arith.extf %126 : vector<8x8xbf16> to vector<8x8xf32>
    %128 = arith.addf %124, %127 : vector<8x8xf32>
    %cst_47 = arith.constant dense<0xFF800000> : vector<8xf32>
    %129 = vector.multi_reduction <maximumf>, %128, %cst_47 [1] : vector<8x8xf32> to vector<8xf32>
    %130 = vector.shape_cast %129 : vector<8xf32> to vector<8x1xf32>
    %131 = vector.broadcast %130 : vector<8x1xf32> to vector<8x8xf32>
    %132 = arith.subf %128, %131 : vector<8x8xf32>
    %133 = math.exp %132 : vector<8x8xf32>
    %cst_48 = arith.constant dense<0.000000e+00> : vector<8xf32>
    %134 = vector.multi_reduction <add>, %133, %cst_48 [1] : vector<8x8xf32> to vector<8xf32>
    %135 = vector.shape_cast %134 : vector<8xf32> to vector<8x1xf32>
    %136 = arith.truncf %133 : vector<8x8xf32> to vector<8x8xbf16>
    %cst_49 = arith.constant dense<0.000000e+00> : vector<8x8xf32>
    %137 = tpu.matmul %136, %123, %cst_49 {dimension_numbers = #tpu.dot_dimension_numbers<[1], [0], [0], [1], [0, 0, 1, 1], [], []>} : vector<8x8xbf16>, vector<8x8xbf16>, vector<8x8xf32> -> vector<8x8xf32>
    %138 = tpu.reciprocal %135 {approx = true} : vector<8x1xf32> -> vector<8x1xf32>
    %139 = vector.broadcast %138 : vector<8x1xf32> to vector<8x8xf32>
    %140 = arith.mulf %137, %139 : vector<8x8xf32>
    %141 = arith.truncf %140 : vector<8x8xf32> to vector<8x8xbf16>
    %142 = vector.extract_strided_slice %73 {offsets = [0, 24], sizes = [8, 8], strides = [1, 1]} : vector<8x32xbf16> to vector<8x8xbf16>
    %143 = vector.extract_strided_slice %75 {offsets = [0, 24], sizes = [8, 8], strides = [1, 1]} : vector<8x32xbf16> to vector<8x8xbf16>
    %144 = vector.extract_strided_slice %77 {offsets = [0, 24], sizes = [8, 8], strides = [1, 1]} : vector<8x32xbf16> to vector<8x8xbf16>
    %cst_50 = arith.constant dense<0.000000e+00> : vector<8x8xf32>
    %145 = tpu.matmul %142, %143, %cst_50 {dimension_numbers = #tpu.dot_dimension_numbers<[1], [1], [0], [0], [0, 0, 1, 0], [], []>} : vector<8x8xbf16>, vector<8x8xbf16>, vector<8x8xf32> -> vector<8x8xf32>
    %146 = vector.extract_strided_slice %78 {offsets = [3, 0, 0], sizes = [1, 8, 8], strides = [1, 1, 1]} : vector<4x8x8xbf16> to vector<1x8x8xbf16>
    %147 = vector.shape_cast %146 : vector<1x8x8xbf16> to vector<8x8xbf16>
    %148 = arith.extf %147 : vector<8x8xbf16> to vector<8x8xf32>
    %149 = arith.addf %145, %148 : vector<8x8xf32>
    %cst_51 = arith.constant dense<0xFF800000> : vector<8xf32>
    %150 = vector.multi_reduction <maximumf>, %149, %cst_51 [1] : vector<8x8xf32> to vector<8xf32>
    %151 = vector.shape_cast %150 : vector<8xf32> to vector<8x1xf32>
    %152 = vector.broadcast %151 : vector<8x1xf32> to vector<8x8xf32>
    %153 = arith.subf %149, %152 : vector<8x8xf32>
    %154 = math.exp %153 : vector<8x8xf32>
    %cst_52 = arith.constant dense<0.000000e+00> : vector<8xf32>
    %155 = vector.multi_reduction <add>, %154, %cst_52 [1] : vector<8x8xf32> to vector<8xf32>
    %156 = vector.shape_cast %155 : vector<8xf32> to vector<8x1xf32>
    %157 = arith.truncf %154 : vector<8x8xf32> to vector<8x8xbf16>
    %cst_53 = arith.constant dense<0.000000e+00> : vector<8x8xf32>
    %158 = tpu.matmul %157, %144, %cst_53 {dimension_numbers = #tpu.dot_dimension_numbers<[1], [0], [0], [1], [0, 0, 1, 1], [], []>} : vector<8x8xbf16>, vector<8x8xbf16>, vector<8x8xf32> -> vector<8x8xf32>
    %159 = tpu.reciprocal %156 {approx = true} : vector<8x1xf32> -> vector<8x1xf32>
    %160 = vector.broadcast %159 : vector<8x1xf32> to vector<8x8xf32>
    %161 = arith.mulf %158, %160 : vector<8x8xf32>
    %162 = arith.truncf %161 : vector<8x8xf32> to vector<8x8xbf16>
    %163 = tpu.concatenate %99, %120, %141, %162 in 1 : vector<8x8xbf16>, vector<8x8xbf16>, vector<8x8xbf16>, vector<8x8xbf16> -> vector<8x32xbf16>
    %c0_54 = arith.constant 0 : index
    %c0_55 = arith.constant 0 : index
    %164 = vector.load %arg17[%c0_54, %c0_55] : memref<32x32xbf16, #tpu.memory_space<vmem>>, vector<32x32xbf16>
    %cst_56 = arith.constant dense<0.000000e+00> : vector<8x32xf32>
    %165 = tpu.matmul %163, %164, %cst_56 {dimension_numbers = #tpu.dot_dimension_numbers<[1], [0], [0], [1], [0, 0, 1, 1], [], []>} : vector<8x32xbf16>, vector<32x32xbf16>, vector<8x32xf32> -> vector<8x32xf32>
    %166 = arith.addf %41, %165 : vector<8x32xf32>
    %c0_57 = arith.constant 0 : index
    %c0_58 = arith.constant 0 : index
    %167 = vector.load %arg18[%c0_57, %c0_58] : memref<1x32xf32, #tpu.memory_space<vmem>>, vector<1x32xf32>
    %168 = vector.broadcast %167 : vector<1x32xf32> to vector<8x32xf32>
    %169 = arith.addf %166, %168 : vector<8x32xf32>
    %cst_59 = arith.constant dense<0.000000e+00> : vector<8xf32>
    %170 = vector.multi_reduction <add>, %169, %cst_59 [1] : vector<8x32xf32> to vector<8xf32>
    %171 = vector.shape_cast %170 : vector<8xf32> to vector<8x1xf32>
    %cst_60 = arith.constant 3.200000e+01 : f32
    %172 = vector.broadcast %cst_60 : f32 to vector<8x1xf32>
    %173 = arith.divf %171, %172 : vector<8x1xf32>
    %174 = vector.broadcast %173 : vector<8x1xf32> to vector<8x32xf32>
    %175 = arith.subf %169, %174 : vector<8x32xf32>
    %176 = arith.mulf %175, %175 : vector<8x32xf32>
    %cst_61 = arith.constant dense<0.000000e+00> : vector<8xf32>
    %177 = vector.multi_reduction <add>, %176, %cst_61 [1] : vector<8x32xf32> to vector<8xf32>
    %178 = vector.shape_cast %177 : vector<8xf32> to vector<8x1xf32>
    %cst_62 = arith.constant 3.200000e+01 : f32
    %179 = vector.broadcast %cst_62 : f32 to vector<8x1xf32>
    %180 = arith.divf %178, %179 : vector<8x1xf32>
    %181 = vector.broadcast %173 : vector<8x1xf32> to vector<8x32xf32>
    %182 = arith.subf %169, %181 : vector<8x32xf32>
    %cst_63 = arith.constant 9.99999974E-6 : f32
    %183 = vector.broadcast %cst_63 : f32 to vector<8x1xf32>
    %184 = arith.addf %180, %183 : vector<8x1xf32>
    %185 = math.rsqrt %184 : vector<8x1xf32>
    %186 = vector.broadcast %185 : vector<8x1xf32> to vector<8x32xf32>
    %187 = arith.mulf %182, %186 : vector<8x32xf32>
    %c0_64 = arith.constant 0 : index
    %c0_65 = arith.constant 0 : index
    %188 = vector.load %arg7[%c0_64, %c0_65] : memref<1x32xf32, #tpu.memory_space<vmem>>, vector<1x32xf32>
    %189 = vector.broadcast %188 : vector<1x32xf32> to vector<8x32xf32>
    %190 = arith.mulf %187, %189 : vector<8x32xf32>
    %c0_66 = arith.constant 0 : index
    %c0_67 = arith.constant 0 : index
    %191 = vector.load %arg8[%c0_66, %c0_67] : memref<1x32xf32, #tpu.memory_space<vmem>>, vector<1x32xf32>
    %192 = vector.broadcast %191 : vector<1x32xf32> to vector<8x32xf32>
    %193 = arith.addf %190, %192 : vector<8x32xf32>
    %c0_68 = arith.constant 0 : index
    %c0_69 = arith.constant 0 : index
    %194 = vector.load %arg19[%c0_68, %c0_69] : memref<32x16xbf16, #tpu.memory_space<vmem>>, vector<32x16xbf16>
    %195 = arith.truncf %193 : vector<8x32xf32> to vector<8x32xbf16>
    %cst_70 = arith.constant dense<0.000000e+00> : vector<8x16xf32>
    %196 = tpu.matmul %195, %194, %cst_70 {dimension_numbers = #tpu.dot_dimension_numbers<[1], [0], [0], [1], [0, 0, 1, 1], [], []>} : vector<8x32xbf16>, vector<32x16xbf16>, vector<8x16xf32> -> vector<8x16xf32>
    %c0_71 = arith.constant 0 : index
    %c0_72 = arith.constant 0 : index
    %197 = vector.load %arg20[%c0_71, %c0_72] : memref<1x16xf32, #tpu.memory_space<vmem>>, vector<1x16xf32>
    %198 = vector.broadcast %197 : vector<1x16xf32> to vector<8x16xf32>
    %199 = arith.addf %196, %198 : vector<8x16xf32>
    %cst_73 = arith.constant 0.000000e+00 : f32
    %200 = vector.broadcast %cst_73 : f32 to vector<8x16xf32>
    %201 = arith.maximumf %199, %200 : vector<8x16xf32>
    %202 = tpu.iota {dimensions = array<i32: 0>} : vector<8x1xi32>
    %c8_i32 = arith.constant 8 : i32
    %c0_i32 = arith.constant 0 : i32
    %203 = arith.cmpi eq, %c8_i32, %c0_i32 : i32
    %c1_i32 = arith.constant 1 : i32
    %204 = arith.select %203, %c1_i32, %c8_i32 : i32
    %205 = vector.broadcast %204 : i32 to vector<8x1xi32>
    %206 = arith.remsi %202, %205 : vector<8x1xi32>
    %c0_i32_74 = arith.constant 0 : i32
    %207 = vector.broadcast %c0_i32_74 : i32 to vector<8x1xi32>
    %208 = arith.cmpi ne, %206, %207 : vector<8x1xi32>
    %c0_i32_75 = arith.constant 0 : i32
    %209 = vector.broadcast %c0_i32_75 : i32 to vector<8x1xi32>
    %210 = arith.cmpi slt, %206, %209 : vector<8x1xi32>
    %c0_i32_76 = arith.constant 0 : i32
    %211 = arith.cmpi slt, %204, %c0_i32_76 : i32
    %212 = vector.broadcast %211 : i1 to vector<8x1xi1>
    %213 = vector.broadcast %212 : vector<8x1xi1> to vector<8x1xi1>
    %214 = arith.xori %210, %213 : vector<8x1xi1>
    %215 = arith.andi %214, %208 : vector<8x1xi1>
    %216 = vector.broadcast %204 : i32 to vector<8x1xi32>
    %217 = arith.addi %206, %216 : vector<8x1xi32>
    %218 = arith.select %215, %217, %206 : vector<8x1xi1>, vector<8x1xi32>
    %cst_77 = arith.constant 0.000000e+00 : f32
    %219 = vector.broadcast %cst_77 : f32 to vector<3x16xf32>
    %220 = vector.extract_strided_slice %201 {offsets = [0, 0], sizes = [5, 16], strides = [1, 1]} : vector<8x16xf32> to vector<5x16xf32>
    %221 = tpu.concatenate %219, %220 in 0 : vector<3x16xf32>, vector<5x16xf32> -> vector<8x16xf32>
    %c-3_i32 = arith.constant -3 : i32
    %222 = vector.broadcast %c-3_i32 : i32 to vector<8x1xi32>
    %223 = arith.addi %218, %222 : vector<8x1xi32>
    %c0_i32_78 = arith.constant 0 : i32
    %224 = vector.broadcast %c0_i32_78 : i32 to vector<8x1xi32>
    %225 = arith.cmpi sge, %223, %224 : vector<8x1xi32>
    %c-3_i32_79 = arith.constant -3 : i32
    %226 = vector.broadcast %c-3_i32_79 : i32 to vector<8x1xi32>
    %227 = arith.addi %218, %226 : vector<8x1xi32>
    %c8_i32_80 = arith.constant 8 : i32
    %228 = vector.broadcast %c8_i32_80 : i32 to vector<8x1xi32>
    %229 = arith.cmpi slt, %227, %228 : vector<8x1xi32>
    %230 = arith.andi %225, %229 : vector<8x1xi1>
    %cst_81 = arith.constant 0.000000e+00 : f32
    %231 = vector.shape_cast %230 : vector<8x1xi1> to vector<8x1xi1>
    %232 = vector.broadcast %231 : vector<8x1xi1> to vector<8x16xi1>
    %233 = vector.broadcast %cst_81 : f32 to vector<8x16xf32>
    %234 = arith.select %232, %221, %233 : vector<8x16xi1>, vector<8x16xf32>
    %cst_82 = arith.constant 0.000000e+00 : f32
    %235 = vector.broadcast %cst_82 : f32 to vector<2x16xf32>
    %236 = vector.extract_strided_slice %201 {offsets = [0, 0], sizes = [6, 16], strides = [1, 1]} : vector<8x16xf32> to vector<6x16xf32>
    %237 = tpu.concatenate %235, %236 in 0 : vector<2x16xf32>, vector<6x16xf32> -> vector<8x16xf32>
    %c-2_i32 = arith.constant -2 : i32
    %238 = vector.broadcast %c-2_i32 : i32 to vector<8x1xi32>
    %239 = arith.addi %218, %238 : vector<8x1xi32>
    %c0_i32_83 = arith.constant 0 : i32
    %240 = vector.broadcast %c0_i32_83 : i32 to vector<8x1xi32>
    %241 = arith.cmpi sge, %239, %240 : vector<8x1xi32>
    %c-2_i32_84 = arith.constant -2 : i32
    %242 = vector.broadcast %c-2_i32_84 : i32 to vector<8x1xi32>
    %243 = arith.addi %218, %242 : vector<8x1xi32>
    %c8_i32_85 = arith.constant 8 : i32
    %244 = vector.broadcast %c8_i32_85 : i32 to vector<8x1xi32>
    %245 = arith.cmpi slt, %243, %244 : vector<8x1xi32>
    %246 = arith.andi %241, %245 : vector<8x1xi1>
    %cst_86 = arith.constant 0.000000e+00 : f32
    %247 = vector.shape_cast %246 : vector<8x1xi1> to vector<8x1xi1>
    %248 = vector.broadcast %247 : vector<8x1xi1> to vector<8x16xi1>
    %249 = vector.broadcast %cst_86 : f32 to vector<8x16xf32>
    %250 = arith.select %248, %237, %249 : vector<8x16xi1>, vector<8x16xf32>
    %cst_87 = arith.constant 0.000000e+00 : f32
    %251 = vector.broadcast %cst_87 : f32 to vector<1x16xf32>
    %252 = vector.extract_strided_slice %201 {offsets = [0, 0], sizes = [7, 16], strides = [1, 1]} : vector<8x16xf32> to vector<7x16xf32>
    %253 = tpu.concatenate %251, %252 in 0 : vector<1x16xf32>, vector<7x16xf32> -> vector<8x16xf32>
    %c-1_i32 = arith.constant -1 : i32
    %254 = vector.broadcast %c-1_i32 : i32 to vector<8x1xi32>
    %255 = arith.addi %218, %254 : vector<8x1xi32>
    %c0_i32_88 = arith.constant 0 : i32
    %256 = vector.broadcast %c0_i32_88 : i32 to vector<8x1xi32>
    %257 = arith.cmpi sge, %255, %256 : vector<8x1xi32>
    %c-1_i32_89 = arith.constant -1 : i32
    %258 = vector.broadcast %c-1_i32_89 : i32 to vector<8x1xi32>
    %259 = arith.addi %218, %258 : vector<8x1xi32>
    %c8_i32_90 = arith.constant 8 : i32
    %260 = vector.broadcast %c8_i32_90 : i32 to vector<8x1xi32>
    %261 = arith.cmpi slt, %259, %260 : vector<8x1xi32>
    %262 = arith.andi %257, %261 : vector<8x1xi1>
    %cst_91 = arith.constant 0.000000e+00 : f32
    %263 = vector.shape_cast %262 : vector<8x1xi1> to vector<8x1xi1>
    %264 = vector.broadcast %263 : vector<8x1xi1> to vector<8x16xi1>
    %265 = vector.broadcast %cst_91 : f32 to vector<8x16xf32>
    %266 = arith.select %264, %253, %265 : vector<8x16xi1>, vector<8x16xf32>
    %c0_i32_92 = arith.constant 0 : i32
    %267 = vector.broadcast %c0_i32_92 : i32 to vector<8x1xi32>
    %268 = arith.addi %218, %267 : vector<8x1xi32>
    %c0_i32_93 = arith.constant 0 : i32
    %269 = vector.broadcast %c0_i32_93 : i32 to vector<8x1xi32>
    %270 = arith.cmpi sge, %268, %269 : vector<8x1xi32>
    %c0_i32_94 = arith.constant 0 : i32
    %271 = vector.broadcast %c0_i32_94 : i32 to vector<8x1xi32>
    %272 = arith.addi %218, %271 : vector<8x1xi32>
    %c8_i32_95 = arith.constant 8 : i32
    %273 = vector.broadcast %c8_i32_95 : i32 to vector<8x1xi32>
    %274 = arith.cmpi slt, %272, %273 : vector<8x1xi32>
    %275 = arith.andi %270, %274 : vector<8x1xi1>
    %cst_96 = arith.constant 0.000000e+00 : f32
    %276 = vector.shape_cast %275 : vector<8x1xi1> to vector<8x1xi1>
    %277 = vector.broadcast %276 : vector<8x1xi1> to vector<8x16xi1>
    %278 = vector.broadcast %cst_96 : f32 to vector<8x16xf32>
    %279 = arith.select %277, %201, %278 : vector<8x16xi1>, vector<8x16xf32>
    %280 = vector.extract_strided_slice %201 {offsets = [1, 0], sizes = [7, 16], strides = [1, 1]} : vector<8x16xf32> to vector<7x16xf32>
    %cst_97 = arith.constant 0.000000e+00 : f32
    %281 = vector.broadcast %cst_97 : f32 to vector<1x16xf32>
    %282 = tpu.concatenate %280, %281 in 0 : vector<7x16xf32>, vector<1x16xf32> -> vector<8x16xf32>
    %c1_i32_98 = arith.constant 1 : i32
    %283 = vector.broadcast %c1_i32_98 : i32 to vector<8x1xi32>
    %284 = arith.addi %218, %283 : vector<8x1xi32>
    %c0_i32_99 = arith.constant 0 : i32
    %285 = vector.broadcast %c0_i32_99 : i32 to vector<8x1xi32>
    %286 = arith.cmpi sge, %284, %285 : vector<8x1xi32>
    %c1_i32_100 = arith.constant 1 : i32
    %287 = vector.broadcast %c1_i32_100 : i32 to vector<8x1xi32>
    %288 = arith.addi %218, %287 : vector<8x1xi32>
    %c8_i32_101 = arith.constant 8 : i32
    %289 = vector.broadcast %c8_i32_101 : i32 to vector<8x1xi32>
    %290 = arith.cmpi slt, %288, %289 : vector<8x1xi32>
    %291 = arith.andi %286, %290 : vector<8x1xi1>
    %cst_102 = arith.constant 0.000000e+00 : f32
    %292 = vector.shape_cast %291 : vector<8x1xi1> to vector<8x1xi1>
    %293 = vector.broadcast %292 : vector<8x1xi1> to vector<8x16xi1>
    %294 = vector.broadcast %cst_102 : f32 to vector<8x16xf32>
    %295 = arith.select %293, %282, %294 : vector<8x16xi1>, vector<8x16xf32>
    %296 = vector.extract_strided_slice %201 {offsets = [2, 0], sizes = [6, 16], strides = [1, 1]} : vector<8x16xf32> to vector<6x16xf32>
    %cst_103 = arith.constant 0.000000e+00 : f32
    %297 = vector.broadcast %cst_103 : f32 to vector<2x16xf32>
    %298 = tpu.concatenate %296, %297 in 0 : vector<6x16xf32>, vector<2x16xf32> -> vector<8x16xf32>
    %c2_i32 = arith.constant 2 : i32
    %299 = vector.broadcast %c2_i32 : i32 to vector<8x1xi32>
    %300 = arith.addi %218, %299 : vector<8x1xi32>
    %c0_i32_104 = arith.constant 0 : i32
    %301 = vector.broadcast %c0_i32_104 : i32 to vector<8x1xi32>
    %302 = arith.cmpi sge, %300, %301 : vector<8x1xi32>
    %c2_i32_105 = arith.constant 2 : i32
    %303 = vector.broadcast %c2_i32_105 : i32 to vector<8x1xi32>
    %304 = arith.addi %218, %303 : vector<8x1xi32>
    %c8_i32_106 = arith.constant 8 : i32
    %305 = vector.broadcast %c8_i32_106 : i32 to vector<8x1xi32>
    %306 = arith.cmpi slt, %304, %305 : vector<8x1xi32>
    %307 = arith.andi %302, %306 : vector<8x1xi1>
    %cst_107 = arith.constant 0.000000e+00 : f32
    %308 = vector.shape_cast %307 : vector<8x1xi1> to vector<8x1xi1>
    %309 = vector.broadcast %308 : vector<8x1xi1> to vector<8x16xi1>
    %310 = vector.broadcast %cst_107 : f32 to vector<8x16xf32>
    %311 = arith.select %309, %298, %310 : vector<8x16xi1>, vector<8x16xf32>
    %312 = vector.extract_strided_slice %201 {offsets = [3, 0], sizes = [5, 16], strides = [1, 1]} : vector<8x16xf32> to vector<5x16xf32>
    %cst_108 = arith.constant 0.000000e+00 : f32
    %313 = vector.broadcast %cst_108 : f32 to vector<3x16xf32>
    %314 = tpu.concatenate %312, %313 in 0 : vector<5x16xf32>, vector<3x16xf32> -> vector<8x16xf32>
    %c3_i32 = arith.constant 3 : i32
    %315 = vector.broadcast %c3_i32 : i32 to vector<8x1xi32>
    %316 = arith.addi %218, %315 : vector<8x1xi32>
    %c0_i32_109 = arith.constant 0 : i32
    %317 = vector.broadcast %c0_i32_109 : i32 to vector<8x1xi32>
    %318 = arith.cmpi sge, %316, %317 : vector<8x1xi32>
    %c3_i32_110 = arith.constant 3 : i32
    %319 = vector.broadcast %c3_i32_110 : i32 to vector<8x1xi32>
    %320 = arith.addi %218, %319 : vector<8x1xi32>
    %c8_i32_111 = arith.constant 8 : i32
    %321 = vector.broadcast %c8_i32_111 : i32 to vector<8x1xi32>
    %322 = arith.cmpi slt, %320, %321 : vector<8x1xi32>
    %323 = arith.andi %318, %322 : vector<8x1xi1>
    %cst_112 = arith.constant 0.000000e+00 : f32
    %324 = vector.shape_cast %323 : vector<8x1xi1> to vector<8x1xi1>
    %325 = vector.broadcast %324 : vector<8x1xi1> to vector<8x16xi1>
    %326 = vector.broadcast %cst_112 : f32 to vector<8x16xf32>
    %327 = arith.select %325, %314, %326 : vector<8x16xi1>, vector<8x16xf32>
    %cst_113 = arith.constant 0.000000e+00 : f32
    %328 = vector.broadcast %cst_113 : f32 to vector<8x16xf32>
    %c0_114 = arith.constant 0 : index
    %c0_115 = arith.constant 0 : index
    %c0_116 = arith.constant 0 : index
    %329 = vector.load %arg21[%c0_114, %c0_115, %c0_116] : memref<3x1x16xf32, #tpu.memory_space<vmem>>, vector<3x1x16xf32>
    %c0_117 = arith.constant 0 : index
    %c0_118 = arith.constant 0 : index
    %330 = vector.load %arg22[%c0_117, %c0_118] : memref<1x16xf32, #tpu.memory_space<vmem>>, vector<1x16xf32>
    %cst_119 = arith.constant 0.000000e+00 : f32
    %331 = vector.broadcast %cst_119 : f32 to vector<8x16xf32>
    %332 = vector.extract_strided_slice %329 {offsets = [0, 0, 0], sizes = [1, 1, 16], strides = [1, 1, 1]} : vector<3x1x16xf32> to vector<1x1x16xf32>
    %333 = vector.shape_cast %332 : vector<1x1x16xf32> to vector<1x16xf32>
    %334 = vector.broadcast %333 : vector<1x16xf32> to vector<8x16xf32>
    %335 = arith.mulf %266, %334 : vector<8x16xf32>
    %336 = arith.addf %331, %335 : vector<8x16xf32>
    %337 = vector.extract_strided_slice %329 {offsets = [1, 0, 0], sizes = [1, 1, 16], strides = [1, 1, 1]} : vector<3x1x16xf32> to vector<1x1x16xf32>
    %338 = vector.shape_cast %337 : vector<1x1x16xf32> to vector<1x16xf32>
    %339 = vector.broadcast %338 : vector<1x16xf32> to vector<8x16xf32>
    %340 = arith.mulf %279, %339 : vector<8x16xf32>
    %341 = arith.addf %336, %340 : vector<8x16xf32>
    %342 = vector.extract_strided_slice %329 {offsets = [2, 0, 0], sizes = [1, 1, 16], strides = [1, 1, 1]} : vector<3x1x16xf32> to vector<1x1x16xf32>
    %343 = vector.shape_cast %342 : vector<1x1x16xf32> to vector<1x16xf32>
    %344 = vector.broadcast %343 : vector<1x16xf32> to vector<8x16xf32>
    %345 = arith.mulf %295, %344 : vector<8x16xf32>
    %346 = arith.addf %341, %345 : vector<8x16xf32>
    %347 = vector.broadcast %330 : vector<1x16xf32> to vector<8x16xf32>
    %348 = arith.addf %346, %347 : vector<8x16xf32>
    %cst_120 = arith.constant 0.000000e+00 : f32
    %349 = vector.broadcast %cst_120 : f32 to vector<8x16xf32>
    %350 = arith.maximumf %348, %349 : vector<8x16xf32>
    %351 = arith.addf %328, %350 : vector<8x16xf32>
    %c0_121 = arith.constant 0 : index
    %c0_122 = arith.constant 0 : index
    %c0_123 = arith.constant 0 : index
    %352 = vector.load %arg23[%c0_121, %c0_122, %c0_123] : memref<5x1x16xf32, #tpu.memory_space<vmem>>, vector<5x1x16xf32>
    %c0_124 = arith.constant 0 : index
    %c0_125 = arith.constant 0 : index
    %353 = vector.load %arg24[%c0_124, %c0_125] : memref<1x16xf32, #tpu.memory_space<vmem>>, vector<1x16xf32>
    %cst_126 = arith.constant 0.000000e+00 : f32
    %354 = vector.broadcast %cst_126 : f32 to vector<8x16xf32>
    %355 = vector.extract_strided_slice %352 {offsets = [0, 0, 0], sizes = [1, 1, 16], strides = [1, 1, 1]} : vector<5x1x16xf32> to vector<1x1x16xf32>
    %356 = vector.shape_cast %355 : vector<1x1x16xf32> to vector<1x16xf32>
    %357 = vector.broadcast %356 : vector<1x16xf32> to vector<8x16xf32>
    %358 = arith.mulf %250, %357 : vector<8x16xf32>
    %359 = arith.addf %354, %358 : vector<8x16xf32>
    %360 = vector.extract_strided_slice %352 {offsets = [1, 0, 0], sizes = [1, 1, 16], strides = [1, 1, 1]} : vector<5x1x16xf32> to vector<1x1x16xf32>
    %361 = vector.shape_cast %360 : vector<1x1x16xf32> to vector<1x16xf32>
    %362 = vector.broadcast %361 : vector<1x16xf32> to vector<8x16xf32>
    %363 = arith.mulf %266, %362 : vector<8x16xf32>
    %364 = arith.addf %359, %363 : vector<8x16xf32>
    %365 = vector.extract_strided_slice %352 {offsets = [2, 0, 0], sizes = [1, 1, 16], strides = [1, 1, 1]} : vector<5x1x16xf32> to vector<1x1x16xf32>
    %366 = vector.shape_cast %365 : vector<1x1x16xf32> to vector<1x16xf32>
    %367 = vector.broadcast %366 : vector<1x16xf32> to vector<8x16xf32>
    %368 = arith.mulf %279, %367 : vector<8x16xf32>
    %369 = arith.addf %364, %368 : vector<8x16xf32>
    %370 = vector.extract_strided_slice %352 {offsets = [3, 0, 0], sizes = [1, 1, 16], strides = [1, 1, 1]} : vector<5x1x16xf32> to vector<1x1x16xf32>
    %371 = vector.shape_cast %370 : vector<1x1x16xf32> to vector<1x16xf32>
    %372 = vector.broadcast %371 : vector<1x16xf32> to vector<8x16xf32>
    %373 = arith.mulf %295, %372 : vector<8x16xf32>
    %374 = arith.addf %369, %373 : vector<8x16xf32>
    %375 = vector.extract_strided_slice %352 {offsets = [4, 0, 0], sizes = [1, 1, 16], strides = [1, 1, 1]} : vector<5x1x16xf32> to vector<1x1x16xf32>
    %376 = vector.shape_cast %375 : vector<1x1x16xf32> to vector<1x16xf32>
    %377 = vector.broadcast %376 : vector<1x16xf32> to vector<8x16xf32>
    %378 = arith.mulf %311, %377 : vector<8x16xf32>
    %379 = arith.addf %374, %378 : vector<8x16xf32>
    %380 = vector.broadcast %353 : vector<1x16xf32> to vector<8x16xf32>
    %381 = arith.addf %379, %380 : vector<8x16xf32>
    %cst_127 = arith.constant 0.000000e+00 : f32
    %382 = vector.broadcast %cst_127 : f32 to vector<8x16xf32>
    %383 = arith.maximumf %381, %382 : vector<8x16xf32>
    %384 = arith.addf %351, %383 : vector<8x16xf32>
    %c0_128 = arith.constant 0 : index
    %c0_129 = arith.constant 0 : index
    %c0_130 = arith.constant 0 : index
    %385 = vector.load %arg25[%c0_128, %c0_129, %c0_130] : memref<7x1x16xf32, #tpu.memory_space<vmem>>, vector<7x1x16xf32>
    %c0_131 = arith.constant 0 : index
    %c0_132 = arith.constant 0 : index
    %386 = vector.load %arg26[%c0_131, %c0_132] : memref<1x16xf32, #tpu.memory_space<vmem>>, vector<1x16xf32>
    %cst_133 = arith.constant 0.000000e+00 : f32
    %387 = vector.broadcast %cst_133 : f32 to vector<8x16xf32>
    %388 = vector.extract_strided_slice %385 {offsets = [0, 0, 0], sizes = [1, 1, 16], strides = [1, 1, 1]} : vector<7x1x16xf32> to vector<1x1x16xf32>
    %389 = vector.shape_cast %388 : vector<1x1x16xf32> to vector<1x16xf32>
    %390 = vector.broadcast %389 : vector<1x16xf32> to vector<8x16xf32>
    %391 = arith.mulf %234, %390 : vector<8x16xf32>
    %392 = arith.addf %387, %391 : vector<8x16xf32>
    %393 = vector.extract_strided_slice %385 {offsets = [1, 0, 0], sizes = [1, 1, 16], strides = [1, 1, 1]} : vector<7x1x16xf32> to vector<1x1x16xf32>
    %394 = vector.shape_cast %393 : vector<1x1x16xf32> to vector<1x16xf32>
    %395 = vector.broadcast %394 : vector<1x16xf32> to vector<8x16xf32>
    %396 = arith.mulf %250, %395 : vector<8x16xf32>
    %397 = arith.addf %392, %396 : vector<8x16xf32>
    %398 = vector.extract_strided_slice %385 {offsets = [2, 0, 0], sizes = [1, 1, 16], strides = [1, 1, 1]} : vector<7x1x16xf32> to vector<1x1x16xf32>
    %399 = vector.shape_cast %398 : vector<1x1x16xf32> to vector<1x16xf32>
    %400 = vector.broadcast %399 : vector<1x16xf32> to vector<8x16xf32>
    %401 = arith.mulf %266, %400 : vector<8x16xf32>
    %402 = arith.addf %397, %401 : vector<8x16xf32>
    %403 = vector.extract_strided_slice %385 {offsets = [3, 0, 0], sizes = [1, 1, 16], strides = [1, 1, 1]} : vector<7x1x16xf32> to vector<1x1x16xf32>
    %404 = vector.shape_cast %403 : vector<1x1x16xf32> to vector<1x16xf32>
    %405 = vector.broadcast %404 : vector<1x16xf32> to vector<8x16xf32>
    %406 = arith.mulf %279, %405 : vector<8x16xf32>
    %407 = arith.addf %402, %406 : vector<8x16xf32>
    %408 = vector.extract_strided_slice %385 {offsets = [4, 0, 0], sizes = [1, 1, 16], strides = [1, 1, 1]} : vector<7x1x16xf32> to vector<1x1x16xf32>
    %409 = vector.shape_cast %408 : vector<1x1x16xf32> to vector<1x16xf32>
    %410 = vector.broadcast %409 : vector<1x16xf32> to vector<8x16xf32>
    %411 = arith.mulf %295, %410 : vector<8x16xf32>
    %412 = arith.addf %407, %411 : vector<8x16xf32>
    %413 = vector.extract_strided_slice %385 {offsets = [5, 0, 0], sizes = [1, 1, 16], strides = [1, 1, 1]} : vector<7x1x16xf32> to vector<1x1x16xf32>
    %414 = vector.shape_cast %413 : vector<1x1x16xf32> to vector<1x16xf32>
    %415 = vector.broadcast %414 : vector<1x16xf32> to vector<8x16xf32>
    %416 = arith.mulf %311, %415 : vector<8x16xf32>
    %417 = arith.addf %412, %416 : vector<8x16xf32>
    %418 = vector.extract_strided_slice %385 {offsets = [6, 0, 0], sizes = [1, 1, 16], strides = [1, 1, 1]} : vector<7x1x16xf32> to vector<1x1x16xf32>
    %419 = vector.shape_cast %418 : vector<1x1x16xf32> to vector<1x16xf32>
    %420 = vector.broadcast %419 : vector<1x16xf32> to vector<8x16xf32>
    %421 = arith.mulf %327, %420 : vector<8x16xf32>
    %422 = arith.addf %417, %421 : vector<8x16xf32>
    %423 = vector.broadcast %386 : vector<1x16xf32> to vector<8x16xf32>
    %424 = arith.addf %422, %423 : vector<8x16xf32>
    %cst_134 = arith.constant 0.000000e+00 : f32
    %425 = vector.broadcast %cst_134 : f32 to vector<8x16xf32>
    %426 = arith.maximumf %424, %425 : vector<8x16xf32>
    %427 = arith.addf %384, %426 : vector<8x16xf32>
    %cst_135 = arith.constant 0.333333343 : f32
    %428 = vector.broadcast %cst_135 : f32 to vector<8x16xf32>
    %429 = arith.mulf %427, %428 : vector<8x16xf32>
    %c0_136 = arith.constant 0 : index
    %c0_137 = arith.constant 0 : index
    %430 = vector.load %arg27[%c0_136, %c0_137] : memref<16x32xbf16, #tpu.memory_space<vmem>>, vector<16x32xbf16>
    %431 = arith.truncf %429 : vector<8x16xf32> to vector<8x16xbf16>
    %cst_138 = arith.constant dense<0.000000e+00> : vector<8x32xf32>
    %432 = tpu.matmul %431, %430, %cst_138 {dimension_numbers = #tpu.dot_dimension_numbers<[1], [0], [0], [1], [0, 0, 1, 1], [], []>} : vector<8x16xbf16>, vector<16x32xbf16>, vector<8x32xf32> -> vector<8x32xf32>
    %433 = arith.addf %169, %432 : vector<8x32xf32>
    %c0_139 = arith.constant 0 : index
    %c0_140 = arith.constant 0 : index
    %434 = vector.load %arg28[%c0_139, %c0_140] : memref<1x32xf32, #tpu.memory_space<vmem>>, vector<1x32xf32>
    %435 = vector.broadcast %434 : vector<1x32xf32> to vector<8x32xf32>
    %436 = arith.addf %433, %435 : vector<8x32xf32>
    %cst_141 = arith.constant dense<0.000000e+00> : vector<8xf32>
    %437 = vector.multi_reduction <add>, %436, %cst_141 [1] : vector<8x32xf32> to vector<8xf32>
    %438 = vector.shape_cast %437 : vector<8xf32> to vector<8x1xf32>
    %cst_142 = arith.constant 3.200000e+01 : f32
    %439 = vector.broadcast %cst_142 : f32 to vector<8x1xf32>
    %440 = arith.divf %438, %439 : vector<8x1xf32>
    %441 = vector.broadcast %440 : vector<8x1xf32> to vector<8x32xf32>
    %442 = arith.subf %436, %441 : vector<8x32xf32>
    %443 = arith.mulf %442, %442 : vector<8x32xf32>
    %cst_143 = arith.constant dense<0.000000e+00> : vector<8xf32>
    %444 = vector.multi_reduction <add>, %443, %cst_143 [1] : vector<8x32xf32> to vector<8xf32>
    %445 = vector.shape_cast %444 : vector<8xf32> to vector<8x1xf32>
    %cst_144 = arith.constant 3.200000e+01 : f32
    %446 = vector.broadcast %cst_144 : f32 to vector<8x1xf32>
    %447 = arith.divf %445, %446 : vector<8x1xf32>
    %448 = vector.broadcast %440 : vector<8x1xf32> to vector<8x32xf32>
    %449 = arith.subf %436, %448 : vector<8x32xf32>
    %cst_145 = arith.constant 9.99999974E-6 : f32
    %450 = vector.broadcast %cst_145 : f32 to vector<8x1xf32>
    %451 = arith.addf %447, %450 : vector<8x1xf32>
    %452 = math.rsqrt %451 : vector<8x1xf32>
    %453 = vector.broadcast %452 : vector<8x1xf32> to vector<8x32xf32>
    %454 = arith.mulf %449, %453 : vector<8x32xf32>
    %c0_146 = arith.constant 0 : index
    %c0_147 = arith.constant 0 : index
    %455 = vector.load %arg9[%c0_146, %c0_147] : memref<1x32xf32, #tpu.memory_space<vmem>>, vector<1x32xf32>
    %456 = vector.broadcast %455 : vector<1x32xf32> to vector<8x32xf32>
    %457 = arith.mulf %454, %456 : vector<8x32xf32>
    %c0_148 = arith.constant 0 : index
    %c0_149 = arith.constant 0 : index
    %458 = vector.load %arg10[%c0_148, %c0_149] : memref<1x32xf32, #tpu.memory_space<vmem>>, vector<1x32xf32>
    %459 = vector.broadcast %458 : vector<1x32xf32> to vector<8x32xf32>
    %460 = arith.addf %457, %459 : vector<8x32xf32>
    %c0_150 = arith.constant 0 : index
    %c0_151 = arith.constant 0 : index
    %461 = vector.load %arg29[%c0_150, %c0_151] : memref<32x64xbf16, #tpu.memory_space<vmem>>, vector<32x64xbf16>
    %462 = arith.truncf %460 : vector<8x32xf32> to vector<8x32xbf16>
    %cst_152 = arith.constant dense<0.000000e+00> : vector<8x64xf32>
    %463 = tpu.matmul %462, %461, %cst_152 {dimension_numbers = #tpu.dot_dimension_numbers<[1], [0], [0], [1], [0, 0, 1, 1], [], []>} : vector<8x32xbf16>, vector<32x64xbf16>, vector<8x64xf32> -> vector<8x64xf32>
    %c0_153 = arith.constant 0 : index
    %c0_154 = arith.constant 0 : index
    %464 = vector.load %arg30[%c0_153, %c0_154] : memref<1x64xf32, #tpu.memory_space<vmem>>, vector<1x64xf32>
    %465 = vector.broadcast %464 : vector<1x64xf32> to vector<8x64xf32>
    %466 = arith.addf %463, %465 : vector<8x64xf32>
    %cst_155 = arith.constant 0.000000e+00 : f32
    %467 = vector.broadcast %cst_155 : f32 to vector<8x64xf32>
    %468 = arith.maximumf %466, %467 : vector<8x64xf32>
    %c0_156 = arith.constant 0 : index
    %c0_157 = arith.constant 0 : index
    %469 = vector.load %arg31[%c0_156, %c0_157] : memref<64x32xbf16, #tpu.memory_space<vmem>>, vector<64x32xbf16>
    %470 = arith.truncf %468 : vector<8x64xf32> to vector<8x64xbf16>
    %cst_158 = arith.constant dense<0.000000e+00> : vector<8x32xf32>
    %471 = tpu.matmul %470, %469, %cst_158 {dimension_numbers = #tpu.dot_dimension_numbers<[1], [0], [0], [1], [0, 0, 1, 1], [], []>} : vector<8x64xbf16>, vector<64x32xbf16>, vector<8x32xf32> -> vector<8x32xf32>
    %c0_159 = arith.constant 0 : index
    %c0_160 = arith.constant 0 : index
    %472 = vector.load %arg32[%c0_159, %c0_160] : memref<1x32xf32, #tpu.memory_space<vmem>>, vector<1x32xf32>
    %473 = vector.broadcast %472 : vector<1x32xf32> to vector<8x32xf32>
    %474 = arith.addf %471, %473 : vector<8x32xf32>
    %cst_161 = arith.constant 5.000000e-01 : f32
    %475 = vector.broadcast %cst_161 : f32 to vector<8x32xf32>
    %476 = arith.mulf %475, %474 : vector<8x32xf32>
    %477 = arith.addf %436, %476 : vector<8x32xf32>
    %c0_162 = arith.constant 0 : index
    %c0_163 = arith.constant 0 : index
    %478 = vector.load %arg33[%c0_162, %c0_163] : memref<8x32xf32, #tpu.memory_space<vmem>>, vector<8x32xf32>
    tpu.vector_store %arg33[%c0_162, %c0_163], %477 {strides = array<i32>} : memref<8x32xf32, #tpu.memory_space<vmem>>, vector<8x32xf32>,
    return
  }
  func.func @transform_0(%arg0: i32) -> (i32, i32) {
    %c0_i32 = arith.constant 0 : i32
    %c0_i32_0 = arith.constant 0 : i32
    return %arg0, %c0_i32 : i32, i32
  }
  func.func @transform_1(%arg0: i32) -> (i32, i32, i32) {
    %c0_i32 = arith.constant 0 : i32
    %c0_i32_0 = arith.constant 0 : i32
    %c0_i32_1 = arith.constant 0 : i32
    %c0_i32_2 = arith.constant 0 : i32
    return %c0_i32, %c0_i32_0, %c0_i32_1 : i32, i32, i32
  }
  func.func @transform_2(%arg0: i32) -> (i32, i32) {
    %c0_i32 = arith.constant 0 : i32
    %c0_i32_0 = arith.constant 0 : i32
    %c0_i32_1 = arith.constant 0 : i32
    return %c0_i32, %c0_i32_0 : i32, i32
  }
  func.func @transform_3(%arg0: i32) -> (i32, i32) {
    %c0_i32 = arith.constant 0 : i32
    %c0_i32_0 = arith.constant 0 : i32
    %c0_i32_1 = arith.constant 0 : i32
    return %c0_i32, %c0_i32_0 : i32, i32
  }
  func.func @transform_4(%arg0: i32) -> (i32, i32) {
    %c0_i32 = arith.constant 0 : i32
    %c0_i32_0 = arith.constant 0 : i32
    %c0_i32_1 = arith.constant 0 : i32
    return %c0_i32, %c0_i32_0 : i32, i32
  }
  func.func @transform_5(%arg0: i32) -> (i32, i32) {
    %c0_i32 = arith.constant 0 : i32
    %c0_i32_0 = arith.constant 0 : i32
    %c0_i32_1 = arith.constant 0 : i32
    return %c0_i32, %c0_i32_0 : i32, i32
  }
  func.func @transform_6(%arg0: i32) -> (i32, i32) {
    %c0_i32 = arith.constant 0 : i32
    %c0_i32_0 = arith.constant 0 : i32
    %c0_i32_1 = arith.constant 0 : i32
    return %c0_i32, %c0_i32_0 : i32, i32
  }
  func.func @transform_7(%arg0: i32) -> (i32, i32) {
    %c0_i32 = arith.constant 0 : i32
    %c0_i32_0 = arith.constant 0 : i32
    %c0_i32_1 = arith.constant 0 : i32
    return %c0_i32, %c0_i32_0 : i32, i32
  }
  func.func @transform_8(%arg0: i32) -> (i32, i32) {
    %c0_i32 = arith.constant 0 : i32
    %c0_i32_0 = arith.constant 0 : i32
    %c0_i32_1 = arith.constant 0 : i32
    return %c0_i32, %c0_i32_0 : i32, i32
  }
  func.func @transform_9(%arg0: i32) -> (i32, i32) {
    %c0_i32 = arith.constant 0 : i32
    %c0_i32_0 = arith.constant 0 : i32
    %c0_i32_1 = arith.constant 0 : i32
    return %c0_i32, %c0_i32_0 : i32, i32
  }
  func.func @transform_10(%arg0: i32) -> (i32, i32) {
    %c0_i32 = arith.constant 0 : i32
    %c0_i32_0 = arith.constant 0 : i32
    %c0_i32_1 = arith.constant 0 : i32
    return %c0_i32, %c0_i32_0 : i32, i32
  }
  func.func @transform_11(%arg0: i32) -> (i32, i32) {
    %c0_i32 = arith.constant 0 : i32
    %c0_i32_0 = arith.constant 0 : i32
    %c0_i32_1 = arith.constant 0 : i32
    return %c0_i32, %c0_i32_0 : i32, i32
  }
  func.func @transform_12(%arg0: i32) -> (i32, i32) {
    %c0_i32 = arith.constant 0 : i32
    %c0_i32_0 = arith.constant 0 : i32
    %c0_i32_1 = arith.constant 0 : i32
    return %c0_i32, %c0_i32_0 : i32, i32
  }
  func.func @transform_13(%arg0: i32) -> (i32, i32) {
    %c0_i32 = arith.constant 0 : i32
    %c0_i32_0 = arith.constant 0 : i32
    %c0_i32_1 = arith.constant 0 : i32
    return %c0_i32, %c0_i32_0 : i32, i32
  }
  func.func @transform_14(%arg0: i32) -> (i32, i32) {
    %c0_i32 = arith.constant 0 : i32
    %c0_i32_0 = arith.constant 0 : i32
    %c0_i32_1 = arith.constant 0 : i32
    return %c0_i32, %c0_i32_0 : i32, i32
  }
  func.func @transform_15(%arg0: i32) -> (i32, i32) {
    %c0_i32 = arith.constant 0 : i32
    %c0_i32_0 = arith.constant 0 : i32
    %c0_i32_1 = arith.constant 0 : i32
    return %c0_i32, %c0_i32_0 : i32, i32
  }
  func.func @transform_16(%arg0: i32) -> (i32, i32) {
    %c0_i32 = arith.constant 0 : i32
    %c0_i32_0 = arith.constant 0 : i32
    %c0_i32_1 = arith.constant 0 : i32
    return %c0_i32, %c0_i32_0 : i32, i32
  }
  func.func @transform_17(%arg0: i32) -> (i32, i32) {
    %c0_i32 = arith.constant 0 : i32
    %c0_i32_0 = arith.constant 0 : i32
    %c0_i32_1 = arith.constant 0 : i32
    return %c0_i32, %c0_i32_0 : i32, i32
  }
  func.func @transform_18(%arg0: i32) -> (i32, i32) {
    %c0_i32 = arith.constant 0 : i32
    %c0_i32_0 = arith.constant 0 : i32
    %c0_i32_1 = arith.constant 0 : i32
    return %c0_i32, %c0_i32_0 : i32, i32
  }
  func.func @transform_19(%arg0: i32) -> (i32, i32) {
    %c0_i32 = arith.constant 0 : i32
    %c0_i32_0 = arith.constant 0 : i32
    %c0_i32_1 = arith.constant 0 : i32
    return %c0_i32, %c0_i32_0 : i32, i32
  }
  func.func @transform_20(%arg0: i32) -> (i32, i32, i32) {
    %c0_i32 = arith.constant 0 : i32
    %c0_i32_0 = arith.constant 0 : i32
    %c0_i32_1 = arith.constant 0 : i32
    %c0_i32_2 = arith.constant 0 : i32
    return %c0_i32, %c0_i32_0, %c0_i32_1 : i32, i32, i32
  }
  func.func @transform_21(%arg0: i32) -> (i32, i32) {
    %c0_i32 = arith.constant 0 : i32
    %c0_i32_0 = arith.constant 0 : i32
    %c0_i32_1 = arith.constant 0 : i32
    return %c0_i32, %c0_i32_0 : i32, i32
  }
  func.func @transform_22(%arg0: i32) -> (i32, i32, i32) {
    %c0_i32 = arith.constant 0 : i32
    %c0_i32_0 = arith.constant 0 : i32
    %c0_i32_1 = arith.constant 0 : i32
    %c0_i32_2 = arith.constant 0 : i32
    return %c0_i32, %c0_i32_0, %c0_i32_1 : i32, i32, i32
  }
  func.func @transform_23(%arg0: i32) -> (i32, i32) {
    %c0_i32 = arith.constant 0 : i32
    %c0_i32_0 = arith.constant 0 : i32
    %c0_i32_1 = arith.constant 0 : i32
    return %c0_i32, %c0_i32_0 : i32, i32
  }
  func.func @transform_24(%arg0: i32) -> (i32, i32, i32) {
    %c0_i32 = arith.constant 0 : i32
    %c0_i32_0 = arith.constant 0 : i32
    %c0_i32_1 = arith.constant 0 : i32
    %c0_i32_2 = arith.constant 0 : i32
    return %c0_i32, %c0_i32_0, %c0_i32_1 : i32, i32, i32
  }
  func.func @transform_25(%arg0: i32) -> (i32, i32) {
    %c0_i32 = arith.constant 0 : i32
    %c0_i32_0 = arith.constant 0 : i32
    %c0_i32_1 = arith.constant 0 : i32
    return %c0_i32, %c0_i32_0 : i32, i32
  }
  func.func @transform_26(%arg0: i32) -> (i32, i32) {
    %c0_i32 = arith.constant 0 : i32
    %c0_i32_0 = arith.constant 0 : i32
    %c0_i32_1 = arith.constant 0 : i32
    return %c0_i32, %c0_i32_0 : i32, i32
  }
  func.func @transform_27(%arg0: i32) -> (i32, i32) {
    %c0_i32 = arith.constant 0 : i32
    %c0_i32_0 = arith.constant 0 : i32
    %c0_i32_1 = arith.constant 0 : i32
    return %c0_i32, %c0_i32_0 : i32, i32
  }
  func.func @transform_28(%arg0: i32) -> (i32, i32) {
    %c0_i32 = arith.constant 0 : i32
    %c0_i32_0 = arith.constant 0 : i32
    %c0_i32_1 = arith.constant 0 : i32
    return %c0_i32, %c0_i32_0 : i32, i32
  }
  func.func @transform_29(%arg0: i32) -> (i32, i32) {
    %c0_i32 = arith.constant 0 : i32
    %c0_i32_0 = arith.constant 0 : i32
    %c0_i32_1 = arith.constant 0 : i32
    return %c0_i32, %c0_i32_0 : i32, i32
  }
  func.func @transform_30(%arg0: i32) -> (i32, i32) {
    %c0_i32 = arith.constant 0 : i32
    %c0_i32_0 = arith.constant 0 : i32
    %c0_i32_1 = arith.constant 0 : i32
    return %c0_i32, %c0_i32_0 : i32, i32
  }
  func.func @transform_31(%arg0: i32) -> (i32, i32) {
    %c0_i32 = arith.constant 0 : i32
    %c0_i32_0 = arith.constant 0 : i32
    %c0_i32_1 = arith.constant 0 : i32
    return %c0_i32, %c0_i32_0 : i32, i32
  }
  func.func @transform_32(%arg0: i32) -> (i32, i32) {
    %c0_i32 = arith.constant 0 : i32
    %c0_i32_0 = arith.constant 0 : i32
    return %arg0, %c0_i32 : i32, i32
  }
}

module attributes {stable_mosaic.version = 11 : i64} {
  func.func @_conformer_kernel(%arg0: i32, %arg1: memref<8x32xf32, #tpu.memory_space<vmem>>, %arg2: memref<4x8x8xbf16, #tpu.memory_space<vmem>>, %arg3: memref<1x32xf32, #tpu.memory_space<vmem>>, %arg4: memref<1x32xf32, #tpu.memory_space<vmem>>, %arg5: memref<1x32xf32, #tpu.memory_space<vmem>>, %arg6: memref<1x32xf32, #tpu.memory_space<vmem>>, %arg7: memref<1x32xf32, #tpu.memory_space<vmem>>, %arg8: memref<1x32xf32, #tpu.memory_space<vmem>>, %arg9: memref<1x32xf32, #tpu.memory_space<vmem>>, %arg10: memref<1x32xf32, #tpu.memory_space<vmem>>, %arg11: memref<32x64xbf16, #tpu.memory_space<vmem>>, %arg12: memref<1x64xf32, #tpu.memory_space<vmem>>, %arg13: memref<64x32xbf16, #tpu.memory_space<vmem>>, %arg14: memref<1x32xf32, #tpu.memory_space<vmem>>, %arg15: memref<32x96xbf16, #tpu.memory_space<vmem>>, %arg16: memref<1x96xf32, #tpu.memory_space<vmem>>, %arg17: memref<32x32xbf16, #tpu.memory_space<vmem>>, %arg18: memref<1x32xf32, #tpu.memory_space<vmem>>, %arg19: memref<32x16xbf16, #tpu.memory_space<vmem>>, %arg20: memref<1x16xf32, #tpu.memory_space<vmem>>, %arg21: memref<3x1x16xf32, #tpu.memory_space<vmem>>, %arg22: memref<1x16xf32, #tpu.memory_space<vmem>>, %arg23: memref<5x1x16xf32, #tpu.memory_space<vmem>>, %arg24: memref<1x16xf32, #tpu.memory_space<vmem>>, %arg25: memref<7x1x16xf32, #tpu.memory_space<vmem>>, %arg26: memref<1x16xf32, #tpu.memory_space<vmem>>, %arg27: memref<16x32xbf16, #tpu.memory_space<vmem>>, %arg28: memref<1x32xf32, #tpu.memory_space<vmem>>, %arg29: memref<32x64xbf16, #tpu.memory_space<vmem>>, %arg30: memref<1x64xf32, #tpu.memory_space<vmem>>, %arg31: memref<64x32xbf16, #tpu.memory_space<vmem>>, %arg32: memref<1x32xf32, #tpu.memory_space<vmem>>, %arg33: memref<8x32xf32, #tpu.memory_space<vmem>>) attributes {dimension_semantics = [#tpu.dimension_semantics<parallel>], iteration_bounds = array<i64: 2>, scalar_prefetch = 0 : i64, scratch_operands = 0 : i64, tpu.core_type = #tpu.core_type<tc>, window_params = [{transform_indices = @transform_0, window_bounds = array<i64: 8, 32>}, {pipeline_mode = #tpu.pipeline_mode<synchronous>, transform_indices = @transform_1, window_bounds = array<i64: 4, 8, 8>}, {pipeline_mode = #tpu.pipeline_mode<synchronous>, transform_indices = @transform_2, window_bounds = array<i64: 1, 32>}, {pipeline_mode = #tpu.pipeline_mode<synchronous>, transform_indices = @transform_3, window_bounds = array<i64: 1, 32>}, {pipeline_mode = #tpu.pipeline_mode<synchronous>, transform_indices = @transform_4, window_bounds = array<i64: 1, 32>}, {pipeline_mode = #tpu.pipeline_mode<synchronous>, transform_indices = @transform_5, window_bounds = array<i64: 1, 32>}, {pipeline_mode = #tpu.pipeline_mode<synchronous>, transform_indices = @transform_6, window_bounds = array<i64: 1, 32>}, {pipeline_mode = #tpu.pipeline_mode<synchronous>, transform_indices = @transform_7, window_bounds = array<i64: 1, 32>}, {pipeline_mode = #tpu.pipeline_mode<synchronous>, transform_indices = @transform_8, window_bounds = array<i64: 1, 32>}, {pipeline_mode = #tpu.pipeline_mode<synchronous>, transform_indices = @transform_9, window_bounds = array<i64: 1, 32>}, {pipeline_mode = #tpu.pipeline_mode<synchronous>, transform_indices = @transform_10, window_bounds = array<i64: 32, 64>}, {pipeline_mode = #tpu.pipeline_mode<synchronous>, transform_indices = @transform_11, window_bounds = array<i64: 1, 64>}, {pipeline_mode = #tpu.pipeline_mode<synchronous>, transform_indices = @transform_12, window_bounds = array<i64: 64, 32>}, {pipeline_mode = #tpu.pipeline_mode<synchronous>, transform_indices = @transform_13, window_bounds = array<i64: 1, 32>}, {pipeline_mode = #tpu.pipeline_mode<synchronous>, transform_indices = @transform_14, window_bounds = array<i64: 32, 96>}, {pipeline_mode = #tpu.pipeline_mode<synchronous>, transform_indices = @transform_15, window_bounds = array<i64: 1, 96>}, {pipeline_mode = #tpu.pipeline_mode<synchronous>, transform_indices = @transform_16, window_bounds = array<i64: 32, 32>}, {pipeline_mode = #tpu.pipeline_mode<synchronous>, transform_indices = @transform_17, window_bounds = array<i64: 1, 32>}, {pipeline_mode = #tpu.pipeline_mode<synchronous>, transform_indices = @transform_18, window_bounds = array<i64: 32, 16>}, {pipeline_mode = #tpu.pipeline_mode<synchronous>, transform_indices = @transform_19, window_bounds = array<i64: 1, 16>}, {pipeline_mode = #tpu.pipeline_mode<synchronous>, transform_indices = @transform_20, window_bounds = array<i64: 3, 1, 16>}, {pipeline_mode = #tpu.pipeline_mode<synchronous>, transform_indices = @transform_21, window_bounds = array<i64: 1, 16>}, {pipeline_mode = #tpu.pipeline_mode<synchronous>, transform_indices = @transform_22, window_bounds = array<i64: 5, 1, 16>}, {pipeline_mode = #tpu.pipeline_mode<synchronous>, transform_indices = @transform_23, window_bounds = array<i64: 1, 16>}, {pipeline_mode = #tpu.pipeline_mode<synchronous>, transform_indices = @transform_24, window_bounds = array<i64: 7, 1, 16>}, {pipeline_mode = #tpu.pipeline_mode<synchronous>, transform_indices = @transform_25, window_bounds = array<i64: 1, 16>}, {pipeline_mode = #tpu.pipeline_mode<synchronous>, transform_indices = @transform_26, window_bounds = array<i64: 16, 32>}, {pipeline_mode = #tpu.pipeline_mode<synchronous>, transform_indices = @transform_27, window_bounds = array<i64: 1, 32>}, {pipeline_mode = #tpu.pipeline_mode<synchronous>, transform_indices = @transform_28, window_bounds = array<i64: 32, 64>}, {pipeline_mode = #tpu.pipeline_mode<synchronous>, transform_indices = @transform_29, window_bounds = array<i64: 1, 64>}, {pipeline_mode = #tpu.pipeline_mode<synchronous>, transform_indices = @transform_30, window_bounds = array<i64: 64, 32>}, {pipeline_mode = #tpu.pipeline_mode<synchronous>, transform_indices = @transform_31, window_bounds = array<i64: 1, 32>}, {transform_indices = @transform_32, window_bounds = array<i64: 8, 32>}]} {
    %c0 = arith.constant 0 : index
    %c0_0 = arith.constant 0 : index
    %0 = vector.load %arg1[%c0, %c0_0] : memref<8x32xf32, #tpu.memory_space<vmem>>, vector<8x32xf32>
    %cst = arith.constant dense<0.000000e+00> : vector<8xf32>
    %1 = vector.multi_reduction <add>, %0, %cst [1] : vector<8x32xf32> to vector<8xf32>
    %2 = vector.shape_cast %1 : vector<8xf32> to vector<8x1xf32>
    %cst_1 = arith.constant 3.200000e+01 : f32
    %3 = vector.broadcast %cst_1 : f32 to vector<8x1xf32>
    %4 = arith.divf %2, %3 : vector<8x1xf32>
    %5 = vector.broadcast %4 : vector<8x1xf32> to vector<8x32xf32>
    %6 = arith.subf %0, %5 : vector<8x32xf32>
    %7 = arith.mulf %6, %6 : vector<8x32xf32>
    %cst_2 = arith.constant dense<0.000000e+00> : vector<8xf32>
    %8 = vector.multi_reduction <add>, %7, %cst_2 [1] : vector<8x32xf32> to vector<8xf32>
    %9 = vector.shape_cast %8 : vector<8xf32> to vector<8x1xf32>
    %cst_3 = arith.constant 3.200000e+01 : f32
    %10 = vector.broadcast %cst_3 : f32 to vector<8x1xf32>
    %11 = arith.divf %9, %10 : vector<8x1xf32>
    %12 = vector.broadcast %4 : vector<8x1xf32> to vector<8x32xf32>
    %13 = arith.subf %0, %12 : vector<8x32xf32>
    %cst_4 = arith.constant 9.99999974E-6 : f32
    %14 = vector.broadcast %cst_4 : f32 to vector<8x1xf32>
    %15 = arith.addf %11, %14 : vector<8x1xf32>
    %16 = math.rsqrt %15 : vector<8x1xf32>
    %17 = vector.broadcast %16 : vector<8x1xf32> to vector<8x32xf32>
    %18 = arith.mulf %13, %17 : vector<8x32xf32>
    %c0_5 = arith.constant 0 : index
    %c0_6 = arith.constant 0 : index
    %19 = vector.load %arg3[%c0_5, %c0_6] : memref<1x32xf32, #tpu.memory_space<vmem>>, vector<1x32xf32>
    %20 = vector.broadcast %19 : vector<1x32xf32> to vector<8x32xf32>
    %21 = arith.mulf %18, %20 : vector<8x32xf32>
    %c0_7 = arith.constant 0 : index
    %c0_8 = arith.constant 0 : index
    %22 = vector.load %arg4[%c0_7, %c0_8] : memref<1x32xf32, #tpu.memory_space<vmem>>, vector<1x32xf32>
    %23 = vector.broadcast %22 : vector<1x32xf32> to vector<8x32xf32>
    %24 = arith.addf %21, %23 : vector<8x32xf32>
    %c0_9 = arith.constant 0 : index
    %c0_10 = arith.constant 0 : index
    %25 = vector.load %arg11[%c0_9, %c0_10] : memref<32x64xbf16, #tpu.memory_space<vmem>>, vector<32x64xbf16>
    %26 = arith.truncf %24 : vector<8x32xf32> to vector<8x32xbf16>
    %cst_11 = arith.constant dense<0.000000e+00> : vector<8x64xf32>
    %27 = tpu.matmul %26, %25, %cst_11 {dimension_numbers = #tpu.dot_dimension_numbers<[1], [0], [0], [1], [0, 0, 1, 1], [], []>} : vector<8x32xbf16>, vector<32x64xbf16>, vector<8x64xf32> -> vector<8x64xf32>
    %c0_12 = arith.constant 0 : index
    %c0_13 = arith.constant 0 : index
    %28 = vector.load %arg12[%c0_12, %c0_13] : memref<1x64xf32, #tpu.memory_space<vmem>>, vector<1x64xf32>
    %29 = vector.broadcast %28 : vector<1x64xf32> to vector<8x64xf32>
    %30 = arith.addf %27, %29 : vector<8x64xf32>
    %cst_14 = arith.constant 0.000000e+00 : f32
    %31 = vector.broadcast %cst_14 : f32 to vector<8x64xf32>
    %32 = arith.maximumf %30, %31 : vector<8x64xf32>
    %c0_15 = arith.constant 0 : index
    %c0_16 = arith.constant 0 : index
    %33 = vector.load %arg13[%c0_15, %c0_16] : memref<64x32xbf16, #tpu.memory_space<vmem>>, vector<64x32xbf16>
    %34 = arith.truncf %32 : vector<8x64xf32> to vector<8x64xbf16>
    %cst_17 = arith.constant dense<0.000000e+00> : vector<8x32xf32>
    %35 = tpu.matmul %34, %33, %cst_17 {dimension_numbers = #tpu.dot_dimension_numbers<[1], [0], [0], [1], [0, 0, 1, 1], [], []>} : vector<8x64xbf16>, vector<64x32xbf16>, vector<8x32xf32> -> vector<8x32xf32>
    %c0_18 = arith.constant 0 : index
    %c0_19 = arith.constant 0 : index
    %36 = vector.load %arg14[%c0_18, %c0_19] : memref<1x32xf32, #tpu.memory_space<vmem>>, vector<1x32xf32>
    %37 = vector.broadcast %36 : vector<1x32xf32> to vector<8x32xf32>
    %38 = arith.addf %35, %37 : vector<8x32xf32>
    %cst_20 = arith.constant 5.000000e-01 : f32
    %39 = vector.broadcast %cst_20 : f32 to vector<8x32xf32>
    %40 = arith.mulf %39, %38 : vector<8x32xf32>
    %41 = arith.addf %0, %40 : vector<8x32xf32>
    %cst_21 = arith.constant dense<0.000000e+00> : vector<8xf32>
    %42 = vector.multi_reduction <add>, %41, %cst_21 [1] : vector<8x32xf32> to vector<8xf32>
    %43 = vector.shape_cast %42 : vector<8xf32> to vector<8x1xf32>
    %cst_22 = arith.constant 3.200000e+01 : f32
    %44 = vector.broadcast %cst_22 : f32 to vector<8x1xf32>
    %45 = arith.divf %43, %44 : vector<8x1xf32>
    %46 = vector.broadcast %45 : vector<8x1xf32> to vector<8x32xf32>
    %47 = arith.subf %41, %46 : vector<8x32xf32>
    %48 = arith.mulf %47, %47 : vector<8x32xf32>
    %cst_23 = arith.constant dense<0.000000e+00> : vector<8xf32>
    %49 = vector.multi_reduction <add>, %48, %cst_23 [1] : vector<8x32xf32> to vector<8xf32>
    %50 = vector.shape_cast %49 : vector<8xf32> to vector<8x1xf32>
    %cst_24 = arith.constant 3.200000e+01 : f32
    %51 = vector.broadcast %cst_24 : f32 to vector<8x1xf32>
    %52 = arith.divf %50, %51 : vector<8x1xf32>
    %53 = vector.broadcast %45 : vector<8x1xf32> to vector<8x32xf32>
    %54 = arith.subf %41, %53 : vector<8x32xf32>
    %cst_25 = arith.constant 9.99999974E-6 : f32
    %55 = vector.broadcast %cst_25 : f32 to vector<8x1xf32>
    %56 = arith.addf %52, %55 : vector<8x1xf32>
    %57 = math.rsqrt %56 : vector<8x1xf32>
    %58 = vector.broadcast %57 : vector<8x1xf32> to vector<8x32xf32>
    %59 = arith.mulf %54, %58 : vector<8x32xf32>
    %c0_26 = arith.constant 0 : index
    %c0_27 = arith.constant 0 : index
    %60 = vector.load %arg5[%c0_26, %c0_27] : memref<1x32xf32, #tpu.memory_space<vmem>>, vector<1x32xf32>
    %61 = vector.broadcast %60 : vector<1x32xf32> to vector<8x32xf32>
    %62 = arith.mulf %59, %61 : vector<8x32xf32>
    %c0_28 = arith.constant 0 : index
    %c0_29 = arith.constant 0 : index
    %63 = vector.load %arg6[%c0_28, %c0_29] : memref<1x32xf32, #tpu.memory_space<vmem>>, vector<1x32xf32>
    %64 = vector.broadcast %63 : vector<1x32xf32> to vector<8x32xf32>
    %65 = arith.addf %62, %64 : vector<8x32xf32>
    %c0_30 = arith.constant 0 : index
    %c0_31 = arith.constant 0 : index
    %66 = vector.load %arg15[%c0_30, %c0_31] : memref<32x96xbf16, #tpu.memory_space<vmem>>, vector<32x96xbf16>
    %67 = arith.truncf %65 : vector<8x32xf32> to vector<8x32xbf16>
    %cst_32 = arith.constant dense<0.000000e+00> : vector<8x96xf32>
    %68 = tpu.matmul %67, %66, %cst_32 {dimension_numbers = #tpu.dot_dimension_numbers<[1], [0], [0], [1], [0, 0, 1, 1], [], []>} : vector<8x32xbf16>, vector<32x96xbf16>, vector<8x96xf32> -> vector<8x96xf32>
    %c0_33 = arith.constant 0 : index
    %c0_34 = arith.constant 0 : index
    %69 = vector.load %arg16[%c0_33, %c0_34] : memref<1x96xf32, #tpu.memory_space<vmem>>, vector<1x96xf32>
    %70 = vector.broadcast %69 : vector<1x96xf32> to vector<8x96xf32>
    %71 = arith.addf %68, %70 : vector<8x96xf32>
    %72 = vector.extract_strided_slice %71 {offsets = [0, 0], sizes = [8, 32], strides = [1, 1]} : vector<8x96xf32> to vector<8x32xf32>
    %73 = arith.truncf %72 : vector<8x32xf32> to vector<8x32xbf16>
    %74 = vector.extract_strided_slice %71 {offsets = [0, 32], sizes = [8, 32], strides = [1, 1]} : vector<8x96xf32> to vector<8x32xf32>
    %75 = arith.truncf %74 : vector<8x32xf32> to vector<8x32xbf16>
    %76 = vector.extract_strided_slice %71 {offsets = [0, 64], sizes = [8, 32], strides = [1, 1]} : vector<8x96xf32> to vector<8x32xf32>
    %77 = arith.truncf %76 : vector<8x32xf32> to vector<8x32xbf16>
    %c0_35 = arith.constant 0 : index
    %c0_36 = arith.constant 0 : index
    %c0_37 = arith.constant 0 : index
    %78 = vector.load %arg2[%c0_35, %c0_36, %c0_37] : memref<4x8x8xbf16, #tpu.memory_space<vmem>>, vector<4x8x8xbf16>
    %79 = vector.extract_strided_slice %73 {offsets = [0, 0], sizes = [8, 8], strides = [1, 1]} : vector<8x32xbf16> to vector<8x8xbf16>
    %80 = vector.extract_strided_slice %75 {offsets = [0, 0], sizes = [8, 8], strides = [1, 1]} : vector<8x32xbf16> to vector<8x8xbf16>
    %81 = vector.extract_strided_slice %77 {offsets = [0, 0], sizes = [8, 8], strides = [1, 1]} : vector<8x32xbf16> to vector<8x8xbf16>
    %cst_38 = arith.constant dense<0.000000e+00> : vector<8x8xf32>
    %82 = tpu.matmul %79, %80, %cst_38 {dimension_numbers = #tpu.dot_dimension_numbers<[1], [1], [0], [0], [0, 0, 1, 0], [], []>} : vector<8x8xbf16>, vector<8x8xbf16>, vector<8x8xf32> -> vector<8x8xf32>
    %83 = vector.extract_strided_slice %78 {offsets = [0, 0, 0], sizes = [1, 8, 8], strides = [1, 1, 1]} : vector<4x8x8xbf16> to vector<1x8x8xbf16>
    %84 = vector.shape_cast %83 : vector<1x8x8xbf16> to vector<8x8xbf16>
    %85 = arith.extf %84 : vector<8x8xbf16> to vector<8x8xf32>
    %86 = arith.addf %82, %85 : vector<8x8xf32>
    %cst_39 = arith.constant dense<0xFF800000> : vector<8xf32>
    %87 = vector.multi_reduction <maximumf>, %86, %cst_39 [1] : vector<8x8xf32> to vector<8xf32>
    %88 = vector.shape_cast %87 : vector<8xf32> to vector<8x1xf32>
    %89 = vector.broadcast %88 : vector<8x1xf32> to vector<8x8xf32>
    %90 = arith.subf %86, %89 : vector<8x8xf32>
    %91 = math.exp %90 : vector<8x8xf32>
    %cst_40 = arith.constant dense<0.000000e+00> : vector<8xf32>
    %92 = vector.multi_reduction <add>, %91, %cst_40 [1] : vector<8x8xf32> to vector<8xf32>
    %93 = vector.shape_cast %92 : vector<8xf32> to vector<8x1xf32>
    %94 = arith.truncf %91 : vector<8x8xf32> to vector<8x8xbf16>
    %cst_41 = arith.constant dense<0.000000e+00> : vector<8x8xf32>
    %95 = tpu.matmul %94, %81, %cst_41 {dimension_numbers = #tpu.dot_dimension_numbers<[1], [0], [0], [1], [0, 0, 1, 1], [], []>} : vector<8x8xbf16>, vector<8x8xbf16>, vector<8x8xf32> -> vector<8x8xf32>
    %96 = tpu.reciprocal %93 {approx = true} : vector<8x1xf32> -> vector<8x1xf32>
    %97 = vector.broadcast %96 : vector<8x1xf32> to vector<8x8xf32>
    %98 = arith.mulf %95, %97 : vector<8x8xf32>
    %99 = arith.truncf %98 : vector<8x8xf32> to vector<8x8xbf16>
    %100 = vector.extract_strided_slice %73 {offsets = [0, 8], sizes = [8, 8], strides = [1, 1]} : vector<8x32xbf16> to vector<8x8xbf16>
    %101 = vector.extract_strided_slice %75 {offsets = [0, 8], sizes = [8, 8], strides = [1, 1]} : vector<8x32xbf16> to vector<8x8xbf16>
    %102 = vector.extract_strided_slice %77 {offsets = [0, 8], sizes = [8, 8], strides = [1, 1]} : vector<8x32xbf16> to vector<8x8xbf16>
    %cst_42 = arith.constant dense<0.000000e+00> : vector<8x8xf32>
    %103 = tpu.matmul %100, %101, %cst_42 {dimension_numbers = #tpu.dot_dimension_numbers<[1], [1], [0], [0], [0, 0, 1, 0], [], []>} : vector<8x8xbf16>, vector<8x8xbf16>, vector<8x8xf32> -> vector<8x8xf32>
    %104 = vector.extract_strided_slice %78 {offsets = [1, 0, 0], sizes = [1, 8, 8], strides = [1, 1, 1]} : vector<4x8x8xbf16> to vector<1x8x8xbf16>
    %105 = vector.shape_cast %104 : vector<1x8x8xbf16> to vector<8x8xbf16>
    %106 = arith.extf %105 : vector<8x8xbf16> to vector<8x8xf32>
    %107 = arith.addf %103, %106 : vector<8x8xf32>
    %cst_43 = arith.constant dense<0xFF800000> : vector<8xf32>
    %108 = vector.multi_reduction <maximumf>, %107, %cst_43 [1] : vector<8x8xf32> to vector<8xf32>
    %109 = vector.shape_cast %108 : vector<8xf32> to vector<8x1xf32>
    %110 = vector.broadcast %109 : vector<8x1xf32> to vector<8x8xf32>
    %111 = arith.subf %107, %110 : vector<8x8xf32>
    %112 = math.exp %111 : vector<8x8xf32>
    %cst_44 = arith.constant dense<0.000000e+00> : vector<8xf32>
    %113 = vector.multi_reduction <add>, %112, %cst_44 [1] : vector<8x8xf32> to vector<8xf32>
    %114 = vector.shape_cast %113 : vector<8xf32> to vector<8x1xf32>
    %115 = arith.truncf %112 : vector<8x8xf32> to vector<8x8xbf16>
    %cst_45 = arith.constant dense<0.000000e+00> : vector<8x8xf32>
    %116 = tpu.matmul %115, %102, %cst_45 {dimension_numbers = #tpu.dot_dimension_numbers<[1], [0], [0], [1], [0, 0, 1, 1], [], []>} : vector<8x8xbf16>, vector<8x8xbf16>, vector<8x8xf32> -> vector<8x8xf32>
    %117 = tpu.reciprocal %114 {approx = true} : vector<8x1xf32> -> vector<8x1xf32>
    %118 = vector.broadcast %117 : vector<8x1xf32> to vector<8x8xf32>
    %119 = arith.mulf %116, %118 : vector<8x8xf32>
    %120 = arith.truncf %119 : vector<8x8xf32> to vector<8x8xbf16>
    %121 = vector.extract_strided_slice %73 {offsets = [0, 16], sizes = [8, 8], strides = [1, 1]} : vector<8x32xbf16> to vector<8x8xbf16>
    %122 = vector.extract_strided_slice %75 {offsets = [0, 16], sizes = [8, 8], strides = [1, 1]} : vector<8x32xbf16> to vector<8x8xbf16>
    %123 = vector.extract_strided_slice %77 {offsets = [0, 16], sizes = [8, 8], strides = [1, 1]} : vector<8x32xbf16> to vector<8x8xbf16>
    %cst_46 = arith.constant dense<0.000000e+00> : vector<8x8xf32>
    %124 = tpu.matmul %121, %122, %cst_46 {dimension_numbers = #tpu.dot_dimension_numbers<[1], [1], [0], [0], [0, 0, 1, 0], [], []>} : vector<8x8xbf16>, vector<8x8xbf16>, vector<8x8xf32> -> vector<8x8xf32>
    %125 = vector.extract_strided_slice %78 {offsets = [2, 0, 0], sizes = [1, 8, 8], strides = [1, 1, 1]} : vector<4x8x8xbf16> to vector<1x8x8xbf16>
    %126 = vector.shape_cast %125 : vector<1x8x8xbf16> to vector<8x8xbf16>
    %127 = arith.extf %126 : vector<8x8xbf16> to vector<8x8xf32>
    %128 = arith.addf %124, %127 : vector<8x8xf32>
    %cst_47 = arith.constant dense<0xFF800000> : vector<8xf32>
    %129 = vector.multi_reduction <maximumf>, %128, %cst_47 [1] : vector<8x8xf32> to vector<8xf32>
    %130 = vector.shape_cast %129 : vector<8xf32> to vector<8x1xf32>
    %131 = vector.broadcast %130 : vector<8x1xf32> to vector<8x8xf32>
    %132 = arith.subf %128, %131 : vector<8x8xf32>
    %133 = math.exp %132 : vector<8x8xf32>
    %cst_48 = arith.constant dense<0.000000e+00> : vector<8xf32>
    %134 = vector.multi_reduction <add>, %133, %cst_48 [1] : vector<8x8xf32> to vector<8xf32>
    %135 = vector.shape_cast %134 : vector<8xf32> to vector<8x1xf32>
    %136 = arith.truncf %133 : vector<8x8xf32> to vector<8x8xbf16>
    %cst_49 = arith.constant dense<0.000000e+00> : vector<8x8xf32>
    %137 = tpu.matmul %136, %123, %cst_49 {dimension_numbers = #tpu.dot_dimension_numbers<[1], [0], [0], [1], [0, 0, 1, 1], [], []>} : vector<8x8xbf16>, vector<8x8xbf16>, vector<8x8xf32> -> vector<8x8xf32>
    %138 = tpu.reciprocal %135 {approx = true} : vector<8x1xf32> -> vector<8x1xf32>
    %139 = vector.broadcast %138 : vector<8x1xf32> to vector<8x8xf32>
    %140 = arith.mulf %137, %139 : vector<8x8xf32>
    %141 = arith.truncf %140 : vector<8x8xf32> to vector<8x8xbf16>
    %142 = vector.extract_strided_slice %73 {offsets = [0, 24], sizes = [8, 8], strides = [1, 1]} : vector<8x32xbf16> to vector<8x8xbf16>
    %143 = vector.extract_strided_slice %75 {offsets = [0, 24], sizes = [8, 8], strides = [1, 1]} : vector<8x32xbf16> to vector<8x8xbf16>
    %144 = vector.extract_strided_slice %77 {offsets = [0, 24], sizes = [8, 8], strides = [1, 1]} : vector<8x32xbf16> to vector<8x8xbf16>
    %cst_50 = arith.constant dense<0.000000e+00> : vector<8x8xf32>
    %145 = tpu.matmul %142, %143, %cst_50 {dimension_numbers = #tpu.dot_dimension_numbers<[1], [1], [0], [0], [0, 0, 1, 0], [], []>} : vector<8x8xbf16>, vector<8x8xbf16>, vector<8x8xf32> -> vector<8x8xf32>
    %146 = vector.extract_strided_slice %78 {offsets = [3, 0, 0], sizes = [1, 8, 8], strides = [1, 1, 1]} : vector<4x8x8xbf16> to vector<1x8x8xbf16>
    %147 = vector.shape_cast %146 : vector<1x8x8xbf16> to vector<8x8xbf16>
    %148 = arith.extf %147 : vector<8x8xbf16> to vector<8x8xf32>
    %149 = arith.addf %145, %148 : vector<8x8xf32>
    %cst_51 = arith.constant dense<0xFF800000> : vector<8xf32>
    %150 = vector.multi_reduction <maximumf>, %149, %cst_51 [1] : vector<8x8xf32> to vector<8xf32>
    %151 = vector.shape_cast %150 : vector<8xf32> to vector<8x1xf32>
    %152 = vector.broadcast %151 : vector<8x1xf32> to vector<8x8xf32>
    %153 = arith.subf %149, %152 : vector<8x8xf32>
    %154 = math.exp %153 : vector<8x8xf32>
    %cst_52 = arith.constant dense<0.000000e+00> : vector<8xf32>
    %155 = vector.multi_reduction <add>, %154, %cst_52 [1] : vector<8x8xf32> to vector<8xf32>
    %156 = vector.shape_cast %155 : vector<8xf32> to vector<8x1xf32>
    %157 = arith.truncf %154 : vector<8x8xf32> to vector<8x8xbf16>
    %cst_53 = arith.constant dense<0.000000e+00> : vector<8x8xf32>
    %158 = tpu.matmul %157, %144, %cst_53 {dimension_numbers = #tpu.dot_dimension_numbers<[1], [0], [0], [1], [0, 0, 1, 1], [], []>} : vector<8x8xbf16>, vector<8x8xbf16>, vector<8x8xf32> -> vector<8x8xf32>
    %159 = tpu.reciprocal %156 {approx = true} : vector<8x1xf32> -> vector<8x1xf32>
    %160 = vector.broadcast %159 : vector<8x1xf32> to vector<8x8xf32>
    %161 = arith.mulf %158, %160 : vector<8x8xf32>
    %162 = arith.truncf %161 : vector<8x8xf32> to vector<8x8xbf16>
    %163 = tpu.concatenate %99, %120, %141, %162 in 1 : vector<8x8xbf16>, vector<8x8xbf16>, vector<8x8xbf16>, vector<8x8xbf16> -> vector<8x32xbf16>
    %c0_54 = arith.constant 0 : index
    %c0_55 = arith.constant 0 : index
    %164 = vector.load %arg17[%c0_54, %c0_55] : memref<32x32xbf16, #tpu.memory_space<vmem>>, vector<32x32xbf16>
    %cst_56 = arith.constant dense<0.000000e+00> : vector<8x32xf32>
    %165 = tpu.matmul %163, %164, %cst_56 {dimension_numbers = #tpu.dot_dimension_numbers<[1], [0], [0], [1], [0, 0, 1, 1], [], []>} : vector<8x32xbf16>, vector<32x32xbf16>, vector<8x32xf32> -> vector<8x32xf32>
    %166 = arith.addf %41, %165 : vector<8x32xf32>
    %c0_57 = arith.constant 0 : index
    %c0_58 = arith.constant 0 : index
    %167 = vector.load %arg18[%c0_57, %c0_58] : memref<1x32xf32, #tpu.memory_space<vmem>>, vector<1x32xf32>
    %168 = vector.broadcast %167 : vector<1x32xf32> to vector<8x32xf32>
    %169 = arith.addf %166, %168 : vector<8x32xf32>
    %cst_59 = arith.constant dense<0.000000e+00> : vector<8xf32>
    %170 = vector.multi_reduction <add>, %169, %cst_59 [1] : vector<8x32xf32> to vector<8xf32>
    %171 = vector.shape_cast %170 : vector<8xf32> to vector<8x1xf32>
    %cst_60 = arith.constant 3.200000e+01 : f32
    %172 = vector.broadcast %cst_60 : f32 to vector<8x1xf32>
    %173 = arith.divf %171, %172 : vector<8x1xf32>
    %174 = vector.broadcast %173 : vector<8x1xf32> to vector<8x32xf32>
    %175 = arith.subf %169, %174 : vector<8x32xf32>
    %176 = arith.mulf %175, %175 : vector<8x32xf32>
    %cst_61 = arith.constant dense<0.000000e+00> : vector<8xf32>
    %177 = vector.multi_reduction <add>, %176, %cst_61 [1] : vector<8x32xf32> to vector<8xf32>
    %178 = vector.shape_cast %177 : vector<8xf32> to vector<8x1xf32>
    %cst_62 = arith.constant 3.200000e+01 : f32
    %179 = vector.broadcast %cst_62 : f32 to vector<8x1xf32>
    %180 = arith.divf %178, %179 : vector<8x1xf32>
    %181 = vector.broadcast %173 : vector<8x1xf32> to vector<8x32xf32>
    %182 = arith.subf %169, %181 : vector<8x32xf32>
    %cst_63 = arith.constant 9.99999974E-6 : f32
    %183 = vector.broadcast %cst_63 : f32 to vector<8x1xf32>
    %184 = arith.addf %180, %183 : vector<8x1xf32>
    %185 = math.rsqrt %184 : vector<8x1xf32>
    %186 = vector.broadcast %185 : vector<8x1xf32> to vector<8x32xf32>
    %187 = arith.mulf %182, %186 : vector<8x32xf32>
    %c0_64 = arith.constant 0 : index
    %c0_65 = arith.constant 0 : index
    %188 = vector.load %arg7[%c0_64, %c0_65] : memref<1x32xf32, #tpu.memory_space<vmem>>, vector<1x32xf32>
    %189 = vector.broadcast %188 : vector<1x32xf32> to vector<8x32xf32>
    %190 = arith.mulf %187, %189 : vector<8x32xf32>
    %c0_66 = arith.constant 0 : index
    %c0_67 = arith.constant 0 : index
    %191 = vector.load %arg8[%c0_66, %c0_67] : memref<1x32xf32, #tpu.memory_space<vmem>>, vector<1x32xf32>
    %192 = vector.broadcast %191 : vector<1x32xf32> to vector<8x32xf32>
    %193 = arith.addf %190, %192 : vector<8x32xf32>
    %c0_68 = arith.constant 0 : index
    %c0_69 = arith.constant 0 : index
    %194 = vector.load %arg19[%c0_68, %c0_69] : memref<32x16xbf16, #tpu.memory_space<vmem>>, vector<32x16xbf16>
    %195 = arith.truncf %193 : vector<8x32xf32> to vector<8x32xbf16>
    %cst_70 = arith.constant dense<0.000000e+00> : vector<8x16xf32>
    %196 = tpu.matmul %195, %194, %cst_70 {dimension_numbers = #tpu.dot_dimension_numbers<[1], [0], [0], [1], [0, 0, 1, 1], [], []>} : vector<8x32xbf16>, vector<32x16xbf16>, vector<8x16xf32> -> vector<8x16xf32>
    %c0_71 = arith.constant 0 : index
    %c0_72 = arith.constant 0 : index
    %197 = vector.load %arg20[%c0_71, %c0_72] : memref<1x16xf32, #tpu.memory_space<vmem>>, vector<1x16xf32>
    %198 = vector.broadcast %197 : vector<1x16xf32> to vector<8x16xf32>
    %199 = arith.addf %196, %198 : vector<8x16xf32>
    %cst_73 = arith.constant 0.000000e+00 : f32
    %200 = vector.broadcast %cst_73 : f32 to vector<8x16xf32>
    %201 = arith.maximumf %199, %200 : vector<8x16xf32>
    %202 = tpu.iota {dimensions = array<i32: 0>} : vector<8x1xi32>
    %c8_i32 = arith.constant 8 : i32
    %c0_i32 = arith.constant 0 : i32
    %203 = arith.cmpi eq, %c8_i32, %c0_i32 : i32
    %c1_i32 = arith.constant 1 : i32
    %204 = arith.select %203, %c1_i32, %c8_i32 : i32
    %205 = vector.broadcast %204 : i32 to vector<8x1xi32>
    %206 = arith.remsi %202, %205 : vector<8x1xi32>
    %c0_i32_74 = arith.constant 0 : i32
    %207 = vector.broadcast %c0_i32_74 : i32 to vector<8x1xi32>
    %208 = arith.cmpi ne, %206, %207 : vector<8x1xi32>
    %c0_i32_75 = arith.constant 0 : i32
    %209 = vector.broadcast %c0_i32_75 : i32 to vector<8x1xi32>
    %210 = arith.cmpi slt, %206, %209 : vector<8x1xi32>
    %c0_i32_76 = arith.constant 0 : i32
    %211 = arith.cmpi slt, %204, %c0_i32_76 : i32
    %212 = vector.broadcast %211 : i1 to vector<8x1xi1>
    %213 = vector.broadcast %212 : vector<8x1xi1> to vector<8x1xi1>
    %214 = arith.xori %210, %213 : vector<8x1xi1>
    %215 = arith.andi %214, %208 : vector<8x1xi1>
    %216 = vector.broadcast %204 : i32 to vector<8x1xi32>
    %217 = arith.addi %206, %216 : vector<8x1xi32>
    %218 = arith.select %215, %217, %206 : vector<8x1xi1>, vector<8x1xi32>
    %cst_77 = arith.constant 0.000000e+00 : f32
    %219 = vector.broadcast %cst_77 : f32 to vector<3x16xf32>
    %220 = vector.extract_strided_slice %201 {offsets = [0, 0], sizes = [5, 16], strides = [1, 1]} : vector<8x16xf32> to vector<5x16xf32>
    %221 = tpu.concatenate %219, %220 in 0 : vector<3x16xf32>, vector<5x16xf32> -> vector<8x16xf32>
    %c-3_i32 = arith.constant -3 : i32
    %222 = vector.broadcast %c-3_i32 : i32 to vector<8x1xi32>
    %223 = arith.addi %218, %222 : vector<8x1xi32>
    %c0_i32_78 = arith.constant 0 : i32
    %224 = vector.broadcast %c0_i32_78 : i32 to vector<8x1xi32>
    %225 = arith.cmpi sge, %223, %224 : vector<8x1xi32>
    %c-3_i32_79 = arith.constant -3 : i32
    %226 = vector.broadcast %c-3_i32_79 : i32 to vector<8x1xi32>
    %227 = arith.addi %218, %226 : vector<8x1xi32>
    %c8_i32_80 = arith.constant 8 : i32
    %228 = vector.broadcast %c8_i32_80 : i32 to vector<8x1xi32>
    %229 = arith.cmpi slt, %227, %228 : vector<8x1xi32>
    %230 = arith.andi %225, %229 : vector<8x1xi1>
    %cst_81 = arith.constant 0.000000e+00 : f32
    %231 = vector.shape_cast %230 : vector<8x1xi1> to vector<8x1xi1>
    %232 = vector.broadcast %231 : vector<8x1xi1> to vector<8x16xi1>
    %233 = vector.broadcast %cst_81 : f32 to vector<8x16xf32>
    %234 = arith.select %232, %221, %233 : vector<8x16xi1>, vector<8x16xf32>
    %cst_82 = arith.constant 0.000000e+00 : f32
    %235 = vector.broadcast %cst_82 : f32 to vector<2x16xf32>
    %236 = vector.extract_strided_slice %201 {offsets = [0, 0], sizes = [6, 16], strides = [1, 1]} : vector<8x16xf32> to vector<6x16xf32>
    %237 = tpu.concatenate %235, %236 in 0 : vector<2x16xf32>, vector<6x16xf32> -> vector<8x16xf32>
    %c-2_i32 = arith.constant -2 : i32
    %238 = vector.broadcast %c-2_i32 : i32 to vector<8x1xi32>
    %239 = arith.addi %218, %238 : vector<8x1xi32>
    %c0_i32_83 = arith.constant 0 : i32
    %240 = vector.broadcast %c0_i32_83 : i32 to vector<8x1xi32>
    %241 = arith.cmpi sge, %239, %240 : vector<8x1xi32>
    %c-2_i32_84 = arith.constant -2 : i32
    %242 = vector.broadcast %c-2_i32_84 : i32 to vector<8x1xi32>
    %243 = arith.addi %218, %242 : vector<8x1xi32>
    %c8_i32_85 = arith.constant 8 : i32
    %244 = vector.broadcast %c8_i32_85 : i32 to vector<8x1xi32>
    %245 = arith.cmpi slt, %243, %244 : vector<8x1xi32>
    %246 = arith.andi %241, %245 : vector<8x1xi1>
    %cst_86 = arith.constant 0.000000e+00 : f32
    %247 = vector.shape_cast %246 : vector<8x1xi1> to vector<8x1xi1>
    %248 = vector.broadcast %247 : vector<8x1xi1> to vector<8x16xi1>
    %249 = vector.broadcast %cst_86 : f32 to vector<8x16xf32>
    %250 = arith.select %248, %237, %249 : vector<8x16xi1>, vector<8x16xf32>
    %cst_87 = arith.constant 0.000000e+00 : f32
    %251 = vector.broadcast %cst_87 : f32 to vector<1x16xf32>
    %252 = vector.extract_strided_slice %201 {offsets = [0, 0], sizes = [7, 16], strides = [1, 1]} : vector<8x16xf32> to vector<7x16xf32>
    %253 = tpu.concatenate %251, %252 in 0 : vector<1x16xf32>, vector<7x16xf32> -> vector<8x16xf32>
    %c-1_i32 = arith.constant -1 : i32
    %254 = vector.broadcast %c-1_i32 : i32 to vector<8x1xi32>
    %255 = arith.addi %218, %254 : vector<8x1xi32>
    %c0_i32_88 = arith.constant 0 : i32
    %256 = vector.broadcast %c0_i32_88 : i32 to vector<8x1xi32>
    %257 = arith.cmpi sge, %255, %256 : vector<8x1xi32>
    %c-1_i32_89 = arith.constant -1 : i32
    %258 = vector.broadcast %c-1_i32_89 : i32 to vector<8x1xi32>
    %259 = arith.addi %218, %258 : vector<8x1xi32>
    %c8_i32_90 = arith.constant 8 : i32
    %260 = vector.broadcast %c8_i32_90 : i32 to vector<8x1xi32>
    %261 = arith.cmpi slt, %259, %260 : vector<8x1xi32>
    %262 = arith.andi %257, %261 : vector<8x1xi1>
    %cst_91 = arith.constant 0.000000e+00 : f32
    %263 = vector.shape_cast %262 : vector<8x1xi1> to vector<8x1xi1>
    %264 = vector.broadcast %263 : vector<8x1xi1> to vector<8x16xi1>
    %265 = vector.broadcast %cst_91 : f32 to vector<8x16xf32>
    %266 = arith.select %264, %253, %265 : vector<8x16xi1>, vector<8x16xf32>
    %c0_i32_92 = arith.constant 0 : i32
    %267 = vector.broadcast %c0_i32_92 : i32 to vector<8x1xi32>
    %268 = arith.addi %218, %267 : vector<8x1xi32>
    %c0_i32_93 = arith.constant 0 : i32
    %269 = vector.broadcast %c0_i32_93 : i32 to vector<8x1xi32>
    %270 = arith.cmpi sge, %268, %269 : vector<8x1xi32>
    %c0_i32_94 = arith.constant 0 : i32
    %271 = vector.broadcast %c0_i32_94 : i32 to vector<8x1xi32>
    %272 = arith.addi %218, %271 : vector<8x1xi32>
    %c8_i32_95 = arith.constant 8 : i32
    %273 = vector.broadcast %c8_i32_95 : i32 to vector<8x1xi32>
    %274 = arith.cmpi slt, %272, %273 : vector<8x1xi32>
    %275 = arith.andi %270, %274 : vector<8x1xi1>
    %cst_96 = arith.constant 0.000000e+00 : f32
    %276 = vector.shape_cast %275 : vector<8x1xi1> to vector<8x1xi1>
    %277 = vector.broadcast %276 : vector<8x1xi1> to vector<8x16xi1>
    %278 = vector.broadcast %cst_96 : f32 to vector<8x16xf32>
    %279 = arith.select %277, %201, %278 : vector<8x16xi1>, vector<8x16xf32>
    %280 = vector.extract_strided_slice %201 {offsets = [1, 0], sizes = [7, 16], strides = [1, 1]} : vector<8x16xf32> to vector<7x16xf32>
    %cst_97 = arith.constant 0.000000e+00 : f32
    %281 = vector.broadcast %cst_97 : f32 to vector<1x16xf32>
    %282 = tpu.concatenate %280, %281 in 0 : vector<7x16xf32>, vector<1x16xf32> -> vector<8x16xf32>
    %c1_i32_98 = arith.constant 1 : i32
    %283 = vector.broadcast %c1_i32_98 : i32 to vector<8x1xi32>
    %284 = arith.addi %218, %283 : vector<8x1xi32>
    %c0_i32_99 = arith.constant 0 : i32
    %285 = vector.broadcast %c0_i32_99 : i32 to vector<8x1xi32>
    %286 = arith.cmpi sge, %284, %285 : vector<8x1xi32>
    %c1_i32_100 = arith.constant 1 : i32
    %287 = vector.broadcast %c1_i32_100 : i32 to vector<8x1xi32>
    %288 = arith.addi %218, %287 : vector<8x1xi32>
    %c8_i32_101 = arith.constant 8 : i32
    %289 = vector.broadcast %c8_i32_101 : i32 to vector<8x1xi32>
    %290 = arith.cmpi slt, %288, %289 : vector<8x1xi32>
    %291 = arith.andi %286, %290 : vector<8x1xi1>
    %cst_102 = arith.constant 0.000000e+00 : f32
    %292 = vector.shape_cast %291 : vector<8x1xi1> to vector<8x1xi1>
    %293 = vector.broadcast %292 : vector<8x1xi1> to vector<8x16xi1>
    %294 = vector.broadcast %cst_102 : f32 to vector<8x16xf32>
    %295 = arith.select %293, %282, %294 : vector<8x16xi1>, vector<8x16xf32>
    %296 = vector.extract_strided_slice %201 {offsets = [2, 0], sizes = [6, 16], strides = [1, 1]} : vector<8x16xf32> to vector<6x16xf32>
    %cst_103 = arith.constant 0.000000e+00 : f32
    %297 = vector.broadcast %cst_103 : f32 to vector<2x16xf32>
    %298 = tpu.concatenate %296, %297 in 0 : vector<6x16xf32>, vector<2x16xf32> -> vector<8x16xf32>
    %c2_i32 = arith.constant 2 : i32
    %299 = vector.broadcast %c2_i32 : i32 to vector<8x1xi32>
    %300 = arith.addi %218, %299 : vector<8x1xi32>
    %c0_i32_104 = arith.constant 0 : i32
    %301 = vector.broadcast %c0_i32_104 : i32 to vector<8x1xi32>
    %302 = arith.cmpi sge, %300, %301 : vector<8x1xi32>
    %c2_i32_105 = arith.constant 2 : i32
    %303 = vector.broadcast %c2_i32_105 : i32 to vector<8x1xi32>
    %304 = arith.addi %218, %303 : vector<8x1xi32>
    %c8_i32_106 = arith.constant 8 : i32
    %305 = vector.broadcast %c8_i32_106 : i32 to vector<8x1xi32>
    %306 = arith.cmpi slt, %304, %305 : vector<8x1xi32>
    %307 = arith.andi %302, %306 : vector<8x1xi1>
    %cst_107 = arith.constant 0.000000e+00 : f32
    %308 = vector.shape_cast %307 : vector<8x1xi1> to vector<8x1xi1>
    %309 = vector.broadcast %308 : vector<8x1xi1> to vector<8x16xi1>
    %310 = vector.broadcast %cst_107 : f32 to vector<8x16xf32>
    %311 = arith.select %309, %298, %310 : vector<8x16xi1>, vector<8x16xf32>
    %312 = vector.extract_strided_slice %201 {offsets = [3, 0], sizes = [5, 16], strides = [1, 1]} : vector<8x16xf32> to vector<5x16xf32>
    %cst_108 = arith.constant 0.000000e+00 : f32
    %313 = vector.broadcast %cst_108 : f32 to vector<3x16xf32>
    %314 = tpu.concatenate %312, %313 in 0 : vector<5x16xf32>, vector<3x16xf32> -> vector<8x16xf32>
    %c3_i32 = arith.constant 3 : i32
    %315 = vector.broadcast %c3_i32 : i32 to vector<8x1xi32>
    %316 = arith.addi %218, %315 : vector<8x1xi32>
    %c0_i32_109 = arith.constant 0 : i32
    %317 = vector.broadcast %c0_i32_109 : i32 to vector<8x1xi32>
    %318 = arith.cmpi sge, %316, %317 : vector<8x1xi32>
    %c3_i32_110 = arith.constant 3 : i32
    %319 = vector.broadcast %c3_i32_110 : i32 to vector<8x1xi32>
    %320 = arith.addi %218, %319 : vector<8x1xi32>
    %c8_i32_111 = arith.constant 8 : i32
    %321 = vector.broadcast %c8_i32_111 : i32 to vector<8x1xi32>
    %322 = arith.cmpi slt, %320, %321 : vector<8x1xi32>
    %323 = arith.andi %318, %322 : vector<8x1xi1>
    %cst_112 = arith.constant 0.000000e+00 : f32
    %324 = vector.shape_cast %323 : vector<8x1xi1> to vector<8x1xi1>
    %325 = vector.broadcast %324 : vector<8x1xi1> to vector<8x16xi1>
    %326 = vector.broadcast %cst_112 : f32 to vector<8x16xf32>
    %327 = arith.select %325, %314, %326 : vector<8x16xi1>, vector<8x16xf32>
    %cst_113 = arith.constant 0.000000e+00 : f32
    %328 = vector.broadcast %cst_113 : f32 to vector<8x16xf32>
    %c0_114 = arith.constant 0 : index
    %c0_115 = arith.constant 0 : index
    %c0_116 = arith.constant 0 : index
    %329 = vector.load %arg21[%c0_114, %c0_115, %c0_116] : memref<3x1x16xf32, #tpu.memory_space<vmem>>, vector<3x1x16xf32>
    %c0_117 = arith.constant 0 : index
    %c0_118 = arith.constant 0 : index
    %330 = vector.load %arg22[%c0_117, %c0_118] : memref<1x16xf32, #tpu.memory_space<vmem>>, vector<1x16xf32>
    %cst_119 = arith.constant 0.000000e+00 : f32
    %331 = vector.broadcast %cst_119 : f32 to vector<8x16xf32>
    %332 = vector.extract_strided_slice %329 {offsets = [0, 0, 0], sizes = [1, 1, 16], strides = [1, 1, 1]} : vector<3x1x16xf32> to vector<1x1x16xf32>
    %333 = vector.shape_cast %332 : vector<1x1x16xf32> to vector<1x16xf32>
    %334 = vector.broadcast %333 : vector<1x16xf32> to vector<8x16xf32>
    %335 = arith.mulf %266, %334 : vector<8x16xf32>
    %336 = arith.addf %331, %335 : vector<8x16xf32>
    %337 = vector.extract_strided_slice %329 {offsets = [1, 0, 0], sizes = [1, 1, 16], strides = [1, 1, 1]} : vector<3x1x16xf32> to vector<1x1x16xf32>
    %338 = vector.shape_cast %337 : vector<1x1x16xf32> to vector<1x16xf32>
    %339 = vector.broadcast %338 : vector<1x16xf32> to vector<8x16xf32>
    %340 = arith.mulf %279, %339 : vector<8x16xf32>
    %341 = arith.addf %336, %340 : vector<8x16xf32>
    %342 = vector.extract_strided_slice %329 {offsets = [2, 0, 0], sizes = [1, 1, 16], strides = [1, 1, 1]} : vector<3x1x16xf32> to vector<1x1x16xf32>
    %343 = vector.shape_cast %342 : vector<1x1x16xf32> to vector<1x16xf32>
    %344 = vector.broadcast %343 : vector<1x16xf32> to vector<8x16xf32>
    %345 = arith.mulf %295, %344 : vector<8x16xf32>
    %346 = arith.addf %341, %345 : vector<8x16xf32>
    %347 = vector.broadcast %330 : vector<1x16xf32> to vector<8x16xf32>
    %348 = arith.addf %346, %347 : vector<8x16xf32>
    %cst_120 = arith.constant 0.000000e+00 : f32
    %349 = vector.broadcast %cst_120 : f32 to vector<8x16xf32>
    %350 = arith.maximumf %348, %349 : vector<8x16xf32>
    %351 = arith.addf %328, %350 : vector<8x16xf32>
    %c0_121 = arith.constant 0 : index
    %c0_122 = arith.constant 0 : index
    %c0_123 = arith.constant 0 : index
    %352 = vector.load %arg23[%c0_121, %c0_122, %c0_123] : memref<5x1x16xf32, #tpu.memory_space<vmem>>, vector<5x1x16xf32>
    %c0_124 = arith.constant 0 : index
    %c0_125 = arith.constant 0 : index
    %353 = vector.load %arg24[%c0_124, %c0_125] : memref<1x16xf32, #tpu.memory_space<vmem>>, vector<1x16xf32>
    %cst_126 = arith.constant 0.000000e+00 : f32
    %354 = vector.broadcast %cst_126 : f32 to vector<8x16xf32>
    %355 = vector.extract_strided_slice %352 {offsets = [0, 0, 0], sizes = [1, 1, 16], strides = [1, 1, 1]} : vector<5x1x16xf32> to vector<1x1x16xf32>
    %356 = vector.shape_cast %355 : vector<1x1x16xf32> to vector<1x16xf32>
    %357 = vector.broadcast %356 : vector<1x16xf32> to vector<8x16xf32>
    %358 = arith.mulf %250, %357 : vector<8x16xf32>
    %359 = arith.addf %354, %358 : vector<8x16xf32>
    %360 = vector.extract_strided_slice %352 {offsets = [1, 0, 0], sizes = [1, 1, 16], strides = [1, 1, 1]} : vector<5x1x16xf32> to vector<1x1x16xf32>
    %361 = vector.shape_cast %360 : vector<1x1x16xf32> to vector<1x16xf32>
    %362 = vector.broadcast %361 : vector<1x16xf32> to vector<8x16xf32>
    %363 = arith.mulf %266, %362 : vector<8x16xf32>
    %364 = arith.addf %359, %363 : vector<8x16xf32>
    %365 = vector.extract_strided_slice %352 {offsets = [2, 0, 0], sizes = [1, 1, 16], strides = [1, 1, 1]} : vector<5x1x16xf32> to vector<1x1x16xf32>
    %366 = vector.shape_cast %365 : vector<1x1x16xf32> to vector<1x16xf32>
    %367 = vector.broadcast %366 : vector<1x16xf32> to vector<8x16xf32>
    %368 = arith.mulf %279, %367 : vector<8x16xf32>
    %369 = arith.addf %364, %368 : vector<8x16xf32>
    %370 = vector.extract_strided_slice %352 {offsets = [3, 0, 0], sizes = [1, 1, 16], strides = [1, 1, 1]} : vector<5x1x16xf32> to vector<1x1x16xf32>
    %371 = vector.shape_cast %370 : vector<1x1x16xf32> to vector<1x16xf32>
    %372 = vector.broadcast %371 : vector<1x16xf32> to vector<8x16xf32>
    %373 = arith.mulf %295, %372 : vector<8x16xf32>
    %374 = arith.addf %369, %373 : vector<8x16xf32>
    %375 = vector.extract_strided_slice %352 {offsets = [4, 0, 0], sizes = [1, 1, 16], strides = [1, 1, 1]} : vector<5x1x16xf32> to vector<1x1x16xf32>
    %376 = vector.shape_cast %375 : vector<1x1x16xf32> to vector<1x16xf32>
    %377 = vector.broadcast %376 : vector<1x16xf32> to vector<8x16xf32>
    %378 = arith.mulf %311, %377 : vector<8x16xf32>
    %379 = arith.addf %374, %378 : vector<8x16xf32>
    %380 = vector.broadcast %353 : vector<1x16xf32> to vector<8x16xf32>
    %381 = arith.addf %379, %380 : vector<8x16xf32>
    %cst_127 = arith.constant 0.000000e+00 : f32
    %382 = vector.broadcast %cst_127 : f32 to vector<8x16xf32>
    %383 = arith.maximumf %381, %382 : vector<8x16xf32>
    %384 = arith.addf %351, %383 : vector<8x16xf32>
    %c0_128 = arith.constant 0 : index
    %c0_129 = arith.constant 0 : index
    %c0_130 = arith.constant 0 : index
    %385 = vector.load %arg25[%c0_128, %c0_129, %c0_130] : memref<7x1x16xf32, #tpu.memory_space<vmem>>, vector<7x1x16xf32>
    %c0_131 = arith.constant 0 : index
    %c0_132 = arith.constant 0 : index
    %386 = vector.load %arg26[%c0_131, %c0_132] : memref<1x16xf32, #tpu.memory_space<vmem>>, vector<1x16xf32>
    %cst_133 = arith.constant 0.000000e+00 : f32
    %387 = vector.broadcast %cst_133 : f32 to vector<8x16xf32>
    %388 = vector.extract_strided_slice %385 {offsets = [0, 0, 0], sizes = [1, 1, 16], strides = [1, 1, 1]} : vector<7x1x16xf32> to vector<1x1x16xf32>
    %389 = vector.shape_cast %388 : vector<1x1x16xf32> to vector<1x16xf32>
    %390 = vector.broadcast %389 : vector<1x16xf32> to vector<8x16xf32>
    %391 = arith.mulf %234, %390 : vector<8x16xf32>
    %392 = arith.addf %387, %391 : vector<8x16xf32>
    %393 = vector.extract_strided_slice %385 {offsets = [1, 0, 0], sizes = [1, 1, 16], strides = [1, 1, 1]} : vector<7x1x16xf32> to vector<1x1x16xf32>
    %394 = vector.shape_cast %393 : vector<1x1x16xf32> to vector<1x16xf32>
    %395 = vector.broadcast %394 : vector<1x16xf32> to vector<8x16xf32>
    %396 = arith.mulf %250, %395 : vector<8x16xf32>
    %397 = arith.addf %392, %396 : vector<8x16xf32>
    %398 = vector.extract_strided_slice %385 {offsets = [2, 0, 0], sizes = [1, 1, 16], strides = [1, 1, 1]} : vector<7x1x16xf32> to vector<1x1x16xf32>
    %399 = vector.shape_cast %398 : vector<1x1x16xf32> to vector<1x16xf32>
    %400 = vector.broadcast %399 : vector<1x16xf32> to vector<8x16xf32>
    %401 = arith.mulf %266, %400 : vector<8x16xf32>
    %402 = arith.addf %397, %401 : vector<8x16xf32>
    %403 = vector.extract_strided_slice %385 {offsets = [3, 0, 0], sizes = [1, 1, 16], strides = [1, 1, 1]} : vector<7x1x16xf32> to vector<1x1x16xf32>
    %404 = vector.shape_cast %403 : vector<1x1x16xf32> to vector<1x16xf32>
    %405 = vector.broadcast %404 : vector<1x16xf32> to vector<8x16xf32>
    %406 = arith.mulf %279, %405 : vector<8x16xf32>
    %407 = arith.addf %402, %406 : vector<8x16xf32>
    %408 = vector.extract_strided_slice %385 {offsets = [4, 0, 0], sizes = [1, 1, 16], strides = [1, 1, 1]} : vector<7x1x16xf32> to vector<1x1x16xf32>
    %409 = vector.shape_cast %408 : vector<1x1x16xf32> to vector<1x16xf32>
    %410 = vector.broadcast %409 : vector<1x16xf32> to vector<8x16xf32>
    %411 = arith.mulf %295, %410 : vector<8x16xf32>
    %412 = arith.addf %407, %411 : vector<8x16xf32>
    %413 = vector.extract_strided_slice %385 {offsets = [5, 0, 0], sizes = [1, 1, 16], strides = [1, 1, 1]} : vector<7x1x16xf32> to vector<1x1x16xf32>
    %414 = vector.shape_cast %413 : vector<1x1x16xf32> to vector<1x16xf32>
    %415 = vector.broadcast %414 : vector<1x16xf32> to vector<8x16xf32>
    %416 = arith.mulf %311, %415 : vector<8x16xf32>
    %417 = arith.addf %412, %416 : vector<8x16xf32>
    %418 = vector.extract_strided_slice %385 {offsets = [6, 0, 0], sizes = [1, 1, 16], strides = [1, 1, 1]} : vector<7x1x16xf32> to vector<1x1x16xf32>
    %419 = vector.shape_cast %418 : vector<1x1x16xf32> to vector<1x16xf32>
    %420 = vector.broadcast %419 : vector<1x16xf32> to vector<8x16xf32>
    %421 = arith.mulf %327, %420 : vector<8x16xf32>
    %422 = arith.addf %417, %421 : vector<8x16xf32>
    %423 = vector.broadcast %386 : vector<1x16xf32> to vector<8x16xf32>
    %424 = arith.addf %422, %423 : vector<8x16xf32>
    %cst_134 = arith.constant 0.000000e+00 : f32
    %425 = vector.broadcast %cst_134 : f32 to vector<8x16xf32>
    %426 = arith.maximumf %424, %425 : vector<8x16xf32>
    %427 = arith.addf %384, %426 : vector<8x16xf32>
    %cst_135 = arith.constant 0.333333343 : f32
    %428 = vector.broadcast %cst_135 : f32 to vector<8x16xf32>
    %429 = arith.mulf %427, %428 : vector<8x16xf32>
    %c0_136 = arith.constant 0 : index
    %c0_137 = arith.constant 0 : index
    %430 = vector.load %arg27[%c0_136, %c0_137] : memref<16x32xbf16, #tpu.memory_space<vmem>>, vector<16x32xbf16>
    %431 = arith.truncf %429 : vector<8x16xf32> to vector<8x16xbf16>
    %cst_138 = arith.constant dense<0.000000e+00> : vector<8x32xf32>
    %432 = tpu.matmul %431, %430, %cst_138 {dimension_numbers = #tpu.dot_dimension_numbers<[1], [0], [0], [1], [0, 0, 1, 1], [], []>} : vector<8x16xbf16>, vector<16x32xbf16>, vector<8x32xf32> -> vector<8x32xf32>
    %433 = arith.addf %169, %432 : vector<8x32xf32>
    %c0_139 = arith.constant 0 : index
    %c0_140 = arith.constant 0 : index
    %434 = vector.load %arg28[%c0_139, %c0_140] : memref<1x32xf32, #tpu.memory_space<vmem>>, vector<1x32xf32>
    %435 = vector.broadcast %434 : vector<1x32xf32> to vector<8x32xf32>
    %436 = arith.addf %433, %435 : vector<8x32xf32>
    %cst_141 = arith.constant dense<0.000000e+00> : vector<8xf32>
    %437 = vector.multi_reduction <add>, %436, %cst_141 [1] : vector<8x32xf32> to vector<8xf32>
    %438 = vector.shape_cast %437 : vector<8xf32> to vector<8x1xf32>
    %cst_142 = arith.constant 3.200000e+01 : f32
    %439 = vector.broadcast %cst_142 : f32 to vector<8x1xf32>
    %440 = arith.divf %438, %439 : vector<8x1xf32>
    %441 = vector.broadcast %440 : vector<8x1xf32> to vector<8x32xf32>
    %442 = arith.subf %436, %441 : vector<8x32xf32>
    %443 = arith.mulf %442, %442 : vector<8x32xf32>
    %cst_143 = arith.constant dense<0.000000e+00> : vector<8xf32>
    %444 = vector.multi_reduction <add>, %443, %cst_143 [1] : vector<8x32xf32> to vector<8xf32>
    %445 = vector.shape_cast %444 : vector<8xf32> to vector<8x1xf32>
    %cst_144 = arith.constant 3.200000e+01 : f32
    %446 = vector.broadcast %cst_144 : f32 to vector<8x1xf32>
    %447 = arith.divf %445, %446 : vector<8x1xf32>
    %448 = vector.broadcast %440 : vector<8x1xf32> to vector<8x32xf32>
    %449 = arith.subf %436, %448 : vector<8x32xf32>
    %cst_145 = arith.constant 9.99999974E-6 : f32
    %450 = vector.broadcast %cst_145 : f32 to vector<8x1xf32>
    %451 = arith.addf %447, %450 : vector<8x1xf32>
    %452 = math.rsqrt %451 : vector<8x1xf32>
    %453 = vector.broadcast %452 : vector<8x1xf32> to vector<8x32xf32>
    %454 = arith.mulf %449, %453 : vector<8x32xf32>
    %c0_146 = arith.constant 0 : index
    %c0_147 = arith.constant 0 : index
    %455 = vector.load %arg9[%c0_146, %c0_147] : memref<1x32xf32, #tpu.memory_space<vmem>>, vector<1x32xf32>
    %456 = vector.broadcast %455 : vector<1x32xf32> to vector<8x32xf32>
    %457 = arith.mulf %454, %456 : vector<8x32xf32>
    %c0_148 = arith.constant 0 : index
    %c0_149 = arith.constant 0 : index
    %458 = vector.load %arg10[%c0_148, %c0_149] : memref<1x32xf32, #tpu.memory_space<vmem>>, vector<1x32xf32>
    %459 = vector.broadcast %458 : vector<1x32xf32> to vector<8x32xf32>
    %460 = arith.addf %457, %459 : vector<8x32xf32>
    %c0_150 = arith.constant 0 : index
    %c0_151 = arith.constant 0 : index
    %461 = vector.load %arg29[%c0_150, %c0_151] : memref<32x64xbf16, #tpu.memory_space<vmem>>, vector<32x64xbf16>
    %462 = arith.truncf %460 : vector<8x32xf32> to vector<8x32xbf16>
    %cst_152 = arith.constant dense<0.000000e+00> : vector<8x64xf32>
    %463 = tpu.matmul %462, %461, %cst_152 {dimension_numbers = #tpu.dot_dimension_numbers<[1], [0], [0], [1], [0, 0, 1, 1], [], []>} : vector<8x32xbf16>, vector<32x64xbf16>, vector<8x64xf32> -> vector<8x64xf32>
    %c0_153 = arith.constant 0 : index
    %c0_154 = arith.constant 0 : index
    %464 = vector.load %arg30[%c0_153, %c0_154] : memref<1x64xf32, #tpu.memory_space<vmem>>, vector<1x64xf32>
    %465 = vector.broadcast %464 : vector<1x64xf32> to vector<8x64xf32>
    %466 = arith.addf %463, %465 : vector<8x64xf32>
    %cst_155 = arith.constant 0.000000e+00 : f32
    %467 = vector.broadcast %cst_155 : f32 to vector<8x64xf32>
    %468 = arith.maximumf %466, %467 : vector<8x64xf32>
    %c0_156 = arith.constant 0 : index
    %c0_157 = arith.constant 0 : index
    %469 = vector.load %arg31[%c0_156, %c0_157] : memref<64x32xbf16, #tpu.memory_space<vmem>>, vector<64x32xbf16>
    %470 = arith.truncf %468 : vector<8x64xf32> to vector<8x64xbf16>
    %cst_158 = arith.constant dense<0.000000e+00> : vector<8x32xf32>
    %471 = tpu.matmul %470, %469, %cst_158 {dimension_numbers = #tpu.dot_dimension_numbers<[1], [0], [0], [1], [0, 0, 1, 1], [], []>} : vector<8x64xbf16>, vector<64x32xbf16>, vector<8x32xf32> -> vector<8x32xf32>
    %c0_159 = arith.constant 0 : index
    %c0_160 = arith.constant 0 : index
    %472 = vector.load %arg32[%c0_159, %c0_160] : memref<1x32xf32, #tpu.memory_space<vmem>>, vector<1x32xf32>
    %473 = vector.broadcast %472 : vector<1x32xf32> to vector<8x32xf32>
    %474 = arith.addf %471, %473 : vector<8x32xf32>
    %cst_161 = arith.constant 5.000000e-01 : f32
    %475 = vector.broadcast %cst_161 : f32 to vector<8x32xf32>
    %476 = arith.mulf %475, %474 : vector<8x32xf32>
    %477 = arith.addf %436, %476 : vector<8x32xf32>
    %c0_162 = arith.constant 0 : index
    %c0_163 = arith.constant 0 : index
    %478 = vector.load %arg33[%c0_162, %c0_163] : memref<8x32xf32, #tpu.memory_space<vmem>>, vector<8x32xf32>
    tpu.vector_store %arg33[%c0_162, %c0_163], %477 {strides = array<i32>} : memref<8x32xf32, #tpu.memory_space<vmem>>, vector<8x32xf32>,
    return
  }
  func.func @transform_0(%arg0: i32) -> (i32, i32) {
    %c0_i32 = arith.constant 0 : i32
    %c0_i32_0 = arith.constant 0 : i32
    return %arg0, %c0_i32 : i32, i32
  }
  func.func @transform_1(%arg0: i32) -> (i32, i32, i32) {
    %c0_i32 = arith.constant 0 : i32
    %c0_i32_0 = arith.constant 0 : i32
    %c0_i32_1 = arith.constant 0 : i32
    %c0_i32_2 = arith.constant 0 : i32
    return %c0_i32, %c0_i32_0, %c0_i32_1 : i32, i32, i32
  }
  func.func @transform_2(%arg0: i32) -> (i32, i32) {
    %c0_i32 = arith.constant 0 : i32
    %c0_i32_0 = arith.constant 0 : i32
    %c0_i32_1 = arith.constant 0 : i32
    return %c0_i32, %c0_i32_0 : i32, i32
  }
  func.func @transform_3(%arg0: i32) -> (i32, i32) {
    %c0_i32 = arith.constant 0 : i32
    %c0_i32_0 = arith.constant 0 : i32
    %c0_i32_1 = arith.constant 0 : i32
    return %c0_i32, %c0_i32_0 : i32, i32
  }
  func.func @transform_4(%arg0: i32) -> (i32, i32) {
    %c0_i32 = arith.constant 0 : i32
    %c0_i32_0 = arith.constant 0 : i32
    %c0_i32_1 = arith.constant 0 : i32
    return %c0_i32, %c0_i32_0 : i32, i32
  }
  func.func @transform_5(%arg0: i32) -> (i32, i32) {
    %c0_i32 = arith.constant 0 : i32
    %c0_i32_0 = arith.constant 0 : i32
    %c0_i32_1 = arith.constant 0 : i32
    return %c0_i32, %c0_i32_0 : i32, i32
  }
  func.func @transform_6(%arg0: i32) -> (i32, i32) {
    %c0_i32 = arith.constant 0 : i32
    %c0_i32_0 = arith.constant 0 : i32
    %c0_i32_1 = arith.constant 0 : i32
    return %c0_i32, %c0_i32_0 : i32, i32
  }
  func.func @transform_7(%arg0: i32) -> (i32, i32) {
    %c0_i32 = arith.constant 0 : i32
    %c0_i32_0 = arith.constant 0 : i32
    %c0_i32_1 = arith.constant 0 : i32
    return %c0_i32, %c0_i32_0 : i32, i32
  }
  func.func @transform_8(%arg0: i32) -> (i32, i32) {
    %c0_i32 = arith.constant 0 : i32
    %c0_i32_0 = arith.constant 0 : i32
    %c0_i32_1 = arith.constant 0 : i32
    return %c0_i32, %c0_i32_0 : i32, i32
  }
  func.func @transform_9(%arg0: i32) -> (i32, i32) {
    %c0_i32 = arith.constant 0 : i32
    %c0_i32_0 = arith.constant 0 : i32
    %c0_i32_1 = arith.constant 0 : i32
    return %c0_i32, %c0_i32_0 : i32, i32
  }
  func.func @transform_10(%arg0: i32) -> (i32, i32) {
    %c0_i32 = arith.constant 0 : i32
    %c0_i32_0 = arith.constant 0 : i32
    %c0_i32_1 = arith.constant 0 : i32
    return %c0_i32, %c0_i32_0 : i32, i32
  }
  func.func @transform_11(%arg0: i32) -> (i32, i32) {
    %c0_i32 = arith.constant 0 : i32
    %c0_i32_0 = arith.constant 0 : i32
    %c0_i32_1 = arith.constant 0 : i32
    return %c0_i32, %c0_i32_0 : i32, i32
  }
  func.func @transform_12(%arg0: i32) -> (i32, i32) {
    %c0_i32 = arith.constant 0 : i32
    %c0_i32_0 = arith.constant 0 : i32
    %c0_i32_1 = arith.constant 0 : i32
    return %c0_i32, %c0_i32_0 : i32, i32
  }
  func.func @transform_13(%arg0: i32) -> (i32, i32) {
    %c0_i32 = arith.constant 0 : i32
    %c0_i32_0 = arith.constant 0 : i32
    %c0_i32_1 = arith.constant 0 : i32
    return %c0_i32, %c0_i32_0 : i32, i32
  }
  func.func @transform_14(%arg0: i32) -> (i32, i32) {
    %c0_i32 = arith.constant 0 : i32
    %c0_i32_0 = arith.constant 0 : i32
    %c0_i32_1 = arith.constant 0 : i32
    return %c0_i32, %c0_i32_0 : i32, i32
  }
  func.func @transform_15(%arg0: i32) -> (i32, i32) {
    %c0_i32 = arith.constant 0 : i32
    %c0_i32_0 = arith.constant 0 : i32
    %c0_i32_1 = arith.constant 0 : i32
    return %c0_i32, %c0_i32_0 : i32, i32
  }
  func.func @transform_16(%arg0: i32) -> (i32, i32) {
    %c0_i32 = arith.constant 0 : i32
    %c0_i32_0 = arith.constant 0 : i32
    %c0_i32_1 = arith.constant 0 : i32
    return %c0_i32, %c0_i32_0 : i32, i32
  }
  func.func @transform_17(%arg0: i32) -> (i32, i32) {
    %c0_i32 = arith.constant 0 : i32
    %c0_i32_0 = arith.constant 0 : i32
    %c0_i32_1 = arith.constant 0 : i32
    return %c0_i32, %c0_i32_0 : i32, i32
  }
  func.func @transform_18(%arg0: i32) -> (i32, i32) {
    %c0_i32 = arith.constant 0 : i32
    %c0_i32_0 = arith.constant 0 : i32
    %c0_i32_1 = arith.constant 0 : i32
    return %c0_i32, %c0_i32_0 : i32, i32
  }
  func.func @transform_19(%arg0: i32) -> (i32, i32) {
    %c0_i32 = arith.constant 0 : i32
    %c0_i32_0 = arith.constant 0 : i32
    %c0_i32_1 = arith.constant 0 : i32
    return %c0_i32, %c0_i32_0 : i32, i32
  }
  func.func @transform_20(%arg0: i32) -> (i32, i32, i32) {
    %c0_i32 = arith.constant 0 : i32
    %c0_i32_0 = arith.constant 0 : i32
    %c0_i32_1 = arith.constant 0 : i32
    %c0_i32_2 = arith.constant 0 : i32
    return %c0_i32, %c0_i32_0, %c0_i32_1 : i32, i32, i32
  }
  func.func @transform_21(%arg0: i32) -> (i32, i32) {
    %c0_i32 = arith.constant 0 : i32
    %c0_i32_0 = arith.constant 0 : i32
    %c0_i32_1 = arith.constant 0 : i32
    return %c0_i32, %c0_i32_0 : i32, i32
  }
  func.func @transform_22(%arg0: i32) -> (i32, i32, i32) {
    %c0_i32 = arith.constant 0 : i32
    %c0_i32_0 = arith.constant 0 : i32
    %c0_i32_1 = arith.constant 0 : i32
    %c0_i32_2 = arith.constant 0 : i32
    return %c0_i32, %c0_i32_0, %c0_i32_1 : i32, i32, i32
  }
  func.func @transform_23(%arg0: i32) -> (i32, i32) {
    %c0_i32 = arith.constant 0 : i32
    %c0_i32_0 = arith.constant 0 : i32
    %c0_i32_1 = arith.constant 0 : i32
    return %c0_i32, %c0_i32_0 : i32, i32
  }
  func.func @transform_24(%arg0: i32) -> (i32, i32, i32) {
    %c0_i32 = arith.constant 0 : i32
    %c0_i32_0 = arith.constant 0 : i32
    %c0_i32_1 = arith.constant 0 : i32
    %c0_i32_2 = arith.constant 0 : i32
    return %c0_i32, %c0_i32_0, %c0_i32_1 : i32, i32, i32
  }
  func.func @transform_25(%arg0: i32) -> (i32, i32) {
    %c0_i32 = arith.constant 0 : i32
    %c0_i32_0 = arith.constant 0 : i32
    %c0_i32_1 = arith.constant 0 : i32
    return %c0_i32, %c0_i32_0 : i32, i32
  }
  func.func @transform_26(%arg0: i32) -> (i32, i32) {
    %c0_i32 = arith.constant 0 : i32
    %c0_i32_0 = arith.constant 0 : i32
    %c0_i32_1 = arith.constant 0 : i32
    return %c0_i32, %c0_i32_0 : i32, i32
  }
  func.func @transform_27(%arg0: i32) -> (i32, i32) {
    %c0_i32 = arith.constant 0 : i32
    %c0_i32_0 = arith.constant 0 : i32
    %c0_i32_1 = arith.constant 0 : i32
    return %c0_i32, %c0_i32_0 : i32, i32
  }
  func.func @transform_28(%arg0: i32) -> (i32, i32) {
    %c0_i32 = arith.constant 0 : i32
    %c0_i32_0 = arith.constant 0 : i32
    %c0_i32_1 = arith.constant 0 : i32
    return %c0_i32, %c0_i32_0 : i32, i32
  }
  func.func @transform_29(%arg0: i32) -> (i32, i32) {
    %c0_i32 = arith.constant 0 : i32
    %c0_i32_0 = arith.constant 0 : i32
    %c0_i32_1 = arith.constant 0 : i32
    return %c0_i32, %c0_i32_0 : i32, i32
  }
  func.func @transform_30(%arg0: i32) -> (i32, i32) {
    %c0_i32 = arith.constant 0 : i32
    %c0_i32_0 = arith.constant 0 : i32
    %c0_i32_1 = arith.constant 0 : i32
    return %c0_i32, %c0_i32_0 : i32, i32
  }
  func.func @transform_31(%arg0: i32) -> (i32, i32) {
    %c0_i32 = arith.constant 0 : i32
    %c0_i32_0 = arith.constant 0 : i32
    %c0_i32_1 = arith.constant 0 : i32
    return %c0_i32, %c0_i32_0 : i32, i32
  }
  func.func @transform_32(%arg0: i32) -> (i32, i32) {
    %c0_i32 = arith.constant 0 : i32
    %c0_i32_0 = arith.constant 0 : i32
    return %arg0, %c0_i32 : i32, i32
  }
}

</mosaic_0001>

<llo_original>
// kernel: tpu_custom_call.1
$region0: #{tpu_custom_call.1}
  #allocation0 [shape = 'u32[]', space=smem, size = 0x4, offset = 0x4, fixed_abs, tag = 'smem constant byte address 0x4 - core index']
  #allocation1 [shape = 'u32[144,128]{1,0:T(1,128)}', space=vmem, size = 0x12000, scoped, tag = 'internal scratch']
  %s0 = inlined_call_operand.smem [shape: u32[33], index: -1, kind: input, shape index: {}]
  %s1 = sld [smem:[%s0]]
  %s2 = scalar_lea.smem %s0, 1
  %s3 = sld [smem:[%s2]]
  %s4 = scalar_lea.smem %s0, 2
  %s5 = sld [smem:[%s4]]
  %s6 = scalar_lea.smem %s0, 3
  %s7 = sld [smem:[%s6]]
  %s8 = scalar_lea.smem %s0, 4
  %s9 = sld [smem:[%s8]]
  %s10 = scalar_lea.smem %s0, 5
  %s11 = sld [smem:[%s10]]
  %s12 = scalar_lea.smem %s0, 6
  %s13 = sld [smem:[%s12]]
  %s14 = scalar_lea.smem %s0, 7
  %s15 = sld [smem:[%s14]]
  %s16 = scalar_lea.smem %s0, 8
  %s17 = sld [smem:[%s16]]
  %s18 = scalar_lea.smem %s0, 9
  %s19 = sld [smem:[%s18]]
  %s20 = scalar_lea.smem %s0, 10
  %s21 = sld [smem:[%s20]]
  %s22 = scalar_lea.smem %s0, 11
  %s23 = sld [smem:[%s22]]
  %s24 = scalar_lea.smem %s0, 12
  %s25 = sld [smem:[%s24]]
  %s26 = scalar_lea.smem %s0, 13
  %s27 = sld [smem:[%s26]]
  %s28 = scalar_lea.smem %s0, 14
  %s29 = sld [smem:[%s28]]
  %s30 = scalar_lea.smem %s0, 15
  %s31 = sld [smem:[%s30]]
  %s32 = scalar_lea.smem %s0, 16
  %s33 = sld [smem:[%s32]]
  %s34 = scalar_lea.smem %s0, 17
  %s35 = sld [smem:[%s34]]
  %s36 = scalar_lea.smem %s0, 18
  %s37 = sld [smem:[%s36]]
  %s38 = scalar_lea.smem %s0, 19
  %s39 = sld [smem:[%s38]]
  %s40 = scalar_lea.smem %s0, 20
  %s41 = sld [smem:[%s40]]
  %s42 = scalar_lea.smem %s0, 21
  %s43 = sld [smem:[%s42]]
  %s44 = scalar_lea.smem %s0, 22
  %s45 = sld [smem:[%s44]]
  %s46 = scalar_lea.smem %s0, 23
  %s47 = sld [smem:[%s46]]
  %s48 = scalar_lea.smem %s0, 24
  %s49 = sld [smem:[%s48]]
  %s50 = scalar_lea.smem %s0, 25
  %s51 = sld [smem:[%s50]]
  %s52 = scalar_lea.smem %s0, 26
  %s53 = sld [smem:[%s52]]
  %s54 = scalar_lea.smem %s0, 27
  %s55 = sld [smem:[%s54]]
  %s56 = scalar_lea.smem %s0, 28
  %s57 = sld [smem:[%s56]]
  %s58 = scalar_lea.smem %s0, 29
  %s59 = sld [smem:[%s58]]
  %s60 = scalar_lea.smem %s0, 30
  %s61 = sld [smem:[%s60]]
  %s62 = scalar_lea.smem %s0, 31
  %s63 = sld [smem:[%s62]]
  %s64 = scalar_lea.smem %s0, 32
  %s65 = sld [smem:[%s64]]
  %s66 = sld [smem:[#allocation0]]
  $region289: #{tpu_custom_call.1} parent=0
    _
  %s68 = ssub.s32 1, %s66
  %s69 = scalar_select 0, %s68, %s66
  $region1: #{tpu_custom_call.1} parent=0
    #allocation2 [shape = 'u8[8192]{0}', space=vmem, size = 0x2000, scoped, tag = 'input window, operand 0']
    #allocation3 [shape = 's32[2]{0}', space=sflag, size = 0x8, scoped, tag = 'scoped memory for tpu_custom_call.1']
    #allocation4 [shape = 's32[2]{0}', space=sflag, size = 0x8, scoped, tag = 'scoped memory for tpu_custom_call.1']
    #allocation5 [shape = 'u8[8192]{0}', space=vmem, size = 0x2000, scoped, tag = 'input window, operand 1, single buffered']
    #allocation6 [shape = 's32[1]{0}', space=sflag, size = 0x4, scoped, tag = 'scoped memory for tpu_custom_call.1']
    #allocation7 [shape = 'u8[512]{0}', space=vmem, size = 0x400, scoped, tag = 'input window, operand 2, single buffered']
    #allocation8 [shape = 'u8[512]{0}', space=vmem, size = 0x400, scoped, tag = 'input window, operand 3, single buffered']
    #allocation9 [shape = 's32[1]{0}', space=sflag, size = 0x4, scoped, tag = 'scoped memory for tpu_custom_call.1']
    #allocation10 [shape = 'u8[512]{0}', space=vmem, size = 0x400, scoped, tag = 'input window, operand 4, single buffered']
    #allocation11 [shape = 'u8[512]{0}', space=vmem, size = 0x400, scoped, tag = 'input window, operand 5, single buffered']
    #allocation12 [shape = 's32[1]{0}', space=sflag, size = 0x4, scoped, tag = 'scoped memory for tpu_custom_call.1']
    #allocation13 [shape = 'u8[512]{0}', space=vmem, size = 0x400, scoped, tag = 'input window, operand 6, single buffered']
    #allocation14 [shape = 'u8[512]{0}', space=vmem, size = 0x400, scoped, tag = 'input window, operand 7, single buffered']
    #allocation15 [shape = 's32[1]{0}', space=sflag, size = 0x4, scoped, tag = 'scoped memory for tpu_custom_call.1']
    #allocation16 [shape = 'u8[512]{0}', space=vmem, size = 0x400, scoped, tag = 'input window, operand 8, single buffered']
    #allocation17 [shape = 'u8[512]{0}', space=vmem, size = 0x400, scoped, tag = 'input window, operand 9, single buffered']
    #allocation18 [shape = 's32[1]{0}', space=sflag, size = 0x4, scoped, tag = 'scoped memory for tpu_custom_call.1']
    #allocation19 [shape = 'u8[8192]{0}', space=vmem, size = 0x2000, scoped, tag = 'input window, operand 10, single buffered']
    #allocation20 [shape = 'u8[512]{0}', space=vmem, size = 0x400, scoped, tag = 'input window, operand 11, single buffered']
    #allocation21 [shape = 's32[1]{0}', space=sflag, size = 0x4, scoped, tag = 'scoped memory for tpu_custom_call.1']
    #allocation22 [shape = 'u8[16384]{0}', space=vmem, size = 0x4000, scoped, tag = 'input window, operand 12, single buffered']
    #allocation23 [shape = 'u8[512]{0}', space=vmem, size = 0x400, scoped, tag = 'input window, operand 13, single buffered']
    #allocation24 [shape = 's32[1]{0}', space=sflag, size = 0x4, scoped, tag = 'scoped memory for tpu_custom_call.1']
    #allocation25 [shape = 'u8[8192]{0}', space=vmem, size = 0x2000, scoped, tag = 'input window, operand 14, single buffered']
    #allocation26 [shape = 'u8[512]{0}', space=vmem, size = 0x400, scoped, tag = 'input window, operand 15, single buffered']
    #allocation27 [shape = 's32[1]{0}', space=sflag, size = 0x4, scoped, tag = 'scoped memory for tpu_custom_call.1']
    #allocation28 [shape = 'u8[8192]{0}', space=vmem, size = 0x2000, scoped, tag = 'input window, operand 16, single buffered']
    #allocation29 [shape = 'u8[512]{0}', space=vmem, size = 0x400, scoped, tag = 'input window, operand 17, single buffered']
    #allocation30 [shape = 's32[1]{0}', space=sflag, size = 0x4, scoped, tag = 'scoped memory for tpu_custom_call.1']
    #allocation31 [shape = 'u8[8192]{0}', space=vmem, size = 0x2000, scoped, tag = 'input window, operand 18, single buffered']
    #allocation32 [shape = 'u8[512]{0}', space=vmem, size = 0x400, scoped, tag = 'input window, operand 19, single buffered']
    #allocation33 [shape = 's32[1]{0}', space=sflag, size = 0x4, scoped, tag = 'scoped memory for tpu_custom_call.1']
    #allocation34 [shape = 'u8[1536]{0}', space=vmem, size = 0x800, scoped, tag = 'input window, operand 20, single buffered']
    #allocation35 [shape = 'u8[512]{0}', space=vmem, size = 0x400, scoped, tag = 'input window, operand 21, single buffered']
    #allocation36 [shape = 's32[1]{0}', space=sflag, size = 0x4, scoped, tag = 'scoped memory for tpu_custom_call.1']
    #allocation37 [shape = 'u8[2560]{0}', space=vmem, size = 0xc00, scoped, tag = 'input window, operand 22, single buffered']
    #allocation38 [shape = 'u8[512]{0}', space=vmem, size = 0x400, scoped, tag = 'input window, operand 23, single buffered']
    #allocation39 [shape = 's32[1]{0}', space=sflag, size = 0x4, scoped, tag = 'scoped memory for tpu_custom_call.1']
    #allocation40 [shape = 'u8[3584]{0}', space=vmem, size = 0x1000, scoped, tag = 'input window, operand 24, single buffered']
    #allocation41 [shape = 'u8[512]{0}', space=vmem, size = 0x400, scoped, tag = 'input window, operand 25, single buffered']
    #allocation42 [shape = 's32[1]{0}', space=sflag, size = 0x4, scoped, tag = 'scoped memory for tpu_custom_call.1']
    #allocation43 [shape = 'u8[4096]{0}', space=vmem, size = 0x1000, scoped, tag = 'input window, operand 26, single buffered']
    #allocation44 [shape = 'u8[512]{0}', space=vmem, size = 0x400, scoped, tag = 'input window, operand 27, single buffered']
    #allocation45 [shape = 's32[1]{0}', space=sflag, size = 0x4, scoped, tag = 'scoped memory for tpu_custom_call.1']
    #allocation46 [shape = 'u8[8192]{0}', space=vmem, size = 0x2000, scoped, tag = 'input window, operand 28, single buffered']
    #allocation47 [shape = 'u8[512]{0}', space=vmem, size = 0x400, scoped, tag = 'input window, operand 29, single buffered']
    #allocation48 [shape = 's32[1]{0}', space=sflag, size = 0x4, scoped, tag = 'scoped memory for tpu_custom_call.1']
    #allocation49 [shape = 'u8[16384]{0}', space=vmem, size = 0x4000, scoped, tag = 'input window, operand 30, single buffered']
    #allocation50 [shape = 'u8[512]{0}', space=vmem, size = 0x400, scoped, tag = 'input window, operand 31, single buffered']
    #allocation51 [shape = 's32[1]{0}', space=sflag, size = 0x4, scoped, tag = 'scoped memory for tpu_custom_call.1']
    #allocation52 [shape = 'u8[8192]{0}', space=vmem, size = 0x2000, scoped, tag = 'output window, operand 0']
    %70 = vsyncpa [#allocation3], 0
    %s71 = scalar_lea.sflag [#allocation3], 1
    %72 = vsyncpa %s71, 0
    %73 = vsyncpa [#allocation6], 0
    %74 = vsyncpa [#allocation9], 0
    %75 = vsyncpa [#allocation12], 0
    %76 = vsyncpa [#allocation15], 0
    %77 = vsyncpa [#allocation18], 0
    %78 = vsyncpa [#allocation21], 0
    %79 = vsyncpa [#allocation24], 0
    %80 = vsyncpa [#allocation27], 0
    %81 = vsyncpa [#allocation30], 0
    %82 = vsyncpa [#allocation33], 0
    %83 = vsyncpa [#allocation36], 0
    %84 = vsyncpa [#allocation39], 0
    %85 = vsyncpa [#allocation42], 0
    %86 = vsyncpa [#allocation45], 0
    %87 = vsyncpa [#allocation48], 0
    %88 = vsyncpa [#allocation51], 0
    %89 = vsyncpa [#allocation4], 0
    %s90 = scalar_lea.sflag [#allocation4], 1
    %91 = vsyncpa %s90, 0
    loop: start=0, step=1, limit=4
    $region2: #{tpu_custom_call.1} parent=1 // loop_pre_header
      _
    $region3: #{tpu_custom_call.1} parent=1 // loop_header
      %s93 = sphi 0, %s97
      %p94 = scmp.ge.s32.totalorder %s93, 4
      %s103 = sphi 0, %s105
      %s106 = sphi 0, %s103
      %s107 = sphi 0, %s106
      %s123 = sphi 0, %s107
      %s127 = sphi 0, %s127
      %s129 = sphi 0, %s127
      %s130 = sphi 0, %s129
      %s144 = sphi 0, %s130
      %s148 = sphi 0, %s148
      %s150 = sphi 0, %s148
      %s151 = sphi 0, %s150
      %s165 = sphi 0, %s151
      %s169 = sphi 0, %s169
      %s171 = sphi 0, %s169
      %s172 = sphi 0, %s171
      %s186 = sphi 0, %s172
      %s190 = sphi 0, %s190
      %s192 = sphi 0, %s190
      %s193 = sphi 0, %s192
      %s207 = sphi 0, %s193
      %s211 = sphi 0, %s211
      %s213 = sphi 0, %s211
      %s214 = sphi 0, %s213
      %s228 = sphi 0, %s214
      %s232 = sphi 0, %s232
      %s234 = sphi 0, %s232
      %s235 = sphi 0, %s234
      %s249 = sphi 0, %s235
      %s253 = sphi 0, %s253
      %s255 = sphi 0, %s253
      %s256 = sphi 0, %s255
      %s270 = sphi 0, %s256
      %s274 = sphi 0, %s274
      %s276 = sphi 0, %s274
      %s277 = sphi 0, %s276
      %s291 = sphi 0, %s277
      %s295 = sphi 0, %s295
      %s297 = sphi 0, %s295
      %s298 = sphi 0, %s297
      %s312 = sphi 0, %s298
      %s316 = sphi 0, %s316
      %s318 = sphi 0, %s316
      %s319 = sphi 0, %s318
      %s333 = sphi 0, %s319
      %s337 = sphi 0, %s337
      %s339 = sphi 0, %s337
      %s340 = sphi 0, %s339
      %s354 = sphi 0, %s340
      %s358 = sphi 0, %s358
      %s360 = sphi 0, %s358
      %s361 = sphi 0, %s360
      %s375 = sphi 0, %s361
      %s379 = sphi 0, %s379
      %s381 = sphi 0, %s379
      %s382 = sphi 0, %s381
      %s396 = sphi 0, %s382
      %s400 = sphi 0, %s400
      %s402 = sphi 0, %s400
      %s403 = sphi 0, %s402
      %s417 = sphi 0, %s403
      %s421 = sphi 0, %s421
      %s423 = sphi 0, %s421
      %s424 = sphi 0, %s423
      %s438 = sphi 0, %s424
      %s442 = sphi 0, %s442
      %s444 = sphi 0, %s442
      %s445 = sphi 0, %s444
      %s459 = sphi 0, %s445
      %s463 = sphi 0, %s463
      %s465 = sphi 0, %s463
      %s466 = sphi 0, %s465
      %s480 = sphi 0, %s466
      %s484 = sphi 0, %s484
      %s486 = sphi 0, %s484
      %s487 = sphi 0, %s486
      %s501 = sphi 0, %s487
      %s505 = sphi 0, %s505
      %s507 = sphi 0, %s505
      %s508 = sphi 0, %s507
      %s522 = sphi 0, %s508
      %s526 = sphi 0, %s526
      %s528 = sphi 0, %s526
      %s529 = sphi 0, %s528
      %s543 = sphi 0, %s529
      %s547 = sphi 0, %s547
      %s549 = sphi 0, %s547
      %s550 = sphi 0, %s549
      %s564 = sphi 0, %s550
      %s568 = sphi 0, %s568
      %s570 = sphi 0, %s568
      %s571 = sphi 0, %s570
      %s585 = sphi 0, %s571
      %s589 = sphi 0, %s589
      %s591 = sphi 0, %s589
      %s592 = sphi 0, %s591
      %s606 = sphi 0, %s592
      %s610 = sphi 0, %s610
      %s612 = sphi 0, %s610
      %s613 = sphi 0, %s612
      %s627 = sphi 0, %s613
      %s631 = sphi 0, %s631
      %s633 = sphi 0, %s631
      %s634 = sphi 0, %s633
      %s648 = sphi 0, %s634
      %s652 = sphi 0, %s652
      %s654 = sphi 0, %s652
      %s655 = sphi 0, %s654
      %s669 = sphi 0, %s655
      %s673 = sphi 0, %s673
      %s675 = sphi 0, %s673
      %s676 = sphi 0, %s675
      %s690 = sphi 0, %s676
      %s694 = sphi 0, %s694
      %s696 = sphi 0, %s694
      %s697 = sphi 0, %s696
      %s711 = sphi 0, %s697
      %s715 = sphi 0, %s715
      %s717 = sphi 0, %s715
      %s718 = sphi 0, %s717
      %s732 = sphi 0, %s718
      %s736 = sphi 0, %s736
      %s738 = sphi 0, %s736
      %s739 = sphi 0, %s738
      %s753 = sphi 0, %s739
      %s757 = sphi 0, %s757
      %s759 = sphi 0, %s757
      %s760 = sphi 0, %s759
      %s774 = sphi 0, %s760
      %s780 = sphi 0, %s782
      %s783 = sphi 0, %s780
      %s784 = sphi 0, %s783
      %s800 = sphi 0, %s784
    $region4: #{tpu_custom_call.1} parent=1 // loop_header_branch
      %96 = sbr.rel (%p94) target = $region8
    $region5: #{tpu_custom_call.1} parent=1 // loop_body
      %s98 = ssub.s32 %s93, 1
      %s99 = ssub.s32 %s93, 2
      %s100 = sadd.s32 %s93, 1
      %s101 = ssub.s32 %s93, %s100
      %p102 = scmp.eq.s32.totalorder %s101, 0
      %s104 = sadd.s32 %s103, 1
      %s105 = scalar_select %p102, %s103, %s104
      %p108 = pneg %p102
      %p109 = scmp.eq.s32.totalorder %s93, 1
      %p110 = por %p108, %p109
      %p111 = scmp.ne.s32.totalorder %s103, %s106
      %p112 = scmp.eq.s32.totalorder %s93, 0
      %p113 = por %p111, %p112
      %p114 = scmp.ne.s32.totalorder %s103, %s106
      %p115 = scmp.eq.s32.totalorder %s98, 1
      %p116 = por %p114, %p115
      %p117 = scmp.ne.s32.totalorder %s106, %s107
      %p118 = scmp.eq.s32.totalorder %s98, 0
      %p119 = por %p117, %p118
      %p120 = scmp.ne.s32.totalorder %s106, %s107
      %p121 = scmp.eq.s32.totalorder %s99, 1
      %p122 = por %p120, %p121
      %p124 = scmp.ne.s32.totalorder %s107, %s123
      %p125 = scmp.eq.s32.totalorder %s99, 0
      %p126 = por %p124, %p125
      %s128 = sadd.s32 %s127, 1
      %p131 = scmp.eq.s32.totalorder %s93, 1
      %p132 = scmp.ne.s32.totalorder %s127, %s129
      %p133 = scmp.eq.s32.totalorder %s93, 0
      %p134 = por %p132, %p133
      %p135 = scmp.ne.s32.totalorder %s127, %s129
      %p136 = scmp.eq.s32.totalorder %s98, 1
      %p137 = por %p135, %p136
      %p138 = scmp.ne.s32.totalorder %s129, %s130
      %p139 = scmp.eq.s32.totalorder %s98, 0
      %p140 = por %p138, %p139
      %p141 = scmp.ne.s32.totalorder %s129, %s130
      %p142 = scmp.eq.s32.totalorder %s99, 1
      %p143 = por %p141, %p142
      %p145 = scmp.ne.s32.totalorder %s130, %s144
      %p146 = scmp.eq.s32.totalorder %s99, 0
      %p147 = por %p145, %p146
      %s149 = sadd.s32 %s148, 1
      %p152 = scmp.eq.s32.totalorder %s93, 1
      %p153 = scmp.ne.s32.totalorder %s148, %s150
      %p154 = scmp.eq.s32.totalorder %s93, 0
      %p155 = por %p153, %p154
      %p156 = scmp.ne.s32.totalorder %s148, %s150
      %p157 = scmp.eq.s32.totalorder %s98, 1
      %p158 = por %p156, %p157
      %p159 = scmp.ne.s32.totalorder %s150, %s151
      %p160 = scmp.eq.s32.totalorder %s98, 0
      %p161 = por %p159, %p160
      %p162 = scmp.ne.s32.totalorder %s150, %s151
      %p163 = scmp.eq.s32.totalorder %s99, 1
      %p164 = por %p162, %p163
      %p166 = scmp.ne.s32.totalorder %s151, %s165
      %p167 = scmp.eq.s32.totalorder %s99, 0
      %p168 = por %p166, %p167
      %s170 = sadd.s32 %s169, 1
      %p173 = scmp.eq.s32.totalorder %s93, 1
      %p174 = scmp.ne.s32.totalorder %s169, %s171
      %p175 = scmp.eq.s32.totalorder %s93, 0
      %p176 = por %p174, %p175
      %p177 = scmp.ne.s32.totalorder %s169, %s171
      %p178 = scmp.eq.s32.totalorder %s98, 1
      %p179 = por %p177, %p178
      %p180 = scmp.ne.s32.totalorder %s171, %s172
      %p181 = scmp.eq.s32.totalorder %s98, 0
      %p182 = por %p180, %p181
      %p183 = scmp.ne.s32.totalorder %s171, %s172
      %p184 = scmp.eq.s32.totalorder %s99, 1
      %p185 = por %p183, %p184
      %p187 = scmp.ne.s32.totalorder %s172, %s186
      %p188 = scmp.eq.s32.totalorder %s99, 0
      %p189 = por %p187, %p188
      %s191 = sadd.s32 %s190, 1
      %p194 = scmp.eq.s32.totalorder %s93, 1
      %p195 = scmp.ne.s32.totalorder %s190, %s192
      %p196 = scmp.eq.s32.totalorder %s93, 0
      %p197 = por %p195, %p196
      %p198 = scmp.ne.s32.totalorder %s190, %s192
      %p199 = scmp.eq.s32.totalorder %s98, 1
      %p200 = por %p198, %p199
      %p201 = scmp.ne.s32.totalorder %s192, %s193
      %p202 = scmp.eq.s32.totalorder %s98, 0
      %p203 = por %p201, %p202
      %p204 = scmp.ne.s32.totalorder %s192, %s193
      %p205 = scmp.eq.s32.totalorder %s99, 1
      %p206 = por %p204, %p205
      %p208 = scmp.ne.s32.totalorder %s193, %s207
      %p209 = scmp.eq.s32.totalorder %s99, 0
      %p210 = por %p208, %p209
      %s212 = sadd.s32 %s211, 1
      %p215 = scmp.eq.s32.totalorder %s93, 1
      %p216 = scmp.ne.s32.totalorder %s211, %s213
      %p217 = scmp.eq.s32.totalorder %s93, 0
      %p218 = por %p216, %p217
      %p219 = scmp.ne.s32.totalorder %s211, %s213
      %p220 = scmp.eq.s32.totalorder %s98, 1
      %p221 = por %p219, %p220
      %p222 = scmp.ne.s32.totalorder %s213, %s214
      %p223 = scmp.eq.s32.totalorder %s98, 0
      %p224 = por %p222, %p223
      %p225 = scmp.ne.s32.totalorder %s213, %s214
      %p226 = scmp.eq.s32.totalorder %s99, 1
      %p227 = por %p225, %p226
      %p229 = scmp.ne.s32.totalorder %s214, %s228
      %p230 = scmp.eq.s32.totalorder %s99, 0
      %p231 = por %p229, %p230
      %s233 = sadd.s32 %s232, 1
      %p236 = scmp.eq.s32.totalorder %s93, 1
      %p237 = scmp.ne.s32.totalorder %s232, %s234
      %p238 = scmp.eq.s32.totalorder %s93, 0
      %p239 = por %p237, %p238
      %p240 = scmp.ne.s32.totalorder %s232, %s234
      %p241 = scmp.eq.s32.totalorder %s98, 1
      %p242 = por %p240, %p241
      %p243 = scmp.ne.s32.totalorder %s234, %s235
      %p244 = scmp.eq.s32.totalorder %s98, 0
      %p245 = por %p243, %p244
      %p246 = scmp.ne.s32.totalorder %s234, %s235
      %p247 = scmp.eq.s32.totalorder %s99, 1
      %p248 = por %p246, %p247
      %p250 = scmp.ne.s32.totalorder %s235, %s249
      %p251 = scmp.eq.s32.totalorder %s99, 0
      %p252 = por %p250, %p251
      %s254 = sadd.s32 %s253, 1
      %p257 = scmp.eq.s32.totalorder %s93, 1
      %p258 = scmp.ne.s32.totalorder %s253, %s255
      %p259 = scmp.eq.s32.totalorder %s93, 0
      %p260 = por %p258, %p259
      %p261 = scmp.ne.s32.totalorder %s253, %s255
      %p262 = scmp.eq.s32.totalorder %s98, 1
      %p263 = por %p261, %p262
      %p264 = scmp.ne.s32.totalorder %s255, %s256
      %p265 = scmp.eq.s32.totalorder %s98, 0
      %p266 = por %p264, %p265
      %p267 = scmp.ne.s32.totalorder %s255, %s256
      %p268 = scmp.eq.s32.totalorder %s99, 1
      %p269 = por %p267, %p268
      %p271 = scmp.ne.s32.totalorder %s256, %s270
      %p272 = scmp.eq.s32.totalorder %s99, 0
      %p273 = por %p271, %p272
      %s275 = sadd.s32 %s274, 1
      %p278 = scmp.eq.s32.totalorder %s93, 1
      %p279 = scmp.ne.s32.totalorder %s274, %s276
      %p280 = scmp.eq.s32.totalorder %s93, 0
      %p281 = por %p279, %p280
      %p282 = scmp.ne.s32.totalorder %s274, %s276
      %p283 = scmp.eq.s32.totalorder %s98, 1
      %p284 = por %p282, %p283
      %p285 = scmp.ne.s32.totalorder %s276, %s277
      %p286 = scmp.eq.s32.totalorder %s98, 0
      %p287 = por %p285, %p286
      %p288 = scmp.ne.s32.totalorder %s276, %s277
      %p289 = scmp.eq.s32.totalorder %s99, 1
      %p290 = por %p288, %p289
      %p292 = scmp.ne.s32.totalorder %s277, %s291
      %p293 = scmp.eq.s32.totalorder %s99, 0
      %p294 = por %p292, %p293
      %s296 = sadd.s32 %s295, 1
      %p299 = scmp.eq.s32.totalorder %s93, 1
      %p300 = scmp.ne.s32.totalorder %s295, %s297
      %p301 = scmp.eq.s32.totalorder %s93, 0
      %p302 = por %p300, %p301
      %p303 = scmp.ne.s32.totalorder %s295, %s297
      %p304 = scmp.eq.s32.totalorder %s98, 1
      %p305 = por %p303, %p304
      %p306 = scmp.ne.s32.totalorder %s297, %s298
      %p307 = scmp.eq.s32.totalorder %s98, 0
      %p308 = por %p306, %p307
      %p309 = scmp.ne.s32.totalorder %s297, %s298
      %p310 = scmp.eq.s32.totalorder %s99, 1
      %p311 = por %p309, %p310
      %p313 = scmp.ne.s32.totalorder %s298, %s312
      %p314 = scmp.eq.s32.totalorder %s99, 0
      %p315 = por %p313, %p314
      %s317 = sadd.s32 %s316, 1
      %p320 = scmp.eq.s32.totalorder %s93, 1
      %p321 = scmp.ne.s32.totalorder %s316, %s318
      %p322 = scmp.eq.s32.totalorder %s93, 0
      %p323 = por %p321, %p322
      %p324 = scmp.ne.s32.totalorder %s316, %s318
      %p325 = scmp.eq.s32.totalorder %s98, 1
      %p326 = por %p324, %p325
      %p327 = scmp.ne.s32.totalorder %s318, %s319
      %p328 = scmp.eq.s32.totalorder %s98, 0
      %p329 = por %p327, %p328
      %p330 = scmp.ne.s32.totalorder %s318, %s319
      %p331 = scmp.eq.s32.totalorder %s99, 1
      %p332 = por %p330, %p331
      %p334 = scmp.ne.s32.totalorder %s319, %s333
      %p335 = scmp.eq.s32.totalorder %s99, 0
      %p336 = por %p334, %p335
      %s338 = sadd.s32 %s337, 1
      %p341 = scmp.eq.s32.totalorder %s93, 1
      %p342 = scmp.ne.s32.totalorder %s337, %s339
      %p343 = scmp.eq.s32.totalorder %s93, 0
      %p344 = por %p342, %p343
      %p345 = scmp.ne.s32.totalorder %s337, %s339
      %p346 = scmp.eq.s32.totalorder %s98, 1
      %p347 = por %p345, %p346
      %p348 = scmp.ne.s32.totalorder %s339, %s340
      %p349 = scmp.eq.s32.totalorder %s98, 0
      %p350 = por %p348, %p349
      %p351 = scmp.ne.s32.totalorder %s339, %s340
      %p352 = scmp.eq.s32.totalorder %s99, 1
      %p353 = por %p351, %p352
      %p355 = scmp.ne.s32.totalorder %s340, %s354
      %p356 = scmp.eq.s32.totalorder %s99, 0
      %p357 = por %p355, %p356
      %s359 = sadd.s32 %s358, 1
      %p362 = scmp.eq.s32.totalorder %s93, 1
      %p363 = scmp.ne.s32.totalorder %s358, %s360
      %p364 = scmp.eq.s32.totalorder %s93, 0
      %p365 = por %p363, %p364
      %p366 = scmp.ne.s32.totalorder %s358, %s360
      %p367 = scmp.eq.s32.totalorder %s98, 1
      %p368 = por %p366, %p367
      %p369 = scmp.ne.s32.totalorder %s360, %s361
      %p370 = scmp.eq.s32.totalorder %s98, 0
      %p371 = por %p369, %p370
      %p372 = scmp.ne.s32.totalorder %s360, %s361
      %p373 = scmp.eq.s32.totalorder %s99, 1
      %p374 = por %p372, %p373
      %p376 = scmp.ne.s32.totalorder %s361, %s375
      %p377 = scmp.eq.s32.totalorder %s99, 0
      %p378 = por %p376, %p377
      %s380 = sadd.s32 %s379, 1
      %p383 = scmp.eq.s32.totalorder %s93, 1
      %p384 = scmp.ne.s32.totalorder %s379, %s381
      %p385 = scmp.eq.s32.totalorder %s93, 0
      %p386 = por %p384, %p385
      %p387 = scmp.ne.s32.totalorder %s379, %s381
      %p388 = scmp.eq.s32.totalorder %s98, 1
      %p389 = por %p387, %p388
      %p390 = scmp.ne.s32.totalorder %s381, %s382
      %p391 = scmp.eq.s32.totalorder %s98, 0
      %p392 = por %p390, %p391
      %p393 = scmp.ne.s32.totalorder %s381, %s382
      %p394 = scmp.eq.s32.totalorder %s99, 1
      %p395 = por %p393, %p394
      %p397 = scmp.ne.s32.totalorder %s382, %s396
      %p398 = scmp.eq.s32.totalorder %s99, 0
      %p399 = por %p397, %p398
      %s401 = sadd.s32 %s400, 1
      %p404 = scmp.eq.s32.totalorder %s93, 1
      %p405 = scmp.ne.s32.totalorder %s400, %s402
      %p406 = scmp.eq.s32.totalorder %s93, 0
      %p407 = por %p405, %p406
      %p408 = scmp.ne.s32.totalorder %s400, %s402
      %p409 = scmp.eq.s32.totalorder %s98, 1
      %p410 = por %p408, %p409
      %p411 = scmp.ne.s32.totalorder %s402, %s403
      %p412 = scmp.eq.s32.totalorder %s98, 0
      %p413 = por %p411, %p412
      %p414 = scmp.ne.s32.totalorder %s402, %s403
      %p415 = scmp.eq.s32.totalorder %s99, 1
      %p416 = por %p414, %p415
      %p418 = scmp.ne.s32.totalorder %s403, %s417
      %p419 = scmp.eq.s32.totalorder %s99, 0
      %p420 = por %p418, %p419
      %s422 = sadd.s32 %s421, 1
      %p425 = scmp.eq.s32.totalorder %s93, 1
      %p426 = scmp.ne.s32.totalorder %s421, %s423
      %p427 = scmp.eq.s32.totalorder %s93, 0
      %p428 = por %p426, %p427
      %p429 = scmp.ne.s32.totalorder %s421, %s423
      %p430 = scmp.eq.s32.totalorder %s98, 1
      %p431 = por %p429, %p430
      %p432 = scmp.ne.s32.totalorder %s423, %s424
      %p433 = scmp.eq.s32.totalorder %s98, 0
      %p434 = por %p432, %p433
      %p435 = scmp.ne.s32.totalorder %s423, %s424
      %p436 = scmp.eq.s32.totalorder %s99, 1
      %p437 = por %p435, %p436
      %p439 = scmp.ne.s32.totalorder %s424, %s438
      %p440 = scmp.eq.s32.totalorder %s99, 0
      %p441 = por %p439, %p440
      %s443 = sadd.s32 %s442, 1
      %p446 = scmp.eq.s32.totalorder %s93, 1
      %p447 = scmp.ne.s32.totalorder %s442, %s444
      %p448 = scmp.eq.s32.totalorder %s93, 0
      %p449 = por %p447, %p448
      %p450 = scmp.ne.s32.totalorder %s442, %s444
      %p451 = scmp.eq.s32.totalorder %s98, 1
      %p452 = por %p450, %p451
      %p453 = scmp.ne.s32.totalorder %s444, %s445
      %p454 = scmp.eq.s32.totalorder %s98, 0
      %p455 = por %p453, %p454
      %p456 = scmp.ne.s32.totalorder %s444, %s445
      %p457 = scmp.eq.s32.totalorder %s99, 1
      %p458 = por %p456, %p457
      %p460 = scmp.ne.s32.totalorder %s445, %s459
      %p461 = scmp.eq.s32.totalorder %s99, 0
      %p462 = por %p460, %p461
      %s464 = sadd.s32 %s463, 1
      %p467 = scmp.eq.s32.totalorder %s93, 1
      %p468 = scmp.ne.s32.totalorder %s463, %s465
      %p469 = scmp.eq.s32.totalorder %s93, 0
      %p470 = por %p468, %p469
      %p471 = scmp.ne.s32.totalorder %s463, %s465
      %p472 = scmp.eq.s32.totalorder %s98, 1
      %p473 = por %p471, %p472
      %p474 = scmp.ne.s32.totalorder %s465, %s466
      %p475 = scmp.eq.s32.totalorder %s98, 0
      %p476 = por %p474, %p475
      %p477 = scmp.ne.s32.totalorder %s465, %s466
      %p478 = scmp.eq.s32.totalorder %s99, 1
      %p479 = por %p477, %p478
      %p481 = scmp.ne.s32.totalorder %s466, %s480
      %p482 = scmp.eq.s32.totalorder %s99, 0
      %p483 = por %p481, %p482
      %s485 = sadd.s32 %s484, 1
      %p488 = scmp.eq.s32.totalorder %s93, 1
      %p489 = scmp.ne.s32.totalorder %s484, %s486
      %p490 = scmp.eq.s32.totalorder %s93, 0
      %p491 = por %p489, %p490
      %p492 = scmp.ne.s32.totalorder %s484, %s486
      %p493 = scmp.eq.s32.totalorder %s98, 1
      %p494 = por %p492, %p493
      %p495 = scmp.ne.s32.totalorder %s486, %s487
      %p496 = scmp.eq.s32.totalorder %s98, 0
      %p497 = por %p495, %p496
      %p498 = scmp.ne.s32.totalorder %s486, %s487
      %p499 = scmp.eq.s32.totalorder %s99, 1
      %p500 = por %p498, %p499
      %p502 = scmp.ne.s32.totalorder %s487, %s501
      %p503 = scmp.eq.s32.totalorder %s99, 0
      %p504 = por %p502, %p503
      %s506 = sadd.s32 %s505, 1
      %p509 = scmp.eq.s32.totalorder %s93, 1
      %p510 = scmp.ne.s32.totalorder %s505, %s507
      %p511 = scmp.eq.s32.totalorder %s93, 0
      %p512 = por %p510, %p511
      %p513 = scmp.ne.s32.totalorder %s505, %s507
      %p514 = scmp.eq.s32.totalorder %s98, 1
      %p515 = por %p513, %p514
      %p516 = scmp.ne.s32.totalorder %s507, %s508
      %p517 = scmp.eq.s32.totalorder %s98, 0
      %p518 = por %p516, %p517
      %p519 = scmp.ne.s32.totalorder %s507, %s508
      %p520 = scmp.eq.s32.totalorder %s99, 1
      %p521 = por %p519, %p520
      %p523 = scmp.ne.s32.totalorder %s508, %s522
      %p524 = scmp.eq.s32.totalorder %s99, 0
      %p525 = por %p523, %p524
      %s527 = sadd.s32 %s526, 1
      %p530 = scmp.eq.s32.totalorder %s93, 1
      %p531 = scmp.ne.s32.totalorder %s526, %s528
      %p532 = scmp.eq.s32.totalorder %s93, 0
      %p533 = por %p531, %p532
      %p534 = scmp.ne.s32.totalorder %s526, %s528
      %p535 = scmp.eq.s32.totalorder %s98, 1
      %p536 = por %p534, %p535
      %p537 = scmp.ne.s32.totalorder %s528, %s529
      %p538 = scmp.eq.s32.totalorder %s98, 0
      %p539 = por %p537, %p538
      %p540 = scmp.ne.s32.totalorder %s528, %s529
      %p541 = scmp.eq.s32.totalorder %s99, 1
      %p542 = por %p540, %p541
      %p544 = scmp.ne.s32.totalorder %s529, %s543
      %p545 = scmp.eq.s32.totalorder %s99, 0
      %p546 = por %p544, %p545
      %s548 = sadd.s32 %s547, 1
      %p551 = scmp.eq.s32.totalorder %s93, 1
      %p552 = scmp.ne.s32.totalorder %s547, %s549
      %p553 = scmp.eq.s32.totalorder %s93, 0
      %p554 = por %p552, %p553
      %p555 = scmp.ne.s32.totalorder %s547, %s549
      %p556 = scmp.eq.s32.totalorder %s98, 1
      %p557 = por %p555, %p556
      %p558 = scmp.ne.s32.totalorder %s549, %s550
      %p559 = scmp.eq.s32.totalorder %s98, 0
      %p560 = por %p558, %p559
      %p561 = scmp.ne.s32.totalorder %s549, %s550
      %p562 = scmp.eq.s32.totalorder %s99, 1
      %p563 = por %p561, %p562
      %p565 = scmp.ne.s32.totalorder %s550, %s564
      %p566 = scmp.eq.s32.totalorder %s99, 0
      %p567 = por %p565, %p566
      %s569 = sadd.s32 %s568, 1
      %p572 = scmp.eq.s32.totalorder %s93, 1
      %p573 = scmp.ne.s32.totalorder %s568, %s570
      %p574 = scmp.eq.s32.totalorder %s93, 0
      %p575 = por %p573, %p574
      %p576 = scmp.ne.s32.totalorder %s568, %s570
      %p577 = scmp.eq.s32.totalorder %s98, 1
      %p578 = por %p576, %p577
      %p579 = scmp.ne.s32.totalorder %s570, %s571
      %p580 = scmp.eq.s32.totalorder %s98, 0
      %p581 = por %p579, %p580
      %p582 = scmp.ne.s32.totalorder %s570, %s571
      %p583 = scmp.eq.s32.totalorder %s99, 1
      %p584 = por %p582, %p583
      %p586 = scmp.ne.s32.totalorder %s571, %s585
      %p587 = scmp.eq.s32.totalorder %s99, 0
      %p588 = por %p586, %p587
      %s590 = sadd.s32 %s589, 1
      %p593 = scmp.eq.s32.totalorder %s93, 1
      %p594 = scmp.ne.s32.totalorder %s589, %s591
      %p595 = scmp.eq.s32.totalorder %s93, 0
      %p596 = por %p594, %p595
      %p597 = scmp.ne.s32.totalorder %s589, %s591
      %p598 = scmp.eq.s32.totalorder %s98, 1
      %p599 = por %p597, %p598
      %p600 = scmp.ne.s32.totalorder %s591, %s592
      %p601 = scmp.eq.s32.totalorder %s98, 0
      %p602 = por %p600, %p601
      %p603 = scmp.ne.s32.totalorder %s591, %s592
      %p604 = scmp.eq.s32.totalorder %s99, 1
      %p605 = por %p603, %p604
      %p607 = scmp.ne.s32.totalorder %s592, %s606
      %p608 = scmp.eq.s32.totalorder %s99, 0
      %p609 = por %p607, %p608
      %s611 = sadd.s32 %s610, 1
      %p614 = scmp.eq.s32.totalorder %s93, 1
      %p615 = scmp.ne.s32.totalorder %s610, %s612
      %p616 = scmp.eq.s32.totalorder %s93, 0
      %p617 = por %p615, %p616
      %p618 = scmp.ne.s32.totalorder %s610, %s612
      %p619 = scmp.eq.s32.totalorder %s98, 1
      %p620 = por %p618, %p619
      %p621 = scmp.ne.s32.totalorder %s612, %s613
      %p622 = scmp.eq.s32.totalorder %s98, 0
      %p623 = por %p621, %p622
      %p624 = scmp.ne.s32.totalorder %s612, %s613
      %p625 = scmp.eq.s32.totalorder %s99, 1
      %p626 = por %p624, %p625
      %p628 = scmp.ne.s32.totalorder %s613, %s627
      %p629 = scmp.eq.s32.totalorder %s99, 0
      %p630 = por %p628, %p629
      %s632 = sadd.s32 %s631, 1
      %p635 = scmp.eq.s32.totalorder %s93, 1
      %p636 = scmp.ne.s32.totalorder %s631, %s633
      %p637 = scmp.eq.s32.totalorder %s93, 0
      %p638 = por %p636, %p637
      %p639 = scmp.ne.s32.totalorder %s631, %s633
      %p640 = scmp.eq.s32.totalorder %s98, 1
      %p641 = por %p639, %p640
      %p642 = scmp.ne.s32.totalorder %s633, %s634
      %p643 = scmp.eq.s32.totalorder %s98, 0
      %p644 = por %p642, %p643
      %p645 = scmp.ne.s32.totalorder %s633, %s634
      %p646 = scmp.eq.s32.totalorder %s99, 1
      %p647 = por %p645, %p646
      %p649 = scmp.ne.s32.totalorder %s634, %s648
      %p650 = scmp.eq.s32.totalorder %s99, 0
      %p651 = por %p649, %p650
      %s653 = sadd.s32 %s652, 1
      %p656 = scmp.eq.s32.totalorder %s93, 1
      %p657 = scmp.ne.s32.totalorder %s652, %s654
      %p658 = scmp.eq.s32.totalorder %s93, 0
      %p659 = por %p657, %p658
      %p660 = scmp.ne.s32.totalorder %s652, %s654
      %p661 = scmp.eq.s32.totalorder %s98, 1
      %p662 = por %p660, %p661
      %p663 = scmp.ne.s32.totalorder %s654, %s655
      %p664 = scmp.eq.s32.totalorder %s98, 0
      %p665 = por %p663, %p664
      %p666 = scmp.ne.s32.totalorder %s654, %s655
      %p667 = scmp.eq.s32.totalorder %s99, 1
      %p668 = por %p666, %p667
      %p670 = scmp.ne.s32.totalorder %s655, %s669
      %p671 = scmp.eq.s32.totalorder %s99, 0
      %p672 = por %p670, %p671
      %s674 = sadd.s32 %s673, 1
      %p677 = scmp.eq.s32.totalorder %s93, 1
      %p678 = scmp.ne.s32.totalorder %s673, %s675
      %p679 = scmp.eq.s32.totalorder %s93, 0
      %p680 = por %p678, %p679
      %p681 = scmp.ne.s32.totalorder %s673, %s675
      %p682 = scmp.eq.s32.totalorder %s98, 1
      %p683 = por %p681, %p682
      %p684 = scmp.ne.s32.totalorder %s675, %s676
      %p685 = scmp.eq.s32.totalorder %s98, 0
      %p686 = por %p684, %p685
      %p687 = scmp.ne.s32.totalorder %s675, %s676
      %p688 = scmp.eq.s32.totalorder %s99, 1
      %p689 = por %p687, %p688
      %p691 = scmp.ne.s32.totalorder %s676, %s690
      %p692 = scmp.eq.s32.totalorder %s99, 0
      %p693 = por %p691, %p692
      %s695 = sadd.s32 %s694, 1
      %p698 = scmp.eq.s32.totalorder %s93, 1
      %p699 = scmp.ne.s32.totalorder %s694, %s696
      %p700 = scmp.eq.s32.totalorder %s93, 0
      %p701 = por %p699, %p700
      %p702 = scmp.ne.s32.totalorder %s694, %s696
      %p703 = scmp.eq.s32.totalorder %s98, 1
      %p704 = por %p702, %p703
      %p705 = scmp.ne.s32.totalorder %s696, %s697
      %p706 = scmp.eq.s32.totalorder %s98, 0
      %p707 = por %p705, %p706
      %p708 = scmp.ne.s32.totalorder %s696, %s697
      %p709 = scmp.eq.s32.totalorder %s99, 1
      %p710 = por %p708, %p709
      %p712 = scmp.ne.s32.totalorder %s697, %s711
      %p713 = scmp.eq.s32.totalorder %s99, 0
      %p714 = por %p712, %p713
      %s716 = sadd.s32 %s715, 1
      %p719 = scmp.eq.s32.totalorder %s93, 1
      %p720 = scmp.ne.s32.totalorder %s715, %s717
      %p721 = scmp.eq.s32.totalorder %s93, 0
      %p722 = por %p720, %p721
      %p723 = scmp.ne.s32.totalorder %s715, %s717
      %p724 = scmp.eq.s32.totalorder %s98, 1
      %p725 = por %p723, %p724
      %p726 = scmp.ne.s32.totalorder %s717, %s718
      %p727 = scmp.eq.s32.totalorder %s98, 0
      %p728 = por %p726, %p727
      %p729 = scmp.ne.s32.totalorder %s717, %s718
      %p730 = scmp.eq.s32.totalorder %s99, 1
      %p731 = por %p729, %p730
      %p733 = scmp.ne.s32.totalorder %s718, %s732
      %p734 = scmp.eq.s32.totalorder %s99, 0
      %p735 = por %p733, %p734
      %s737 = sadd.s32 %s736, 1
      %p740 = scmp.eq.s32.totalorder %s93, 1
      %p741 = scmp.ne.s32.totalorder %s736, %s738
      %p742 = scmp.eq.s32.totalorder %s93, 0
      %p743 = por %p741, %p742
      %p744 = scmp.ne.s32.totalorder %s736, %s738
      %p745 = scmp.eq.s32.totalorder %s98, 1
      %p746 = por %p744, %p745
      %p747 = scmp.ne.s32.totalorder %s738, %s739
      %p748 = scmp.eq.s32.totalorder %s98, 0
      %p749 = por %p747, %p748
      %p750 = scmp.ne.s32.totalorder %s738, %s739
      %p751 = scmp.eq.s32.totalorder %s99, 1
      %p752 = por %p750, %p751
      %p754 = scmp.ne.s32.totalorder %s739, %s753
      %p755 = scmp.eq.s32.totalorder %s99, 0
      %p756 = por %p754, %p755
      %s758 = sadd.s32 %s757, 1
      %p761 = scmp.eq.s32.totalorder %s93, 1
      %p762 = scmp.ne.s32.totalorder %s757, %s759
      %p763 = scmp.eq.s32.totalorder %s93, 0
      %p764 = por %p762, %p763
      %p765 = scmp.ne.s32.totalorder %s757, %s759
      %p766 = scmp.eq.s32.totalorder %s98, 1
      %p767 = por %p765, %p766
      %p768 = scmp.ne.s32.totalorder %s759, %s760
      %p769 = scmp.eq.s32.totalorder %s98, 0
      %p770 = por %p768, %p769
      %p771 = scmp.ne.s32.totalorder %s759, %s760
      %p772 = scmp.eq.s32.totalorder %s99, 1
      %p773 = por %p771, %p772
      %p775 = scmp.ne.s32.totalorder %s760, %s774
      %p776 = scmp.eq.s32.totalorder %s99, 0
      %p777 = por %p775, %p776
      %s778 = ssub.s32 %s93, %s100
      %p779 = scmp.eq.s32.totalorder %s778, 0
      %s781 = sadd.s32 %s780, 1
      %s782 = scalar_select %p779, %s780, %s781
      %p785 = pneg %p779
      %p786 = scmp.eq.s32.totalorder %s93, 1
      %p787 = por %p785, %p786
      %p788 = scmp.ne.s32.totalorder %s780, %s783
      %p789 = scmp.eq.s32.totalorder %s93, 0
      %p790 = por %p788, %p789
      %p791 = scmp.ne.s32.totalorder %s780, %s783
      %p792 = scmp.eq.s32.totalorder %s98, 1
      %p793 = por %p791, %p792
      %p794 = scmp.ne.s32.totalorder %s783, %s784
      %p795 = scmp.eq.s32.totalorder %s98, 0
      %p796 = por %p794, %p795
      %p797 = scmp.ne.s32.totalorder %s783, %s784
      %p798 = scmp.eq.s32.totalorder %s99, 1
      %p799 = por %p797, %p798
      %p801 = scmp.ne.s32.totalorder %s784, %s800
      %p802 = scmp.eq.s32.totalorder %s99, 0
      %p803 = por %p801, %p802
      %p804 = scmp.le.s32.totalorder 1, %s93
      %p805 = scmp.lt.s32.totalorder %s93, 3
      %p806 = pnand %p804, %p805
      %p807 = pneg %p806
      // Predicated region
      $region9: #{tpu_custom_call.1} parent=5 // pred_check
        _
      $region10: #{tpu_custom_call.1} parent=5 // pred_check_branch
        %809 = sbr.rel (%p806) target = $region12
      $region11: #{tpu_custom_call.1} parent=5 // pred_region
        %s810 = ssub.s32 %s93, 1
        // Predicated region
        $region13: #{tpu_custom_call.1} parent=11 // pred_check
          %p811 = pneg %p140
        $region14: #{tpu_custom_call.1} parent=11 // pred_check_branch
          %813 = sbr.rel (%p811) target = $region16
        $region15: #{tpu_custom_call.1} parent=11 // pred_region
          %s815 = ssub.s32 256, 256
          %816 = vsyncadd [#allocation6], %s815
          %s817 = sshll.u32 [#allocation5], 4
          %s818 = int_to_ptr.vmem [resolvable:$true] %s817
          %823 = dma.hbm_to_vmem [thread:$0]  %s3, 256, %s818, [#allocation6], 64, 64, 4
        $region16: #{tpu_custom_call.1} parent=11 // pred_fallthru
          _
        // Predicated region
        $region17: #{tpu_custom_call.1} parent=11 // pred_check
          %p824 = pneg %p161
        $region18: #{tpu_custom_call.1} parent=11 // pred_check_branch
          %826 = sbr.rel (%p824) target = $region20
        $region19: #{tpu_custom_call.1} parent=11 // pred_region
          %s828 = ssub.s32 16, 16
          %829 = vsyncadd [#allocation6], %s828
          %s831 = sshll.u32 [#allocation7], 4
          %s832 = int_to_ptr.vmem [resolvable:$true] %s831
          %834 = dma.hbm_to_vmem [thread:$0]  %s5, 16, %s832, [#allocation6]
        $region20: #{tpu_custom_call.1} parent=11 // pred_fallthru
          _
        // Predicated region
        $region21: #{tpu_custom_call.1} parent=11 // pred_check
          %p835 = pneg %p182
        $region22: #{tpu_custom_call.1} parent=11 // pred_check_branch
          %837 = sbr.rel (%p835) target = $region24
        $region23: #{tpu_custom_call.1} parent=11 // pred_region
          %s839 = ssub.s32 16, 16
          %840 = vsyncadd [#allocation9], %s839
          %s842 = sshll.u32 [#allocation8], 4
          %s843 = int_to_ptr.vmem [resolvable:$true] %s842
          %845 = dma.hbm_to_vmem [thread:$0]  %s7, 16, %s843, [#allocation9]
        $region24: #{tpu_custom_call.1} parent=11 // pred_fallthru
          _
        // Predicated region
        $region25: #{tpu_custom_call.1} parent=11 // pred_check
          %p846 = pneg %p203
        $region26: #{tpu_custom_call.1} parent=11 // pred_check_branch
          %848 = sbr.rel (%p846) target = $region28
        $region27: #{tpu_custom_call.1} parent=11 // pred_region
          %s850 = ssub.s32 16, 16
          %851 = vsyncadd [#allocation9], %s850
          %s853 = sshll.u32 [#allocation10], 4
          %s854 = int_to_ptr.vmem [resolvable:$true] %s853
          %856 = dma.hbm_to_vmem [thread:$0]  %s9, 16, %s854, [#allocation9]
        $region28: #{tpu_custom_call.1} parent=11 // pred_fallthru
          _
        // Predicated region
        $region29: #{tpu_custom_call.1} parent=11 // pred_check
          %p857 = pneg %p224
        $region30: #{tpu_custom_call.1} parent=11 // pred_check_branch
          %859 = sbr.rel (%p857) target = $region32
        $region31: #{tpu_custom_call.1} parent=11 // pred_region
          %s861 = ssub.s32 16, 16
          %862 = vsyncadd [#allocation12], %s861
          %s864 = sshll.u32 [#allocation11], 4
          %s865 = int_to_ptr.vmem [resolvable:$true] %s864
          %867 = dma.hbm_to_vmem [thread:$0]  %s11, 16, %s865, [#allocation12]
        $region32: #{tpu_custom_call.1} parent=11 // pred_fallthru
          _
        // Predicated region
        $region33: #{tpu_custom_call.1} parent=11 // pred_check
          %p868 = pneg %p245
        $region34: #{tpu_custom_call.1} parent=11 // pred_check_branch
          %870 = sbr.rel (%p868) target = $region36
        $region35: #{tpu_custom_call.1} parent=11 // pred_region
          %s872 = ssub.s32 16, 16
          %873 = vsyncadd [#allocation12], %s872
          %s875 = sshll.u32 [#allocation13], 4
          %s876 = int_to_ptr.vmem [resolvable:$true] %s875
          %878 = dma.hbm_to_vmem [thread:$0]  %s13, 16, %s876, [#allocation12]
        $region36: #{tpu_custom_call.1} parent=11 // pred_fallthru
          _
        // Predicated region
        $region37: #{tpu_custom_call.1} parent=11 // pred_check
          %p879 = pneg %p266
        $region38: #{tpu_custom_call.1} parent=11 // pred_check_branch
          %881 = sbr.rel (%p879) target = $region40
        $region39: #{tpu_custom_call.1} parent=11 // pred_region
          %s883 = ssub.s32 16, 16
          %884 = vsyncadd [#allocation15], %s883
          %s886 = sshll.u32 [#allocation14], 4
          %s887 = int_to_ptr.vmem [resolvable:$true] %s886
          %889 = dma.hbm_to_vmem [thread:$0]  %s15, 16, %s887, [#allocation15]
        $region40: #{tpu_custom_call.1} parent=11 // pred_fallthru
          _
        // Predicated region
        $region41: #{tpu_custom_call.1} parent=11 // pred_check
          %p890 = pneg %p287
        $region42: #{tpu_custom_call.1} parent=11 // pred_check_branch
          %892 = sbr.rel (%p890) target = $region44
        $region43: #{tpu_custom_call.1} parent=11 // pred_region
          %s894 = ssub.s32 16, 16
          %895 = vsyncadd [#allocation15], %s894
          %s897 = sshll.u32 [#allocation16], 4
          %s898 = int_to_ptr.vmem [resolvable:$true] %s897
          %900 = dma.hbm_to_vmem [thread:$0]  %s17, 16, %s898, [#allocation15]
        $region44: #{tpu_custom_call.1} parent=11 // pred_fallthru
          _
        // Predicated region
        $region45: #{tpu_custom_call.1} parent=11 // pred_check
          %p901 = pneg %p308
        $region46: #{tpu_custom_call.1} parent=11 // pred_check_branch
          %903 = sbr.rel (%p901) target = $region48
        $region47: #{tpu_custom_call.1} parent=11 // pred_region
          %s905 = ssub.s32 16, 16
          %906 = vsyncadd [#allocation18], %s905
          %s908 = sshll.u32 [#allocation17], 4
          %s909 = int_to_ptr.vmem [resolvable:$true] %s908
          %911 = dma.hbm_to_vmem [thread:$0]  %s19, 16, %s909, [#allocation18]
        $region48: #{tpu_custom_call.1} parent=11 // pred_fallthru
          _
        // Predicated region
        $region49: #{tpu_custom_call.1} parent=11 // pred_check
          %p912 = pneg %p329
        $region50: #{tpu_custom_call.1} parent=11 // pred_check_branch
          %914 = sbr.rel (%p912) target = $region52
        $region51: #{tpu_custom_call.1} parent=11 // pred_region
          %s916 = ssub.s32 256, 256
          %917 = vsyncadd [#allocation18], %s916
          %s918 = sshll.u32 [#allocation19], 4
          %s919 = int_to_ptr.vmem [resolvable:$true] %s918
          %924 = dma.hbm_to_vmem [thread:$0]  %s21, 256, %s919, [#allocation18], 64, 64, 4
        $region52: #{tpu_custom_call.1} parent=11 // pred_fallthru
          _
        // Predicated region
        $region53: #{tpu_custom_call.1} parent=11 // pred_check
          %p925 = pneg %p350
        $region54: #{tpu_custom_call.1} parent=11 // pred_check_branch
          %927 = sbr.rel (%p925) target = $region56
        $region55: #{tpu_custom_call.1} parent=11 // pred_region
          %s929 = ssub.s32 16, 16
          %930 = vsyncadd [#allocation21], %s929
          %s932 = sshll.u32 [#allocation20], 4
          %s933 = int_to_ptr.vmem [resolvable:$true] %s932
          %935 = dma.hbm_to_vmem [thread:$0]  %s23, 16, %s933, [#allocation21]
        $region56: #{tpu_custom_call.1} parent=11 // pred_fallthru
          _
        // Predicated region
        $region57: #{tpu_custom_call.1} parent=11 // pred_check
          %p936 = pneg %p371
        $region58: #{tpu_custom_call.1} parent=11 // pred_check_branch
          %938 = sbr.rel (%p936) target = $region60
        $region59: #{tpu_custom_call.1} parent=11 // pred_region
          %s940 = ssub.s32 512, 512
          %941 = vsyncadd [#allocation21], %s940
          %s942 = sshll.u32 [#allocation22], 4
          %s943 = int_to_ptr.vmem [resolvable:$true] %s942
          %948 = dma.hbm_to_vmem [thread:$0]  %s25, 512, %s943, [#allocation21], 64, 64, 4
        $region60: #{tpu_custom_call.1} parent=11 // pred_fallthru
          _
        // Predicated region
        $region61: #{tpu_custom_call.1} parent=11 // pred_check
          %p949 = pneg %p392
        $region62: #{tpu_custom_call.1} parent=11 // pred_check_branch
          %951 = sbr.rel (%p949) target = $region64
        $region63: #{tpu_custom_call.1} parent=11 // pred_region
          %s953 = ssub.s32 16, 16
          %954 = vsyncadd [#allocation24], %s953
          %s956 = sshll.u32 [#allocation23], 4
          %s957 = int_to_ptr.vmem [resolvable:$true] %s956
          %959 = dma.hbm_to_vmem [thread:$0]  %s27, 16, %s957, [#allocation24]
        $region64: #{tpu_custom_call.1} parent=11 // pred_fallthru
          _
        // Predicated region
        $region65: #{tpu_custom_call.1} parent=11 // pred_check
          %p960 = pneg %p413
        $region66: #{tpu_custom_call.1} parent=11 // pred_check_branch
          %962 = sbr.rel (%p960) target = $region68
        $region67: #{tpu_custom_call.1} parent=11 // pred_region
          %s964 = ssub.s32 256, 256
          %965 = vsyncadd [#allocation24], %s964
          %s966 = sshll.u32 [#allocation25], 4
          %s967 = int_to_ptr.vmem [resolvable:$true] %s966
          %972 = dma.hbm_to_vmem [thread:$0]  %s29, 256, %s967, [#allocation24], 64, 64, 4
        $region68: #{tpu_custom_call.1} parent=11 // pred_fallthru
          _
        // Predicated region
        $region69: #{tpu_custom_call.1} parent=11 // pred_check
          %p973 = pneg %p434
        $region70: #{tpu_custom_call.1} parent=11 // pred_check_branch
          %975 = sbr.rel (%p973) target = $region72
        $region71: #{tpu_custom_call.1} parent=11 // pred_region
          %s977 = ssub.s32 16, 16
          %978 = vsyncadd [#allocation27], %s977
          %s980 = sshll.u32 [#allocation26], 4
          %s981 = int_to_ptr.vmem [resolvable:$true] %s980
          %983 = dma.hbm_to_vmem [thread:$0]  %s31, 16, %s981, [#allocation27]
        $region72: #{tpu_custom_call.1} parent=11 // pred_fallthru
          _
        // Predicated region
        $region73: #{tpu_custom_call.1} parent=11 // pred_check
          %p984 = pneg %p455
        $region74: #{tpu_custom_call.1} parent=11 // pred_check_branch
          %986 = sbr.rel (%p984) target = $region76
        $region75: #{tpu_custom_call.1} parent=11 // pred_region
          %s988 = ssub.s32 256, 256
          %989 = vsyncadd [#allocation27], %s988
          %s990 = sshll.u32 [#allocation28], 4
          %s991 = int_to_ptr.vmem [resolvable:$true] %s990
          %996 = dma.hbm_to_vmem [thread:$0]  %s33, 256, %s991, [#allocation27], 64, 64, 4
        $region76: #{tpu_custom_call.1} parent=11 // pred_fallthru
          _
        // Predicated region
        $region77: #{tpu_custom_call.1} parent=11 // pred_check
          %p997 = pneg %p476
        $region78: #{tpu_custom_call.1} parent=11 // pred_check_branch
          %999 = sbr.rel (%p997) target = $region80
        $region79: #{tpu_custom_call.1} parent=11 // pred_region
          %s1001 = ssub.s32 16, 16
          %1002 = vsyncadd [#allocation30], %s1001
          %s1004 = sshll.u32 [#allocation29], 4
          %s1005 = int_to_ptr.vmem [resolvable:$true] %s1004
          %1007 = dma.hbm_to_vmem [thread:$0]  %s35, 16, %s1005, [#allocation30]
        $region80: #{tpu_custom_call.1} parent=11 // pred_fallthru
          _
        // Predicated region
        $region81: #{tpu_custom_call.1} parent=11 // pred_check
          %p1008 = pneg %p497
        $region82: #{tpu_custom_call.1} parent=11 // pred_check_branch
          %1010 = sbr.rel (%p1008) target = $region84
        $region83: #{tpu_custom_call.1} parent=11 // pred_region
          %s1012 = ssub.s32 256, 256
          %1013 = vsyncadd [#allocation30], %s1012
          %s1014 = sshll.u32 [#allocation31], 4
          %s1015 = int_to_ptr.vmem [resolvable:$true] %s1014
          %1020 = dma.hbm_to_vmem [thread:$0]  %s37, 256, %s1015, [#allocation30], 64, 64, 4
        $region84: #{tpu_custom_call.1} parent=11 // pred_fallthru
          _
        // Predicated region
        $region85: #{tpu_custom_call.1} parent=11 // pred_check
          %p1021 = pneg %p518
        $region86: #{tpu_custom_call.1} parent=11 // pred_check_branch
          %1023 = sbr.rel (%p1021) target = $region88
        $region87: #{tpu_custom_call.1} parent=11 // pred_region
          %s1025 = ssub.s32 16, 16
          %1026 = vsyncadd [#allocation33], %s1025
          %s1028 = sshll.u32 [#allocation32], 4
          %s1029 = int_to_ptr.vmem [resolvable:$true] %s1028
          %1031 = dma.hbm_to_vmem [thread:$0]  %s39, 16, %s1029, [#allocation33]
        $region88: #{tpu_custom_call.1} parent=11 // pred_fallthru
          _
        // Predicated region
        $region89: #{tpu_custom_call.1} parent=11 // pred_check
          %p1032 = pneg %p539
        $region90: #{tpu_custom_call.1} parent=11 // pred_check_branch
          %1034 = sbr.rel (%p1032) target = $region92
        $region91: #{tpu_custom_call.1} parent=11 // pred_region
          %s1036 = ssub.s32 48, 48
          %1037 = vsyncadd [#allocation33], %s1036
          %s1038 = sshll.u32 [#allocation34], 4
          %s1039 = int_to_ptr.vmem [resolvable:$true] %s1038
          %1044 = dma.hbm_to_vmem [thread:$0]  %s41, 48, %s1039, [#allocation33], 16, 16, 1
        $region92: #{tpu_custom_call.1} parent=11 // pred_fallthru
          _
        // Predicated region
        $region93: #{tpu_custom_call.1} parent=11 // pred_check
          %p1045 = pneg %p560
        $region94: #{tpu_custom_call.1} parent=11 // pred_check_branch
          %1047 = sbr.rel (%p1045) target = $region96
        $region95: #{tpu_custom_call.1} parent=11 // pred_region
          %s1049 = ssub.s32 16, 16
          %1050 = vsyncadd [#allocation36], %s1049
          %s1052 = sshll.u32 [#allocation35], 4
          %s1053 = int_to_ptr.vmem [resolvable:$true] %s1052
          %1055 = dma.hbm_to_vmem [thread:$0]  %s43, 16, %s1053, [#allocation36]
        $region96: #{tpu_custom_call.1} parent=11 // pred_fallthru
          _
        // Predicated region
        $region97: #{tpu_custom_call.1} parent=11 // pred_check
          %p1056 = pneg %p581
        $region98: #{tpu_custom_call.1} parent=11 // pred_check_branch
          %1058 = sbr.rel (%p1056) target = $region100
        $region99: #{tpu_custom_call.1} parent=11 // pred_region
          %s1060 = ssub.s32 80, 80
          %1061 = vsyncadd [#allocation36], %s1060
          %s1062 = sshll.u32 [#allocation37], 4
          %s1063 = int_to_ptr.vmem [resolvable:$true] %s1062
          %1068 = dma.hbm_to_vmem [thread:$0]  %s45, 80, %s1063, [#allocation36], 16, 16, 1
        $region100: #{tpu_custom_call.1} parent=11 // pred_fallthru
          _
        // Predicated region
        $region101: #{tpu_custom_call.1} parent=11 // pred_check
          %p1069 = pneg %p602
        $region102: #{tpu_custom_call.1} parent=11 // pred_check_branch
          %1071 = sbr.rel (%p1069) target = $region104
        $region103: #{tpu_custom_call.1} parent=11 // pred_region
          %s1073 = ssub.s32 16, 16
          %1074 = vsyncadd [#allocation39], %s1073
          %s1076 = sshll.u32 [#allocation38], 4
          %s1077 = int_to_ptr.vmem [resolvable:$true] %s1076
          %1079 = dma.hbm_to_vmem [thread:$0]  %s47, 16, %s1077, [#allocation39]
        $region104: #{tpu_custom_call.1} parent=11 // pred_fallthru
          _
        // Predicated region
        $region105: #{tpu_custom_call.1} parent=11 // pred_check
          %p1080 = pneg %p623
        $region106: #{tpu_custom_call.1} parent=11 // pred_check_branch
          %1082 = sbr.rel (%p1080) target = $region108
        $region107: #{tpu_custom_call.1} parent=11 // pred_region
          %s1084 = ssub.s32 112, 112
          %1085 = vsyncadd [#allocation39], %s1084
          %s1086 = sshll.u32 [#allocation40], 4
          %s1087 = int_to_ptr.vmem [resolvable:$true] %s1086
          %1092 = dma.hbm_to_vmem [thread:$0]  %s49, 112, %s1087, [#allocation39], 16, 16, 1
        $region108: #{tpu_custom_call.1} parent=11 // pred_fallthru
          _
        // Predicated region
        $region109: #{tpu_custom_call.1} parent=11 // pred_check
          %p1093 = pneg %p644
        $region110: #{tpu_custom_call.1} parent=11 // pred_check_branch
          %1095 = sbr.rel (%p1093) target = $region112
        $region111: #{tpu_custom_call.1} parent=11 // pred_region
          %s1097 = ssub.s32 16, 16
          %1098 = vsyncadd [#allocation42], %s1097
          %s1100 = sshll.u32 [#allocation41], 4
          %s1101 = int_to_ptr.vmem [resolvable:$true] %s1100
          %1103 = dma.hbm_to_vmem [thread:$0]  %s51, 16, %s1101, [#allocation42]
        $region112: #{tpu_custom_call.1} parent=11 // pred_fallthru
          _
        // Predicated region
        $region113: #{tpu_custom_call.1} parent=11 // pred_check
          %p1104 = pneg %p665
        $region114: #{tpu_custom_call.1} parent=11 // pred_check_branch
          %1106 = sbr.rel (%p1104) target = $region116
        $region115: #{tpu_custom_call.1} parent=11 // pred_region
          %s1108 = ssub.s32 128, 128
          %1109 = vsyncadd [#allocation42], %s1108
          %s1110 = sshll.u32 [#allocation43], 4
          %s1111 = int_to_ptr.vmem [resolvable:$true] %s1110
          %1116 = dma.hbm_to_vmem [thread:$0]  %s53, 128, %s1111, [#allocation42], 64, 64, 4
        $region116: #{tpu_custom_call.1} parent=11 // pred_fallthru
          _
        // Predicated region
        $region117: #{tpu_custom_call.1} parent=11 // pred_check
          %p1117 = pneg %p686
        $region118: #{tpu_custom_call.1} parent=11 // pred_check_branch
          %1119 = sbr.rel (%p1117) target = $region120
        $region119: #{tpu_custom_call.1} parent=11 // pred_region
          %s1121 = ssub.s32 16, 16
          %1122 = vsyncadd [#allocation45], %s1121
          %s1124 = sshll.u32 [#allocation44], 4
          %s1125 = int_to_ptr.vmem [resolvable:$true] %s1124
          %1127 = dma.hbm_to_vmem [thread:$0]  %s55, 16, %s1125, [#allocation45]
        $region120: #{tpu_custom_call.1} parent=11 // pred_fallthru
          _
        // Predicated region
        $region121: #{tpu_custom_call.1} parent=11 // pred_check
          %p1128 = pneg %p707
        $region122: #{tpu_custom_call.1} parent=11 // pred_check_branch
          %1130 = sbr.rel (%p1128) target = $region124
        $region123: #{tpu_custom_call.1} parent=11 // pred_region
          %s1132 = ssub.s32 256, 256
          %1133 = vsyncadd [#allocation45], %s1132
          %s1134 = sshll.u32 [#allocation46], 4
          %s1135 = int_to_ptr.vmem [resolvable:$true] %s1134
          %1140 = dma.hbm_to_vmem [thread:$0]  %s57, 256, %s1135, [#allocation45], 64, 64, 4
        $region124: #{tpu_custom_call.1} parent=11 // pred_fallthru
          _
        // Predicated region
        $region125: #{tpu_custom_call.1} parent=11 // pred_check
          %p1141 = pneg %p728
        $region126: #{tpu_custom_call.1} parent=11 // pred_check_branch
          %1143 = sbr.rel (%p1141) target = $region128
        $region127: #{tpu_custom_call.1} parent=11 // pred_region
          %s1145 = ssub.s32 16, 16
          %1146 = vsyncadd [#allocation48], %s1145
          %s1148 = sshll.u32 [#allocation47], 4
          %s1149 = int_to_ptr.vmem [resolvable:$true] %s1148
          %1151 = dma.hbm_to_vmem [thread:$0]  %s59, 16, %s1149, [#allocation48]
        $region128: #{tpu_custom_call.1} parent=11 // pred_fallthru
          _
        // Predicated region
        $region129: #{tpu_custom_call.1} parent=11 // pred_check
          %p1152 = pneg %p749
        $region130: #{tpu_custom_call.1} parent=11 // pred_check_branch
          %1154 = sbr.rel (%p1152) target = $region132
        $region131: #{tpu_custom_call.1} parent=11 // pred_region
          %s1156 = ssub.s32 512, 512
          %1157 = vsyncadd [#allocation48], %s1156
          %s1158 = sshll.u32 [#allocation49], 4
          %s1159 = int_to_ptr.vmem [resolvable:$true] %s1158
          %1164 = dma.hbm_to_vmem [thread:$0]  %s61, 512, %s1159, [#allocation48], 64, 64, 4
        $region132: #{tpu_custom_call.1} parent=11 // pred_fallthru
          _
        // Predicated region
        $region133: #{tpu_custom_call.1} parent=11 // pred_check
          %p1165 = pneg %p770
        $region134: #{tpu_custom_call.1} parent=11 // pred_check_branch
          %1167 = sbr.rel (%p1165) target = $region136
        $region135: #{tpu_custom_call.1} parent=11 // pred_region
          %s1169 = ssub.s32 16, 16
          %1170 = vsyncadd [#allocation51], %s1169
          %s1172 = sshll.u32 [#allocation50], 4
          %s1173 = int_to_ptr.vmem [resolvable:$true] %s1172
          %1175 = dma.hbm_to_vmem [thread:$0]  %s63, 16, %s1173, [#allocation51]
        $region136: #{tpu_custom_call.1} parent=11 // pred_fallthru
          _
      $region12: #{tpu_custom_call.1} parent=5 // pred_fallthru
        _
      %p1176 = scmp.lt.s32.totalorder %s93, 2
      // Predicated region
      $region137: #{tpu_custom_call.1} parent=5 // pred_check
        %p1177 = pneg %p1176
      $region138: #{tpu_custom_call.1} parent=5 // pred_check_branch
        %1179 = sbr.rel (%p1177) target = $region140
      $region139: #{tpu_custom_call.1} parent=5 // pred_region
        // Predicated region
        $region141: #{tpu_custom_call.1} parent=139 // pred_check
          %p1180 = pneg %p113
        $region142: #{tpu_custom_call.1} parent=139 // pred_check_branch
          %1182 = sbr.rel (%p1180) target = $region144
        $region143: #{tpu_custom_call.1} parent=139 // pred_region
          %s1183 = sand.u32 %s103, 1
          %s1184 = scalar_lea.sflag [#allocation3], %s1183
          %s1185 = sand.u32 %s103, 1
          %s1186 = smul.addr %s1185, 8
          %s1187 = scalar_lea.vmem [#allocation2], %s1186
          %s1189 = ssub.s32 128, 128
          %1190 = vsyncadd %s1184, %s1189
          %s1191 = smul.addr %s93, 128
          %s1192 = scalar_lea.hbm %s1, %s1191
          %s1194 = sshll.u32 %s1187, 4
          %s1195 = int_to_ptr.vmem [resolvable:$true] %s1194
          %1197 = dma.hbm_to_vmem [thread:$0]  %s1192, 128, %s1195, %s1184
        $region144: #{tpu_custom_call.1} parent=139 // pred_fallthru
          _
      $region140: #{tpu_custom_call.1} parent=5 // pred_fallthru
        _
      %p1198 = scmp.le.s32.totalorder 1, %s93
      %p1199 = scmp.lt.s32.totalorder %s93, 3
      %p1200 = pnand %p1198, %p1199
      %p1201 = pneg %p1200
      // Predicated region
      $region145: #{tpu_custom_call.1} parent=5 // pred_check
        _
      $region146: #{tpu_custom_call.1} parent=5 // pred_check_branch
        %1203 = sbr.rel (%p1200) target = $region148
      $region147: #{tpu_custom_call.1} parent=5 // pred_region
        %s1204 = ssub.s32 %s93, 1
        %s1205 = sand.u32 %s106, 1
        %s1206 = scalar_lea.sflag [#allocation3], %s1205
        %s1207 = sand.u32 %s106, 1
        %s1208 = smul.addr %s1207, 8
        %s1209 = scalar_lea.vmem [#allocation2], %s1208
        // Predicated region
        $region149: #{tpu_custom_call.1} parent=147 // pred_check
          %p1210 = pneg %p119
        $region150: #{tpu_custom_call.1} parent=147 // pred_check_branch
          %1212 = sbr.rel (%p1210) target = $region152
        $region151: #{tpu_custom_call.1} parent=147 // pred_region
          %1213 = dma.done %s1206, 128
        $region152: #{tpu_custom_call.1} parent=147 // pred_fallthru
          _
        // Predicated region
        $region153: #{tpu_custom_call.1} parent=147 // pred_check
          %p1214 = pneg %p140
        $region154: #{tpu_custom_call.1} parent=147 // pred_check_branch
          %1216 = sbr.rel (%p1214) target = $region156
        $region155: #{tpu_custom_call.1} parent=147 // pred_region
          %1217 = dma.done [#allocation6], 256
        $region156: #{tpu_custom_call.1} parent=147 // pred_fallthru
          _
        // Predicated region
        $region157: #{tpu_custom_call.1} parent=147 // pred_check
          %p1218 = pneg %p161
        $region158: #{tpu_custom_call.1} parent=147 // pred_check_branch
          %1220 = sbr.rel (%p1218) target = $region160
        $region159: #{tpu_custom_call.1} parent=147 // pred_region
          %1221 = dma.done [#allocation6], 16
        $region160: #{tpu_custom_call.1} parent=147 // pred_fallthru
          _
        // Predicated region
        $region161: #{tpu_custom_call.1} parent=147 // pred_check
          %p1222 = pneg %p182
        $region162: #{tpu_custom_call.1} parent=147 // pred_check_branch
          %1224 = sbr.rel (%p1222) target = $region164
        $region163: #{tpu_custom_call.1} parent=147 // pred_region
          %1225 = dma.done [#allocation9], 16
        $region164: #{tpu_custom_call.1} parent=147 // pred_fallthru
          _
        // Predicated region
        $region165: #{tpu_custom_call.1} parent=147 // pred_check
          %p1226 = pneg %p203
        $region166: #{tpu_custom_call.1} parent=147 // pred_check_branch
          %1228 = sbr.rel (%p1226) target = $region168
        $region167: #{tpu_custom_call.1} parent=147 // pred_region
          %1229 = dma.done [#allocation9], 16
        $region168: #{tpu_custom_call.1} parent=147 // pred_fallthru
          _
        // Predicated region
        $region169: #{tpu_custom_call.1} parent=147 // pred_check
          %p1230 = pneg %p224
        $region170: #{tpu_custom_call.1} parent=147 // pred_check_branch
          %1232 = sbr.rel (%p1230) target = $region172
        $region171: #{tpu_custom_call.1} parent=147 // pred_region
          %1233 = dma.done [#allocation12], 16
        $region172: #{tpu_custom_call.1} parent=147 // pred_fallthru
          _
        // Predicated region
        $region173: #{tpu_custom_call.1} parent=147 // pred_check
          %p1234 = pneg %p245
        $region174: #{tpu_custom_call.1} parent=147 // pred_check_branch
          %1236 = sbr.rel (%p1234) target = $region176
        $region175: #{tpu_custom_call.1} parent=147 // pred_region
          %1237 = dma.done [#allocation12], 16
        $region176: #{tpu_custom_call.1} parent=147 // pred_fallthru
          _
        // Predicated region
        $region177: #{tpu_custom_call.1} parent=147 // pred_check
          %p1238 = pneg %p266
        $region178: #{tpu_custom_call.1} parent=147 // pred_check_branch
          %1240 = sbr.rel (%p1238) target = $region180
        $region179: #{tpu_custom_call.1} parent=147 // pred_region
          %1241 = dma.done [#allocation15], 16
        $region180: #{tpu_custom_call.1} parent=147 // pred_fallthru
          _
        // Predicated region
        $region181: #{tpu_custom_call.1} parent=147 // pred_check
          %p1242 = pneg %p287
        $region182: #{tpu_custom_call.1} parent=147 // pred_check_branch
          %1244 = sbr.rel (%p1242) target = $region184
        $region183: #{tpu_custom_call.1} parent=147 // pred_region
          %1245 = dma.done [#allocation15], 16
        $region184: #{tpu_custom_call.1} parent=147 // pred_fallthru
          _
        // Predicated region
        $region185: #{tpu_custom_call.1} parent=147 // pred_check
          %p1246 = pneg %p308
        $region186: #{tpu_custom_call.1} parent=147 // pred_check_branch
          %1248 = sbr.rel (%p1246) target = $region188
        $region187: #{tpu_custom_call.1} parent=147 // pred_region
          %1249 = dma.done [#allocation18], 16
        $region188: #{tpu_custom_call.1} parent=147 // pred_fallthru
          _
        // Predicated region
        $region189: #{tpu_custom_call.1} parent=147 // pred_check
          %p1250 = pneg %p329
        $region190: #{tpu_custom_call.1} parent=147 // pred_check_branch
          %1252 = sbr.rel (%p1250) target = $region192
        $region191: #{tpu_custom_call.1} parent=147 // pred_region
          %1253 = dma.done [#allocation18], 256
        $region192: #{tpu_custom_call.1} parent=147 // pred_fallthru
          _
        // Predicated region
        $region193: #{tpu_custom_call.1} parent=147 // pred_check
          %p1254 = pneg %p350
        $region194: #{tpu_custom_call.1} parent=147 // pred_check_branch
          %1256 = sbr.rel (%p1254) target = $region196
        $region195: #{tpu_custom_call.1} parent=147 // pred_region
          %1257 = dma.done [#allocation21], 16
        $region196: #{tpu_custom_call.1} parent=147 // pred_fallthru
          _
        // Predicated region
        $region197: #{tpu_custom_call.1} parent=147 // pred_check
          %p1258 = pneg %p371
        $region198: #{tpu_custom_call.1} parent=147 // pred_check_branch
          %1260 = sbr.rel (%p1258) target = $region200
        $region199: #{tpu_custom_call.1} parent=147 // pred_region
          %1261 = dma.done [#allocation21], 512
        $region200: #{tpu_custom_call.1} parent=147 // pred_fallthru
          _
        // Predicated region
        $region201: #{tpu_custom_call.1} parent=147 // pred_check
          %p1262 = pneg %p392
        $region202: #{tpu_custom_call.1} parent=147 // pred_check_branch
          %1264 = sbr.rel (%p1262) target = $region204
        $region203: #{tpu_custom_call.1} parent=147 // pred_region
          %1265 = dma.done [#allocation24], 16
        $region204: #{tpu_custom_call.1} parent=147 // pred_fallthru
          _
        // Predicated region
        $region205: #{tpu_custom_call.1} parent=147 // pred_check
          %p1266 = pneg %p413
        $region206: #{tpu_custom_call.1} parent=147 // pred_check_branch
          %1268 = sbr.rel (%p1266) target = $region208
        $region207: #{tpu_custom_call.1} parent=147 // pred_region
          %1269 = dma.done [#allocation24], 256
        $region208: #{tpu_custom_call.1} parent=147 // pred_fallthru
          _
        // Predicated region
        $region209: #{tpu_custom_call.1} parent=147 // pred_check
          %p1270 = pneg %p434
        $region210: #{tpu_custom_call.1} parent=147 // pred_check_branch
          %1272 = sbr.rel (%p1270) target = $region212
        $region211: #{tpu_custom_call.1} parent=147 // pred_region
          %1273 = dma.done [#allocation27], 16
        $region212: #{tpu_custom_call.1} parent=147 // pred_fallthru
          _
        // Predicated region
        $region213: #{tpu_custom_call.1} parent=147 // pred_check
          %p1274 = pneg %p455
        $region214: #{tpu_custom_call.1} parent=147 // pred_check_branch
          %1276 = sbr.rel (%p1274) target = $region216
        $region215: #{tpu_custom_call.1} parent=147 // pred_region
          %1277 = dma.done [#allocation27], 256
        $region216: #{tpu_custom_call.1} parent=147 // pred_fallthru
          _
        // Predicated region
        $region217: #{tpu_custom_call.1} parent=147 // pred_check
          %p1278 = pneg %p476
        $region218: #{tpu_custom_call.1} parent=147 // pred_check_branch
          %1280 = sbr.rel (%p1278) target = $region220
        $region219: #{tpu_custom_call.1} parent=147 // pred_region
          %1281 = dma.done [#allocation30], 16
        $region220: #{tpu_custom_call.1} parent=147 // pred_fallthru
          _
        // Predicated region
        $region221: #{tpu_custom_call.1} parent=147 // pred_check
          %p1282 = pneg %p497
        $region222: #{tpu_custom_call.1} parent=147 // pred_check_branch
          %1284 = sbr.rel (%p1282) target = $region224
        $region223: #{tpu_custom_call.1} parent=147 // pred_region
          %1285 = dma.done [#allocation30], 256
        $region224: #{tpu_custom_call.1} parent=147 // pred_fallthru
          _
        // Predicated region
        $region225: #{tpu_custom_call.1} parent=147 // pred_check
          %p1286 = pneg %p518
        $region226: #{tpu_custom_call.1} parent=147 // pred_check_branch
          %1288 = sbr.rel (%p1286) target = $region228
        $region227: #{tpu_custom_call.1} parent=147 // pred_region
          %1289 = dma.done [#allocation33], 16
        $region228: #{tpu_custom_call.1} parent=147 // pred_fallthru
          _
        // Predicated region
        $region229: #{tpu_custom_call.1} parent=147 // pred_check
          %p1290 = pneg %p539
        $region230: #{tpu_custom_call.1} parent=147 // pred_check_branch
          %1292 = sbr.rel (%p1290) target = $region232
        $region231: #{tpu_custom_call.1} parent=147 // pred_region
          %1293 = dma.done [#allocation33], 48
        $region232: #{tpu_custom_call.1} parent=147 // pred_fallthru
          _
        // Predicated region
        $region233: #{tpu_custom_call.1} parent=147 // pred_check
          %p1294 = pneg %p560
        $region234: #{tpu_custom_call.1} parent=147 // pred_check_branch
          %1296 = sbr.rel (%p1294) target = $region236
        $region235: #{tpu_custom_call.1} parent=147 // pred_region
          %1297 = dma.done [#allocation36], 16
        $region236: #{tpu_custom_call.1} parent=147 // pred_fallthru
          _
        // Predicated region
        $region237: #{tpu_custom_call.1} parent=147 // pred_check
          %p1298 = pneg %p581
        $region238: #{tpu_custom_call.1} parent=147 // pred_check_branch
          %1300 = sbr.rel (%p1298) target = $region240
        $region239: #{tpu_custom_call.1} parent=147 // pred_region
          %1301 = dma.done [#allocation36], 80
        $region240: #{tpu_custom_call.1} parent=147 // pred_fallthru
          _
        // Predicated region
        $region241: #{tpu_custom_call.1} parent=147 // pred_check
          %p1302 = pneg %p602
        $region242: #{tpu_custom_call.1} parent=147 // pred_check_branch
          %1304 = sbr.rel (%p1302) target = $region244
        $region243: #{tpu_custom_call.1} parent=147 // pred_region
          %1305 = dma.done [#allocation39], 16
        $region244: #{tpu_custom_call.1} parent=147 // pred_fallthru
          _
        // Predicated region
        $region245: #{tpu_custom_call.1} parent=147 // pred_check
          %p1306 = pneg %p623
        $region246: #{tpu_custom_call.1} parent=147 // pred_check_branch
          %1308 = sbr.rel (%p1306) target = $region248
        $region247: #{tpu_custom_call.1} parent=147 // pred_region
          %1309 = dma.done [#allocation39], 112
        $region248: #{tpu_custom_call.1} parent=147 // pred_fallthru
          _
        // Predicated region
        $region249: #{tpu_custom_call.1} parent=147 // pred_check
          %p1310 = pneg %p644
        $region250: #{tpu_custom_call.1} parent=147 // pred_check_branch
          %1312 = sbr.rel (%p1310) target = $region252
        $region251: #{tpu_custom_call.1} parent=147 // pred_region
          %1313 = dma.done [#allocation42], 16
        $region252: #{tpu_custom_call.1} parent=147 // pred_fallthru
          _
        // Predicated region
        $region253: #{tpu_custom_call.1} parent=147 // pred_check
          %p1314 = pneg %p665
        $region254: #{tpu_custom_call.1} parent=147 // pred_check_branch
          %1316 = sbr.rel (%p1314) target = $region256
        $region255: #{tpu_custom_call.1} parent=147 // pred_region
          %1317 = dma.done [#allocation42], 128
        $region256: #{tpu_custom_call.1} parent=147 // pred_fallthru
          _
        // Predicated region
        $region257: #{tpu_custom_call.1} parent=147 // pred_check
          %p1318 = pneg %p686
        $region258: #{tpu_custom_call.1} parent=147 // pred_check_branch
          %1320 = sbr.rel (%p1318) target = $region260
        $region259: #{tpu_custom_call.1} parent=147 // pred_region
          %1321 = dma.done [#allocation45], 16
        $region260: #{tpu_custom_call.1} parent=147 // pred_fallthru
          _
        // Predicated region
        $region261: #{tpu_custom_call.1} parent=147 // pred_check
          %p1322 = pneg %p707
        $region262: #{tpu_custom_call.1} parent=147 // pred_check_branch
          %1324 = sbr.rel (%p1322) target = $region264
        $region263: #{tpu_custom_call.1} parent=147 // pred_region
          %1325 = dma.done [#allocation45], 256
        $region264: #{tpu_custom_call.1} parent=147 // pred_fallthru
          _
        // Predicated region
        $region265: #{tpu_custom_call.1} parent=147 // pred_check
          %p1326 = pneg %p728
        $region266: #{tpu_custom_call.1} parent=147 // pred_check_branch
          %1328 = sbr.rel (%p1326) target = $region268
        $region267: #{tpu_custom_call.1} parent=147 // pred_region
          %1329 = dma.done [#allocation48], 16
        $region268: #{tpu_custom_call.1} parent=147 // pred_fallthru
          _
        // Predicated region
        $region269: #{tpu_custom_call.1} parent=147 // pred_check
          %p1330 = pneg %p749
        $region270: #{tpu_custom_call.1} parent=147 // pred_check_branch
          %1332 = sbr.rel (%p1330) target = $region272
        $region271: #{tpu_custom_call.1} parent=147 // pred_region
          %1333 = dma.done [#allocation48], 512
        $region272: #{tpu_custom_call.1} parent=147 // pred_fallthru
          _
        // Predicated region
        $region273: #{tpu_custom_call.1} parent=147 // pred_check
          %p1334 = pneg %p770
        $region274: #{tpu_custom_call.1} parent=147 // pred_check_branch
          %1336 = sbr.rel (%p1334) target = $region276
        $region275: #{tpu_custom_call.1} parent=147 // pred_region
          %1337 = dma.done [#allocation51], 16
        $region276: #{tpu_custom_call.1} parent=147 // pred_fallthru
          _
        %s1338 = sand.u32 %s106, 1
        %s1339 = scalar_lea.sflag [#allocation3], %s1338
        %s1340 = sand.u32 %s106, 1
        %s1341 = smul.addr %s1340, 8
        %s1342 = scalar_lea.vmem [#allocation2], %s1341
        %p1343 = pneg %p119
        %p1344 = pneg %p116
        %p1345 = pneg %p140
        %p1346 = pneg %p137
        %p1347 = pneg %p161
        %p1348 = pneg %p158
        %p1349 = pneg %p182
        %p1350 = pneg %p179
        %p1351 = pneg %p203
        %p1352 = pneg %p200
        %p1353 = pneg %p224
        %p1354 = pneg %p221
        %p1355 = pneg %p245
        %p1356 = pneg %p242
        %p1357 = pneg %p266
        %p1358 = pneg %p263
        %p1359 = pneg %p287
        %p1360 = pneg %p284
        %p1361 = pneg %p308
        %p1362 = pneg %p305
        %p1363 = pneg %p329
        %p1364 = pneg %p326
        %p1365 = pneg %p350
        %p1366 = pneg %p347
        %p1367 = pneg %p371
        %p1368 = pneg %p368
        %p1369 = pneg %p392
        %p1370 = pneg %p389
        %p1371 = pneg %p413
        %p1372 = pneg %p410
        %p1373 = pneg %p434
        %p1374 = pneg %p431
        %p1375 = pneg %p455
        %p1376 = pneg %p452
        %p1377 = pneg %p476
        %p1378 = pneg %p473
        %p1379 = pneg %p497
        %p1380 = pneg %p494
        %p1381 = pneg %p518
        %p1382 = pneg %p515
        %p1383 = pneg %p539
        %p1384 = pneg %p536
        %p1385 = pneg %p560
        %p1386 = pneg %p557
        %p1387 = pneg %p581
        %p1388 = pneg %p578
        %p1389 = pneg %p602
        %p1390 = pneg %p599
        %p1391 = pneg %p623
        %p1392 = pneg %p620
        %p1393 = pneg %p644
        %p1394 = pneg %p641
        %p1395 = pneg %p665
        %p1396 = pneg %p662
        %p1397 = pneg %p686
        %p1398 = pneg %p683
        %p1399 = pneg %p707
        %p1400 = pneg %p704
        %p1401 = pneg %p728
        %p1402 = pneg %p725
        %p1403 = pneg %p749
        %p1404 = pneg %p746
        %p1405 = pneg %p770
        %p1406 = pneg %p767
        %p1407 = pneg %p796
        %p1408 = pneg %p793
        %s1409 = sand.u32 %s783, 1
        %s1410 = scalar_lea.sflag [#allocation4], %s1409
        %s1411 = sand.u32 %s783, 1
        %s1412 = smul.addr %s1411, 8
        %s1413 = scalar_lea.vmem [#allocation52], %s1412
        %v1415 = vld [vmem:[%s1209] sm:$0xff]
        %vm1416 = vcmask 261120
        %v1417 = vsel %vm1416, %v1415, 0.0
        %1418 = vadd.xlane.f32.xlu0 %v1417
        %v1419 = vpop.xlane.xlu0 %1418
        %v1420 = vrcp.pop 32.0
        %v1421 = vmul.f32 %v1419, %v1420
        %v1422 = vsub.f32 %v1415, %v1421
        %v1423 = vmul.f32 %v1422, %v1422
        %v1424 = vsel %vm1416, %v1423, 0.0
        %1425 = vadd.xlane.f32.xlu0 %v1424
        %v1426 = vpop.xlane.xlu0 %1425
        %v1427 = vmul.f32 %v1426, %v1420
        %v1428 = vadd.f32 %v1427, 1e-05
        %v1429 = vrsqrt.pop %v1428
        %v1430 = vmul.f32 %v1422, %v1429
        %v1431 = vld [vmem:[#allocation7] sm:$0x1]
        %v1433 = vlaneseq
        %v1434 = vshrl.u32 %v1433, 7
        %v1435 = vsub.s32 0, %v1434
        %v1436 = vrot.slane %v1431, %v1435
        %v1438 = vmul.f32 %v1430, %v1436
        %v1439 = vld [vmem:[#allocation8] sm:$0x1]
        %v1441 = vlaneseq
        %v1442 = vshrl.u32 %v1441, 7
        %v1443 = vsub.s32 0, %v1442
        %v1444 = vrot.slane %v1439, %v1443
        %v1446 = vadd.f32 %v1438, %v1444
        %v1447 = vld [vmem:[#allocation19] sm:$0xf]
        %v1448 = vld [vmem:[#allocation19 + $0x4] sm:$0xf]
        %v1449 = vld [vmem:[#allocation19 + $0x8] sm:$0xf]
        %v1450 = vld [vmem:[#allocation19 + $0xc] sm:$0xf]
        %v1451 = vpack.c.bf16 %v1446, %v1446
        %v1452 = vld [vmem:[#allocation20] sm:$0x1]
        %v1454 = vlaneseq
        %v1455 = vshrl.u32 %v1454, 7
        %v1456 = vsub.s32 0, %v1455
        %v1457 = vrot.slane %v1452, %v1456
        %v1463 = vunpack.c.l.b16 %v1447
        %v1464 = vunpack.c.l.b16 %v1448
        %v1465 = vunpack.c.l.b16 %v1449
        %v1466 = vunpack.c.l.b16 %v1450
        %v1467 = vpack.c.b16 %v1464, %v1463
        %v1468 = vpack.c.b16 %v1466, %v1465
        %v1472 = vsel %vm1416, %v1451, 0
        %1474 = vmatprep.subr.bf16.mxu0 0
        %1475 = vmatpush1.bf16.msra.mxu0 %v1467
        %1476 = vmatprep.subr.bf16.mxu0 0
        %1477 = vmatpush1.bf16.msra.mxu0 %v1468
        %1478 = vmatprep.subr.bf16.mxu0 0
        %1479 = vmatpush1.bf16.msra.mxu0 0
        %1480 = vmatprep.subr.bf16.mxu0 0
        %1481 = vmatpush1.bf16.msra.mxu0 0
        %1482 = vmatprep.subr.bf16.mxu0 0
        %1483 = vmatpush1.bf16.msra.mxu0 0
        %1484 = vmatprep.subr.bf16.mxu0 0
        %1485 = vmatpush1.bf16.msra.mxu0 0
        %1486 = vmatprep.subr.bf16.mxu0 0
        %1487 = vmatpush1.bf16.msra.mxu0 0
        %1488 = vmatprep.subr.bf16.mxu0 0
        %1489 = vmatpush1.bf16.msra.mxu0 0
        %1490 = vmatprep.subr.bf16.mxu0 0
        %1491 = vmatpush1.bf16.msra.mxu0 0
        %1492 = vmatprep.subr.bf16.mxu0 0
        %1493 = vmatpush1.bf16.msra.mxu0 0
        %1494 = vmatprep.subr.bf16.mxu0 0
        %1495 = vmatpush1.bf16.msra.mxu0 0
        %1496 = vmatprep.subr.bf16.mxu0 0
        %1497 = vmatpush1.bf16.msra.mxu0 0
        %1498 = vmatprep.subr.bf16.mxu0 0
        %1499 = vmatpush1.bf16.msra.mxu0 0
        %1500 = vmatprep.subr.bf16.mxu0 0
        %1501 = vmatpush1.bf16.msra.mxu0 0
        %1502 = vmatprep.subr.bf16.mxu0 0
        %1503 = vmatpush1.bf16.msra.mxu0 0
        %1504 = vmatprep.subr.bf16.mxu0 0
        %1505 = vmatpush1.bf16.msra.mxu0 0
        %1506 = vmatprep.mubr.bf16.mxu0 0
        %1507 = vmatmul.mubr.bf16.gmra.mrb[0].mxu0 %v1472
        %v1508 = vpop.f32.mrb[0].mxu0
        %v1509 = vadd.f32 %v1457, %v1508
        %v1510 = vpop.f32.mrb[0].mxu0
        %v1511 = vpop.f32.mrb[0].mxu0
        %v1512 = vpop.f32.mrb[0].mxu0
        %1513 = vdwg.mxu0
        %v1514 = vmax.f32 %v1509, 0.0
        %v1515 = vld [vmem:[#allocation22] sm:$0xf]
        %v1516 = vld [vmem:[#allocation22 + $0x4] sm:$0xf]
        %v1517 = vld [vmem:[#allocation22 + $0x8] sm:$0xf]
        %v1518 = vld [vmem:[#allocation22 + $0xc] sm:$0xf]
        %v1519 = vld [vmem:[#allocation22 + $0x10] sm:$0xf]
        %v1520 = vld [vmem:[#allocation22 + $0x14] sm:$0xf]
        %v1521 = vld [vmem:[#allocation22 + $0x18] sm:$0xf]
        %v1522 = vld [vmem:[#allocation22 + $0x1c] sm:$0xf]
        %v1523 = vpack.c.bf16 %v1514, %v1514
        %v1524 = vld [vmem:[#allocation23] sm:$0x1]
        %v1526 = vlaneseq
        %v1527 = vshrl.u32 %v1526, 7
        %v1528 = vsub.s32 0, %v1527
        %v1529 = vrot.slane %v1524, %v1528
        %v1539 = vunpack.c.l.b16 %v1515
        %v1540 = vunpack.c.l.b16 %v1516
        %v1541 = vunpack.c.l.b16 %v1517
        %v1542 = vunpack.c.l.b16 %v1518
        %v1543 = vunpack.c.l.b16 %v1519
        %v1544 = vunpack.c.l.b16 %v1520
        %v1545 = vunpack.c.l.b16 %v1521
        %v1546 = vunpack.c.l.b16 %v1522
        %v1547 = vpack.c.b16 %v1540, %v1539
        %v1548 = vpack.c.b16 %v1542, %v1541
        %v1549 = vpack.c.b16 %v1544, %v1543
        %v1550 = vpack.c.b16 %v1546, %v1545
        %vm1555 = vcmask 523264
        %v1557 = vsel %vm1555, %v1523, 0
        %1559 = vmatprep.subr.bf16.mxu0 0
        %1560 = vmatpush1.bf16.msra.mxu0 %v1547
        %1561 = vmatprep.subr.bf16.mxu0 0
        %1562 = vmatpush1.bf16.msra.mxu0 %v1548
        %1563 = vmatprep.subr.bf16.mxu0 0
        %1564 = vmatpush1.bf16.msra.mxu0 %v1549
        %1565 = vmatprep.subr.bf16.mxu0 0
        %1566 = vmatpush1.bf16.msra.mxu0 %v1550
        %1567 = vmatprep.subr.bf16.mxu0 0
        %1568 = vmatpush1.bf16.msra.mxu0 0
        %1569 = vmatprep.subr.bf16.mxu0 0
        %1570 = vmatpush1.bf16.msra.mxu0 0
        %1571 = vmatprep.subr.bf16.mxu0 0
        %1572 = vmatpush1.bf16.msra.mxu0 0
        %1573 = vmatprep.subr.bf16.mxu0 0
        %1574 = vmatpush1.bf16.msra.mxu0 0
        %1575 = vmatprep.subr.bf16.mxu0 0
        %1576 = vmatpush1.bf16.msra.mxu0 0
        %1577 = vmatprep.subr.bf16.mxu0 0
        %1578 = vmatpush1.bf16.msra.mxu0 0
        %1579 = vmatprep.subr.bf16.mxu0 0
        %1580 = vmatpush1.bf16.msra.mxu0 0
        %1581 = vmatprep.subr.bf16.mxu0 0
        %1582 = vmatpush1.bf16.msra.mxu0 0
        %1583 = vmatprep.subr.bf16.mxu0 0
        %1584 = vmatpush1.bf16.msra.mxu0 0
        %1585 = vmatprep.subr.bf16.mxu0 0
        %1586 = vmatpush1.bf16.msra.mxu0 0
        %1587 = vmatprep.subr.bf16.mxu0 0
        %1588 = vmatpush1.bf16.msra.mxu0 0
        %1589 = vmatprep.subr.bf16.mxu0 0
        %1590 = vmatpush1.bf16.msra.mxu0 0
        %1591 = vmatprep.mubr.bf16.mxu0 0
        %1592 = vmatmul.mubr.bf16.gmra.mrb[0].mxu0 %v1557
        %v1593 = vpop.f32.mrb[0].mxu0
        %v1594 = vadd.f32 %v1529, %v1593
        %v1595 = vpop.f32.mrb[0].mxu0
        %v1596 = vpop.f32.mrb[0].mxu0
        %v1597 = vpop.f32.mrb[0].mxu0
        %1598 = vdwg.mxu0
        %v1599 = vmul.f32 %v1594, 0.5
        %v1600 = vadd.f32 %v1415, %v1599
        %v1601 = vsel %vm1416, %v1600, 0.0
        %1602 = vadd.xlane.f32.xlu0 %v1601
        %v1603 = vpop.xlane.xlu0 %1602
        %v1604 = vmul.f32 %v1603, %v1420
        %v1605 = vsub.f32 %v1600, %v1604
        %v1606 = vmul.f32 %v1605, %v1605
        %v1607 = vsel %vm1416, %v1606, 0.0
        %1608 = vadd.xlane.f32.xlu0 %v1607
        %v1609 = vpop.xlane.xlu0 %1608
        %v1610 = vmul.f32 %v1609, %v1420
        %v1611 = vadd.f32 %v1610, 1e-05
        %v1612 = vrsqrt.pop %v1611
        %v1613 = vmul.f32 %v1605, %v1612
        %v1614 = vld [vmem:[#allocation10] sm:$0x1]
        %v1616 = vlaneseq
        %v1617 = vshrl.u32 %v1616, 7
        %v1618 = vsub.s32 0, %v1617
        %v1619 = vrot.slane %v1614, %v1618
        %v1621 = vmul.f32 %v1613, %v1619
        %v1622 = vld [vmem:[#allocation11] sm:$0x1]
        %v1624 = vlaneseq
        %v1625 = vshrl.u32 %v1624, 7
        %v1626 = vsub.s32 0, %v1625
        %v1627 = vrot.slane %v1622, %v1626
        %v1629 = vadd.f32 %v1621, %v1627
        %v1630 = vld [vmem:[#allocation25] sm:$0xf]
        %v1631 = vld [vmem:[#allocation25 + $0x4] sm:$0xf]
        %v1632 = vld [vmem:[#allocation25 + $0x8] sm:$0xf]
        %v1633 = vld [vmem:[#allocation25 + $0xc] sm:$0xf]
        %v1634 = vpack.c.bf16 %v1629, %v1629
        %v1635 = vld [vmem:[#allocation26] sm:$0x1]
        %v1637 = vlaneseq
        %v1638 = vshrl.u32 %v1637, 7
        %v1639 = vsub.s32 0, %v1638
        %v1640 = vrot.slane %v1635, %v1639
        %v1646 = vunpack.c.l.b16 %v1630
        %v1647 = vunpack.c.l.b16 %v1631
        %v1648 = vunpack.c.l.b16 %v1632
        %v1649 = vunpack.c.l.b16 %v1633
        %v1650 = vpack.c.b16 %v1647, %v1646
        %v1651 = vpack.c.b16 %v1649, %v1648
        %v1655 = vsel %vm1416, %v1634, 0
        %1657 = vmatprep.subr.bf16.mxu0 0
        %1658 = vmatpush1.bf16.msra.mxu0 %v1650
        %1659 = vmatprep.subr.bf16.mxu0 0
        %1660 = vmatpush1.bf16.msra.mxu0 %v1651
        %1661 = vmatprep.subr.bf16.mxu0 0
        %1662 = vmatpush1.bf16.msra.mxu0 0
        %1663 = vmatprep.subr.bf16.mxu0 0
        %1664 = vmatpush1.bf16.msra.mxu0 0
        %1665 = vmatprep.subr.bf16.mxu0 0
        %1666 = vmatpush1.bf16.msra.mxu0 0
        %1667 = vmatprep.subr.bf16.mxu0 0
        %1668 = vmatpush1.bf16.msra.mxu0 0
        %1669 = vmatprep.subr.bf16.mxu0 0
        %1670 = vmatpush1.bf16.msra.mxu0 0
        %1671 = vmatprep.subr.bf16.mxu0 0
        %1672 = vmatpush1.bf16.msra.mxu0 0
        %1673 = vmatprep.subr.bf16.mxu0 0
        %1674 = vmatpush1.bf16.msra.mxu0 0
        %1675 = vmatprep.subr.bf16.mxu0 0
        %1676 = vmatpush1.bf16.msra.mxu0 0
        %1677 = vmatprep.subr.bf16.mxu0 0
        %1678 = vmatpush1.bf16.msra.mxu0 0
        %1679 = vmatprep.subr.bf16.mxu0 0
        %1680 = vmatpush1.bf16.msra.mxu0 0
        %1681 = vmatprep.subr.bf16.mxu0 0
        %1682 = vmatpush1.bf16.msra.mxu0 0
        %1683 = vmatprep.subr.bf16.mxu0 0
        %1684 = vmatpush1.bf16.msra.mxu0 0
        %1685 = vmatprep.subr.bf16.mxu0 0
        %1686 = vmatpush1.bf16.msra.mxu0 0
        %1687 = vmatprep.subr.bf16.mxu0 0
        %1688 = vmatpush1.bf16.msra.mxu0 0
        %1689 = vmatprep.mubr.bf16.mxu0 0
        %1690 = vmatmul.mubr.bf16.gmra.mrb[0].mxu0 %v1655
        %v1691 = vpop.f32.mrb[0].mxu0
        %v1692 = vadd.f32 %v1640, %v1691
        %v1693 = vpop.f32.mrb[0].mxu0
        %v1694 = vpop.f32.mrb[0].mxu0
        %v1695 = vpop.f32.mrb[0].mxu0
        %1696 = vdwg.mxu0
        %v1697 = vpack.c.bf16 %v1692, %v1692
        %v1698 = vld [vmem:[#allocation5] sm:$0xf]
        %v1699 = vld [vmem:[#allocation5 + $0x4] sm:$0xf]
        %v1700 = vld [vmem:[#allocation5 + $0x8] sm:$0xf]
        %v1701 = vld [vmem:[#allocation5 + $0xc] sm:$0xf]
        %v1702 = vunpack.c.l.bf16 %v1698
        %1704 = vrot.lane.b32.xlu0 %v1697, 96
        %v1705 = vpop.permute.xlu0 %1704
        %vm1706 = vcmask 64512
        %v1708 = vsel %vm1706, %v1697, 0
        %v1711 = vsel %vm1706, %v1705, 0
        %1713 = vmatprep.subr.bf16.mxu0 0
        %1714 = vmatpush1.bf16.xpose.msra.mxu0 %v1711
        %1715 = vmatprep.subr.bf16.mxu0 0
        %1716 = vmatpush1.bf16.xpose.msra.mxu0 0
        %1717 = vmatprep.subr.bf16.mxu0 0
        %1718 = vmatpush1.bf16.xpose.msra.mxu0 0
        %1719 = vmatprep.subr.bf16.mxu0 0
        %1720 = vmatpush1.bf16.xpose.msra.mxu0 0
        %1721 = vmatprep.subr.bf16.mxu0 0
        %1722 = vmatpush1.bf16.xpose.msra.mxu0 0
        %1723 = vmatprep.subr.bf16.mxu0 0
        %1724 = vmatpush1.bf16.xpose.msra.mxu0 0
        %1725 = vmatprep.subr.bf16.mxu0 0
        %1726 = vmatpush1.bf16.xpose.msra.mxu0 0
        %1727 = vmatprep.subr.bf16.mxu0 0
        %1728 = vmatpush1.bf16.xpose.msra.mxu0 0
        %1729 = vmatprep.subr.bf16.mxu0 0
        %1730 = vmatpush1.bf16.xpose.msra.mxu0 0
        %1731 = vmatprep.subr.bf16.mxu0 0
        %1732 = vmatpush1.bf16.xpose.msra.mxu0 0
        %1733 = vmatprep.subr.bf16.mxu0 0
        %1734 = vmatpush1.bf16.xpose.msra.mxu0 0
        %1735 = vmatprep.subr.bf16.mxu0 0
        %1736 = vmatpush1.bf16.xpose.msra.mxu0 0
        %1737 = vmatprep.subr.bf16.mxu0 0
        %1738 = vmatpush1.bf16.xpose.msra.mxu0 0
        %1739 = vmatprep.subr.bf16.mxu0 0
        %1740 = vmatpush1.bf16.xpose.msra.mxu0 0
        %1741 = vmatprep.subr.bf16.mxu0 0
        %1742 = vmatpush1.bf16.xpose.msra.mxu0 0
        %1743 = vmatprep.subr.bf16.mxu0 0
        %1744 = vmatpush1.bf16.xpose.msra.mxu0 0
        %1745 = vmatprep.mubr.bf16.mxu0 0
        %1746 = vmatmul.mubr.bf16.gmra.mrb[0].mxu0 %v1708
        %v1747 = vpop.f32.mrb[0].mxu0
        %v1748 = vadd.f32 %v1702, %v1747
        %v1749 = vpop.f32.mrb[0].mxu0
        %v1750 = vpop.f32.mrb[0].mxu0
        %v1751 = vpop.f32.mrb[0].mxu0
        %1752 = vdwg.mxu0
        %v1753 = vsel %vm1706, %v1748, -inf
        %1754 = vmax.xlane.f32.xlu0 %v1753
        %v1755 = vpop.xlane.xlu0 %1754
        %v1756 = vsub.f32 %v1748, %v1755
        %v1757 = vmul.f32 %v1756, 1.442695
        %v1758 = vpow.pop %v1757
        %v1759 = vsel %vm1706, %v1758, 0.0
        %1760 = vadd.xlane.f32.xlu0 %v1759
        %v1761 = vpop.xlane.xlu0 %1760
        %v1762 = vpack.c.bf16 %v1758, %v1758
        %1763 = vrot.lane.b32.xlu0 %v1697, 64
        %v1764 = vpop.permute.xlu0 %1763
        %v1766 = vsel %vm1706, %v1762, 0
        %vm1768 = vcmask 1043456
        %v1770 = vsel %vm1768, %v1764, 0
        %1772 = vmatprep.subr.bf16.mxu0 0
        %1773 = vmatpush1.bf16.msra.mxu0 %v1770
        %1774 = vmatprep.subr.bf16.mxu0 0
        %1775 = vmatpush1.bf16.msra.mxu0 0
        %1776 = vmatprep.subr.bf16.mxu0 0
        %1777 = vmatpush1.bf16.msra.mxu0 0
        %1778 = vmatprep.subr.bf16.mxu0 0
        %1779 = vmatpush1.bf16.msra.mxu0 0
        %1780 = vmatprep.subr.bf16.mxu0 0
        %1781 = vmatpush1.bf16.msra.mxu0 0
        %1782 = vmatprep.subr.bf16.mxu0 0
        %1783 = vmatpush1.bf16.msra.mxu0 0
        %1784 = vmatprep.subr.bf16.mxu0 0
        %1785 = vmatpush1.bf16.msra.mxu0 0
        %1786 = vmatprep.subr.bf16.mxu0 0
        %1787 = vmatpush1.bf16.msra.mxu0 0
        %1788 = vmatprep.subr.bf16.mxu0 0
        %1789 = vmatpush1.bf16.msra.mxu0 0
        %1790 = vmatprep.subr.bf16.mxu0 0
        %1791 = vmatpush1.bf16.msra.mxu0 0
        %1792 = vmatprep.subr.bf16.mxu0 0
        %1793 = vmatpush1.bf16.msra.mxu0 0
        %1794 = vmatprep.subr.bf16.mxu0 0
        %1795 = vmatpush1.bf16.msra.mxu0 0
        %1796 = vmatprep.subr.bf16.mxu0 0
        %1797 = vmatpush1.bf16.msra.mxu0 0
        %1798 = vmatprep.subr.bf16.mxu0 0
        %1799 = vmatpush1.bf16.msra.mxu0 0
        %1800 = vmatprep.subr.bf16.mxu0 0
        %1801 = vmatpush1.bf16.msra.mxu0 0
        %1802 = vmatprep.subr.bf16.mxu0 0
        %1803 = vmatpush1.bf16.msra.mxu0 0
        %1804 = vmatprep.mubr.bf16.mxu0 0
        %1805 = vmatmul.mubr.bf16.gmra.mrb[0].mxu0 %v1766
        %v1806 = vpop.f32.mrb[0].mxu0
        %v1807 = vadd.f32 0.0, %v1806
        %v1808 = vpop.f32.mrb[0].mxu0
        %v1809 = vpop.f32.mrb[0].mxu0
        %v1810 = vpop.f32.mrb[0].mxu0
        %1811 = vdwg.mxu0
        %v1812 = vrcp.pop %v1761
        %v1813 = vmul.f32 %v1807, %v1812
        %v1814 = vpack.c.bf16 %v1813, %v1813
        %v1815 = vunpack.c.l.bf16 %v1699
        %1816 = vrot.lane.b32.xlu0 %v1697, 120
        %v1817 = vpop.permute.xlu0 %1816
        %1818 = vrot.lane.b32.xlu0 %v1697, 88
        %v1819 = vpop.permute.xlu0 %1818
        %v1821 = vsel %vm1706, %v1817, 0
        %v1824 = vsel %vm1706, %v1819, 0
        %1826 = vmatprep.subr.bf16.mxu0 0
        %1827 = vmatpush1.bf16.xpose.msra.mxu0 %v1824
        %1828 = vmatprep.subr.bf16.mxu0 0
        %1829 = vmatpush1.bf16.xpose.msra.mxu0 0
        %1830 = vmatprep.subr.bf16.mxu0 0
        %1831 = vmatpush1.bf16.xpose.msra.mxu0 0
        %1832 = vmatprep.subr.bf16.mxu0 0
        %1833 = vmatpush1.bf16.xpose.msra.mxu0 0
        %1834 = vmatprep.subr.bf16.mxu0 0
        %1835 = vmatpush1.bf16.xpose.msra.mxu0 0
        %1836 = vmatprep.subr.bf16.mxu0 0
        %1837 = vmatpush1.bf16.xpose.msra.mxu0 0
        %1838 = vmatprep.subr.bf16.mxu0 0
        %1839 = vmatpush1.bf16.xpose.msra.mxu0 0
        %1840 = vmatprep.subr.bf16.mxu0 0
        %1841 = vmatpush1.bf16.xpose.msra.mxu0 0
        %1842 = vmatprep.subr.bf16.mxu0 0
        %1843 = vmatpush1.bf16.xpose.msra.mxu0 0
        %1844 = vmatprep.subr.bf16.mxu0 0
        %1845 = vmatpush1.bf16.xpose.msra.mxu0 0
        %1846 = vmatprep.subr.bf16.mxu0 0
        %1847 = vmatpush1.bf16.xpose.msra.mxu0 0
        %1848 = vmatprep.subr.bf16.mxu0 0
        %1849 = vmatpush1.bf16.xpose.msra.mxu0 0
        %1850 = vmatprep.subr.bf16.mxu0 0
        %1851 = vmatpush1.bf16.xpose.msra.mxu0 0
        %1852 = vmatprep.subr.bf16.mxu0 0
        %1853 = vmatpush1.bf16.xpose.msra.mxu0 0
        %1854 = vmatprep.subr.bf16.mxu0 0
        %1855 = vmatpush1.bf16.xpose.msra.mxu0 0
        %1856 = vmatprep.subr.bf16.mxu0 0
        %1857 = vmatpush1.bf16.xpose.msra.mxu0 0
        %1858 = vmatprep.mubr.bf16.mxu0 0
        %1859 = vmatmul.mubr.bf16.gmra.mrb[0].mxu0 %v1821
        %v1860 = vpop.f32.mrb[0].mxu0
        %v1861 = vadd.f32 %v1815, %v1860
        %v1862 = vpop.f32.mrb[0].mxu0
        %v1863 = vpop.f32.mrb[0].mxu0
        %v1864 = vpop.f32.mrb[0].mxu0
        %1865 = vdwg.mxu0
        %v1866 = vsel %vm1706, %v1861, -inf
        %1867 = vmax.xlane.f32.xlu0 %v1866
        %v1868 = vpop.xlane.xlu0 %1867
        %v1869 = vsub.f32 %v1861, %v1868
        %v1870 = vmul.f32 %v1869, 1.442695
        %v1871 = vpow.pop %v1870
        %v1872 = vsel %vm1706, %v1871, 0.0
        %1873 = vadd.xlane.f32.xlu0 %v1872
        %v1874 = vpop.xlane.xlu0 %1873
        %v1875 = vpack.c.bf16 %v1871, %v1871
        %1876 = vrot.lane.b32.xlu0 %v1697, 56
        %v1877 = vpop.permute.xlu0 %1876
        %v1879 = vsel %vm1706, %v1875, 0
        %v1882 = vsel %vm1768, %v1877, 0
        %1884 = vmatprep.subr.bf16.mxu0 0
        %1885 = vmatpush1.bf16.msra.mxu0 %v1882
        %1886 = vmatprep.subr.bf16.mxu0 0
        %1887 = vmatpush1.bf16.msra.mxu0 0
        %1888 = vmatprep.subr.bf16.mxu0 0
        %1889 = vmatpush1.bf16.msra.mxu0 0
        %1890 = vmatprep.subr.bf16.mxu0 0
        %1891 = vmatpush1.bf16.msra.mxu0 0
        %1892 = vmatprep.subr.bf16.mxu0 0
        %1893 = vmatpush1.bf16.msra.mxu0 0
        %1894 = vmatprep.subr.bf16.mxu0 0
        %1895 = vmatpush1.bf16.msra.mxu0 0
        %1896 = vmatprep.subr.bf16.mxu0 0
        %1897 = vmatpush1.bf16.msra.mxu0 0
        %1898 = vmatprep.subr.bf16.mxu0 0
        %1899 = vmatpush1.bf16.msra.mxu0 0
        %1900 = vmatprep.subr.bf16.mxu0 0
        %1901 = vmatpush1.bf16.msra.mxu0 0
        %1902 = vmatprep.subr.bf16.mxu0 0
        %1903 = vmatpush1.bf16.msra.mxu0 0
        %1904 = vmatprep.subr.bf16.mxu0 0
        %1905 = vmatpush1.bf16.msra.mxu0 0
        %1906 = vmatprep.subr.bf16.mxu0 0
        %1907 = vmatpush1.bf16.msra.mxu0 0
        %1908 = vmatprep.subr.bf16.mxu0 0
        %1909 = vmatpush1.bf16.msra.mxu0 0
        %1910 = vmatprep.subr.bf16.mxu0 0
        %1911 = vmatpush1.bf16.msra.mxu0 0
        %1912 = vmatprep.subr.bf16.mxu0 0
        %1913 = vmatpush1.bf16.msra.mxu0 0
        %1914 = vmatprep.subr.bf16.mxu0 0
        %1915 = vmatpush1.bf16.msra.mxu0 0
        %1916 = vmatprep.mubr.bf16.mxu0 0
        %1917 = vmatmul.mubr.bf16.gmra.mrb[0].mxu0 %v1879
        %v1918 = vpop.f32.mrb[0].mxu0
        %v1919 = vadd.f32 0.0, %v1918
        %v1920 = vpop.f32.mrb[0].mxu0
        %v1921 = vpop.f32.mrb[0].mxu0
        %v1922 = vpop.f32.mrb[0].mxu0
        %1923 = vdwg.mxu0
        %v1924 = vrcp.pop %v1874
        %v1925 = vmul.f32 %v1919, %v1924
        %v1926 = vpack.c.bf16 %v1925, %v1925
        %v1927 = vunpack.c.l.bf16 %v1700
        %1928 = vrot.lane.b32.xlu0 %v1697, 112
        %v1929 = vpop.permute.xlu0 %1928
        %1930 = vrot.lane.b32.xlu0 %v1697, 80
        %v1931 = vpop.permute.xlu0 %1930
        %v1933 = vsel %vm1706, %v1929, 0
        %v1936 = vsel %vm1706, %v1931, 0
        %1938 = vmatprep.subr.bf16.mxu0 0
        %1939 = vmatpush1.bf16.xpose.msra.mxu0 %v1936
        %1940 = vmatprep.subr.bf16.mxu0 0
        %1941 = vmatpush1.bf16.xpose.msra.mxu0 0
        %1942 = vmatprep.subr.bf16.mxu0 0
        %1943 = vmatpush1.bf16.xpose.msra.mxu0 0
        %1944 = vmatprep.subr.bf16.mxu0 0
        %1945 = vmatpush1.bf16.xpose.msra.mxu0 0
        %1946 = vmatprep.subr.bf16.mxu0 0
        %1947 = vmatpush1.bf16.xpose.msra.mxu0 0
        %1948 = vmatprep.subr.bf16.mxu0 0
        %1949 = vmatpush1.bf16.xpose.msra.mxu0 0
        %1950 = vmatprep.subr.bf16.mxu0 0
        %1951 = vmatpush1.bf16.xpose.msra.mxu0 0
        %1952 = vmatprep.subr.bf16.mxu0 0
        %1953 = vmatpush1.bf16.xpose.msra.mxu0 0
        %1954 = vmatprep.subr.bf16.mxu0 0
        %1955 = vmatpush1.bf16.xpose.msra.mxu0 0
        %1956 = vmatprep.subr.bf16.mxu0 0
        %1957 = vmatpush1.bf16.xpose.msra.mxu0 0
        %1958 = vmatprep.subr.bf16.mxu0 0
        %1959 = vmatpush1.bf16.xpose.msra.mxu0 0
        %1960 = vmatprep.subr.bf16.mxu0 0
        %1961 = vmatpush1.bf16.xpose.msra.mxu0 0
        %1962 = vmatprep.subr.bf16.mxu0 0
        %1963 = vmatpush1.bf16.xpose.msra.mxu0 0
        %1964 = vmatprep.subr.bf16.mxu0 0
        %1965 = vmatpush1.bf16.xpose.msra.mxu0 0
        %1966 = vmatprep.subr.bf16.mxu0 0
        %1967 = vmatpush1.bf16.xpose.msra.mxu0 0
        %1968 = vmatprep.subr.bf16.mxu0 0
        %1969 = vmatpush1.bf16.xpose.msra.mxu0 0
        %1970 = vmatprep.mubr.bf16.mxu0 0
        %1971 = vmatmul.mubr.bf16.gmra.mrb[0].mxu0 %v1933
        %v1972 = vpop.f32.mrb[0].mxu0
        %v1973 = vadd.f32 %v1927, %v1972
        %v1974 = vpop.f32.mrb[0].mxu0
        %v1975 = vpop.f32.mrb[0].mxu0
        %v1976 = vpop.f32.mrb[0].mxu0
        %1977 = vdwg.mxu0
        %v1978 = vsel %vm1706, %v1973, -inf
        %1979 = vmax.xlane.f32.xlu0 %v1978
        %v1980 = vpop.xlane.xlu0 %1979
        %v1981 = vsub.f32 %v1973, %v1980
        %v1982 = vmul.f32 %v1981, 1.442695
        %v1983 = vpow.pop %v1982
        %v1984 = vsel %vm1706, %v1983, 0.0
        %1985 = vadd.xlane.f32.xlu0 %v1984
        %v1986 = vpop.xlane.xlu0 %1985
        %v1987 = vpack.c.bf16 %v1983, %v1983
        %1988 = vrot.lane.b32.xlu0 %v1697, 48
        %v1989 = vpop.permute.xlu0 %1988
        %v1991 = vsel %vm1706, %v1987, 0
        %v1994 = vsel %vm1768, %v1989, 0
        %1996 = vmatprep.subr.bf16.mxu0 0
        %1997 = vmatpush1.bf16.msra.mxu0 %v1994
        %1998 = vmatprep.subr.bf16.mxu0 0
        %1999 = vmatpush1.bf16.msra.mxu0 0
        %2000 = vmatprep.subr.bf16.mxu0 0
        %2001 = vmatpush1.bf16.msra.mxu0 0
        %2002 = vmatprep.subr.bf16.mxu0 0
        %2003 = vmatpush1.bf16.msra.mxu0 0
        %2004 = vmatprep.subr.bf16.mxu0 0
        %2005 = vmatpush1.bf16.msra.mxu0 0
        %2006 = vmatprep.subr.bf16.mxu0 0
        %2007 = vmatpush1.bf16.msra.mxu0 0
        %2008 = vmatprep.subr.bf16.mxu0 0
        %2009 = vmatpush1.bf16.msra.mxu0 0
        %2010 = vmatprep.subr.bf16.mxu0 0
        %2011 = vmatpush1.bf16.msra.mxu0 0
        %2012 = vmatprep.subr.bf16.mxu0 0
        %2013 = vmatpush1.bf16.msra.mxu0 0
        %2014 = vmatprep.subr.bf16.mxu0 0
        %2015 = vmatpush1.bf16.msra.mxu0 0
        %2016 = vmatprep.subr.bf16.mxu0 0
        %2017 = vmatpush1.bf16.msra.mxu0 0
        %2018 = vmatprep.subr.bf16.mxu0 0
        %2019 = vmatpush1.bf16.msra.mxu0 0
        %2020 = vmatprep.subr.bf16.mxu0 0
        %2021 = vmatpush1.bf16.msra.mxu0 0
        %2022 = vmatprep.subr.bf16.mxu0 0
        %2023 = vmatpush1.bf16.msra.mxu0 0
        %2024 = vmatprep.subr.bf16.mxu0 0
        %2025 = vmatpush1.bf16.msra.mxu0 0
        %2026 = vmatprep.subr.bf16.mxu0 0
        %2027 = vmatpush1.bf16.msra.mxu0 0
        %2028 = vmatprep.mubr.bf16.mxu0 0
        %2029 = vmatmul.mubr.bf16.gmra.mrb[0].mxu0 %v1991
        %v2030 = vpop.f32.mrb[0].mxu0
        %v2031 = vadd.f32 0.0, %v2030
        %v2032 = vpop.f32.mrb[0].mxu0
        %v2033 = vpop.f32.mrb[0].mxu0
        %v2034 = vpop.f32.mrb[0].mxu0
        %2035 = vdwg.mxu0
        %v2036 = vrcp.pop %v1986
        %v2037 = vmul.f32 %v2031, %v2036
        %v2038 = vpack.c.bf16 %v2037, %v2037
        %v2039 = vunpack.c.l.bf16 %v1701
        %2040 = vrot.lane.b32.xlu0 %v1697, 104
        %v2041 = vpop.permute.xlu0 %2040
        %2042 = vrot.lane.b32.xlu0 %v1697, 72
        %v2043 = vpop.permute.xlu0 %2042
        %v2045 = vsel %vm1706, %v2041, 0
        %v2048 = vsel %vm1706, %v2043, 0
        %2050 = vmatprep.subr.bf16.mxu0 0
        %2051 = vmatpush1.bf16.xpose.msra.mxu0 %v2048
        %2052 = vmatprep.subr.bf16.mxu0 0
        %2053 = vmatpush1.bf16.xpose.msra.mxu0 0
        %2054 = vmatprep.subr.bf16.mxu0 0
        %2055 = vmatpush1.bf16.xpose.msra.mxu0 0
        %2056 = vmatprep.subr.bf16.mxu0 0
        %2057 = vmatpush1.bf16.xpose.msra.mxu0 0
        %2058 = vmatprep.subr.bf16.mxu0 0
        %2059 = vmatpush1.bf16.xpose.msra.mxu0 0
        %2060 = vmatprep.subr.bf16.mxu0 0
        %2061 = vmatpush1.bf16.xpose.msra.mxu0 0
        %2062 = vmatprep.subr.bf16.mxu0 0
        %2063 = vmatpush1.bf16.xpose.msra.mxu0 0
        %2064 = vmatprep.subr.bf16.mxu0 0
        %2065 = vmatpush1.bf16.xpose.msra.mxu0 0
        %2066 = vmatprep.subr.bf16.mxu0 0
        %2067 = vmatpush1.bf16.xpose.msra.mxu0 0
        %2068 = vmatprep.subr.bf16.mxu0 0
        %2069 = vmatpush1.bf16.xpose.msra.mxu0 0
        %2070 = vmatprep.subr.bf16.mxu0 0
        %2071 = vmatpush1.bf16.xpose.msra.mxu0 0
        %2072 = vmatprep.subr.bf16.mxu0 0
        %2073 = vmatpush1.bf16.xpose.msra.mxu0 0
        %2074 = vmatprep.subr.bf16.mxu0 0
        %2075 = vmatpush1.bf16.xpose.msra.mxu0 0
        %2076 = vmatprep.subr.bf16.mxu0 0
        %2077 = vmatpush1.bf16.xpose.msra.mxu0 0
        %2078 = vmatprep.subr.bf16.mxu0 0
        %2079 = vmatpush1.bf16.xpose.msra.mxu0 0
        %2080 = vmatprep.subr.bf16.mxu0 0
        %2081 = vmatpush1.bf16.xpose.msra.mxu0 0
        %2082 = vmatprep.mubr.bf16.mxu0 0
        %2083 = vmatmul.mubr.bf16.gmra.mrb[0].mxu0 %v2045
        %v2084 = vpop.f32.mrb[0].mxu0
        %v2085 = vadd.f32 %v2039, %v2084
        %v2086 = vpop.f32.mrb[0].mxu0
        %v2087 = vpop.f32.mrb[0].mxu0
        %v2088 = vpop.f32.mrb[0].mxu0
        %2089 = vdwg.mxu0
        %v2090 = vsel %vm1706, %v2085, -inf
        %2091 = vmax.xlane.f32.xlu0 %v2090
        %v2092 = vpop.xlane.xlu0 %2091
        %v2093 = vsub.f32 %v2085, %v2092
        %v2094 = vmul.f32 %v2093, 1.442695
        %v2095 = vpow.pop %v2094
        %v2096 = vsel %vm1706, %v2095, 0.0
        %2097 = vadd.xlane.f32.xlu0 %v2096
        %v2098 = vpop.xlane.xlu0 %2097
        %v2099 = vpack.c.bf16 %v2095, %v2095
        %2100 = vrot.lane.b32.xlu0 %v1697, 40
        %v2101 = vpop.permute.xlu0 %2100
        %v2103 = vsel %vm1706, %v2099, 0
        %v2106 = vsel %vm1768, %v2101, 0
        %2108 = vmatprep.subr.bf16.mxu0 0
        %2109 = vmatpush1.bf16.msra.mxu0 %v2106
        %2110 = vmatprep.subr.bf16.mxu0 0
        %2111 = vmatpush1.bf16.msra.mxu0 0
        %2112 = vmatprep.subr.bf16.mxu0 0
        %2113 = vmatpush1.bf16.msra.mxu0 0
        %2114 = vmatprep.subr.bf16.mxu0 0
        %2115 = vmatpush1.bf16.msra.mxu0 0
        %2116 = vmatprep.subr.bf16.mxu0 0
        %2117 = vmatpush1.bf16.msra.mxu0 0
        %2118 = vmatprep.subr.bf16.mxu0 0
        %2119 = vmatpush1.bf16.msra.mxu0 0
        %2120 = vmatprep.subr.bf16.mxu0 0
        %2121 = vmatpush1.bf16.msra.mxu0 0
        %2122 = vmatprep.subr.bf16.mxu0 0
        %2123 = vmatpush1.bf16.msra.mxu0 0
        %2124 = vmatprep.subr.bf16.mxu0 0
        %2125 = vmatpush1.bf16.msra.mxu0 0
        %2126 = vmatprep.subr.bf16.mxu0 0
        %2127 = vmatpush1.bf16.msra.mxu0 0
        %2128 = vmatprep.subr.bf16.mxu0 0
        %2129 = vmatpush1.bf16.msra.mxu0 0
        %2130 = vmatprep.subr.bf16.mxu0 0
        %2131 = vmatpush1.bf16.msra.mxu0 0
        %2132 = vmatprep.subr.bf16.mxu0 0
        %2133 = vmatpush1.bf16.msra.mxu0 0
        %2134 = vmatprep.subr.bf16.mxu0 0
        %2135 = vmatpush1.bf16.msra.mxu0 0
        %2136 = vmatprep.subr.bf16.mxu0 0
        %2137 = vmatpush1.bf16.msra.mxu0 0
        %2138 = vmatprep.subr.bf16.mxu0 0
        %2139 = vmatpush1.bf16.msra.mxu0 0
        %2140 = vmatprep.mubr.bf16.mxu0 0
        %2141 = vmatmul.mubr.bf16.gmra.mrb[0].mxu0 %v2103
        %v2142 = vpop.f32.mrb[0].mxu0
        %v2143 = vadd.f32 0.0, %v2142
        %v2144 = vpop.f32.mrb[0].mxu0
        %v2145 = vpop.f32.mrb[0].mxu0
        %v2146 = vpop.f32.mrb[0].mxu0
        %2147 = vdwg.mxu0
        %v2148 = vrcp.pop %v2098
        %v2149 = vmul.f32 %v2143, %v2148
        %v2150 = vpack.c.bf16 %v2149, %v2149
        %2152 = vrot.lane.b32.xlu0 %v1926, 8
        %v2153 = vpop.permute.xlu0 %2152
        %2155 = vrot.lane.b32.xlu0 %v2038, 16
        %v2156 = vpop.permute.xlu0 %2155
        %2158 = vrot.lane.b32.xlu0 %v2150, 24
        %v2159 = vpop.permute.xlu0 %2158
        %v2162 = vsel %vm1706, %v1814, %v2153
        %vm2163 = vcmask 130048
        %v2165 = vsel %vm2163, %v2162, %v2156
        %vm2166 = vcmask 195584
        %v2168 = vsel %vm2166, %v2165, %v2159
        %v2169 = vld [vmem:[#allocation28] sm:$0xf]
        %v2170 = vld [vmem:[#allocation28 + $0x4] sm:$0xf]
        %v2171 = vld [vmem:[#allocation28 + $0x8] sm:$0xf]
        %v2172 = vld [vmem:[#allocation28 + $0xc] sm:$0xf]
        %v2177 = vunpack.c.l.b16 %v2169
        %v2178 = vunpack.c.l.b16 %v2170
        %v2179 = vunpack.c.l.b16 %v2171
        %v2180 = vunpack.c.l.b16 %v2172
        %v2181 = vpack.c.b16 %v2178, %v2177
        %v2182 = vpack.c.b16 %v2180, %v2179
        %v2185 = vsel %vm1416, %v2168, 0
        %2187 = vmatprep.subr.bf16.mxu0 0
        %2188 = vmatpush1.bf16.msra.mxu0 %v2181
        %2189 = vmatprep.subr.bf16.mxu0 0
        %2190 = vmatpush1.bf16.msra.mxu0 %v2182
        %2191 = vmatprep.subr.bf16.mxu0 0
        %2192 = vmatpush1.bf16.msra.mxu0 0
        %2193 = vmatprep.subr.bf16.mxu0 0
        %2194 = vmatpush1.bf16.msra.mxu0 0
        %2195 = vmatprep.subr.bf16.mxu0 0
        %2196 = vmatpush1.bf16.msra.mxu0 0
        %2197 = vmatprep.subr.bf16.mxu0 0
        %2198 = vmatpush1.bf16.msra.mxu0 0
        %2199 = vmatprep.subr.bf16.mxu0 0
        %2200 = vmatpush1.bf16.msra.mxu0 0
        %2201 = vmatprep.subr.bf16.mxu0 0
        %2202 = vmatpush1.bf16.msra.mxu0 0
        %2203 = vmatprep.subr.bf16.mxu0 0
        %2204 = vmatpush1.bf16.msra.mxu0 0
        %2205 = vmatprep.subr.bf16.mxu0 0
        %2206 = vmatpush1.bf16.msra.mxu0 0
        %2207 = vmatprep.subr.bf16.mxu0 0
        %2208 = vmatpush1.bf16.msra.mxu0 0
        %2209 = vmatprep.subr.bf16.mxu0 0
        %2210 = vmatpush1.bf16.msra.mxu0 0
        %2211 = vmatprep.subr.bf16.mxu0 0
        %2212 = vmatpush1.bf16.msra.mxu0 0
        %2213 = vmatprep.subr.bf16.mxu0 0
        %2214 = vmatpush1.bf16.msra.mxu0 0
        %2215 = vmatprep.subr.bf16.mxu0 0
        %2216 = vmatpush1.bf16.msra.mxu0 0
        %2217 = vmatprep.subr.bf16.mxu0 0
        %2218 = vmatpush1.bf16.msra.mxu0 0
        %2219 = vmatprep.mubr.bf16.mxu0 0
        %2220 = vmatmul.mubr.bf16.gmra.mrb[0].mxu0 %v2185
        %v2221 = vpop.f32.mrb[0].mxu0
        %v2222 = vadd.f32 0.0, %v2221
        %v2223 = vpop.f32.mrb[0].mxu0
        %v2224 = vpop.f32.mrb[0].mxu0
        %v2225 = vpop.f32.mrb[0].mxu0
        %2226 = vdwg.mxu0
        %v2227 = vadd.f32 %v1600, %v2222
        %v2228 = vld [vmem:[#allocation29] sm:$0x1]
        %v2230 = vlaneseq
        %v2231 = vshrl.u32 %v2230, 7
        %v2232 = vsub.s32 0, %v2231
        %v2233 = vrot.slane %v2228, %v2232
        %v2235 = vadd.f32 %v2227, %v2233
        %v2236 = vsel %vm1416, %v2235, 0.0
        %2237 = vadd.xlane.f32.xlu0 %v2236
        %v2238 = vpop.xlane.xlu0 %2237
        %v2239 = vmul.f32 %v2238, %v1420
        %v2240 = vsub.f32 %v2235, %v2239
        %v2241 = vmul.f32 %v2240, %v2240
        %v2242 = vsel %vm1416, %v2241, 0.0
        %2243 = vadd.xlane.f32.xlu0 %v2242
        %v2244 = vpop.xlane.xlu0 %2243
        %v2245 = vmul.f32 %v2244, %v1420
        %v2246 = vadd.f32 %v2245, 1e-05
        %v2247 = vrsqrt.pop %v2246
        %v2248 = vmul.f32 %v2240, %v2247
        %v2249 = vld [vmem:[#allocation13] sm:$0x1]
        %v2251 = vlaneseq
        %v2252 = vshrl.u32 %v2251, 7
        %v2253 = vsub.s32 0, %v2252
        %v2254 = vrot.slane %v2249, %v2253
        %v2256 = vmul.f32 %v2248, %v2254
        %v2257 = vld [vmem:[#allocation14] sm:$0x1]
        %v2259 = vlaneseq
        %v2260 = vshrl.u32 %v2259, 7
        %v2261 = vsub.s32 0, %v2260
        %v2262 = vrot.slane %v2257, %v2261
        %v2264 = vadd.f32 %v2256, %v2262
        %v2265 = vld [vmem:[#allocation31] sm:$0xf]
        %v2266 = vld [vmem:[#allocation31 + $0x4] sm:$0xf]
        %v2267 = vld [vmem:[#allocation31 + $0x8] sm:$0xf]
        %v2268 = vld [vmem:[#allocation31 + $0xc] sm:$0xf]
        %v2269 = vpack.c.bf16 %v2264, %v2264
        %v2270 = vld [vmem:[#allocation32] sm:$0x1]
        %v2272 = vlaneseq
        %v2273 = vshrl.u32 %v2272, 7
        %v2274 = vsub.s32 0, %v2273
        %v2275 = vrot.slane %v2270, %v2274
        %v2281 = vunpack.c.l.b16 %v2265
        %v2282 = vunpack.c.l.b16 %v2266
        %v2283 = vunpack.c.l.b16 %v2267
        %v2284 = vunpack.c.l.b16 %v2268
        %v2285 = vpack.c.b16 %v2282, %v2281
        %v2286 = vpack.c.b16 %v2284, %v2283
        %v2290 = vsel %vm1416, %v2269, 0
        %2292 = vmatprep.subr.bf16.mxu0 0
        %2293 = vmatpush1.bf16.msra.mxu0 %v2285
        %2294 = vmatprep.subr.bf16.mxu0 0
        %2295 = vmatpush1.bf16.msra.mxu0 %v2286
        %2296 = vmatprep.subr.bf16.mxu0 0
        %2297 = vmatpush1.bf16.msra.mxu0 0
        %2298 = vmatprep.subr.bf16.mxu0 0
        %2299 = vmatpush1.bf16.msra.mxu0 0
        %2300 = vmatprep.subr.bf16.mxu0 0
        %2301 = vmatpush1.bf16.msra.mxu0 0
        %2302 = vmatprep.subr.bf16.mxu0 0
        %2303 = vmatpush1.bf16.msra.mxu0 0
        %2304 = vmatprep.subr.bf16.mxu0 0
        %2305 = vmatpush1.bf16.msra.mxu0 0
        %2306 = vmatprep.subr.bf16.mxu0 0
        %2307 = vmatpush1.bf16.msra.mxu0 0
        %2308 = vmatprep.subr.bf16.mxu0 0
        %2309 = vmatpush1.bf16.msra.mxu0 0
        %2310 = vmatprep.subr.bf16.mxu0 0
        %2311 = vmatpush1.bf16.msra.mxu0 0
        %2312 = vmatprep.subr.bf16.mxu0 0
        %2313 = vmatpush1.bf16.msra.mxu0 0
        %2314 = vmatprep.subr.bf16.mxu0 0
        %2315 = vmatpush1.bf16.msra.mxu0 0
        %2316 = vmatprep.subr.bf16.mxu0 0
        %2317 = vmatpush1.bf16.msra.mxu0 0
        %2318 = vmatprep.subr.bf16.mxu0 0
        %2319 = vmatpush1.bf16.msra.mxu0 0
        %2320 = vmatprep.subr.bf16.mxu0 0
        %2321 = vmatpush1.bf16.msra.mxu0 0
        %2322 = vmatprep.subr.bf16.mxu0 0
        %2323 = vmatpush1.bf16.msra.mxu0 0
        %2324 = vmatprep.mubr.bf16.mxu0 0
        %2325 = vmatmul.mubr.bf16.gmra.mrb[0].mxu0 %v2290
        %v2326 = vpop.f32.mrb[0].mxu0
        %v2327 = vadd.f32 %v2275, %v2326
        %v2328 = vpop.f32.mrb[0].mxu0
        %v2329 = vpop.f32.mrb[0].mxu0
        %v2330 = vpop.f32.mrb[0].mxu0
        %2331 = vdwg.mxu0
        %v2332 = vmax.f32 %v2327, 0.0
        %v2333 = vlaneseq
        %v2334 = vshrl.u32 %v2333, 7
        %vm2335 = vcmp.lt.s32.totalorder %v2334, 0
        %v2336 = vsub.s32 0, %v2334
        %v2337 = vsel %vm2335, %v2336, %v2334
        %v2338 = vshrl.u32 %v2337, 3
        %v2339 = vand.u32 %v2337, 7
        %v2340 = vsub.s32 0, %v2339
        %v2341 = vsel %vm2335, %v2340, %v2339
        %vm2342 = vcmp.ne.s32.totalorder %v2341, 0
        %vm2343 = vcmp.lt.s32.totalorder %v2341, 0
        %vm2344 = vmand %vm2343, %vm2342
        %v2345 = vadd.s32 %v2341, 8
        %v2346 = vsel %vm2344, %v2345, %v2341
        %v2348 = vrot.slane %v2332, 5
        %vm2350 = vcmask 1042432
        %v2351 = vsel %vm2350, 0.0, %v2348
        %v2352 = vadd.s32 %v2346, 4294967293
        %vm2353 = vcmp.ge.s32.totalorder %v2352, 0
        %vm2354 = vcmp.lt.s32.totalorder %v2352, 8
        %vm2355 = vmand %vm2353, %vm2354
        %v2356 = vsel %vm2355, 1, 0
        %vm2357 = vcmp.eq.s32.totalorder %v2356, 1
        %v2358 = vsel %vm2357, %v2351, 0.0
        %v2359 = vrot.slane %v2332, 6
        %vm2361 = vcmask 1041408
        %v2362 = vsel %vm2361, 0.0, %v2359
        %v2363 = vadd.s32 %v2346, 4294967294
        %vm2364 = vcmp.ge.s32.totalorder %v2363, 0
        %vm2365 = vcmp.lt.s32.totalorder %v2363, 8
        %vm2366 = vmand %vm2364, %vm2365
        %v2367 = vsel %vm2366, 1, 0
        %vm2368 = vcmp.eq.s32.totalorder %v2367, 1
        %v2369 = vsel %vm2368, %v2362, 0.0
        %v2370 = vrot.slane %v2332, 7
        %vm2372 = vcmask 1040384
        %v2373 = vsel %vm2372, 0.0, %v2370
        %v2374 = vadd.s32 %v2346, 4294967295
        %vm2375 = vcmp.ge.s32.totalorder %v2374, 0
        %vm2376 = vcmp.lt.s32.totalorder %v2374, 8
        %vm2377 = vmand %vm2375, %vm2376
        %v2378 = vsel %vm2377, 1, 0
        %vm2379 = vcmp.eq.s32.totalorder %v2378, 1
        %v2380 = vsel %vm2379, %v2373, 0.0
        %vm2381 = vcmp.ge.s32.totalorder %v2346, 0
        %vm2382 = vcmp.lt.s32.totalorder %v2346, 8
        %vm2383 = vmand %vm2381, %vm2382
        %v2384 = vsel %vm2383, 1, 0
        %vm2385 = vcmp.eq.s32.totalorder %v2384, 1
        %v2386 = vsel %vm2385, %v2332, 0.0
        %v2387 = vrot.slane %v2332, 1
        %vm2389 = vcmask 1046528
        %v2390 = vsel %vm2389, %v2387, 0.0
        %v2391 = vadd.s32 %v2346, 1
        %vm2392 = vcmp.ge.s32.totalorder %v2391, 0
        %vm2393 = vcmp.lt.s32.totalorder %v2391, 8
        %vm2394 = vmand %vm2392, %vm2393
        %v2395 = vsel %vm2394, 1, 0
        %vm2396 = vcmp.eq.s32.totalorder %v2395, 1
        %v2397 = vsel %vm2396, %v2390, 0.0
        %v2398 = vrot.slane %v2332, 2
        %vm2400 = vcmask 1045504
        %v2401 = vsel %vm2400, %v2398, 0.0
        %v2402 = vadd.s32 %v2346, 2
        %vm2403 = vcmp.ge.s32.totalorder %v2402, 0
        %vm2404 = vcmp.lt.s32.totalorder %v2402, 8
        %vm2405 = vmand %vm2403, %vm2404
        %v2406 = vsel %vm2405, 1, 0
        %vm2407 = vcmp.eq.s32.totalorder %v2406, 1
        %v2408 = vsel %vm2407, %v2401, 0.0
        %v2409 = vrot.slane %v2332, 3
        %vm2411 = vcmask 1044480
        %v2412 = vsel %vm2411, %v2409, 0.0
        %v2413 = vadd.s32 %v2346, 3
        %vm2414 = vcmp.ge.s32.totalorder %v2413, 0
        %vm2415 = vcmp.lt.s32.totalorder %v2413, 8
        %vm2416 = vmand %vm2414, %vm2415
        %v2417 = vsel %vm2416, 1, 0
        %vm2418 = vcmp.eq.s32.totalorder %v2417, 1
        %v2419 = vsel %vm2418, %v2412, 0.0
        %v2420 = vld [vmem:[#allocation34] sm:$0x1]
        %v2421 = vld [vmem:[#allocation34 + $0x1] sm:$0x1]
        %v2422 = vld [vmem:[#allocation34 + $0x2] sm:$0x1]
        %v2423 = vld [vmem:[#allocation35] sm:$0x1]
        %v2425 = vlaneseq
        %v2426 = vshrl.u32 %v2425, 7
        %v2427 = vsub.s32 0, %v2426
        %v2428 = vrot.slane %v2420, %v2427
        %v2430 = vmul.f32 %v2380, %v2428
        %v2431 = vadd.f32 %v2430, 0.0
        %v2433 = vlaneseq
        %v2434 = vshrl.u32 %v2433, 7
        %v2435 = vsub.s32 0, %v2434
        %v2436 = vrot.slane %v2421, %v2435
        %v2438 = vmul.f32 %v2386, %v2436
        %v2439 = vadd.f32 %v2431, %v2438
        %v2441 = vlaneseq
        %v2442 = vshrl.u32 %v2441, 7
        %v2443 = vsub.s32 0, %v2442
        %v2444 = vrot.slane %v2422, %v2443
        %v2446 = vmul.f32 %v2397, %v2444
        %v2447 = vadd.f32 %v2439, %v2446
        %v2449 = vlaneseq
        %v2450 = vshrl.u32 %v2449, 7
        %v2451 = vsub.s32 0, %v2450
        %v2452 = vrot.slane %v2423, %v2451
        %v2454 = vadd.f32 %v2447, %v2452
        %v2455 = vmax.f32 %v2454, 0.0
        %v2456 = vadd.f32 %v2455, 0.0
        %v2457 = vld [vmem:[#allocation37] sm:$0x1]
        %v2458 = vld [vmem:[#allocation37 + $0x1] sm:$0x1]
        %v2459 = vld [vmem:[#allocation37 + $0x2] sm:$0x1]
        %v2460 = vld [vmem:[#allocation37 + $0x3] sm:$0x1]
        %v2461 = vld [vmem:[#allocation37 + $0x4] sm:$0x1]
        %v2462 = vld [vmem:[#allocation38] sm:$0x1]
        %v2464 = vlaneseq
        %v2465 = vshrl.u32 %v2464, 7
        %v2466 = vsub.s32 0, %v2465
        %v2467 = vrot.slane %v2457, %v2466
        %v2469 = vmul.f32 %v2369, %v2467
        %v2470 = vadd.f32 %v2469, 0.0
        %v2472 = vlaneseq
        %v2473 = vshrl.u32 %v2472, 7
        %v2474 = vsub.s32 0, %v2473
        %v2475 = vrot.slane %v2458, %v2474
        %v2477 = vmul.f32 %v2380, %v2475
        %v2478 = vadd.f32 %v2470, %v2477
        %v2480 = vlaneseq
        %v2481 = vshrl.u32 %v2480, 7
        %v2482 = vsub.s32 0, %v2481
        %v2483 = vrot.slane %v2459, %v2482
        %v2485 = vmul.f32 %v2386, %v2483
        %v2486 = vadd.f32 %v2478, %v2485
        %v2488 = vlaneseq
        %v2489 = vshrl.u32 %v2488, 7
        %v2490 = vsub.s32 0, %v2489
        %v2491 = vrot.slane %v2460, %v2490
        %v2493 = vmul.f32 %v2397, %v2491
        %v2494 = vadd.f32 %v2486, %v2493
        %v2496 = vlaneseq
        %v2497 = vshrl.u32 %v2496, 7
        %v2498 = vsub.s32 0, %v2497
        %v2499 = vrot.slane %v2461, %v2498
        %v2501 = vmul.f32 %v2408, %v2499
        %v2502 = vadd.f32 %v2494, %v2501
        %v2504 = vlaneseq
        %v2505 = vshrl.u32 %v2504, 7
        %v2506 = vsub.s32 0, %v2505
        %v2507 = vrot.slane %v2462, %v2506
        %v2509 = vadd.f32 %v2502, %v2507
        %v2510 = vmax.f32 %v2509, 0.0
        %v2511 = vadd.f32 %v2456, %v2510
        %v2512 = vld [vmem:[#allocation40] sm:$0x1]
        %v2513 = vld [vmem:[#allocation40 + $0x1] sm:$0x1]
        %v2514 = vld [vmem:[#allocation40 + $0x2] sm:$0x1]
        %v2515 = vld [vmem:[#allocation40 + $0x3] sm:$0x1]
        %v2516 = vld [vmem:[#allocation40 + $0x4] sm:$0x1]
        %v2517 = vld [vmem:[#allocation40 + $0x5] sm:$0x1]
        %v2518 = vld [vmem:[#allocation40 + $0x6] sm:$0x1]
        %v2519 = vld [vmem:[#allocation41] sm:$0x1]
        %v2521 = vlaneseq
        %v2522 = vshrl.u32 %v2521, 7
        %v2523 = vsub.s32 0, %v2522
        %v2524 = vrot.slane %v2512, %v2523
        %v2526 = vmul.f32 %v2358, %v2524
        %v2527 = vadd.f32 %v2526, 0.0
        %v2529 = vlaneseq
        %v2530 = vshrl.u32 %v2529, 7
        %v2531 = vsub.s32 0, %v2530
        %v2532 = vrot.slane %v2513, %v2531
        %v2534 = vmul.f32 %v2369, %v2532
        %v2535 = vadd.f32 %v2527, %v2534
        %v2537 = vlaneseq
        %v2538 = vshrl.u32 %v2537, 7
        %v2539 = vsub.s32 0, %v2538
        %v2540 = vrot.slane %v2514, %v2539
        %v2542 = vmul.f32 %v2380, %v2540
        %v2543 = vadd.f32 %v2535, %v2542
        %v2545 = vlaneseq
        %v2546 = vshrl.u32 %v2545, 7
        %v2547 = vsub.s32 0, %v2546
        %v2548 = vrot.slane %v2515, %v2547
        %v2550 = vmul.f32 %v2386, %v2548
        %v2551 = vadd.f32 %v2543, %v2550
        %v2553 = vlaneseq
        %v2554 = vshrl.u32 %v2553, 7
        %v2555 = vsub.s32 0, %v2554
        %v2556 = vrot.slane %v2516, %v2555
        %v2558 = vmul.f32 %v2397, %v2556
        %v2559 = vadd.f32 %v2551, %v2558
        %v2561 = vlaneseq
        %v2562 = vshrl.u32 %v2561, 7
        %v2563 = vsub.s32 0, %v2562
        %v2564 = vrot.slane %v2517, %v2563
        %v2566 = vmul.f32 %v2408, %v2564
        %v2567 = vadd.f32 %v2559, %v2566
        %v2569 = vlaneseq
        %v2570 = vshrl.u32 %v2569, 7
        %v2571 = vsub.s32 0, %v2570
        %v2572 = vrot.slane %v2518, %v2571
        %v2574 = vmul.f32 %v2419, %v2572
        %v2575 = vadd.f32 %v2567, %v2574
        %v2577 = vlaneseq
        %v2578 = vshrl.u32 %v2577, 7
        %v2579 = vsub.s32 0, %v2578
        %v2580 = vrot.slane %v2519, %v2579
        %v2582 = vadd.f32 %v2575, %v2580
        %v2583 = vmax.f32 %v2582, 0.0
        %v2584 = vadd.f32 %v2511, %v2583
        %v2585 = vmul.f32 %v2584, 0.33333334
        %v2586 = vld [vmem:[#allocation43] sm:$0xf]
        %v2587 = vld [vmem:[#allocation43 + $0x4] sm:$0xf]
        %v2588 = vpack.c.bf16 %v2585, %v2585
        %v2591 = vunpack.c.l.b16 %v2586
        %v2592 = vunpack.c.l.b16 %v2587
        %v2593 = vpack.c.b16 %v2592, %v2591
        %v2596 = vsel %vm2163, %v2588, 0
        %2598 = vmatprep.subr.bf16.mxu0 0
        %2599 = vmatpush1.bf16.msra.mxu0 %v2593
        %2600 = vmatprep.subr.bf16.mxu0 0
        %2601 = vmatpush1.bf16.msra.mxu0 0
        %2602 = vmatprep.subr.bf16.mxu0 0
        %2603 = vmatpush1.bf16.msra.mxu0 0
        %2604 = vmatprep.subr.bf16.mxu0 0
        %2605 = vmatpush1.bf16.msra.mxu0 0
        %2606 = vmatprep.subr.bf16.mxu0 0
        %2607 = vmatpush1.bf16.msra.mxu0 0
        %2608 = vmatprep.subr.bf16.mxu0 0
        %2609 = vmatpush1.bf16.msra.mxu0 0
        %2610 = vmatprep.subr.bf16.mxu0 0
        %2611 = vmatpush1.bf16.msra.mxu0 0
        %2612 = vmatprep.subr.bf16.mxu0 0
        %2613 = vmatpush1.bf16.msra.mxu0 0
        %2614 = vmatprep.subr.bf16.mxu0 0
        %2615 = vmatpush1.bf16.msra.mxu0 0
        %2616 = vmatprep.subr.bf16.mxu0 0
        %2617 = vmatpush1.bf16.msra.mxu0 0
        %2618 = vmatprep.subr.bf16.mxu0 0
        %2619 = vmatpush1.bf16.msra.mxu0 0
        %2620 = vmatprep.subr.bf16.mxu0 0
        %2621 = vmatpush1.bf16.msra.mxu0 0
        %2622 = vmatprep.subr.bf16.mxu0 0
        %2623 = vmatpush1.bf16.msra.mxu0 0
        %2624 = vmatprep.subr.bf16.mxu0 0
        %2625 = vmatpush1.bf16.msra.mxu0 0
        %2626 = vmatprep.subr.bf16.mxu0 0
        %2627 = vmatpush1.bf16.msra.mxu0 0
        %2628 = vmatprep.subr.bf16.mxu0 0
        %2629 = vmatpush1.bf16.msra.mxu0 0
        %2630 = vmatprep.mubr.bf16.mxu0 0
        %2631 = vmatmul.mubr.bf16.gmra.mrb[0].mxu0 %v2596
        %v2632 = vpop.f32.mrb[0].mxu0
        %v2633 = vadd.f32 0.0, %v2632
        %v2634 = vpop.f32.mrb[0].mxu0
        %v2635 = vpop.f32.mrb[0].mxu0
        %v2636 = vpop.f32.mrb[0].mxu0
        %2637 = vdwg.mxu0
        %v2638 = vadd.f32 %v2235, %v2633
        %v2639 = vld [vmem:[#allocation44] sm:$0x1]
        %v2641 = vlaneseq
        %v2642 = vshrl.u32 %v2641, 7
        %v2643 = vsub.s32 0, %v2642
        %v2644 = vrot.slane %v2639, %v2643
        %v2646 = vadd.f32 %v2638, %v2644
        %v2647 = vsel %vm1416, %v2646, 0.0
        %2648 = vadd.xlane.f32.xlu0 %v2647
        %v2649 = vpop.xlane.xlu0 %2648
        %v2650 = vmul.f32 %v2649, %v1420
        %v2651 = vsub.f32 %v2646, %v2650
        %v2652 = vmul.f32 %v2651, %v2651
        %v2653 = vsel %vm1416, %v2652, 0.0
        %2654 = vadd.xlane.f32.xlu0 %v2653
        %v2655 = vpop.xlane.xlu0 %2654
        %v2656 = vmul.f32 %v2655, %v1420
        %v2657 = vadd.f32 %v2656, 1e-05
        %v2658 = vrsqrt.pop %v2657
        %v2659 = vmul.f32 %v2651, %v2658
        %v2660 = vld [vmem:[#allocation16] sm:$0x1]
        %v2662 = vlaneseq
        %v2663 = vshrl.u32 %v2662, 7
        %v2664 = vsub.s32 0, %v2663
        %v2665 = vrot.slane %v2660, %v2664
        %v2667 = vmul.f32 %v2659, %v2665
        %v2668 = vld [vmem:[#allocation17] sm:$0x1]
        %v2670 = vlaneseq
        %v2671 = vshrl.u32 %v2670, 7
        %v2672 = vsub.s32 0, %v2671
        %v2673 = vrot.slane %v2668, %v2672
        %v2675 = vadd.f32 %v2667, %v2673
        %v2676 = vld [vmem:[#allocation46] sm:$0xf]
        %v2677 = vld [vmem:[#allocation46 + $0x4] sm:$0xf]
        %v2678 = vld [vmem:[#allocation46 + $0x8] sm:$0xf]
        %v2679 = vld [vmem:[#allocation46 + $0xc] sm:$0xf]
        %v2680 = vpack.c.bf16 %v2675, %v2675
        %v2681 = vld [vmem:[#allocation47] sm:$0x1]
        %v2683 = vlaneseq
        %v2684 = vshrl.u32 %v2683, 7
        %v2685 = vsub.s32 0, %v2684
        %v2686 = vrot.slane %v2681, %v2685
        %v2692 = vunpack.c.l.b16 %v2676
        %v2693 = vunpack.c.l.b16 %v2677
        %v2694 = vunpack.c.l.b16 %v2678
        %v2695 = vunpack.c.l.b16 %v2679
        %v2696 = vpack.c.b16 %v2693, %v2692
        %v2697 = vpack.c.b16 %v2695, %v2694
        %v2701 = vsel %vm1416, %v2680, 0
        %2703 = vmatprep.subr.bf16.mxu0 0
        %2704 = vmatpush1.bf16.msra.mxu0 %v2696
        %2705 = vmatprep.subr.bf16.mxu0 0
        %2706 = vmatpush1.bf16.msra.mxu0 %v2697
        %2707 = vmatprep.subr.bf16.mxu0 0
        %2708 = vmatpush1.bf16.msra.mxu0 0
        %2709 = vmatprep.subr.bf16.mxu0 0
        %2710 = vmatpush1.bf16.msra.mxu0 0
        %2711 = vmatprep.subr.bf16.mxu0 0
        %2712 = vmatpush1.bf16.msra.mxu0 0
        %2713 = vmatprep.subr.bf16.mxu0 0
        %2714 = vmatpush1.bf16.msra.mxu0 0
        %2715 = vmatprep.subr.bf16.mxu0 0
        %2716 = vmatpush1.bf16.msra.mxu0 0
        %2717 = vmatprep.subr.bf16.mxu0 0
        %2718 = vmatpush1.bf16.msra.mxu0 0
        %2719 = vmatprep.subr.bf16.mxu0 0
        %2720 = vmatpush1.bf16.msra.mxu0 0
        %2721 = vmatprep.subr.bf16.mxu0 0
        %2722 = vmatpush1.bf16.msra.mxu0 0
        %2723 = vmatprep.subr.bf16.mxu0 0
        %2724 = vmatpush1.bf16.msra.mxu0 0
        %2725 = vmatprep.subr.bf16.mxu0 0
        %2726 = vmatpush1.bf16.msra.mxu0 0
        %2727 = vmatprep.subr.bf16.mxu0 0
        %2728 = vmatpush1.bf16.msra.mxu0 0
        %2729 = vmatprep.subr.bf16.mxu0 0
        %2730 = vmatpush1.bf16.msra.mxu0 0
        %2731 = vmatprep.subr.bf16.mxu0 0
        %2732 = vmatpush1.bf16.msra.mxu0 0
        %2733 = vmatprep.subr.bf16.mxu0 0
        %2734 = vmatpush1.bf16.msra.mxu0 0
        %2735 = vmatprep.mubr.bf16.mxu0 0
        %2736 = vmatmul.mubr.bf16.gmra.mrb[0].mxu0 %v2701
        %v2737 = vpop.f32.mrb[0].mxu0
        %v2738 = vadd.f32 %v2686, %v2737
        %v2739 = vpop.f32.mrb[0].mxu0
        %v2740 = vpop.f32.mrb[0].mxu0
        %v2741 = vpop.f32.mrb[0].mxu0
        %2742 = vdwg.mxu0
        %v2743 = vmax.f32 %v2738, 0.0
        %v2744 = vld [vmem:[#allocation49] sm:$0xf]
        %v2745 = vld [vmem:[#allocation49 + $0x4] sm:$0xf]
        %v2746 = vld [vmem:[#allocation49 + $0x8] sm:$0xf]
        %v2747 = vld [vmem:[#allocation49 + $0xc] sm:$0xf]
        %v2748 = vld [vmem:[#allocation49 + $0x10] sm:$0xf]
        %v2749 = vld [vmem:[#allocation49 + $0x14] sm:$0xf]
        %v2750 = vld [vmem:[#allocation49 + $0x18] sm:$0xf]
        %v2751 = vld [vmem:[#allocation49 + $0x1c] sm:$0xf]
        %v2752 = vpack.c.bf16 %v2743, %v2743
        %v2753 = vld [vmem:[#allocation50] sm:$0x1]
        %v2755 = vlaneseq
        %v2756 = vshrl.u32 %v2755, 7
        %v2757 = vsub.s32 0, %v2756
        %v2758 = vrot.slane %v2753, %v2757
        %v2768 = vunpack.c.l.b16 %v2744
        %v2769 = vunpack.c.l.b16 %v2745
        %v2770 = vunpack.c.l.b16 %v2746
        %v2771 = vunpack.c.l.b16 %v2747
        %v2772 = vunpack.c.l.b16 %v2748
        %v2773 = vunpack.c.l.b16 %v2749
        %v2774 = vunpack.c.l.b16 %v2750
        %v2775 = vunpack.c.l.b16 %v2751
        %v2776 = vpack.c.b16 %v2769, %v2768
        %v2777 = vpack.c.b16 %v2771, %v2770
        %v2778 = vpack.c.b16 %v2773, %v2772
        %v2779 = vpack.c.b16 %v2775, %v2774
        %v2785 = vsel %vm1555, %v2752, 0
        %2787 = vmatprep.subr.bf16.mxu0 0
        %2788 = vmatpush1.bf16.msra.mxu0 %v2776
        %2789 = vmatprep.subr.bf16.mxu0 0
        %2790 = vmatpush1.bf16.msra.mxu0 %v2777
        %2791 = vmatprep.subr.bf16.mxu0 0
        %2792 = vmatpush1.bf16.msra.mxu0 %v2778
        %2793 = vmatprep.subr.bf16.mxu0 0
        %2794 = vmatpush1.bf16.msra.mxu0 %v2779
        %2795 = vmatprep.subr.bf16.mxu0 0
        %2796 = vmatpush1.bf16.msra.mxu0 0
        %2797 = vmatprep.subr.bf16.mxu0 0
        %2798 = vmatpush1.bf16.msra.mxu0 0
        %2799 = vmatprep.subr.bf16.mxu0 0
        %2800 = vmatpush1.bf16.msra.mxu0 0
        %2801 = vmatprep.subr.bf16.mxu0 0
        %2802 = vmatpush1.bf16.msra.mxu0 0
        %2803 = vmatprep.subr.bf16.mxu0 0
        %2804 = vmatpush1.bf16.msra.mxu0 0
        %2805 = vmatprep.subr.bf16.mxu0 0
        %2806 = vmatpush1.bf16.msra.mxu0 0
        %2807 = vmatprep.subr.bf16.mxu0 0
        %2808 = vmatpush1.bf16.msra.mxu0 0
        %2809 = vmatprep.subr.bf16.mxu0 0
        %2810 = vmatpush1.bf16.msra.mxu0 0
        %2811 = vmatprep.subr.bf16.mxu0 0
        %2812 = vmatpush1.bf16.msra.mxu0 0
        %2813 = vmatprep.subr.bf16.mxu0 0
        %2814 = vmatpush1.bf16.msra.mxu0 0
        %2815 = vmatprep.subr.bf16.mxu0 0
        %2816 = vmatpush1.bf16.msra.mxu0 0
        %2817 = vmatprep.subr.bf16.mxu0 0
        %2818 = vmatpush1.bf16.msra.mxu0 0
        %2819 = vmatprep.mubr.bf16.mxu0 0
        %2820 = vmatmul.mubr.bf16.gmra.mrb[0].mxu0 %v2785
        %v2821 = vpop.f32.mrb[0].mxu0
        %v2822 = vadd.f32 %v2758, %v2821
        %v2823 = vpop.f32.mrb[0].mxu0
        %v2824 = vpop.f32.mrb[0].mxu0
        %v2825 = vpop.f32.mrb[0].mxu0
        %2826 = vdwg.mxu0
        %v2827 = vmul.f32 %v2822, 0.5
        %v2828 = vadd.f32 %v2646, %v2827
        %2829 = vst.msk [vmem:[%s1413] sm:$0xff] %vm1416, %v2828
        %s2830 = sand.u32 %s783, 1
        %s2831 = scalar_lea.sflag [#allocation4], %s2830
        %s2832 = sand.u32 %s783, 1
        %s2833 = smul.addr %s2832, 8
        %s2834 = scalar_lea.vmem [#allocation52], %s2833
        // Predicated region
        $region277: #{tpu_custom_call.1} parent=147 // pred_check
          %p2835 = pneg %p793
        $region278: #{tpu_custom_call.1} parent=147 // pred_check_branch
          %2837 = sbr.rel (%p2835) target = $region280
        $region279: #{tpu_custom_call.1} parent=147 // pred_region
          %s2839 = ssub.s32 128, 128
          %2840 = vsyncadd %s2831, %s2839
          %s2841 = smul.addr %s98, 128
          %s2842 = scalar_lea.hbm %s65, %s2841
          %s2844 = sshll.u32 %s2834, 4
          %s2845 = int_to_ptr.vmem [resolvable:$true] %s2844
          %2847 = dma.vmem_to_hbm [thread:$0]  %s2845, 128, %s2842, %s2831
        $region280: #{tpu_custom_call.1} parent=147 // pred_fallthru
          _
      $region148: #{tpu_custom_call.1} parent=5 // pred_fallthru
        _
      %p2848 = scmp.le.s32.totalorder 2, %s93
      // Predicated region
      $region281: #{tpu_custom_call.1} parent=5 // pred_check
        %p2849 = pneg %p2848
      $region282: #{tpu_custom_call.1} parent=5 // pred_check_branch
        %2851 = sbr.rel (%p2849) target = $region284
      $region283: #{tpu_custom_call.1} parent=5 // pred_region
        %s2852 = ssub.s32 %s93, 2
        // Predicated region
        $region285: #{tpu_custom_call.1} parent=283 // pred_check
          %p2853 = pneg %p799
        $region286: #{tpu_custom_call.1} parent=283 // pred_check_branch
          %2855 = sbr.rel (%p2853) target = $region288
        $region287: #{tpu_custom_call.1} parent=283 // pred_region
          %s2856 = sand.u32 %s784, 1
          %s2857 = scalar_lea.sflag [#allocation4], %s2856
          %s2858 = sand.u32 %s784, 1
          %s2859 = smul.addr %s2858, 8
          %s2860 = scalar_lea.vmem [#allocation52], %s2859
          %2861 = dma.done %s2857, 128
        $region288: #{tpu_custom_call.1} parent=283 // pred_fallthru
          _
      $region284: #{tpu_custom_call.1} parent=5 // pred_fallthru
        _
    $region6: #{tpu_custom_call.1} parent=1 // loop_footer
      %s97 = sadd.s32 1, %s93
    $region7: #{tpu_custom_call.1} parent=1 // loop_footer_branch
      %92 = sbr.rel target = $region3
    $region8: #{tpu_custom_call.1} parent=1 // loop_exit
      _
    %2862 = vsyncpa [#allocation3], 1
    %s2863 = scalar_lea.sflag [#allocation3], 1
    %2864 = vsyncpa %s2863, 1
    %2865 = vsyncpa [#allocation6], 1
    %2866 = vsyncpa [#allocation9], 1
    %2867 = vsyncpa [#allocation12], 1
    %2868 = vsyncpa [#allocation15], 1
    %2869 = vsyncpa [#allocation18], 1
    %2870 = vsyncpa [#allocation21], 1
    %2871 = vsyncpa [#allocation24], 1
    %2872 = vsyncpa [#allocation27], 1
    %2873 = vsyncpa [#allocation30], 1
    %2874 = vsyncpa [#allocation33], 1
    %2875 = vsyncpa [#allocation36], 1
    %2876 = vsyncpa [#allocation39], 1
    %2877 = vsyncpa [#allocation42], 1
    %2878 = vsyncpa [#allocation45], 1
    %2879 = vsyncpa [#allocation48], 1
    %2880 = vsyncpa [#allocation51], 1
    %2881 = vsyncpa [#allocation4], 1
    %s2882 = scalar_lea.sflag [#allocation4], 1
    %2883 = vsyncpa %s2882, 1

// kernel: tpu_custom_call.1
$region0: #{tpu_custom_call.1}
  #allocation0 [shape = 'u32[]', space=smem, size = 0x4, offset = 0x4, fixed_abs, tag = 'smem constant byte address 0x4 - core index']
  #allocation1 [shape = 'u32[144,128]{1,0:T(1,128)}', space=vmem, size = 0x12000, scoped, tag = 'internal scratch']
  %s0 = inlined_call_operand.smem [shape: u32[33], index: -1, kind: input, shape index: {}]
  %s1 = sld [smem:[%s0]]
  %s2 = scalar_lea.smem %s0, 1
  %s3 = sld [smem:[%s2]]
  %s4 = scalar_lea.smem %s0, 2
  %s5 = sld [smem:[%s4]]
  %s6 = scalar_lea.smem %s0, 3
  %s7 = sld [smem:[%s6]]
  %s8 = scalar_lea.smem %s0, 4
  %s9 = sld [smem:[%s8]]
  %s10 = scalar_lea.smem %s0, 5
  %s11 = sld [smem:[%s10]]
  %s12 = scalar_lea.smem %s0, 6
  %s13 = sld [smem:[%s12]]
  %s14 = scalar_lea.smem %s0, 7
  %s15 = sld [smem:[%s14]]
  %s16 = scalar_lea.smem %s0, 8
  %s17 = sld [smem:[%s16]]
  %s18 = scalar_lea.smem %s0, 9
  %s19 = sld [smem:[%s18]]
  %s20 = scalar_lea.smem %s0, 10
  %s21 = sld [smem:[%s20]]
  %s22 = scalar_lea.smem %s0, 11
  %s23 = sld [smem:[%s22]]
  %s24 = scalar_lea.smem %s0, 12
  %s25 = sld [smem:[%s24]]
  %s26 = scalar_lea.smem %s0, 13
  %s27 = sld [smem:[%s26]]
  %s28 = scalar_lea.smem %s0, 14
  %s29 = sld [smem:[%s28]]
  %s30 = scalar_lea.smem %s0, 15
  %s31 = sld [smem:[%s30]]
  %s32 = scalar_lea.smem %s0, 16
  %s33 = sld [smem:[%s32]]
  %s34 = scalar_lea.smem %s0, 17
  %s35 = sld [smem:[%s34]]
  %s36 = scalar_lea.smem %s0, 18
  %s37 = sld [smem:[%s36]]
  %s38 = scalar_lea.smem %s0, 19
  %s39 = sld [smem:[%s38]]
  %s40 = scalar_lea.smem %s0, 20
  %s41 = sld [smem:[%s40]]
  %s42 = scalar_lea.smem %s0, 21
  %s43 = sld [smem:[%s42]]
  %s44 = scalar_lea.smem %s0, 22
  %s45 = sld [smem:[%s44]]
  %s46 = scalar_lea.smem %s0, 23
  %s47 = sld [smem:[%s46]]
  %s48 = scalar_lea.smem %s0, 24
  %s49 = sld [smem:[%s48]]
  %s50 = scalar_lea.smem %s0, 25
  %s51 = sld [smem:[%s50]]
  %s52 = scalar_lea.smem %s0, 26
  %s53 = sld [smem:[%s52]]
  %s54 = scalar_lea.smem %s0, 27
  %s55 = sld [smem:[%s54]]
  %s56 = scalar_lea.smem %s0, 28
  %s57 = sld [smem:[%s56]]
  %s58 = scalar_lea.smem %s0, 29
  %s59 = sld [smem:[%s58]]
  %s60 = scalar_lea.smem %s0, 30
  %s61 = sld [smem:[%s60]]
  %s62 = scalar_lea.smem %s0, 31
  %s63 = sld [smem:[%s62]]
  %s64 = scalar_lea.smem %s0, 32
  %s65 = sld [smem:[%s64]]
  %s66 = sld [smem:[#allocation0]]
  $region289: #{tpu_custom_call.1} parent=0
    _
  %s68 = ssub.s32 1, %s66
  %s69 = scalar_select 0, %s68, %s66
  $region1: #{tpu_custom_call.1} parent=0
    #allocation2 [shape = 'u8[8192]{0}', space=vmem, size = 0x2000, scoped, tag = 'input window, operand 0']
    #allocation3 [shape = 's32[2]{0}', space=sflag, size = 0x8, scoped, tag = 'scoped memory for tpu_custom_call.1']
    #allocation4 [shape = 's32[2]{0}', space=sflag, size = 0x8, scoped, tag = 'scoped memory for tpu_custom_call.1']
    #allocation5 [shape = 'u8[8192]{0}', space=vmem, size = 0x2000, scoped, tag = 'input window, operand 1, single buffered']
    #allocation6 [shape = 's32[1]{0}', space=sflag, size = 0x4, scoped, tag = 'scoped memory for tpu_custom_call.1']
    #allocation7 [shape = 'u8[512]{0}', space=vmem, size = 0x400, scoped, tag = 'input window, operand 2, single buffered']
    #allocation8 [shape = 'u8[512]{0}', space=vmem, size = 0x400, scoped, tag = 'input window, operand 3, single buffered']
    #allocation9 [shape = 's32[1]{0}', space=sflag, size = 0x4, scoped, tag = 'scoped memory for tpu_custom_call.1']
    #allocation10 [shape = 'u8[512]{0}', space=vmem, size = 0x400, scoped, tag = 'input window, operand 4, single buffered']
    #allocation11 [shape = 'u8[512]{0}', space=vmem, size = 0x400, scoped, tag = 'input window, operand 5, single buffered']
    #allocation12 [shape = 's32[1]{0}', space=sflag, size = 0x4, scoped, tag = 'scoped memory for tpu_custom_call.1']
    #allocation13 [shape = 'u8[512]{0}', space=vmem, size = 0x400, scoped, tag = 'input window, operand 6, single buffered']
    #allocation14 [shape = 'u8[512]{0}', space=vmem, size = 0x400, scoped, tag = 'input window, operand 7, single buffered']
    #allocation15 [shape = 's32[1]{0}', space=sflag, size = 0x4, scoped, tag = 'scoped memory for tpu_custom_call.1']
    #allocation16 [shape = 'u8[512]{0}', space=vmem, size = 0x400, scoped, tag = 'input window, operand 8, single buffered']
    #allocation17 [shape = 'u8[512]{0}', space=vmem, size = 0x400, scoped, tag = 'input window, operand 9, single buffered']
    #allocation18 [shape = 's32[1]{0}', space=sflag, size = 0x4, scoped, tag = 'scoped memory for tpu_custom_call.1']
    #allocation19 [shape = 'u8[8192]{0}', space=vmem, size = 0x2000, scoped, tag = 'input window, operand 10, single buffered']
    #allocation20 [shape = 'u8[512]{0}', space=vmem, size = 0x400, scoped, tag = 'input window, operand 11, single buffered']
    #allocation21 [shape = 's32[1]{0}', space=sflag, size = 0x4, scoped, tag = 'scoped memory for tpu_custom_call.1']
    #allocation22 [shape = 'u8[16384]{0}', space=vmem, size = 0x4000, scoped, tag = 'input window, operand 12, single buffered']
    #allocation23 [shape = 'u8[512]{0}', space=vmem, size = 0x400, scoped, tag = 'input window, operand 13, single buffered']
    #allocation24 [shape = 's32[1]{0}', space=sflag, size = 0x4, scoped, tag = 'scoped memory for tpu_custom_call.1']
    #allocation25 [shape = 'u8[8192]{0}', space=vmem, size = 0x2000, scoped, tag = 'input window, operand 14, single buffered']
    #allocation26 [shape = 'u8[512]{0}', space=vmem, size = 0x400, scoped, tag = 'input window, operand 15, single buffered']
    #allocation27 [shape = 's32[1]{0}', space=sflag, size = 0x4, scoped, tag = 'scoped memory for tpu_custom_call.1']
    #allocation28 [shape = 'u8[8192]{0}', space=vmem, size = 0x2000, scoped, tag = 'input window, operand 16, single buffered']
    #allocation29 [shape = 'u8[512]{0}', space=vmem, size = 0x400, scoped, tag = 'input window, operand 17, single buffered']
    #allocation30 [shape = 's32[1]{0}', space=sflag, size = 0x4, scoped, tag = 'scoped memory for tpu_custom_call.1']
    #allocation31 [shape = 'u8[8192]{0}', space=vmem, size = 0x2000, scoped, tag = 'input window, operand 18, single buffered']
    #allocation32 [shape = 'u8[512]{0}', space=vmem, size = 0x400, scoped, tag = 'input window, operand 19, single buffered']
    #allocation33 [shape = 's32[1]{0}', space=sflag, size = 0x4, scoped, tag = 'scoped memory for tpu_custom_call.1']
    #allocation34 [shape = 'u8[1536]{0}', space=vmem, size = 0x800, scoped, tag = 'input window, operand 20, single buffered']
    #allocation35 [shape = 'u8[512]{0}', space=vmem, size = 0x400, scoped, tag = 'input window, operand 21, single buffered']
    #allocation36 [shape = 's32[1]{0}', space=sflag, size = 0x4, scoped, tag = 'scoped memory for tpu_custom_call.1']
    #allocation37 [shape = 'u8[2560]{0}', space=vmem, size = 0xc00, scoped, tag = 'input window, operand 22, single buffered']
    #allocation38 [shape = 'u8[512]{0}', space=vmem, size = 0x400, scoped, tag = 'input window, operand 23, single buffered']
    #allocation39 [shape = 's32[1]{0}', space=sflag, size = 0x4, scoped, tag = 'scoped memory for tpu_custom_call.1']
    #allocation40 [shape = 'u8[3584]{0}', space=vmem, size = 0x1000, scoped, tag = 'input window, operand 24, single buffered']
    #allocation41 [shape = 'u8[512]{0}', space=vmem, size = 0x400, scoped, tag = 'input window, operand 25, single buffered']
    #allocation42 [shape = 's32[1]{0}', space=sflag, size = 0x4, scoped, tag = 'scoped memory for tpu_custom_call.1']
    #allocation43 [shape = 'u8[4096]{0}', space=vmem, size = 0x1000, scoped, tag = 'input window, operand 26, single buffered']
    #allocation44 [shape = 'u8[512]{0}', space=vmem, size = 0x400, scoped, tag = 'input window, operand 27, single buffered']
    #allocation45 [shape = 's32[1]{0}', space=sflag, size = 0x4, scoped, tag = 'scoped memory for tpu_custom_call.1']
    #allocation46 [shape = 'u8[8192]{0}', space=vmem, size = 0x2000, scoped, tag = 'input window, operand 28, single buffered']
    #allocation47 [shape = 'u8[512]{0}', space=vmem, size = 0x400, scoped, tag = 'input window, operand 29, single buffered']
    #allocation48 [shape = 's32[1]{0}', space=sflag, size = 0x4, scoped, tag = 'scoped memory for tpu_custom_call.1']
    #allocation49 [shape = 'u8[16384]{0}', space=vmem, size = 0x4000, scoped, tag = 'input window, operand 30, single buffered']
    #allocation50 [shape = 'u8[512]{0}', space=vmem, size = 0x400, scoped, tag = 'input window, operand 31, single buffered']
    #allocation51 [shape = 's32[1]{0}', space=sflag, size = 0x4, scoped, tag = 'scoped memory for tpu_custom_call.1']
    #allocation52 [shape = 'u8[8192]{0}', space=vmem, size = 0x2000, scoped, tag = 'output window, operand 0']
    %70 = vsyncpa [#allocation3], 0
    %s71 = scalar_lea.sflag [#allocation3], 1
    %72 = vsyncpa %s71, 0
    %73 = vsyncpa [#allocation6], 0
    %74 = vsyncpa [#allocation9], 0
    %75 = vsyncpa [#allocation12], 0
    %76 = vsyncpa [#allocation15], 0
    %77 = vsyncpa [#allocation18], 0
    %78 = vsyncpa [#allocation21], 0
    %79 = vsyncpa [#allocation24], 0
    %80 = vsyncpa [#allocation27], 0
    %81 = vsyncpa [#allocation30], 0
    %82 = vsyncpa [#allocation33], 0
    %83 = vsyncpa [#allocation36], 0
    %84 = vsyncpa [#allocation39], 0
    %85 = vsyncpa [#allocation42], 0
    %86 = vsyncpa [#allocation45], 0
    %87 = vsyncpa [#allocation48], 0
    %88 = vsyncpa [#allocation51], 0
    %89 = vsyncpa [#allocation4], 0
    %s90 = scalar_lea.sflag [#allocation4], 1
    %91 = vsyncpa %s90, 0
    loop: start=0, step=1, limit=4
    $region2: #{tpu_custom_call.1} parent=1 // loop_pre_header
      _
    $region3: #{tpu_custom_call.1} parent=1 // loop_header
      %s93 = sphi 0, %s97
      %p94 = scmp.ge.s32.totalorder %s93, 4
      %s103 = sphi 0, %s105
      %s106 = sphi 0, %s103
      %s107 = sphi 0, %s106
      %s123 = sphi 0, %s107
      %s127 = sphi 0, %s127
      %s129 = sphi 0, %s127
      %s130 = sphi 0, %s129
      %s144 = sphi 0, %s130
      %s148 = sphi 0, %s148
      %s150 = sphi 0, %s148
      %s151 = sphi 0, %s150
      %s165 = sphi 0, %s151
      %s169 = sphi 0, %s169
      %s171 = sphi 0, %s169
      %s172 = sphi 0, %s171
      %s186 = sphi 0, %s172
      %s190 = sphi 0, %s190
      %s192 = sphi 0, %s190
      %s193 = sphi 0, %s192
      %s207 = sphi 0, %s193
      %s211 = sphi 0, %s211
      %s213 = sphi 0, %s211
      %s214 = sphi 0, %s213
      %s228 = sphi 0, %s214
      %s232 = sphi 0, %s232
      %s234 = sphi 0, %s232
      %s235 = sphi 0, %s234
      %s249 = sphi 0, %s235
      %s253 = sphi 0, %s253
      %s255 = sphi 0, %s253
      %s256 = sphi 0, %s255
      %s270 = sphi 0, %s256
      %s274 = sphi 0, %s274
      %s276 = sphi 0, %s274
      %s277 = sphi 0, %s276
      %s291 = sphi 0, %s277
      %s295 = sphi 0, %s295
      %s297 = sphi 0, %s295
      %s298 = sphi 0, %s297
      %s312 = sphi 0, %s298
      %s316 = sphi 0, %s316
      %s318 = sphi 0, %s316
      %s319 = sphi 0, %s318
      %s333 = sphi 0, %s319
      %s337 = sphi 0, %s337
      %s339 = sphi 0, %s337
      %s340 = sphi 0, %s339
      %s354 = sphi 0, %s340
      %s358 = sphi 0, %s358
      %s360 = sphi 0, %s358
      %s361 = sphi 0, %s360
      %s375 = sphi 0, %s361
      %s379 = sphi 0, %s379
      %s381 = sphi 0, %s379
      %s382 = sphi 0, %s381
      %s396 = sphi 0, %s382
      %s400 = sphi 0, %s400
      %s402 = sphi 0, %s400
      %s403 = sphi 0, %s402
      %s417 = sphi 0, %s403
      %s421 = sphi 0, %s421
      %s423 = sphi 0, %s421
      %s424 = sphi 0, %s423
      %s438 = sphi 0, %s424
      %s442 = sphi 0, %s442
      %s444 = sphi 0, %s442
      %s445 = sphi 0, %s444
      %s459 = sphi 0, %s445
      %s463 = sphi 0, %s463
      %s465 = sphi 0, %s463
      %s466 = sphi 0, %s465
      %s480 = sphi 0, %s466
      %s484 = sphi 0, %s484
      %s486 = sphi 0, %s484
      %s487 = sphi 0, %s486
      %s501 = sphi 0, %s487
      %s505 = sphi 0, %s505
      %s507 = sphi 0, %s505
      %s508 = sphi 0, %s507
      %s522 = sphi 0, %s508
      %s526 = sphi 0, %s526
      %s528 = sphi 0, %s526
      %s529 = sphi 0, %s528
      %s543 = sphi 0, %s529
      %s547 = sphi 0, %s547
      %s549 = sphi 0, %s547
      %s550 = sphi 0, %s549
      %s564 = sphi 0, %s550
      %s568 = sphi 0, %s568
      %s570 = sphi 0, %s568
      %s571 = sphi 0, %s570
      %s585 = sphi 0, %s571
      %s589 = sphi 0, %s589
      %s591 = sphi 0, %s589
      %s592 = sphi 0, %s591
      %s606 = sphi 0, %s592
      %s610 = sphi 0, %s610
      %s612 = sphi 0, %s610
      %s613 = sphi 0, %s612
      %s627 = sphi 0, %s613
      %s631 = sphi 0, %s631
      %s633 = sphi 0, %s631
      %s634 = sphi 0, %s633
      %s648 = sphi 0, %s634
      %s652 = sphi 0, %s652
      %s654 = sphi 0, %s652
      %s655 = sphi 0, %s654
      %s669 = sphi 0, %s655
      %s673 = sphi 0, %s673
      %s675 = sphi 0, %s673
      %s676 = sphi 0, %s675
      %s690 = sphi 0, %s676
      %s694 = sphi 0, %s694
      %s696 = sphi 0, %s694
      %s697 = sphi 0, %s696
      %s711 = sphi 0, %s697
      %s715 = sphi 0, %s715
      %s717 = sphi 0, %s715
      %s718 = sphi 0, %s717
      %s732 = sphi 0, %s718
      %s736 = sphi 0, %s736
      %s738 = sphi 0, %s736
      %s739 = sphi 0, %s738
      %s753 = sphi 0, %s739
      %s757 = sphi 0, %s757
      %s759 = sphi 0, %s757
      %s760 = sphi 0, %s759
      %s774 = sphi 0, %s760
      %s780 = sphi 0, %s782
      %s783 = sphi 0, %s780
      %s784 = sphi 0, %s783
      %s800 = sphi 0, %s784
    $region4: #{tpu_custom_call.1} parent=1 // loop_header_branch
      %96 = sbr.rel (%p94) target = $region8
    $region5: #{tpu_custom_call.1} parent=1 // loop_body
      %s98 = ssub.s32 %s93, 1
      %s99 = ssub.s32 %s93, 2
      %s100 = sadd.s32 %s93, 1
      %s101 = ssub.s32 %s93, %s100
      %p102 = scmp.eq.s32.totalorder %s101, 0
      %s104 = sadd.s32 %s103, 1
      %s105 = scalar_select %p102, %s103, %s104
      %p108 = pneg %p102
      %p109 = scmp.eq.s32.totalorder %s93, 1
      %p110 = por %p108, %p109
      %p111 = scmp.ne.s32.totalorder %s103, %s106
      %p112 = scmp.eq.s32.totalorder %s93, 0
      %p113 = por %p111, %p112
      %p114 = scmp.ne.s32.totalorder %s103, %s106
      %p115 = scmp.eq.s32.totalorder %s98, 1
      %p116 = por %p114, %p115
      %p117 = scmp.ne.s32.totalorder %s106, %s107
      %p118 = scmp.eq.s32.totalorder %s98, 0
      %p119 = por %p117, %p118
      %p120 = scmp.ne.s32.totalorder %s106, %s107
      %p121 = scmp.eq.s32.totalorder %s99, 1
      %p122 = por %p120, %p121
      %p124 = scmp.ne.s32.totalorder %s107, %s123
      %p125 = scmp.eq.s32.totalorder %s99, 0
      %p126 = por %p124, %p125
      %s128 = sadd.s32 %s127, 1
      %p131 = scmp.eq.s32.totalorder %s93, 1
      %p132 = scmp.ne.s32.totalorder %s127, %s129
      %p133 = scmp.eq.s32.totalorder %s93, 0
      %p134 = por %p132, %p133
      %p135 = scmp.ne.s32.totalorder %s127, %s129
      %p136 = scmp.eq.s32.totalorder %s98, 1
      %p137 = por %p135, %p136
      %p138 = scmp.ne.s32.totalorder %s129, %s130
      %p139 = scmp.eq.s32.totalorder %s98, 0
      %p140 = por %p138, %p139
      %p141 = scmp.ne.s32.totalorder %s129, %s130
      %p142 = scmp.eq.s32.totalorder %s99, 1
      %p143 = por %p141, %p142
      %p145 = scmp.ne.s32.totalorder %s130, %s144
      %p146 = scmp.eq.s32.totalorder %s99, 0
      %p147 = por %p145, %p146
      %s149 = sadd.s32 %s148, 1
      %p152 = scmp.eq.s32.totalorder %s93, 1
      %p153 = scmp.ne.s32.totalorder %s148, %s150
      %p154 = scmp.eq.s32.totalorder %s93, 0
      %p155 = por %p153, %p154
      %p156 = scmp.ne.s32.totalorder %s148, %s150
      %p157 = scmp.eq.s32.totalorder %s98, 1
      %p158 = por %p156, %p157
      %p159 = scmp.ne.s32.totalorder %s150, %s151
      %p160 = scmp.eq.s32.totalorder %s98, 0
      %p161 = por %p159, %p160
      %p162 = scmp.ne.s32.totalorder %s150, %s151
      %p163 = scmp.eq.s32.totalorder %s99, 1
      %p164 = por %p162, %p163
      %p166 = scmp.ne.s32.totalorder %s151, %s165
      %p167 = scmp.eq.s32.totalorder %s99, 0
      %p168 = por %p166, %p167
      %s170 = sadd.s32 %s169, 1
      %p173 = scmp.eq.s32.totalorder %s93, 1
      %p174 = scmp.ne.s32.totalorder %s169, %s171
      %p175 = scmp.eq.s32.totalorder %s93, 0
      %p176 = por %p174, %p175
      %p177 = scmp.ne.s32.totalorder %s169, %s171
      %p178 = scmp.eq.s32.totalorder %s98, 1
      %p179 = por %p177, %p178
      %p180 = scmp.ne.s32.totalorder %s171, %s172
      %p181 = scmp.eq.s32.totalorder %s98, 0
      %p182 = por %p180, %p181
      %p183 = scmp.ne.s32.totalorder %s171, %s172
      %p184 = scmp.eq.s32.totalorder %s99, 1
      %p185 = por %p183, %p184
      %p187 = scmp.ne.s32.totalorder %s172, %s186
      %p188 = scmp.eq.s32.totalorder %s99, 0
      %p189 = por %p187, %p188
      %s191 = sadd.s32 %s190, 1
      %p194 = scmp.eq.s32.totalorder %s93, 1
      %p195 = scmp.ne.s32.totalorder %s190, %s192
      %p196 = scmp.eq.s32.totalorder %s93, 0
      %p197 = por %p195, %p196
      %p198 = scmp.ne.s32.totalorder %s190, %s192
      %p199 = scmp.eq.s32.totalorder %s98, 1
      %p200 = por %p198, %p199
      %p201 = scmp.ne.s32.totalorder %s192, %s193
      %p202 = scmp.eq.s32.totalorder %s98, 0
      %p203 = por %p201, %p202
      %p204 = scmp.ne.s32.totalorder %s192, %s193
      %p205 = scmp.eq.s32.totalorder %s99, 1
      %p206 = por %p204, %p205
      %p208 = scmp.ne.s32.totalorder %s193, %s207
      %p209 = scmp.eq.s32.totalorder %s99, 0
      %p210 = por %p208, %p209
      %s212 = sadd.s32 %s211, 1
      %p215 = scmp.eq.s32.totalorder %s93, 1
      %p216 = scmp.ne.s32.totalorder %s211, %s213
      %p217 = scmp.eq.s32.totalorder %s93, 0
      %p218 = por %p216, %p217
      %p219 = scmp.ne.s32.totalorder %s211, %s213
      %p220 = scmp.eq.s32.totalorder %s98, 1
      %p221 = por %p219, %p220
      %p222 = scmp.ne.s32.totalorder %s213, %s214
      %p223 = scmp.eq.s32.totalorder %s98, 0
      %p224 = por %p222, %p223
      %p225 = scmp.ne.s32.totalorder %s213, %s214
      %p226 = scmp.eq.s32.totalorder %s99, 1
      %p227 = por %p225, %p226
      %p229 = scmp.ne.s32.totalorder %s214, %s228
      %p230 = scmp.eq.s32.totalorder %s99, 0
      %p231 = por %p229, %p230
      %s233 = sadd.s32 %s232, 1
      %p236 = scmp.eq.s32.totalorder %s93, 1
      %p237 = scmp.ne.s32.totalorder %s232, %s234
      %p238 = scmp.eq.s32.totalorder %s93, 0
      %p239 = por %p237, %p238
      %p240 = scmp.ne.s32.totalorder %s232, %s234
      %p241 = scmp.eq.s32.totalorder %s98, 1
      %p242 = por %p240, %p241
      %p243 = scmp.ne.s32.totalorder %s234, %s235
      %p244 = scmp.eq.s32.totalorder %s98, 0
      %p245 = por %p243, %p244
      %p246 = scmp.ne.s32.totalorder %s234, %s235
      %p247 = scmp.eq.s32.totalorder %s99, 1
      %p248 = por %p246, %p247
      %p250 = scmp.ne.s32.totalorder %s235, %s249
      %p251 = scmp.eq.s32.totalorder %s99, 0
      %p252 = por %p250, %p251
      %s254 = sadd.s32 %s253, 1
      %p257 = scmp.eq.s32.totalorder %s93, 1
      %p258 = scmp.ne.s32.totalorder %s253, %s255
      %p259 = scmp.eq.s32.totalorder %s93, 0
      %p260 = por %p258, %p259
      %p261 = scmp.ne.s32.totalorder %s253, %s255
      %p262 = scmp.eq.s32.totalorder %s98, 1
      %p263 = por %p261, %p262
      %p264 = scmp.ne.s32.totalorder %s255, %s256
      %p265 = scmp.eq.s32.totalorder %s98, 0
      %p266 = por %p264, %p265
      %p267 = scmp.ne.s32.totalorder %s255, %s256
      %p268 = scmp.eq.s32.totalorder %s99, 1
      %p269 = por %p267, %p268
      %p271 = scmp.ne.s32.totalorder %s256, %s270
      %p272 = scmp.eq.s32.totalorder %s99, 0
      %p273 = por %p271, %p272
      %s275 = sadd.s32 %s274, 1
      %p278 = scmp.eq.s32.totalorder %s93, 1
      %p279 = scmp.ne.s32.totalorder %s274, %s276
      %p280 = scmp.eq.s32.totalorder %s93, 0
      %p281 = por %p279, %p280
      %p282 = scmp.ne.s32.totalorder %s274, %s276
      %p283 = scmp.eq.s32.totalorder %s98, 1
      %p284 = por %p282, %p283
      %p285 = scmp.ne.s32.totalorder %s276, %s277
      %p286 = scmp.eq.s32.totalorder %s98, 0
      %p287 = por %p285, %p286
      %p288 = scmp.ne.s32.totalorder %s276, %s277
      %p289 = scmp.eq.s32.totalorder %s99, 1
      %p290 = por %p288, %p289
      %p292 = scmp.ne.s32.totalorder %s277, %s291
      %p293 = scmp.eq.s32.totalorder %s99, 0
      %p294 = por %p292, %p293
      %s296 = sadd.s32 %s295, 1
      %p299 = scmp.eq.s32.totalorder %s93, 1
      %p300 = scmp.ne.s32.totalorder %s295, %s297
      %p301 = scmp.eq.s32.totalorder %s93, 0
      %p302 = por %p300, %p301
      %p303 = scmp.ne.s32.totalorder %s295, %s297
      %p304 = scmp.eq.s32.totalorder %s98, 1
      %p305 = por %p303, %p304
      %p306 = scmp.ne.s32.totalorder %s297, %s298
      %p307 = scmp.eq.s32.totalorder %s98, 0
      %p308 = por %p306, %p307
      %p309 = scmp.ne.s32.totalorder %s297, %s298
      %p310 = scmp.eq.s32.totalorder %s99, 1
      %p311 = por %p309, %p310
      %p313 = scmp.ne.s32.totalorder %s298, %s312
      %p314 = scmp.eq.s32.totalorder %s99, 0
      %p315 = por %p313, %p314
      %s317 = sadd.s32 %s316, 1
      %p320 = scmp.eq.s32.totalorder %s93, 1
      %p321 = scmp.ne.s32.totalorder %s316, %s318
      %p322 = scmp.eq.s32.totalorder %s93, 0
      %p323 = por %p321, %p322
      %p324 = scmp.ne.s32.totalorder %s316, %s318
      %p325 = scmp.eq.s32.totalorder %s98, 1
      %p326 = por %p324, %p325
      %p327 = scmp.ne.s32.totalorder %s318, %s319
      %p328 = scmp.eq.s32.totalorder %s98, 0
      %p329 = por %p327, %p328
      %p330 = scmp.ne.s32.totalorder %s318, %s319
      %p331 = scmp.eq.s32.totalorder %s99, 1
      %p332 = por %p330, %p331
      %p334 = scmp.ne.s32.totalorder %s319, %s333
      %p335 = scmp.eq.s32.totalorder %s99, 0
      %p336 = por %p334, %p335
      %s338 = sadd.s32 %s337, 1
      %p341 = scmp.eq.s32.totalorder %s93, 1
      %p342 = scmp.ne.s32.totalorder %s337, %s339
      %p343 = scmp.eq.s32.totalorder %s93, 0
      %p344 = por %p342, %p343
      %p345 = scmp.ne.s32.totalorder %s337, %s339
      %p346 = scmp.eq.s32.totalorder %s98, 1
      %p347 = por %p345, %p346
      %p348 = scmp.ne.s32.totalorder %s339, %s340
      %p349 = scmp.eq.s32.totalorder %s98, 0
      %p350 = por %p348, %p349
      %p351 = scmp.ne.s32.totalorder %s339, %s340
      %p352 = scmp.eq.s32.totalorder %s99, 1
      %p353 = por %p351, %p352
      %p355 = scmp.ne.s32.totalorder %s340, %s354
      %p356 = scmp.eq.s32.totalorder %s99, 0
      %p357 = por %p355, %p356
      %s359 = sadd.s32 %s358, 1
      %p362 = scmp.eq.s32.totalorder %s93, 1
      %p363 = scmp.ne.s32.totalorder %s358, %s360
      %p364 = scmp.eq.s32.totalorder %s93, 0
      %p365 = por %p363, %p364
      %p366 = scmp.ne.s32.totalorder %s358, %s360
      %p367 = scmp.eq.s32.totalorder %s98, 1
      %p368 = por %p366, %p367
      %p369 = scmp.ne.s32.totalorder %s360, %s361
      %p370 = scmp.eq.s32.totalorder %s98, 0
      %p371 = por %p369, %p370
      %p372 = scmp.ne.s32.totalorder %s360, %s361
      %p373 = scmp.eq.s32.totalorder %s99, 1
      %p374 = por %p372, %p373
      %p376 = scmp.ne.s32.totalorder %s361, %s375
      %p377 = scmp.eq.s32.totalorder %s99, 0
      %p378 = por %p376, %p377
      %s380 = sadd.s32 %s379, 1
      %p383 = scmp.eq.s32.totalorder %s93, 1
      %p384 = scmp.ne.s32.totalorder %s379, %s381
      %p385 = scmp.eq.s32.totalorder %s93, 0
      %p386 = por %p384, %p385
      %p387 = scmp.ne.s32.totalorder %s379, %s381
      %p388 = scmp.eq.s32.totalorder %s98, 1
      %p389 = por %p387, %p388
      %p390 = scmp.ne.s32.totalorder %s381, %s382
      %p391 = scmp.eq.s32.totalorder %s98, 0
      %p392 = por %p390, %p391
      %p393 = scmp.ne.s32.totalorder %s381, %s382
      %p394 = scmp.eq.s32.totalorder %s99, 1
      %p395 = por %p393, %p394
      %p397 = scmp.ne.s32.totalorder %s382, %s396
      %p398 = scmp.eq.s32.totalorder %s99, 0
      %p399 = por %p397, %p398
      %s401 = sadd.s32 %s400, 1
      %p404 = scmp.eq.s32.totalorder %s93, 1
      %p405 = scmp.ne.s32.totalorder %s400, %s402
      %p406 = scmp.eq.s32.totalorder %s93, 0
      %p407 = por %p405, %p406
      %p408 = scmp.ne.s32.totalorder %s400, %s402
      %p409 = scmp.eq.s32.totalorder %s98, 1
      %p410 = por %p408, %p409
      %p411 = scmp.ne.s32.totalorder %s402, %s403
      %p412 = scmp.eq.s32.totalorder %s98, 0
      %p413 = por %p411, %p412
      %p414 = scmp.ne.s32.totalorder %s402, %s403
      %p415 = scmp.eq.s32.totalorder %s99, 1
      %p416 = por %p414, %p415
      %p418 = scmp.ne.s32.totalorder %s403, %s417
      %p419 = scmp.eq.s32.totalorder %s99, 0
      %p420 = por %p418, %p419
      %s422 = sadd.s32 %s421, 1
      %p425 = scmp.eq.s32.totalorder %s93, 1
      %p426 = scmp.ne.s32.totalorder %s421, %s423
      %p427 = scmp.eq.s32.totalorder %s93, 0
      %p428 = por %p426, %p427
      %p429 = scmp.ne.s32.totalorder %s421, %s423
      %p430 = scmp.eq.s32.totalorder %s98, 1
      %p431 = por %p429, %p430
      %p432 = scmp.ne.s32.totalorder %s423, %s424
      %p433 = scmp.eq.s32.totalorder %s98, 0
      %p434 = por %p432, %p433
      %p435 = scmp.ne.s32.totalorder %s423, %s424
      %p436 = scmp.eq.s32.totalorder %s99, 1
      %p437 = por %p435, %p436
      %p439 = scmp.ne.s32.totalorder %s424, %s438
      %p440 = scmp.eq.s32.totalorder %s99, 0
      %p441 = por %p439, %p440
      %s443 = sadd.s32 %s442, 1
      %p446 = scmp.eq.s32.totalorder %s93, 1
      %p447 = scmp.ne.s32.totalorder %s442, %s444
      %p448 = scmp.eq.s32.totalorder %s93, 0
      %p449 = por %p447, %p448
      %p450 = scmp.ne.s32.totalorder %s442, %s444
      %p451 = scmp.eq.s32.totalorder %s98, 1
      %p452 = por %p450, %p451
      %p453 = scmp.ne.s32.totalorder %s444, %s445
      %p454 = scmp.eq.s32.totalorder %s98, 0
      %p455 = por %p453, %p454
      %p456 = scmp.ne.s32.totalorder %s444, %s445
      %p457 = scmp.eq.s32.totalorder %s99, 1
      %p458 = por %p456, %p457
      %p460 = scmp.ne.s32.totalorder %s445, %s459
      %p461 = scmp.eq.s32.totalorder %s99, 0
      %p462 = por %p460, %p461
      %s464 = sadd.s32 %s463, 1
      %p467 = scmp.eq.s32.totalorder %s93, 1
      %p468 = scmp.ne.s32.totalorder %s463, %s465
      %p469 = scmp.eq.s32.totalorder %s93, 0
      %p470 = por %p468, %p469
      %p471 = scmp.ne.s32.totalorder %s463, %s465
      %p472 = scmp.eq.s32.totalorder %s98, 1
      %p473 = por %p471, %p472
      %p474 = scmp.ne.s32.totalorder %s465, %s466
      %p475 = scmp.eq.s32.totalorder %s98, 0
      %p476 = por %p474, %p475
      %p477 = scmp.ne.s32.totalorder %s465, %s466
      %p478 = scmp.eq.s32.totalorder %s99, 1
      %p479 = por %p477, %p478
      %p481 = scmp.ne.s32.totalorder %s466, %s480
      %p482 = scmp.eq.s32.totalorder %s99, 0
      %p483 = por %p481, %p482
      %s485 = sadd.s32 %s484, 1
      %p488 = scmp.eq.s32.totalorder %s93, 1
      %p489 = scmp.ne.s32.totalorder %s484, %s486
      %p490 = scmp.eq.s32.totalorder %s93, 0
      %p491 = por %p489, %p490
      %p492 = scmp.ne.s32.totalorder %s484, %s486
      %p493 = scmp.eq.s32.totalorder %s98, 1
      %p494 = por %p492, %p493
      %p495 = scmp.ne.s32.totalorder %s486, %s487
      %p496 = scmp.eq.s32.totalorder %s98, 0
      %p497 = por %p495, %p496
      %p498 = scmp.ne.s32.totalorder %s486, %s487
      %p499 = scmp.eq.s32.totalorder %s99, 1
      %p500 = por %p498, %p499
      %p502 = scmp.ne.s32.totalorder %s487, %s501
      %p503 = scmp.eq.s32.totalorder %s99, 0
      %p504 = por %p502, %p503
      %s506 = sadd.s32 %s505, 1
      %p509 = scmp.eq.s32.totalorder %s93, 1
      %p510 = scmp.ne.s32.totalorder %s505, %s507
      %p511 = scmp.eq.s32.totalorder %s93, 0
      %p512 = por %p510, %p511
      %p513 = scmp.ne.s32.totalorder %s505, %s507
      %p514 = scmp.eq.s32.totalorder %s98, 1
      %p515 = por %p513, %p514
      %p516 = scmp.ne.s32.totalorder %s507, %s508
      %p517 = scmp.eq.s32.totalorder %s98, 0
      %p518 = por %p516, %p517
      %p519 = scmp.ne.s32.totalorder %s507, %s508
      %p520 = scmp.eq.s32.totalorder %s99, 1
      %p521 = por %p519, %p520
      %p523 = scmp.ne.s32.totalorder %s508, %s522
      %p524 = scmp.eq.s32.totalorder %s99, 0
      %p525 = por %p523, %p524
      %s527 = sadd.s32 %s526, 1
      %p530 = scmp.eq.s32.totalorder %s93, 1
      %p531 = scmp.ne.s32.totalorder %s526, %s528
      %p532 = scmp.eq.s32.totalorder %s93, 0
      %p533 = por %p531, %p532
      %p534 = scmp.ne.s32.totalorder %s526, %s528
      %p535 = scmp.eq.s32.totalorder %s98, 1
      %p536 = por %p534, %p535
      %p537 = scmp.ne.s32.totalorder %s528, %s529
      %p538 = scmp.eq.s32.totalorder %s98, 0
      %p539 = por %p537, %p538
      %p540 = scmp.ne.s32.totalorder %s528, %s529
      %p541 = scmp.eq.s32.totalorder %s99, 1
      %p542 = por %p540, %p541
      %p544 = scmp.ne.s32.totalorder %s529, %s543
      %p545 = scmp.eq.s32.totalorder %s99, 0
      %p546 = por %p544, %p545
      %s548 = sadd.s32 %s547, 1
      %p551 = scmp.eq.s32.totalorder %s93, 1
      %p552 = scmp.ne.s32.totalorder %s547, %s549
      %p553 = scmp.eq.s32.totalorder %s93, 0
      %p554 = por %p552, %p553
      %p555 = scmp.ne.s32.totalorder %s547, %s549
      %p556 = scmp.eq.s32.totalorder %s98, 1
      %p557 = por %p555, %p556
      %p558 = scmp.ne.s32.totalorder %s549, %s550
      %p559 = scmp.eq.s32.totalorder %s98, 0
      %p560 = por %p558, %p559
      %p561 = scmp.ne.s32.totalorder %s549, %s550
      %p562 = scmp.eq.s32.totalorder %s99, 1
      %p563 = por %p561, %p562
      %p565 = scmp.ne.s32.totalorder %s550, %s564
      %p566 = scmp.eq.s32.totalorder %s99, 0
      %p567 = por %p565, %p566
      %s569 = sadd.s32 %s568, 1
      %p572 = scmp.eq.s32.totalorder %s93, 1
      %p573 = scmp.ne.s32.totalorder %s568, %s570
      %p574 = scmp.eq.s32.totalorder %s93, 0
      %p575 = por %p573, %p574
      %p576 = scmp.ne.s32.totalorder %s568, %s570
      %p577 = scmp.eq.s32.totalorder %s98, 1
      %p578 = por %p576, %p577
      %p579 = scmp.ne.s32.totalorder %s570, %s571
      %p580 = scmp.eq.s32.totalorder %s98, 0
      %p581 = por %p579, %p580
      %p582 = scmp.ne.s32.totalorder %s570, %s571
      %p583 = scmp.eq.s32.totalorder %s99, 1
      %p584 = por %p582, %p583
      %p586 = scmp.ne.s32.totalorder %s571, %s585
      %p587 = scmp.eq.s32.totalorder %s99, 0
      %p588 = por %p586, %p587
      %s590 = sadd.s32 %s589, 1
      %p593 = scmp.eq.s32.totalorder %s93, 1
      %p594 = scmp.ne.s32.totalorder %s589, %s591
      %p595 = scmp.eq.s32.totalorder %s93, 0
      %p596 = por %p594, %p595
      %p597 = scmp.ne.s32.totalorder %s589, %s591
      %p598 = scmp.eq.s32.totalorder %s98, 1
      %p599 = por %p597, %p598
      %p600 = scmp.ne.s32.totalorder %s591, %s592
      %p601 = scmp.eq.s32.totalorder %s98, 0
      %p602 = por %p600, %p601
      %p603 = scmp.ne.s32.totalorder %s591, %s592
      %p604 = scmp.eq.s32.totalorder %s99, 1
      %p605 = por %p603, %p604
      %p607 = scmp.ne.s32.totalorder %s592, %s606
      %p608 = scmp.eq.s32.totalorder %s99, 0
      %p609 = por %p607, %p608
      %s611 = sadd.s32 %s610, 1
      %p614 = scmp.eq.s32.totalorder %s93, 1
      %p615 = scmp.ne.s32.totalorder %s610, %s612
      %p616 = scmp.eq.s32.totalorder %s93, 0
      %p617 = por %p615, %p616
      %p618 = scmp.ne.s32.totalorder %s610, %s612
      %p619 = scmp.eq.s32.totalorder %s98, 1
      %p620 = por %p618, %p619
      %p621 = scmp.ne.s32.totalorder %s612, %s613
      %p622 = scmp.eq.s32.totalorder %s98, 0
      %p623 = por %p621, %p622
      %p624 = scmp.ne.s32.totalorder %s612, %s613
      %p625 = scmp.eq.s32.totalorder %s99, 1
      %p626 = por %p624, %p625
      %p628 = scmp.ne.s32.totalorder %s613, %s627
      %p629 = scmp.eq.s32.totalorder %s99, 0
      %p630 = por %p628, %p629
      %s632 = sadd.s32 %s631, 1
      %p635 = scmp.eq.s32.totalorder %s93, 1
      %p636 = scmp.ne.s32.totalorder %s631, %s633
      %p637 = scmp.eq.s32.totalorder %s93, 0
      %p638 = por %p636, %p637
      %p639 = scmp.ne.s32.totalorder %s631, %s633
      %p640 = scmp.eq.s32.totalorder %s98, 1
      %p641 = por %p639, %p640
      %p642 = scmp.ne.s32.totalorder %s633, %s634
      %p643 = scmp.eq.s32.totalorder %s98, 0
      %p644 = por %p642, %p643
      %p645 = scmp.ne.s32.totalorder %s633, %s634
      %p646 = scmp.eq.s32.totalorder %s99, 1
      %p647 = por %p645, %p646
      %p649 = scmp.ne.s32.totalorder %s634, %s648
      %p650 = scmp.eq.s32.totalorder %s99, 0
      %p651 = por %p649, %p650
      %s653 = sadd.s32 %s652, 1
      %p656 = scmp.eq.s32.totalorder %s93, 1
      %p657 = scmp.ne.s32.totalorder %s652, %s654
      %p658 = scmp.eq.s32.totalorder %s93, 0
      %p659 = por %p657, %p658
      %p660 = scmp.ne.s32.totalorder %s652, %s654
      %p661 = scmp.eq.s32.totalorder %s98, 1
      %p662 = por %p660, %p661
      %p663 = scmp.ne.s32.totalorder %s654, %s655
      %p664 = scmp.eq.s32.totalorder %s98, 0
      %p665 = por %p663, %p664
      %p666 = scmp.ne.s32.totalorder %s654, %s655
      %p667 = scmp.eq.s32.totalorder %s99, 1
      %p668 = por %p666, %p667
      %p670 = scmp.ne.s32.totalorder %s655, %s669
      %p671 = scmp.eq.s32.totalorder %s99, 0
      %p672 = por %p670, %p671
      %s674 = sadd.s32 %s673, 1
      %p677 = scmp.eq.s32.totalorder %s93, 1
      %p678 = scmp.ne.s32.totalorder %s673, %s675
      %p679 = scmp.eq.s32.totalorder %s93, 0
      %p680 = por %p678, %p679
      %p681 = scmp.ne.s32.totalorder %s673, %s675
      %p682 = scmp.eq.s32.totalorder %s98, 1
      %p683 = por %p681, %p682
      %p684 = scmp.ne.s32.totalorder %s675, %s676
      %p685 = scmp.eq.s32.totalorder %s98, 0
      %p686 = por %p684, %p685
      %p687 = scmp.ne.s32.totalorder %s675, %s676
      %p688 = scmp.eq.s32.totalorder %s99, 1
      %p689 = por %p687, %p688
      %p691 = scmp.ne.s32.totalorder %s676, %s690
      %p692 = scmp.eq.s32.totalorder %s99, 0
      %p693 = por %p691, %p692
      %s695 = sadd.s32 %s694, 1
      %p698 = scmp.eq.s32.totalorder %s93, 1
      %p699 = scmp.ne.s32.totalorder %s694, %s696
      %p700 = scmp.eq.s32.totalorder %s93, 0
      %p701 = por %p699, %p700
      %p702 = scmp.ne.s32.totalorder %s694, %s696
      %p703 = scmp.eq.s32.totalorder %s98, 1
      %p704 = por %p702, %p703
      %p705 = scmp.ne.s32.totalorder %s696, %s697
      %p706 = scmp.eq.s32.totalorder %s98, 0
      %p707 = por %p705, %p706
      %p708 = scmp.ne.s32.totalorder %s696, %s697
      %p709 = scmp.eq.s32.totalorder %s99, 1
      %p710 = por %p708, %p709
      %p712 = scmp.ne.s32.totalorder %s697, %s711
      %p713 = scmp.eq.s32.totalorder %s99, 0
      %p714 = por %p712, %p713
      %s716 = sadd.s32 %s715, 1
      %p719 = scmp.eq.s32.totalorder %s93, 1
      %p720 = scmp.ne.s32.totalorder %s715, %s717
      %p721 = scmp.eq.s32.totalorder %s93, 0
      %p722 = por %p720, %p721
      %p723 = scmp.ne.s32.totalorder %s715, %s717
      %p724 = scmp.eq.s32.totalorder %s98, 1
      %p725 = por %p723, %p724
      %p726 = scmp.ne.s32.totalorder %s717, %s718
      %p727 = scmp.eq.s32.totalorder %s98, 0
      %p728 = por %p726, %p727
      %p729 = scmp.ne.s32.totalorder %s717, %s718
      %p730 = scmp.eq.s32.totalorder %s99, 1
      %p731 = por %p729, %p730
      %p733 = scmp.ne.s32.totalorder %s718, %s732
      %p734 = scmp.eq.s32.totalorder %s99, 0
      %p735 = por %p733, %p734
      %s737 = sadd.s32 %s736, 1
      %p740 = scmp.eq.s32.totalorder %s93, 1
      %p741 = scmp.ne.s32.totalorder %s736, %s738
      %p742 = scmp.eq.s32.totalorder %s93, 0
      %p743 = por %p741, %p742
      %p744 = scmp.ne.s32.totalorder %s736, %s738
      %p745 = scmp.eq.s32.totalorder %s98, 1
      %p746 = por %p744, %p745
      %p747 = scmp.ne.s32.totalorder %s738, %s739
      %p748 = scmp.eq.s32.totalorder %s98, 0
      %p749 = por %p747, %p748
      %p750 = scmp.ne.s32.totalorder %s738, %s739
      %p751 = scmp.eq.s32.totalorder %s99, 1
      %p752 = por %p750, %p751
      %p754 = scmp.ne.s32.totalorder %s739, %s753
      %p755 = scmp.eq.s32.totalorder %s99, 0
      %p756 = por %p754, %p755
      %s758 = sadd.s32 %s757, 1
      %p761 = scmp.eq.s32.totalorder %s93, 1
      %p762 = scmp.ne.s32.totalorder %s757, %s759
      %p763 = scmp.eq.s32.totalorder %s93, 0
      %p764 = por %p762, %p763
      %p765 = scmp.ne.s32.totalorder %s757, %s759
      %p766 = scmp.eq.s32.totalorder %s98, 1
      %p767 = por %p765, %p766
      %p768 = scmp.ne.s32.totalorder %s759, %s760
      %p769 = scmp.eq.s32.totalorder %s98, 0
      %p770 = por %p768, %p769
      %p771 = scmp.ne.s32.totalorder %s759, %s760
      %p772 = scmp.eq.s32.totalorder %s99, 1
      %p773 = por %p771, %p772
      %p775 = scmp.ne.s32.totalorder %s760, %s774
      %p776 = scmp.eq.s32.totalorder %s99, 0
      %p777 = por %p775, %p776
      %s778 = ssub.s32 %s93, %s100
      %p779 = scmp.eq.s32.totalorder %s778, 0
      %s781 = sadd.s32 %s780, 1
      %s782 = scalar_select %p779, %s780, %s781
      %p785 = pneg %p779
      %p786 = scmp.eq.s32.totalorder %s93, 1
      %p787 = por %p785, %p786
      %p788 = scmp.ne.s32.totalorder %s780, %s783
      %p789 = scmp.eq.s32.totalorder %s93, 0
      %p790 = por %p788, %p789
      %p791 = scmp.ne.s32.totalorder %s780, %s783
      %p792 = scmp.eq.s32.totalorder %s98, 1
      %p793 = por %p791, %p792
      %p794 = scmp.ne.s32.totalorder %s783, %s784
      %p795 = scmp.eq.s32.totalorder %s98, 0
      %p796 = por %p794, %p795
      %p797 = scmp.ne.s32.totalorder %s783, %s784
      %p798 = scmp.eq.s32.totalorder %s99, 1
      %p799 = por %p797, %p798
      %p801 = scmp.ne.s32.totalorder %s784, %s800
      %p802 = scmp.eq.s32.totalorder %s99, 0
      %p803 = por %p801, %p802
      %p804 = scmp.le.s32.totalorder 1, %s93
      %p805 = scmp.lt.s32.totalorder %s93, 3
      %p806 = pnand %p804, %p805
      %p807 = pneg %p806
      // Predicated region
      $region9: #{tpu_custom_call.1} parent=5 // pred_check
        _
      $region10: #{tpu_custom_call.1} parent=5 // pred_check_branch
        %809 = sbr.rel (%p806) target = $region12
      $region11: #{tpu_custom_call.1} parent=5 // pred_region
        %s810 = ssub.s32 %s93, 1
        // Predicated region
        $region13: #{tpu_custom_call.1} parent=11 // pred_check
          %p811 = pneg %p140
        $region14: #{tpu_custom_call.1} parent=11 // pred_check_branch
          %813 = sbr.rel (%p811) target = $region16
        $region15: #{tpu_custom_call.1} parent=11 // pred_region
          %s815 = ssub.s32 256, 256
          %816 = vsyncadd [#allocation6], %s815
          %s817 = sshll.u32 [#allocation5], 4
          %s818 = int_to_ptr.vmem [resolvable:$true] %s817
          %823 = dma.hbm_to_vmem [thread:$0]  %s3, 256, %s818, [#allocation6], 64, 64, 4
        $region16: #{tpu_custom_call.1} parent=11 // pred_fallthru
          _
        // Predicated region
        $region17: #{tpu_custom_call.1} parent=11 // pred_check
          %p824 = pneg %p161
        $region18: #{tpu_custom_call.1} parent=11 // pred_check_branch
          %826 = sbr.rel (%p824) target = $region20
        $region19: #{tpu_custom_call.1} parent=11 // pred_region
          %s828 = ssub.s32 16, 16
          %829 = vsyncadd [#allocation6], %s828
          %s831 = sshll.u32 [#allocation7], 4
          %s832 = int_to_ptr.vmem [resolvable:$true] %s831
          %834 = dma.hbm_to_vmem [thread:$0]  %s5, 16, %s832, [#allocation6]
        $region20: #{tpu_custom_call.1} parent=11 // pred_fallthru
          _
        // Predicated region
        $region21: #{tpu_custom_call.1} parent=11 // pred_check
          %p835 = pneg %p182
        $region22: #{tpu_custom_call.1} parent=11 // pred_check_branch
          %837 = sbr.rel (%p835) target = $region24
        $region23: #{tpu_custom_call.1} parent=11 // pred_region
          %s839 = ssub.s32 16, 16
          %840 = vsyncadd [#allocation9], %s839
          %s842 = sshll.u32 [#allocation8], 4
          %s843 = int_to_ptr.vmem [resolvable:$true] %s842
          %845 = dma.hbm_to_vmem [thread:$0]  %s7, 16, %s843, [#allocation9]
        $region24: #{tpu_custom_call.1} parent=11 // pred_fallthru
          _
        // Predicated region
        $region25: #{tpu_custom_call.1} parent=11 // pred_check
          %p846 = pneg %p203
        $region26: #{tpu_custom_call.1} parent=11 // pred_check_branch
          %848 = sbr.rel (%p846) target = $region28
        $region27: #{tpu_custom_call.1} parent=11 // pred_region
          %s850 = ssub.s32 16, 16
          %851 = vsyncadd [#allocation9], %s850
          %s853 = sshll.u32 [#allocation10], 4
          %s854 = int_to_ptr.vmem [resolvable:$true] %s853
          %856 = dma.hbm_to_vmem [thread:$0]  %s9, 16, %s854, [#allocation9]
        $region28: #{tpu_custom_call.1} parent=11 // pred_fallthru
          _
        // Predicated region
        $region29: #{tpu_custom_call.1} parent=11 // pred_check
          %p857 = pneg %p224
        $region30: #{tpu_custom_call.1} parent=11 // pred_check_branch
          %859 = sbr.rel (%p857) target = $region32
        $region31: #{tpu_custom_call.1} parent=11 // pred_region
          %s861 = ssub.s32 16, 16
          %862 = vsyncadd [#allocation12], %s861
          %s864 = sshll.u32 [#allocation11], 4
          %s865 = int_to_ptr.vmem [resolvable:$true] %s864
          %867 = dma.hbm_to_vmem [thread:$0]  %s11, 16, %s865, [#allocation12]
        $region32: #{tpu_custom_call.1} parent=11 // pred_fallthru
          _
        // Predicated region
        $region33: #{tpu_custom_call.1} parent=11 // pred_check
          %p868 = pneg %p245
        $region34: #{tpu_custom_call.1} parent=11 // pred_check_branch
          %870 = sbr.rel (%p868) target = $region36
        $region35: #{tpu_custom_call.1} parent=11 // pred_region
          %s872 = ssub.s32 16, 16
          %873 = vsyncadd [#allocation12], %s872
          %s875 = sshll.u32 [#allocation13], 4
          %s876 = int_to_ptr.vmem [resolvable:$true] %s875
          %878 = dma.hbm_to_vmem [thread:$0]  %s13, 16, %s876, [#allocation12]
        $region36: #{tpu_custom_call.1} parent=11 // pred_fallthru
          _
        // Predicated region
        $region37: #{tpu_custom_call.1} parent=11 // pred_check
          %p879 = pneg %p266
        $region38: #{tpu_custom_call.1} parent=11 // pred_check_branch
          %881 = sbr.rel (%p879) target = $region40
        $region39: #{tpu_custom_call.1} parent=11 // pred_region
          %s883 = ssub.s32 16, 16
          %884 = vsyncadd [#allocation15], %s883
          %s886 = sshll.u32 [#allocation14], 4
          %s887 = int_to_ptr.vmem [resolvable:$true] %s886
          %889 = dma.hbm_to_vmem [thread:$0]  %s15, 16, %s887, [#allocation15]
        $region40: #{tpu_custom_call.1} parent=11 // pred_fallthru
          _
        // Predicated region
        $region41: #{tpu_custom_call.1} parent=11 // pred_check
          %p890 = pneg %p287
        $region42: #{tpu_custom_call.1} parent=11 // pred_check_branch
          %892 = sbr.rel (%p890) target = $region44
        $region43: #{tpu_custom_call.1} parent=11 // pred_region
          %s894 = ssub.s32 16, 16
          %895 = vsyncadd [#allocation15], %s894
          %s897 = sshll.u32 [#allocation16], 4
          %s898 = int_to_ptr.vmem [resolvable:$true] %s897
          %900 = dma.hbm_to_vmem [thread:$0]  %s17, 16, %s898, [#allocation15]
        $region44: #{tpu_custom_call.1} parent=11 // pred_fallthru
          _
        // Predicated region
        $region45: #{tpu_custom_call.1} parent=11 // pred_check
          %p901 = pneg %p308
        $region46: #{tpu_custom_call.1} parent=11 // pred_check_branch
          %903 = sbr.rel (%p901) target = $region48
        $region47: #{tpu_custom_call.1} parent=11 // pred_region
          %s905 = ssub.s32 16, 16
          %906 = vsyncadd [#allocation18], %s905
          %s908 = sshll.u32 [#allocation17], 4
          %s909 = int_to_ptr.vmem [resolvable:$true] %s908
          %911 = dma.hbm_to_vmem [thread:$0]  %s19, 16, %s909, [#allocation18]
        $region48: #{tpu_custom_call.1} parent=11 // pred_fallthru
          _
        // Predicated region
        $region49: #{tpu_custom_call.1} parent=11 // pred_check
          %p912 = pneg %p329
        $region50: #{tpu_custom_call.1} parent=11 // pred_check_branch
          %914 = sbr.rel (%p912) target = $region52
        $region51: #{tpu_custom_call.1} parent=11 // pred_region
          %s916 = ssub.s32 256, 256
          %917 = vsyncadd [#allocation18], %s916
          %s918 = sshll.u32 [#allocation19], 4
          %s919 = int_to_ptr.vmem [resolvable:$true] %s918
          %924 = dma.hbm_to_vmem [thread:$0]  %s21, 256, %s919, [#allocation18], 64, 64, 4
        $region52: #{tpu_custom_call.1} parent=11 // pred_fallthru
          _
        // Predicated region
        $region53: #{tpu_custom_call.1} parent=11 // pred_check
          %p925 = pneg %p350
        $region54: #{tpu_custom_call.1} parent=11 // pred_check_branch
          %927 = sbr.rel (%p925) target = $region56
        $region55: #{tpu_custom_call.1} parent=11 // pred_region
          %s929 = ssub.s32 16, 16
          %930 = vsyncadd [#allocation21], %s929
          %s932 = sshll.u32 [#allocation20], 4
          %s933 = int_to_ptr.vmem [resolvable:$true] %s932
          %935 = dma.hbm_to_vmem [thread:$0]  %s23, 16, %s933, [#allocation21]
        $region56: #{tpu_custom_call.1} parent=11 // pred_fallthru
          _
        // Predicated region
        $region57: #{tpu_custom_call.1} parent=11 // pred_check
          %p936 = pneg %p371
        $region58: #{tpu_custom_call.1} parent=11 // pred_check_branch
          %938 = sbr.rel (%p936) target = $region60
        $region59: #{tpu_custom_call.1} parent=11 // pred_region
          %s940 = ssub.s32 512, 512
          %941 = vsyncadd [#allocation21], %s940
          %s942 = sshll.u32 [#allocation22], 4
          %s943 = int_to_ptr.vmem [resolvable:$true] %s942
          %948 = dma.hbm_to_vmem [thread:$0]  %s25, 512, %s943, [#allocation21], 64, 64, 4
        $region60: #{tpu_custom_call.1} parent=11 // pred_fallthru
          _
        // Predicated region
        $region61: #{tpu_custom_call.1} parent=11 // pred_check
          %p949 = pneg %p392
        $region62: #{tpu_custom_call.1} parent=11 // pred_check_branch
          %951 = sbr.rel (%p949) target = $region64
        $region63: #{tpu_custom_call.1} parent=11 // pred_region
          %s953 = ssub.s32 16, 16
          %954 = vsyncadd [#allocation24], %s953
          %s956 = sshll.u32 [#allocation23], 4
          %s957 = int_to_ptr.vmem [resolvable:$true] %s956
          %959 = dma.hbm_to_vmem [thread:$0]  %s27, 16, %s957, [#allocation24]
        $region64: #{tpu_custom_call.1} parent=11 // pred_fallthru
          _
        // Predicated region
        $region65: #{tpu_custom_call.1} parent=11 // pred_check
          %p960 = pneg %p413
        $region66: #{tpu_custom_call.1} parent=11 // pred_check_branch
          %962 = sbr.rel (%p960) target = $region68
        $region67: #{tpu_custom_call.1} parent=11 // pred_region
          %s964 = ssub.s32 256, 256
          %965 = vsyncadd [#allocation24], %s964
          %s966 = sshll.u32 [#allocation25], 4
          %s967 = int_to_ptr.vmem [resolvable:$true] %s966
          %972 = dma.hbm_to_vmem [thread:$0]  %s29, 256, %s967, [#allocation24], 64, 64, 4
        $region68: #{tpu_custom_call.1} parent=11 // pred_fallthru
          _
        // Predicated region
        $region69: #{tpu_custom_call.1} parent=11 // pred_check
          %p973 = pneg %p434
        $region70: #{tpu_custom_call.1} parent=11 // pred_check_branch
          %975 = sbr.rel (%p973) target = $region72
        $region71: #{tpu_custom_call.1} parent=11 // pred_region
          %s977 = ssub.s32 16, 16
          %978 = vsyncadd [#allocation27], %s977
          %s980 = sshll.u32 [#allocation26], 4
          %s981 = int_to_ptr.vmem [resolvable:$true] %s980
          %983 = dma.hbm_to_vmem [thread:$0]  %s31, 16, %s981, [#allocation27]
        $region72: #{tpu_custom_call.1} parent=11 // pred_fallthru
          _
        // Predicated region
        $region73: #{tpu_custom_call.1} parent=11 // pred_check
          %p984 = pneg %p455
        $region74: #{tpu_custom_call.1} parent=11 // pred_check_branch
          %986 = sbr.rel (%p984) target = $region76
        $region75: #{tpu_custom_call.1} parent=11 // pred_region
          %s988 = ssub.s32 256, 256
          %989 = vsyncadd [#allocation27], %s988
          %s990 = sshll.u32 [#allocation28], 4
          %s991 = int_to_ptr.vmem [resolvable:$true] %s990
          %996 = dma.hbm_to_vmem [thread:$0]  %s33, 256, %s991, [#allocation27], 64, 64, 4
        $region76: #{tpu_custom_call.1} parent=11 // pred_fallthru
          _
        // Predicated region
        $region77: #{tpu_custom_call.1} parent=11 // pred_check
          %p997 = pneg %p476
        $region78: #{tpu_custom_call.1} parent=11 // pred_check_branch
          %999 = sbr.rel (%p997) target = $region80
        $region79: #{tpu_custom_call.1} parent=11 // pred_region
          %s1001 = ssub.s32 16, 16
          %1002 = vsyncadd [#allocation30], %s1001
          %s1004 = sshll.u32 [#allocation29], 4
          %s1005 = int_to_ptr.vmem [resolvable:$true] %s1004
          %1007 = dma.hbm_to_vmem [thread:$0]  %s35, 16, %s1005, [#allocation30]
        $region80: #{tpu_custom_call.1} parent=11 // pred_fallthru
          _
        // Predicated region
        $region81: #{tpu_custom_call.1} parent=11 // pred_check
          %p1008 = pneg %p497
        $region82: #{tpu_custom_call.1} parent=11 // pred_check_branch
          %1010 = sbr.rel (%p1008) target = $region84
        $region83: #{tpu_custom_call.1} parent=11 // pred_region
          %s1012 = ssub.s32 256, 256
          %1013 = vsyncadd [#allocation30], %s1012
          %s1014 = sshll.u32 [#allocation31], 4
          %s1015 = int_to_ptr.vmem [resolvable:$true] %s1014
          %1020 = dma.hbm_to_vmem [thread:$0]  %s37, 256, %s1015, [#allocation30], 64, 64, 4
        $region84: #{tpu_custom_call.1} parent=11 // pred_fallthru
          _
        // Predicated region
        $region85: #{tpu_custom_call.1} parent=11 // pred_check
          %p1021 = pneg %p518
        $region86: #{tpu_custom_call.1} parent=11 // pred_check_branch
          %1023 = sbr.rel (%p1021) target = $region88
        $region87: #{tpu_custom_call.1} parent=11 // pred_region
          %s1025 = ssub.s32 16, 16
          %1026 = vsyncadd [#allocation33], %s1025
          %s1028 = sshll.u32 [#allocation32], 4
          %s1029 = int_to_ptr.vmem [resolvable:$true] %s1028
          %1031 = dma.hbm_to_vmem [thread:$0]  %s39, 16, %s1029, [#allocation33]
        $region88: #{tpu_custom_call.1} parent=11 // pred_fallthru
          _
        // Predicated region
        $region89: #{tpu_custom_call.1} parent=11 // pred_check
          %p1032 = pneg %p539
        $region90: #{tpu_custom_call.1} parent=11 // pred_check_branch
          %1034 = sbr.rel (%p1032) target = $region92
        $region91: #{tpu_custom_call.1} parent=11 // pred_region
          %s1036 = ssub.s32 48, 48
          %1037 = vsyncadd [#allocation33], %s1036
          %s1038 = sshll.u32 [#allocation34], 4
          %s1039 = int_to_ptr.vmem [resolvable:$true] %s1038
          %1044 = dma.hbm_to_vmem [thread:$0]  %s41, 48, %s1039, [#allocation33], 16, 16, 1
        $region92: #{tpu_custom_call.1} parent=11 // pred_fallthru
          _
        // Predicated region
        $region93: #{tpu_custom_call.1} parent=11 // pred_check
          %p1045 = pneg %p560
        $region94: #{tpu_custom_call.1} parent=11 // pred_check_branch
          %1047 = sbr.rel (%p1045) target = $region96
        $region95: #{tpu_custom_call.1} parent=11 // pred_region
          %s1049 = ssub.s32 16, 16
          %1050 = vsyncadd [#allocation36], %s1049
          %s1052 = sshll.u32 [#allocation35], 4
          %s1053 = int_to_ptr.vmem [resolvable:$true] %s1052
          %1055 = dma.hbm_to_vmem [thread:$0]  %s43, 16, %s1053, [#allocation36]
        $region96: #{tpu_custom_call.1} parent=11 // pred_fallthru
          _
        // Predicated region
        $region97: #{tpu_custom_call.1} parent=11 // pred_check
          %p1056 = pneg %p581
        $region98: #{tpu_custom_call.1} parent=11 // pred_check_branch
          %1058 = sbr.rel (%p1056) target = $region100
        $region99: #{tpu_custom_call.1} parent=11 // pred_region
          %s1060 = ssub.s32 80, 80
          %1061 = vsyncadd [#allocation36], %s1060
          %s1062 = sshll.u32 [#allocation37], 4
          %s1063 = int_to_ptr.vmem [resolvable:$true] %s1062
          %1068 = dma.hbm_to_vmem [thread:$0]  %s45, 80, %s1063, [#allocation36], 16, 16, 1
        $region100: #{tpu_custom_call.1} parent=11 // pred_fallthru
          _
        // Predicated region
        $region101: #{tpu_custom_call.1} parent=11 // pred_check
          %p1069 = pneg %p602
        $region102: #{tpu_custom_call.1} parent=11 // pred_check_branch
          %1071 = sbr.rel (%p1069) target = $region104
        $region103: #{tpu_custom_call.1} parent=11 // pred_region
          %s1073 = ssub.s32 16, 16
          %1074 = vsyncadd [#allocation39], %s1073
          %s1076 = sshll.u32 [#allocation38], 4
          %s1077 = int_to_ptr.vmem [resolvable:$true] %s1076
          %1079 = dma.hbm_to_vmem [thread:$0]  %s47, 16, %s1077, [#allocation39]
        $region104: #{tpu_custom_call.1} parent=11 // pred_fallthru
          _
        // Predicated region
        $region105: #{tpu_custom_call.1} parent=11 // pred_check
          %p1080 = pneg %p623
        $region106: #{tpu_custom_call.1} parent=11 // pred_check_branch
          %1082 = sbr.rel (%p1080) target = $region108
        $region107: #{tpu_custom_call.1} parent=11 // pred_region
          %s1084 = ssub.s32 112, 112
          %1085 = vsyncadd [#allocation39], %s1084
          %s1086 = sshll.u32 [#allocation40], 4
          %s1087 = int_to_ptr.vmem [resolvable:$true] %s1086
          %1092 = dma.hbm_to_vmem [thread:$0]  %s49, 112, %s1087, [#allocation39], 16, 16, 1
        $region108: #{tpu_custom_call.1} parent=11 // pred_fallthru
          _
        // Predicated region
        $region109: #{tpu_custom_call.1} parent=11 // pred_check
          %p1093 = pneg %p644
        $region110: #{tpu_custom_call.1} parent=11 // pred_check_branch
          %1095 = sbr.rel (%p1093) target = $region112
        $region111: #{tpu_custom_call.1} parent=11 // pred_region
          %s1097 = ssub.s32 16, 16
          %1098 = vsyncadd [#allocation42], %s1097
          %s1100 = sshll.u32 [#allocation41], 4
          %s1101 = int_to_ptr.vmem [resolvable:$true] %s1100
          %1103 = dma.hbm_to_vmem [thread:$0]  %s51, 16, %s1101, [#allocation42]
        $region112: #{tpu_custom_call.1} parent=11 // pred_fallthru
          _
        // Predicated region
        $region113: #{tpu_custom_call.1} parent=11 // pred_check
          %p1104 = pneg %p665
        $region114: #{tpu_custom_call.1} parent=11 // pred_check_branch
          %1106 = sbr.rel (%p1104) target = $region116
        $region115: #{tpu_custom_call.1} parent=11 // pred_region
          %s1108 = ssub.s32 128, 128
          %1109 = vsyncadd [#allocation42], %s1108
          %s1110 = sshll.u32 [#allocation43], 4
          %s1111 = int_to_ptr.vmem [resolvable:$true] %s1110
          %1116 = dma.hbm_to_vmem [thread:$0]  %s53, 128, %s1111, [#allocation42], 64, 64, 4
        $region116: #{tpu_custom_call.1} parent=11 // pred_fallthru
          _
        // Predicated region
        $region117: #{tpu_custom_call.1} parent=11 // pred_check
          %p1117 = pneg %p686
        $region118: #{tpu_custom_call.1} parent=11 // pred_check_branch
          %1119 = sbr.rel (%p1117) target = $region120
        $region119: #{tpu_custom_call.1} parent=11 // pred_region
          %s1121 = ssub.s32 16, 16
          %1122 = vsyncadd [#allocation45], %s1121
          %s1124 = sshll.u32 [#allocation44], 4
          %s1125 = int_to_ptr.vmem [resolvable:$true] %s1124
          %1127 = dma.hbm_to_vmem [thread:$0]  %s55, 16, %s1125, [#allocation45]
        $region120: #{tpu_custom_call.1} parent=11 // pred_fallthru
          _
        // Predicated region
        $region121: #{tpu_custom_call.1} parent=11 // pred_check
          %p1128 = pneg %p707
        $region122: #{tpu_custom_call.1} parent=11 // pred_check_branch
          %1130 = sbr.rel (%p1128) target = $region124
        $region123: #{tpu_custom_call.1} parent=11 // pred_region
          %s1132 = ssub.s32 256, 256
          %1133 = vsyncadd [#allocation45], %s1132
          %s1134 = sshll.u32 [#allocation46], 4
          %s1135 = int_to_ptr.vmem [resolvable:$true] %s1134
          %1140 = dma.hbm_to_vmem [thread:$0]  %s57, 256, %s1135, [#allocation45], 64, 64, 4
        $region124: #{tpu_custom_call.1} parent=11 // pred_fallthru
          _
        // Predicated region
        $region125: #{tpu_custom_call.1} parent=11 // pred_check
          %p1141 = pneg %p728
        $region126: #{tpu_custom_call.1} parent=11 // pred_check_branch
          %1143 = sbr.rel (%p1141) target = $region128
        $region127: #{tpu_custom_call.1} parent=11 // pred_region
          %s1145 = ssub.s32 16, 16
          %1146 = vsyncadd [#allocation48], %s1145
          %s1148 = sshll.u32 [#allocation47], 4
          %s1149 = int_to_ptr.vmem [resolvable:$true] %s1148
          %1151 = dma.hbm_to_vmem [thread:$0]  %s59, 16, %s1149, [#allocation48]
        $region128: #{tpu_custom_call.1} parent=11 // pred_fallthru
          _
        // Predicated region
        $region129: #{tpu_custom_call.1} parent=11 // pred_check
          %p1152 = pneg %p749
        $region130: #{tpu_custom_call.1} parent=11 // pred_check_branch
          %1154 = sbr.rel (%p1152) target = $region132
        $region131: #{tpu_custom_call.1} parent=11 // pred_region
          %s1156 = ssub.s32 512, 512
          %1157 = vsyncadd [#allocation48], %s1156
          %s1158 = sshll.u32 [#allocation49], 4
          %s1159 = int_to_ptr.vmem [resolvable:$true] %s1158
          %1164 = dma.hbm_to_vmem [thread:$0]  %s61, 512, %s1159, [#allocation48], 64, 64, 4
        $region132: #{tpu_custom_call.1} parent=11 // pred_fallthru
          _
        // Predicated region
        $region133: #{tpu_custom_call.1} parent=11 // pred_check
          %p1165 = pneg %p770
        $region134: #{tpu_custom_call.1} parent=11 // pred_check_branch
          %1167 = sbr.rel (%p1165) target = $region136
        $region135: #{tpu_custom_call.1} parent=11 // pred_region
          %s1169 = ssub.s32 16, 16
          %1170 = vsyncadd [#allocation51], %s1169
          %s1172 = sshll.u32 [#allocation50], 4
          %s1173 = int_to_ptr.vmem [resolvable:$true] %s1172
          %1175 = dma.hbm_to_vmem [thread:$0]  %s63, 16, %s1173, [#allocation51]
        $region136: #{tpu_custom_call.1} parent=11 // pred_fallthru
          _
      $region12: #{tpu_custom_call.1} parent=5 // pred_fallthru
        _
      %p1176 = scmp.lt.s32.totalorder %s93, 2
      // Predicated region
      $region137: #{tpu_custom_call.1} parent=5 // pred_check
        %p1177 = pneg %p1176
      $region138: #{tpu_custom_call.1} parent=5 // pred_check_branch
        %1179 = sbr.rel (%p1177) target = $region140
      $region139: #{tpu_custom_call.1} parent=5 // pred_region
        // Predicated region
        $region141: #{tpu_custom_call.1} parent=139 // pred_check
          %p1180 = pneg %p113
        $region142: #{tpu_custom_call.1} parent=139 // pred_check_branch
          %1182 = sbr.rel (%p1180) target = $region144
        $region143: #{tpu_custom_call.1} parent=139 // pred_region
          %s1183 = sand.u32 %s103, 1
          %s1184 = scalar_lea.sflag [#allocation3], %s1183
          %s1185 = sand.u32 %s103, 1
          %s1186 = smul.addr %s1185, 8
          %s1187 = scalar_lea.vmem [#allocation2], %s1186
          %s1189 = ssub.s32 128, 128
          %1190 = vsyncadd %s1184, %s1189
          %s1191 = smul.addr %s93, 128
          %s1192 = scalar_lea.hbm %s1, %s1191
          %s1194 = sshll.u32 %s1187, 4
          %s1195 = int_to_ptr.vmem [resolvable:$true] %s1194
          %1197 = dma.hbm_to_vmem [thread:$0]  %s1192, 128, %s1195, %s1184
        $region144: #{tpu_custom_call.1} parent=139 // pred_fallthru
          _
      $region140: #{tpu_custom_call.1} parent=5 // pred_fallthru
        _
      %p1198 = scmp.le.s32.totalorder 1, %s93
      %p1199 = scmp.lt.s32.totalorder %s93, 3
      %p1200 = pnand %p1198, %p1199
      %p1201 = pneg %p1200
      // Predicated region
      $region145: #{tpu_custom_call.1} parent=5 // pred_check
        _
      $region146: #{tpu_custom_call.1} parent=5 // pred_check_branch
        %1203 = sbr.rel (%p1200) target = $region148
      $region147: #{tpu_custom_call.1} parent=5 // pred_region
        %s1204 = ssub.s32 %s93, 1
        %s1205 = sand.u32 %s106, 1
        %s1206 = scalar_lea.sflag [#allocation3], %s1205
        %s1207 = sand.u32 %s106, 1
        %s1208 = smul.addr %s1207, 8
        %s1209 = scalar_lea.vmem [#allocation2], %s1208
        // Predicated region
        $region149: #{tpu_custom_call.1} parent=147 // pred_check
          %p1210 = pneg %p119
        $region150: #{tpu_custom_call.1} parent=147 // pred_check_branch
          %1212 = sbr.rel (%p1210) target = $region152
        $region151: #{tpu_custom_call.1} parent=147 // pred_region
          %1213 = dma.done %s1206, 128
        $region152: #{tpu_custom_call.1} parent=147 // pred_fallthru
          _
        // Predicated region
        $region153: #{tpu_custom_call.1} parent=147 // pred_check
          %p1214 = pneg %p140
        $region154: #{tpu_custom_call.1} parent=147 // pred_check_branch
          %1216 = sbr.rel (%p1214) target = $region156
        $region155: #{tpu_custom_call.1} parent=147 // pred_region
          %1217 = dma.done [#allocation6], 256
        $region156: #{tpu_custom_call.1} parent=147 // pred_fallthru
          _
        // Predicated region
        $region157: #{tpu_custom_call.1} parent=147 // pred_check
          %p1218 = pneg %p161
        $region158: #{tpu_custom_call.1} parent=147 // pred_check_branch
          %1220 = sbr.rel (%p1218) target = $region160
        $region159: #{tpu_custom_call.1} parent=147 // pred_region
          %1221 = dma.done [#allocation6], 16
        $region160: #{tpu_custom_call.1} parent=147 // pred_fallthru
          _
        // Predicated region
        $region161: #{tpu_custom_call.1} parent=147 // pred_check
          %p1222 = pneg %p182
        $region162: #{tpu_custom_call.1} parent=147 // pred_check_branch
          %1224 = sbr.rel (%p1222) target = $region164
        $region163: #{tpu_custom_call.1} parent=147 // pred_region
          %1225 = dma.done [#allocation9], 16
        $region164: #{tpu_custom_call.1} parent=147 // pred_fallthru
          _
        // Predicated region
        $region165: #{tpu_custom_call.1} parent=147 // pred_check
          %p1226 = pneg %p203
        $region166: #{tpu_custom_call.1} parent=147 // pred_check_branch
          %1228 = sbr.rel (%p1226) target = $region168
        $region167: #{tpu_custom_call.1} parent=147 // pred_region
          %1229 = dma.done [#allocation9], 16
        $region168: #{tpu_custom_call.1} parent=147 // pred_fallthru
          _
        // Predicated region
        $region169: #{tpu_custom_call.1} parent=147 // pred_check
          %p1230 = pneg %p224
        $region170: #{tpu_custom_call.1} parent=147 // pred_check_branch
          %1232 = sbr.rel (%p1230) target = $region172
        $region171: #{tpu_custom_call.1} parent=147 // pred_region
          %1233 = dma.done [#allocation12], 16
        $region172: #{tpu_custom_call.1} parent=147 // pred_fallthru
          _
        // Predicated region
        $region173: #{tpu_custom_call.1} parent=147 // pred_check
          %p1234 = pneg %p245
        $region174: #{tpu_custom_call.1} parent=147 // pred_check_branch
          %1236 = sbr.rel (%p1234) target = $region176
        $region175: #{tpu_custom_call.1} parent=147 // pred_region
          %1237 = dma.done [#allocation12], 16
        $region176: #{tpu_custom_call.1} parent=147 // pred_fallthru
          _
        // Predicated region
        $region177: #{tpu_custom_call.1} parent=147 // pred_check
          %p1238 = pneg %p266
        $region178: #{tpu_custom_call.1} parent=147 // pred_check_branch
          %1240 = sbr.rel (%p1238) target = $region180
        $region179: #{tpu_custom_call.1} parent=147 // pred_region
          %1241 = dma.done [#allocation15], 16
        $region180: #{tpu_custom_call.1} parent=147 // pred_fallthru
          _
        // Predicated region
        $region181: #{tpu_custom_call.1} parent=147 // pred_check
          %p1242 = pneg %p287
        $region182: #{tpu_custom_call.1} parent=147 // pred_check_branch
          %1244 = sbr.rel (%p1242) target = $region184
        $region183: #{tpu_custom_call.1} parent=147 // pred_region
          %1245 = dma.done [#allocation15], 16
        $region184: #{tpu_custom_call.1} parent=147 // pred_fallthru
          _
        // Predicated region
        $region185: #{tpu_custom_call.1} parent=147 // pred_check
          %p1246 = pneg %p308
        $region186: #{tpu_custom_call.1} parent=147 // pred_check_branch
          %1248 = sbr.rel (%p1246) target = $region188
        $region187: #{tpu_custom_call.1} parent=147 // pred_region
          %1249 = dma.done [#allocation18], 16
        $region188: #{tpu_custom_call.1} parent=147 // pred_fallthru
          _
        // Predicated region
        $region189: #{tpu_custom_call.1} parent=147 // pred_check
          %p1250 = pneg %p329
        $region190: #{tpu_custom_call.1} parent=147 // pred_check_branch
          %1252 = sbr.rel (%p1250) target = $region192
        $region191: #{tpu_custom_call.1} parent=147 // pred_region
          %1253 = dma.done [#allocation18], 256
        $region192: #{tpu_custom_call.1} parent=147 // pred_fallthru
          _
        // Predicated region
        $region193: #{tpu_custom_call.1} parent=147 // pred_check
          %p1254 = pneg %p350
        $region194: #{tpu_custom_call.1} parent=147 // pred_check_branch
          %1256 = sbr.rel (%p1254) target = $region196
        $region195: #{tpu_custom_call.1} parent=147 // pred_region
          %1257 = dma.done [#allocation21], 16
        $region196: #{tpu_custom_call.1} parent=147 // pred_fallthru
          _
        // Predicated region
        $region197: #{tpu_custom_call.1} parent=147 // pred_check
          %p1258 = pneg %p371
        $region198: #{tpu_custom_call.1} parent=147 // pred_check_branch
          %1260 = sbr.rel (%p1258) target = $region200
        $region199: #{tpu_custom_call.1} parent=147 // pred_region
          %1261 = dma.done [#allocation21], 512
        $region200: #{tpu_custom_call.1} parent=147 // pred_fallthru
          _
        // Predicated region
        $region201: #{tpu_custom_call.1} parent=147 // pred_check
          %p1262 = pneg %p392
        $region202: #{tpu_custom_call.1} parent=147 // pred_check_branch
          %1264 = sbr.rel (%p1262) target = $region204
        $region203: #{tpu_custom_call.1} parent=147 // pred_region
          %1265 = dma.done [#allocation24], 16
        $region204: #{tpu_custom_call.1} parent=147 // pred_fallthru
          _
        // Predicated region
        $region205: #{tpu_custom_call.1} parent=147 // pred_check
          %p1266 = pneg %p413
        $region206: #{tpu_custom_call.1} parent=147 // pred_check_branch
          %1268 = sbr.rel (%p1266) target = $region208
        $region207: #{tpu_custom_call.1} parent=147 // pred_region
          %1269 = dma.done [#allocation24], 256
        $region208: #{tpu_custom_call.1} parent=147 // pred_fallthru
          _
        // Predicated region
        $region209: #{tpu_custom_call.1} parent=147 // pred_check
          %p1270 = pneg %p434
        $region210: #{tpu_custom_call.1} parent=147 // pred_check_branch
          %1272 = sbr.rel (%p1270) target = $region212
        $region211: #{tpu_custom_call.1} parent=147 // pred_region
          %1273 = dma.done [#allocation27], 16
        $region212: #{tpu_custom_call.1} parent=147 // pred_fallthru
          _
        // Predicated region
        $region213: #{tpu_custom_call.1} parent=147 // pred_check
          %p1274 = pneg %p455
        $region214: #{tpu_custom_call.1} parent=147 // pred_check_branch
          %1276 = sbr.rel (%p1274) target = $region216
        $region215: #{tpu_custom_call.1} parent=147 // pred_region
          %1277 = dma.done [#allocation27], 256
        $region216: #{tpu_custom_call.1} parent=147 // pred_fallthru
          _
        // Predicated region
        $region217: #{tpu_custom_call.1} parent=147 // pred_check
          %p1278 = pneg %p476
        $region218: #{tpu_custom_call.1} parent=147 // pred_check_branch
          %1280 = sbr.rel (%p1278) target = $region220
        $region219: #{tpu_custom_call.1} parent=147 // pred_region
          %1281 = dma.done [#allocation30], 16
        $region220: #{tpu_custom_call.1} parent=147 // pred_fallthru
          _
        // Predicated region
        $region221: #{tpu_custom_call.1} parent=147 // pred_check
          %p1282 = pneg %p497
        $region222: #{tpu_custom_call.1} parent=147 // pred_check_branch
          %1284 = sbr.rel (%p1282) target = $region224
        $region223: #{tpu_custom_call.1} parent=147 // pred_region
          %1285 = dma.done [#allocation30], 256
        $region224: #{tpu_custom_call.1} parent=147 // pred_fallthru
          _
        // Predicated region
        $region225: #{tpu_custom_call.1} parent=147 // pred_check
          %p1286 = pneg %p518
        $region226: #{tpu_custom_call.1} parent=147 // pred_check_branch
          %1288 = sbr.rel (%p1286) target = $region228
        $region227: #{tpu_custom_call.1} parent=147 // pred_region
          %1289 = dma.done [#allocation33], 16
        $region228: #{tpu_custom_call.1} parent=147 // pred_fallthru
          _
        // Predicated region
        $region229: #{tpu_custom_call.1} parent=147 // pred_check
          %p1290 = pneg %p539
        $region230: #{tpu_custom_call.1} parent=147 // pred_check_branch
          %1292 = sbr.rel (%p1290) target = $region232
        $region231: #{tpu_custom_call.1} parent=147 // pred_region
          %1293 = dma.done [#allocation33], 48
        $region232: #{tpu_custom_call.1} parent=147 // pred_fallthru
          _
        // Predicated region
        $region233: #{tpu_custom_call.1} parent=147 // pred_check
          %p1294 = pneg %p560
        $region234: #{tpu_custom_call.1} parent=147 // pred_check_branch
          %1296 = sbr.rel (%p1294) target = $region236
        $region235: #{tpu_custom_call.1} parent=147 // pred_region
          %1297 = dma.done [#allocation36], 16
        $region236: #{tpu_custom_call.1} parent=147 // pred_fallthru
          _
        // Predicated region
        $region237: #{tpu_custom_call.1} parent=147 // pred_check
          %p1298 = pneg %p581
        $region238: #{tpu_custom_call.1} parent=147 // pred_check_branch
          %1300 = sbr.rel (%p1298) target = $region240
        $region239: #{tpu_custom_call.1} parent=147 // pred_region
          %1301 = dma.done [#allocation36], 80
        $region240: #{tpu_custom_call.1} parent=147 // pred_fallthru
          _
        // Predicated region
        $region241: #{tpu_custom_call.1} parent=147 // pred_check
          %p1302 = pneg %p602
        $region242: #{tpu_custom_call.1} parent=147 // pred_check_branch
          %1304 = sbr.rel (%p1302) target = $region244
        $region243: #{tpu_custom_call.1} parent=147 // pred_region
          %1305 = dma.done [#allocation39], 16
        $region244: #{tpu_custom_call.1} parent=147 // pred_fallthru
          _
        // Predicated region
        $region245: #{tpu_custom_call.1} parent=147 // pred_check
          %p1306 = pneg %p623
        $region246: #{tpu_custom_call.1} parent=147 // pred_check_branch
          %1308 = sbr.rel (%p1306) target = $region248
        $region247: #{tpu_custom_call.1} parent=147 // pred_region
          %1309 = dma.done [#allocation39], 112
        $region248: #{tpu_custom_call.1} parent=147 // pred_fallthru
          _
        // Predicated region
        $region249: #{tpu_custom_call.1} parent=147 // pred_check
          %p1310 = pneg %p644
        $region250: #{tpu_custom_call.1} parent=147 // pred_check_branch
          %1312 = sbr.rel (%p1310) target = $region252
        $region251: #{tpu_custom_call.1} parent=147 // pred_region
          %1313 = dma.done [#allocation42], 16
        $region252: #{tpu_custom_call.1} parent=147 // pred_fallthru
          _
        // Predicated region
        $region253: #{tpu_custom_call.1} parent=147 // pred_check
          %p1314 = pneg %p665
        $region254: #{tpu_custom_call.1} parent=147 // pred_check_branch
          %1316 = sbr.rel (%p1314) target = $region256
        $region255: #{tpu_custom_call.1} parent=147 // pred_region
          %1317 = dma.done [#allocation42], 128
        $region256: #{tpu_custom_call.1} parent=147 // pred_fallthru
          _
        // Predicated region
        $region257: #{tpu_custom_call.1} parent=147 // pred_check
          %p1318 = pneg %p686
        $region258: #{tpu_custom_call.1} parent=147 // pred_check_branch
          %1320 = sbr.rel (%p1318) target = $region260
        $region259: #{tpu_custom_call.1} parent=147 // pred_region
          %1321 = dma.done [#allocation45], 16
        $region260: #{tpu_custom_call.1} parent=147 // pred_fallthru
          _
        // Predicated region
        $region261: #{tpu_custom_call.1} parent=147 // pred_check
          %p1322 = pneg %p707
        $region262: #{tpu_custom_call.1} parent=147 // pred_check_branch
          %1324 = sbr.rel (%p1322) target = $region264
        $region263: #{tpu_custom_call.1} parent=147 // pred_region
          %1325 = dma.done [#allocation45], 256
        $region264: #{tpu_custom_call.1} parent=147 // pred_fallthru
          _
        // Predicated region
        $region265: #{tpu_custom_call.1} parent=147 // pred_check
          %p1326 = pneg %p728
        $region266: #{tpu_custom_call.1} parent=147 // pred_check_branch
          %1328 = sbr.rel (%p1326) target = $region268
        $region267: #{tpu_custom_call.1} parent=147 // pred_region
          %1329 = dma.done [#allocation48], 16
        $region268: #{tpu_custom_call.1} parent=147 // pred_fallthru
          _
        // Predicated region
        $region269: #{tpu_custom_call.1} parent=147 // pred_check
          %p1330 = pneg %p749
        $region270: #{tpu_custom_call.1} parent=147 // pred_check_branch
          %1332 = sbr.rel (%p1330) target = $region272
        $region271: #{tpu_custom_call.1} parent=147 // pred_region
          %1333 = dma.done [#allocation48], 512
        $region272: #{tpu_custom_call.1} parent=147 // pred_fallthru
          _
        // Predicated region
        $region273: #{tpu_custom_call.1} parent=147 // pred_check
          %p1334 = pneg %p770
        $region274: #{tpu_custom_call.1} parent=147 // pred_check_branch
          %1336 = sbr.rel (%p1334) target = $region276
        $region275: #{tpu_custom_call.1} parent=147 // pred_region
          %1337 = dma.done [#allocation51], 16
        $region276: #{tpu_custom_call.1} parent=147 // pred_fallthru
          _
        %s1338 = sand.u32 %s106, 1
        %s1339 = scalar_lea.sflag [#allocation3], %s1338
        %s1340 = sand.u32 %s106, 1
        %s1341 = smul.addr %s1340, 8
        %s1342 = scalar_lea.vmem [#allocation2], %s1341
        %p1343 = pneg %p119
        %p1344 = pneg %p116
        %p1345 = pneg %p140
        %p1346 = pneg %p137
        %p1347 = pneg %p161
        %p1348 = pneg %p158
        %p1349 = pneg %p182
        %p1350 = pneg %p179
        %p1351 = pneg %p203
        %p1352 = pneg %p200
        %p1353 = pneg %p224
        %p1354 = pneg %p221
        %p1355 = pneg %p245
        %p1356 = pneg %p242
        %p1357 = pneg %p266
        %p1358 = pneg %p263
        %p1359 = pneg %p287
        %p1360 = pneg %p284
        %p1361 = pneg %p308
        %p1362 = pneg %p305
        %p1363 = pneg %p329
        %p1364 = pneg %p326
        %p1365 = pneg %p350
        %p1366 = pneg %p347
        %p1367 = pneg %p371
        %p1368 = pneg %p368
        %p1369 = pneg %p392
        %p1370 = pneg %p389
        %p1371 = pneg %p413
        %p1372 = pneg %p410
        %p1373 = pneg %p434
        %p1374 = pneg %p431
        %p1375 = pneg %p455
        %p1376 = pneg %p452
        %p1377 = pneg %p476
        %p1378 = pneg %p473
        %p1379 = pneg %p497
        %p1380 = pneg %p494
        %p1381 = pneg %p518
        %p1382 = pneg %p515
        %p1383 = pneg %p539
        %p1384 = pneg %p536
        %p1385 = pneg %p560
        %p1386 = pneg %p557
        %p1387 = pneg %p581
        %p1388 = pneg %p578
        %p1389 = pneg %p602
        %p1390 = pneg %p599
        %p1391 = pneg %p623
        %p1392 = pneg %p620
        %p1393 = pneg %p644
        %p1394 = pneg %p641
        %p1395 = pneg %p665
        %p1396 = pneg %p662
        %p1397 = pneg %p686
        %p1398 = pneg %p683
        %p1399 = pneg %p707
        %p1400 = pneg %p704
        %p1401 = pneg %p728
        %p1402 = pneg %p725
        %p1403 = pneg %p749
        %p1404 = pneg %p746
        %p1405 = pneg %p770
        %p1406 = pneg %p767
        %p1407 = pneg %p796
        %p1408 = pneg %p793
        %s1409 = sand.u32 %s783, 1
        %s1410 = scalar_lea.sflag [#allocation4], %s1409
        %s1411 = sand.u32 %s783, 1
        %s1412 = smul.addr %s1411, 8
        %s1413 = scalar_lea.vmem [#allocation52], %s1412
        %v1415 = vld [vmem:[%s1209] sm:$0xff]
        %vm1416 = vcmask 261120
        %v1417 = vsel %vm1416, %v1415, 0.0
        %1418 = vadd.xlane.f32.xlu0 %v1417
        %v1419 = vpop.xlane.xlu0 %1418
        %v1420 = vrcp.pop 32.0
        %v1421 = vmul.f32 %v1419, %v1420
        %v1422 = vsub.f32 %v1415, %v1421
        %v1423 = vmul.f32 %v1422, %v1422
        %v1424 = vsel %vm1416, %v1423, 0.0
        %1425 = vadd.xlane.f32.xlu0 %v1424
        %v1426 = vpop.xlane.xlu0 %1425
        %v1427 = vmul.f32 %v1426, %v1420
        %v1428 = vadd.f32 %v1427, 1e-05
        %v1429 = vrsqrt.pop %v1428
        %v1430 = vmul.f32 %v1422, %v1429
        %v1431 = vld [vmem:[#allocation7] sm:$0x1]
        %v1433 = vlaneseq
        %v1434 = vshrl.u32 %v1433, 7
        %v1435 = vsub.s32 0, %v1434
        %v1436 = vrot.slane %v1431, %v1435
        %v1438 = vmul.f32 %v1430, %v1436
        %v1439 = vld [vmem:[#allocation8] sm:$0x1]
        %v1441 = vlaneseq
        %v1442 = vshrl.u32 %v1441, 7
        %v1443 = vsub.s32 0, %v1442
        %v1444 = vrot.slane %v1439, %v1443
        %v1446 = vadd.f32 %v1438, %v1444
        %v1447 = vld [vmem:[#allocation19] sm:$0xf]
        %v1448 = vld [vmem:[#allocation19 + $0x4] sm:$0xf]
        %v1449 = vld [vmem:[#allocation19 + $0x8] sm:$0xf]
        %v1450 = vld [vmem:[#allocation19 + $0xc] sm:$0xf]
        %v1451 = vpack.c.bf16 %v1446, %v1446
        %v1452 = vld [vmem:[#allocation20] sm:$0x1]
        %v1454 = vlaneseq
        %v1455 = vshrl.u32 %v1454, 7
        %v1456 = vsub.s32 0, %v1455
        %v1457 = vrot.slane %v1452, %v1456
        %v1463 = vunpack.c.l.b16 %v1447
        %v1464 = vunpack.c.l.b16 %v1448
        %v1465 = vunpack.c.l.b16 %v1449
        %v1466 = vunpack.c.l.b16 %v1450
        %v1467 = vpack.c.b16 %v1464, %v1463
        %v1468 = vpack.c.b16 %v1466, %v1465
        %v1472 = vsel %vm1416, %v1451, 0
        %1474 = vmatprep.subr.bf16.mxu0 0
        %1475 = vmatpush1.bf16.msra.mxu0 %v1467
        %1476 = vmatprep.subr.bf16.mxu0 0
        %1477 = vmatpush1.bf16.msra.mxu0 %v1468
        %1478 = vmatprep.subr.bf16.mxu0 0
        %1479 = vmatpush1.bf16.msra.mxu0 0
        %1480 = vmatprep.subr.bf16.mxu0 0
        %1481 = vmatpush1.bf16.msra.mxu0 0
        %1482 = vmatprep.subr.bf16.mxu0 0
        %1483 = vmatpush1.bf16.msra.mxu0 0
        %1484 = vmatprep.subr.bf16.mxu0 0
        %1485 = vmatpush1.bf16.msra.mxu0 0
        %1486 = vmatprep.subr.bf16.mxu0 0
        %1487 = vmatpush1.bf16.msra.mxu0 0
        %1488 = vmatprep.subr.bf16.mxu0 0
        %1489 = vmatpush1.bf16.msra.mxu0 0
        %1490 = vmatprep.subr.bf16.mxu0 0
        %1491 = vmatpush1.bf16.msra.mxu0 0
        %1492 = vmatprep.subr.bf16.mxu0 0
        %1493 = vmatpush1.bf16.msra.mxu0 0
        %1494 = vmatprep.subr.bf16.mxu0 0
        %1495 = vmatpush1.bf16.msra.mxu0 0
        %1496 = vmatprep.subr.bf16.mxu0 0
        %1497 = vmatpush1.bf16.msra.mxu0 0
        %1498 = vmatprep.subr.bf16.mxu0 0
        %1499 = vmatpush1.bf16.msra.mxu0 0
        %1500 = vmatprep.subr.bf16.mxu0 0
        %1501 = vmatpush1.bf16.msra.mxu0 0
        %1502 = vmatprep.subr.bf16.mxu0 0
        %1503 = vmatpush1.bf16.msra.mxu0 0
        %1504 = vmatprep.subr.bf16.mxu0 0
        %1505 = vmatpush1.bf16.msra.mxu0 0
        %1506 = vmatprep.mubr.bf16.mxu0 0
        %1507 = vmatmul.mubr.bf16.gmra.mrb[0].mxu0 %v1472
        %v1508 = vpop.f32.mrb[0].mxu0
        %v1509 = vadd.f32 %v1457, %v1508
        %v1510 = vpop.f32.mrb[0].mxu0
        %v1511 = vpop.f32.mrb[0].mxu0
        %v1512 = vpop.f32.mrb[0].mxu0
        %1513 = vdwg.mxu0
        %v1514 = vmax.f32 %v1509, 0.0
        %v1515 = vld [vmem:[#allocation22] sm:$0xf]
        %v1516 = vld [vmem:[#allocation22 + $0x4] sm:$0xf]
        %v1517 = vld [vmem:[#allocation22 + $0x8] sm:$0xf]
        %v1518 = vld [vmem:[#allocation22 + $0xc] sm:$0xf]
        %v1519 = vld [vmem:[#allocation22 + $0x10] sm:$0xf]
        %v1520 = vld [vmem:[#allocation22 + $0x14] sm:$0xf]
        %v1521 = vld [vmem:[#allocation22 + $0x18] sm:$0xf]
        %v1522 = vld [vmem:[#allocation22 + $0x1c] sm:$0xf]
        %v1523 = vpack.c.bf16 %v1514, %v1514
        %v1524 = vld [vmem:[#allocation23] sm:$0x1]
        %v1526 = vlaneseq
        %v1527 = vshrl.u32 %v1526, 7
        %v1528 = vsub.s32 0, %v1527
        %v1529 = vrot.slane %v1524, %v1528
        %v1539 = vunpack.c.l.b16 %v1515
        %v1540 = vunpack.c.l.b16 %v1516
        %v1541 = vunpack.c.l.b16 %v1517
        %v1542 = vunpack.c.l.b16 %v1518
        %v1543 = vunpack.c.l.b16 %v1519
        %v1544 = vunpack.c.l.b16 %v1520
        %v1545 = vunpack.c.l.b16 %v1521
        %v1546 = vunpack.c.l.b16 %v1522
        %v1547 = vpack.c.b16 %v1540, %v1539
        %v1548 = vpack.c.b16 %v1542, %v1541
        %v1549 = vpack.c.b16 %v1544, %v1543
        %v1550 = vpack.c.b16 %v1546, %v1545
        %vm1555 = vcmask 523264
        %v1557 = vsel %vm1555, %v1523, 0
        %1559 = vmatprep.subr.bf16.mxu0 0
        %1560 = vmatpush1.bf16.msra.mxu0 %v1547
        %1561 = vmatprep.subr.bf16.mxu0 0
        %1562 = vmatpush1.bf16.msra.mxu0 %v1548
        %1563 = vmatprep.subr.bf16.mxu0 0
        %1564 = vmatpush1.bf16.msra.mxu0 %v1549
        %1565 = vmatprep.subr.bf16.mxu0 0
        %1566 = vmatpush1.bf16.msra.mxu0 %v1550
        %1567 = vmatprep.subr.bf16.mxu0 0
        %1568 = vmatpush1.bf16.msra.mxu0 0
        %1569 = vmatprep.subr.bf16.mxu0 0
        %1570 = vmatpush1.bf16.msra.mxu0 0
        %1571 = vmatprep.subr.bf16.mxu0 0
        %1572 = vmatpush1.bf16.msra.mxu0 0
        %1573 = vmatprep.subr.bf16.mxu0 0
        %1574 = vmatpush1.bf16.msra.mxu0 0
        %1575 = vmatprep.subr.bf16.mxu0 0
        %1576 = vmatpush1.bf16.msra.mxu0 0
        %1577 = vmatprep.subr.bf16.mxu0 0
        %1578 = vmatpush1.bf16.msra.mxu0 0
        %1579 = vmatprep.subr.bf16.mxu0 0
        %1580 = vmatpush1.bf16.msra.mxu0 0
        %1581 = vmatprep.subr.bf16.mxu0 0
        %1582 = vmatpush1.bf16.msra.mxu0 0
        %1583 = vmatprep.subr.bf16.mxu0 0
        %1584 = vmatpush1.bf16.msra.mxu0 0
        %1585 = vmatprep.subr.bf16.mxu0 0
        %1586 = vmatpush1.bf16.msra.mxu0 0
        %1587 = vmatprep.subr.bf16.mxu0 0
        %1588 = vmatpush1.bf16.msra.mxu0 0
        %1589 = vmatprep.subr.bf16.mxu0 0
        %1590 = vmatpush1.bf16.msra.mxu0 0
        %1591 = vmatprep.mubr.bf16.mxu0 0
        %1592 = vmatmul.mubr.bf16.gmra.mrb[0].mxu0 %v1557
        %v1593 = vpop.f32.mrb[0].mxu0
        %v1594 = vadd.f32 %v1529, %v1593
        %v1595 = vpop.f32.mrb[0].mxu0
        %v1596 = vpop.f32.mrb[0].mxu0
        %v1597 = vpop.f32.mrb[0].mxu0
        %1598 = vdwg.mxu0
        %v1599 = vmul.f32 %v1594, 0.5
        %v1600 = vadd.f32 %v1415, %v1599
        %v1601 = vsel %vm1416, %v1600, 0.0
        %1602 = vadd.xlane.f32.xlu0 %v1601
        %v1603 = vpop.xlane.xlu0 %1602
        %v1604 = vmul.f32 %v1603, %v1420
        %v1605 = vsub.f32 %v1600, %v1604
        %v1606 = vmul.f32 %v1605, %v1605
        %v1607 = vsel %vm1416, %v1606, 0.0
        %1608 = vadd.xlane.f32.xlu0 %v1607
        %v1609 = vpop.xlane.xlu0 %1608
        %v1610 = vmul.f32 %v1609, %v1420
        %v1611 = vadd.f32 %v1610, 1e-05
        %v1612 = vrsqrt.pop %v1611
        %v1613 = vmul.f32 %v1605, %v1612
        %v1614 = vld [vmem:[#allocation10] sm:$0x1]
        %v1616 = vlaneseq
        %v1617 = vshrl.u32 %v1616, 7
        %v1618 = vsub.s32 0, %v1617
        %v1619 = vrot.slane %v1614, %v1618
        %v1621 = vmul.f32 %v1613, %v1619
        %v1622 = vld [vmem:[#allocation11] sm:$0x1]
        %v1624 = vlaneseq
        %v1625 = vshrl.u32 %v1624, 7
        %v1626 = vsub.s32 0, %v1625
        %v1627 = vrot.slane %v1622, %v1626
        %v1629 = vadd.f32 %v1621, %v1627
        %v1630 = vld [vmem:[#allocation25] sm:$0xf]
        %v1631 = vld [vmem:[#allocation25 + $0x4] sm:$0xf]
        %v1632 = vld [vmem:[#allocation25 + $0x8] sm:$0xf]
        %v1633 = vld [vmem:[#allocation25 + $0xc] sm:$0xf]
        %v1634 = vpack.c.bf16 %v1629, %v1629
        %v1635 = vld [vmem:[#allocation26] sm:$0x1]
        %v1637 = vlaneseq
        %v1638 = vshrl.u32 %v1637, 7
        %v1639 = vsub.s32 0, %v1638
        %v1640 = vrot.slane %v1635, %v1639
        %v1646 = vunpack.c.l.b16 %v1630
        %v1647 = vunpack.c.l.b16 %v1631
        %v1648 = vunpack.c.l.b16 %v1632
        %v1649 = vunpack.c.l.b16 %v1633
        %v1650 = vpack.c.b16 %v1647, %v1646
        %v1651 = vpack.c.b16 %v1649, %v1648
        %v1655 = vsel %vm1416, %v1634, 0
        %1657 = vmatprep.subr.bf16.mxu0 0
        %1658 = vmatpush1.bf16.msra.mxu0 %v1650
        %1659 = vmatprep.subr.bf16.mxu0 0
        %1660 = vmatpush1.bf16.msra.mxu0 %v1651
        %1661 = vmatprep.subr.bf16.mxu0 0
        %1662 = vmatpush1.bf16.msra.mxu0 0
        %1663 = vmatprep.subr.bf16.mxu0 0
        %1664 = vmatpush1.bf16.msra.mxu0 0
        %1665 = vmatprep.subr.bf16.mxu0 0
        %1666 = vmatpush1.bf16.msra.mxu0 0
        %1667 = vmatprep.subr.bf16.mxu0 0
        %1668 = vmatpush1.bf16.msra.mxu0 0
        %1669 = vmatprep.subr.bf16.mxu0 0
        %1670 = vmatpush1.bf16.msra.mxu0 0
        %1671 = vmatprep.subr.bf16.mxu0 0
        %1672 = vmatpush1.bf16.msra.mxu0 0
        %1673 = vmatprep.subr.bf16.mxu0 0
        %1674 = vmatpush1.bf16.msra.mxu0 0
        %1675 = vmatprep.subr.bf16.mxu0 0
        %1676 = vmatpush1.bf16.msra.mxu0 0
        %1677 = vmatprep.subr.bf16.mxu0 0
        %1678 = vmatpush1.bf16.msra.mxu0 0
        %1679 = vmatprep.subr.bf16.mxu0 0
        %1680 = vmatpush1.bf16.msra.mxu0 0
        %1681 = vmatprep.subr.bf16.mxu0 0
        %1682 = vmatpush1.bf16.msra.mxu0 0
        %1683 = vmatprep.subr.bf16.mxu0 0
        %1684 = vmatpush1.bf16.msra.mxu0 0
        %1685 = vmatprep.subr.bf16.mxu0 0
        %1686 = vmatpush1.bf16.msra.mxu0 0
        %1687 = vmatprep.subr.bf16.mxu0 0
        %1688 = vmatpush1.bf16.msra.mxu0 0
        %1689 = vmatprep.mubr.bf16.mxu0 0
        %1690 = vmatmul.mubr.bf16.gmra.mrb[0].mxu0 %v1655
        %v1691 = vpop.f32.mrb[0].mxu0
        %v1692 = vadd.f32 %v1640, %v1691
        %v1693 = vpop.f32.mrb[0].mxu0
        %v1694 = vpop.f32.mrb[0].mxu0
        %v1695 = vpop.f32.mrb[0].mxu0
        %1696 = vdwg.mxu0
        %v1697 = vpack.c.bf16 %v1692, %v1692
        %v1698 = vld [vmem:[#allocation5] sm:$0xf]
        %v1699 = vld [vmem:[#allocation5 + $0x4] sm:$0xf]
        %v1700 = vld [vmem:[#allocation5 + $0x8] sm:$0xf]
        %v1701 = vld [vmem:[#allocation5 + $0xc] sm:$0xf]
        %v1702 = vunpack.c.l.bf16 %v1698
        %1704 = vrot.lane.b32.xlu0 %v1697, 96
        %v1705 = vpop.permute.xlu0 %1704
        %vm1706 = vcmask 64512
        %v1708 = vsel %vm1706, %v1697, 0
        %v1711 = vsel %vm1706, %v1705, 0
        %1713 = vmatprep.subr.bf16.mxu0 0
        %1714 = vmatpush1.bf16.xpose.msra.mxu0 %v1711
        %1715 = vmatprep.subr.bf16.mxu0 0
        %1716 = vmatpush1.bf16.xpose.msra.mxu0 0
        %1717 = vmatprep.subr.bf16.mxu0 0
        %1718 = vmatpush1.bf16.xpose.msra.mxu0 0
        %1719 = vmatprep.subr.bf16.mxu0 0
        %1720 = vmatpush1.bf16.xpose.msra.mxu0 0
        %1721 = vmatprep.subr.bf16.mxu0 0
        %1722 = vmatpush1.bf16.xpose.msra.mxu0 0
        %1723 = vmatprep.subr.bf16.mxu0 0
        %1724 = vmatpush1.bf16.xpose.msra.mxu0 0
        %1725 = vmatprep.subr.bf16.mxu0 0
        %1726 = vmatpush1.bf16.xpose.msra.mxu0 0
        %1727 = vmatprep.subr.bf16.mxu0 0
        %1728 = vmatpush1.bf16.xpose.msra.mxu0 0
        %1729 = vmatprep.subr.bf16.mxu0 0
        %1730 = vmatpush1.bf16.xpose.msra.mxu0 0
        %1731 = vmatprep.subr.bf16.mxu0 0
        %1732 = vmatpush1.bf16.xpose.msra.mxu0 0
        %1733 = vmatprep.subr.bf16.mxu0 0
        %1734 = vmatpush1.bf16.xpose.msra.mxu0 0
        %1735 = vmatprep.subr.bf16.mxu0 0
        %1736 = vmatpush1.bf16.xpose.msra.mxu0 0
        %1737 = vmatprep.subr.bf16.mxu0 0
        %1738 = vmatpush1.bf16.xpose.msra.mxu0 0
        %1739 = vmatprep.subr.bf16.mxu0 0
        %1740 = vmatpush1.bf16.xpose.msra.mxu0 0
        %1741 = vmatprep.subr.bf16.mxu0 0
        %1742 = vmatpush1.bf16.xpose.msra.mxu0 0
        %1743 = vmatprep.subr.bf16.mxu0 0
        %1744 = vmatpush1.bf16.xpose.msra.mxu0 0
        %1745 = vmatprep.mubr.bf16.mxu0 0
        %1746 = vmatmul.mubr.bf16.gmra.mrb[0].mxu0 %v1708
        %v1747 = vpop.f32.mrb[0].mxu0
        %v1748 = vadd.f32 %v1702, %v1747
        %v1749 = vpop.f32.mrb[0].mxu0
        %v1750 = vpop.f32.mrb[0].mxu0
        %v1751 = vpop.f32.mrb[0].mxu0
        %1752 = vdwg.mxu0
        %v1753 = vsel %vm1706, %v1748, -inf
        %1754 = vmax.xlane.f32.xlu0 %v1753
        %v1755 = vpop.xlane.xlu0 %1754
        %v1756 = vsub.f32 %v1748, %v1755
        %v1757 = vmul.f32 %v1756, 1.442695
        %v1758 = vpow.pop %v1757
        %v1759 = vsel %vm1706, %v1758, 0.0
        %1760 = vadd.xlane.f32.xlu0 %v1759
        %v1761 = vpop.xlane.xlu0 %1760
        %v1762 = vpack.c.bf16 %v1758, %v1758
        %1763 = vrot.lane.b32.xlu0 %v1697, 64
        %v1764 = vpop.permute.xlu0 %1763
        %v1766 = vsel %vm1706, %v1762, 0
        %vm1768 = vcmask 1043456
        %v1770 = vsel %vm1768, %v1764, 0
        %1772 = vmatprep.subr.bf16.mxu0 0
        %1773 = vmatpush1.bf16.msra.mxu0 %v1770
        %1774 = vmatprep.subr.bf16.mxu0 0
        %1775 = vmatpush1.bf16.msra.mxu0 0
        %1776 = vmatprep.subr.bf16.mxu0 0
        %1777 = vmatpush1.bf16.msra.mxu0 0
        %1778 = vmatprep.subr.bf16.mxu0 0
        %1779 = vmatpush1.bf16.msra.mxu0 0
        %1780 = vmatprep.subr.bf16.mxu0 0
        %1781 = vmatpush1.bf16.msra.mxu0 0
        %1782 = vmatprep.subr.bf16.mxu0 0
        %1783 = vmatpush1.bf16.msra.mxu0 0
        %1784 = vmatprep.subr.bf16.mxu0 0
        %1785 = vmatpush1.bf16.msra.mxu0 0
        %1786 = vmatprep.subr.bf16.mxu0 0
        %1787 = vmatpush1.bf16.msra.mxu0 0
        %1788 = vmatprep.subr.bf16.mxu0 0
        %1789 = vmatpush1.bf16.msra.mxu0 0
        %1790 = vmatprep.subr.bf16.mxu0 0
        %1791 = vmatpush1.bf16.msra.mxu0 0
        %1792 = vmatprep.subr.bf16.mxu0 0
        %1793 = vmatpush1.bf16.msra.mxu0 0
        %1794 = vmatprep.subr.bf16.mxu0 0
        %1795 = vmatpush1.bf16.msra.mxu0 0
        %1796 = vmatprep.subr.bf16.mxu0 0
        %1797 = vmatpush1.bf16.msra.mxu0 0
        %1798 = vmatprep.subr.bf16.mxu0 0
        %1799 = vmatpush1.bf16.msra.mxu0 0
        %1800 = vmatprep.subr.bf16.mxu0 0
        %1801 = vmatpush1.bf16.msra.mxu0 0
        %1802 = vmatprep.subr.bf16.mxu0 0
        %1803 = vmatpush1.bf16.msra.mxu0 0
        %1804 = vmatprep.mubr.bf16.mxu0 0
        %1805 = vmatmul.mubr.bf16.gmra.mrb[0].mxu0 %v1766
        %v1806 = vpop.f32.mrb[0].mxu0
        %v1807 = vadd.f32 0.0, %v1806
        %v1808 = vpop.f32.mrb[0].mxu0
        %v1809 = vpop.f32.mrb[0].mxu0
        %v1810 = vpop.f32.mrb[0].mxu0
        %1811 = vdwg.mxu0
        %v1812 = vrcp.pop %v1761
        %v1813 = vmul.f32 %v1807, %v1812
        %v1814 = vpack.c.bf16 %v1813, %v1813
        %v1815 = vunpack.c.l.bf16 %v1699
        %1816 = vrot.lane.b32.xlu0 %v1697, 120
        %v1817 = vpop.permute.xlu0 %1816
        %1818 = vrot.lane.b32.xlu0 %v1697, 88
        %v1819 = vpop.permute.xlu0 %1818
        %v1821 = vsel %vm1706, %v1817, 0
        %v1824 = vsel %vm1706, %v1819, 0
        %1826 = vmatprep.subr.bf16.mxu0 0
        %1827 = vmatpush1.bf16.xpose.msra.mxu0 %v1824
        %1828 = vmatprep.subr.bf16.mxu0 0
        %1829 = vmatpush1.bf16.xpose.msra.mxu0 0
        %1830 = vmatprep.subr.bf16.mxu0 0
        %1831 = vmatpush1.bf16.xpose.msra.mxu0 0
        %1832 = vmatprep.subr.bf16.mxu0 0
        %1833 = vmatpush1.bf16.xpose.msra.mxu0 0
        %1834 = vmatprep.subr.bf16.mxu0 0
        %1835 = vmatpush1.bf16.xpose.msra.mxu0 0
        %1836 = vmatprep.subr.bf16.mxu0 0
        %1837 = vmatpush1.bf16.xpose.msra.mxu0 0
        %1838 = vmatprep.subr.bf16.mxu0 0
        %1839 = vmatpush1.bf16.xpose.msra.mxu0 0
        %1840 = vmatprep.subr.bf16.mxu0 0
        %1841 = vmatpush1.bf16.xpose.msra.mxu0 0
        %1842 = vmatprep.subr.bf16.mxu0 0
        %1843 = vmatpush1.bf16.xpose.msra.mxu0 0
        %1844 = vmatprep.subr.bf16.mxu0 0
        %1845 = vmatpush1.bf16.xpose.msra.mxu0 0
        %1846 = vmatprep.subr.bf16.mxu0 0
        %1847 = vmatpush1.bf16.xpose.msra.mxu0 0
        %1848 = vmatprep.subr.bf16.mxu0 0
        %1849 = vmatpush1.bf16.xpose.msra.mxu0 0
        %1850 = vmatprep.subr.bf16.mxu0 0
        %1851 = vmatpush1.bf16.xpose.msra.mxu0 0
        %1852 = vmatprep.subr.bf16.mxu0 0
        %1853 = vmatpush1.bf16.xpose.msra.mxu0 0
        %1854 = vmatprep.subr.bf16.mxu0 0
        %1855 = vmatpush1.bf16.xpose.msra.mxu0 0
        %1856 = vmatprep.subr.bf16.mxu0 0
        %1857 = vmatpush1.bf16.xpose.msra.mxu0 0
        %1858 = vmatprep.mubr.bf16.mxu0 0
        %1859 = vmatmul.mubr.bf16.gmra.mrb[0].mxu0 %v1821
        %v1860 = vpop.f32.mrb[0].mxu0
        %v1861 = vadd.f32 %v1815, %v1860
        %v1862 = vpop.f32.mrb[0].mxu0
        %v1863 = vpop.f32.mrb[0].mxu0
        %v1864 = vpop.f32.mrb[0].mxu0
        %1865 = vdwg.mxu0
        %v1866 = vsel %vm1706, %v1861, -inf
        %1867 = vmax.xlane.f32.xlu0 %v1866
        %v1868 = vpop.xlane.xlu0 %1867
        %v1869 = vsub.f32 %v1861, %v1868
        %v1870 = vmul.f32 %v1869, 1.442695
        %v1871 = vpow.pop %v1870
        %v1872 = vsel %vm1706, %v1871, 0.0
        %1873 = vadd.xlane.f32.xlu0 %v1872
        %v1874 = vpop.xlane.xlu0 %1873
        %v1875 = vpack.c.bf16 %v1871, %v1871
        %1876 = vrot.lane.b32.xlu0 %v1697, 56
        %v1877 = vpop.permute.xlu0 %1876
        %v1879 = vsel %vm1706, %v1875, 0
        %v1882 = vsel %vm1768, %v1877, 0
        %1884 = vmatprep.subr.bf16.mxu0 0
        %1885 = vmatpush1.bf16.msra.mxu0 %v1882
        %1886 = vmatprep.subr.bf16.mxu0 0
        %1887 = vmatpush1.bf16.msra.mxu0 0
        %1888 = vmatprep.subr.bf16.mxu0 0
        %1889 = vmatpush1.bf16.msra.mxu0 0
        %1890 = vmatprep.subr.bf16.mxu0 0
        %1891 = vmatpush1.bf16.msra.mxu0 0
        %1892 = vmatprep.subr.bf16.mxu0 0
        %1893 = vmatpush1.bf16.msra.mxu0 0
        %1894 = vmatprep.subr.bf16.mxu0 0
        %1895 = vmatpush1.bf16.msra.mxu0 0
        %1896 = vmatprep.subr.bf16.mxu0 0
        %1897 = vmatpush1.bf16.msra.mxu0 0
        %1898 = vmatprep.subr.bf16.mxu0 0
        %1899 = vmatpush1.bf16.msra.mxu0 0
        %1900 = vmatprep.subr.bf16.mxu0 0
        %1901 = vmatpush1.bf16.msra.mxu0 0
        %1902 = vmatprep.subr.bf16.mxu0 0
        %1903 = vmatpush1.bf16.msra.mxu0 0
        %1904 = vmatprep.subr.bf16.mxu0 0
        %1905 = vmatpush1.bf16.msra.mxu0 0
        %1906 = vmatprep.subr.bf16.mxu0 0
        %1907 = vmatpush1.bf16.msra.mxu0 0
        %1908 = vmatprep.subr.bf16.mxu0 0
        %1909 = vmatpush1.bf16.msra.mxu0 0
        %1910 = vmatprep.subr.bf16.mxu0 0
        %1911 = vmatpush1.bf16.msra.mxu0 0
        %1912 = vmatprep.subr.bf16.mxu0 0
        %1913 = vmatpush1.bf16.msra.mxu0 0
        %1914 = vmatprep.subr.bf16.mxu0 0
        %1915 = vmatpush1.bf16.msra.mxu0 0
        %1916 = vmatprep.mubr.bf16.mxu0 0
        %1917 = vmatmul.mubr.bf16.gmra.mrb[0].mxu0 %v1879
        %v1918 = vpop.f32.mrb[0].mxu0
        %v1919 = vadd.f32 0.0, %v1918
        %v1920 = vpop.f32.mrb[0].mxu0
        %v1921 = vpop.f32.mrb[0].mxu0
        %v1922 = vpop.f32.mrb[0].mxu0
        %1923 = vdwg.mxu0
        %v1924 = vrcp.pop %v1874
        %v1925 = vmul.f32 %v1919, %v1924
        %v1926 = vpack.c.bf16 %v1925, %v1925
        %v1927 = vunpack.c.l.bf16 %v1700
        %1928 = vrot.lane.b32.xlu0 %v1697, 112
        %v1929 = vpop.permute.xlu0 %1928
        %1930 = vrot.lane.b32.xlu0 %v1697, 80
        %v1931 = vpop.permute.xlu0 %1930
        %v1933 = vsel %vm1706, %v1929, 0
        %v1936 = vsel %vm1706, %v1931, 0
        %1938 = vmatprep.subr.bf16.mxu0 0
        %1939 = vmatpush1.bf16.xpose.msra.mxu0 %v1936
        %1940 = vmatprep.subr.bf16.mxu0 0
        %1941 = vmatpush1.bf16.xpose.msra.mxu0 0
        %1942 = vmatprep.subr.bf16.mxu0 0
        %1943 = vmatpush1.bf16.xpose.msra.mxu0 0
        %1944 = vmatprep.subr.bf16.mxu0 0
        %1945 = vmatpush1.bf16.xpose.msra.mxu0 0
        %1946 = vmatprep.subr.bf16.mxu0 0
        %1947 = vmatpush1.bf16.xpose.msra.mxu0 0
        %1948 = vmatprep.subr.bf16.mxu0 0
        %1949 = vmatpush1.bf16.xpose.msra.mxu0 0
        %1950 = vmatprep.subr.bf16.mxu0 0
        %1951 = vmatpush1.bf16.xpose.msra.mxu0 0
        %1952 = vmatprep.subr.bf16.mxu0 0
        %1953 = vmatpush1.bf16.xpose.msra.mxu0 0
        %1954 = vmatprep.subr.bf16.mxu0 0
        %1955 = vmatpush1.bf16.xpose.msra.mxu0 0
        %1956 = vmatprep.subr.bf16.mxu0 0
        %1957 = vmatpush1.bf16.xpose.msra.mxu0 0
        %1958 = vmatprep.subr.bf16.mxu0 0
        %1959 = vmatpush1.bf16.xpose.msra.mxu0 0
        %1960 = vmatprep.subr.bf16.mxu0 0
        %1961 = vmatpush1.bf16.xpose.msra.mxu0 0
        %1962 = vmatprep.subr.bf16.mxu0 0
        %1963 = vmatpush1.bf16.xpose.msra.mxu0 0
        %1964 = vmatprep.subr.bf16.mxu0 0
        %1965 = vmatpush1.bf16.xpose.msra.mxu0 0
        %1966 = vmatprep.subr.bf16.mxu0 0
        %1967 = vmatpush1.bf16.xpose.msra.mxu0 0
        %1968 = vmatprep.subr.bf16.mxu0 0
        %1969 = vmatpush1.bf16.xpose.msra.mxu0 0
        %1970 = vmatprep.mubr.bf16.mxu0 0
        %1971 = vmatmul.mubr.bf16.gmra.mrb[0].mxu0 %v1933
        %v1972 = vpop.f32.mrb[0].mxu0
        %v1973 = vadd.f32 %v1927, %v1972
        %v1974 = vpop.f32.mrb[0].mxu0
        %v1975 = vpop.f32.mrb[0].mxu0
        %v1976 = vpop.f32.mrb[0].mxu0
        %1977 = vdwg.mxu0
        %v1978 = vsel %vm1706, %v1973, -inf
        %1979 = vmax.xlane.f32.xlu0 %v1978
        %v1980 = vpop.xlane.xlu0 %1979
        %v1981 = vsub.f32 %v1973, %v1980
        %v1982 = vmul.f32 %v1981, 1.442695
        %v1983 = vpow.pop %v1982
        %v1984 = vsel %vm1706, %v1983, 0.0
        %1985 = vadd.xlane.f32.xlu0 %v1984
        %v1986 = vpop.xlane.xlu0 %1985
        %v1987 = vpack.c.bf16 %v1983, %v1983
        %1988 = vrot.lane.b32.xlu0 %v1697, 48
        %v1989 = vpop.permute.xlu0 %1988
        %v1991 = vsel %vm1706, %v1987, 0
        %v1994 = vsel %vm1768, %v1989, 0
        %1996 = vmatprep.subr.bf16.mxu0 0
        %1997 = vmatpush1.bf16.msra.mxu0 %v1994
        %1998 = vmatprep.subr.bf16.mxu0 0
        %1999 = vmatpush1.bf16.msra.mxu0 0
        %2000 = vmatprep.subr.bf16.mxu0 0
        %2001 = vmatpush1.bf16.msra.mxu0 0
        %2002 = vmatprep.subr.bf16.mxu0 0
        %2003 = vmatpush1.bf16.msra.mxu0 0
        %2004 = vmatprep.subr.bf16.mxu0 0
        %2005 = vmatpush1.bf16.msra.mxu0 0
        %2006 = vmatprep.subr.bf16.mxu0 0
        %2007 = vmatpush1.bf16.msra.mxu0 0
        %2008 = vmatprep.subr.bf16.mxu0 0
        %2009 = vmatpush1.bf16.msra.mxu0 0
        %2010 = vmatprep.subr.bf16.mxu0 0
        %2011 = vmatpush1.bf16.msra.mxu0 0
        %2012 = vmatprep.subr.bf16.mxu0 0
        %2013 = vmatpush1.bf16.msra.mxu0 0
        %2014 = vmatprep.subr.bf16.mxu0 0
        %2015 = vmatpush1.bf16.msra.mxu0 0
        %2016 = vmatprep.subr.bf16.mxu0 0
        %2017 = vmatpush1.bf16.msra.mxu0 0
        %2018 = vmatprep.subr.bf16.mxu0 0
        %2019 = vmatpush1.bf16.msra.mxu0 0
        %2020 = vmatprep.subr.bf16.mxu0 0
        %2021 = vmatpush1.bf16.msra.mxu0 0
        %2022 = vmatprep.subr.bf16.mxu0 0
        %2023 = vmatpush1.bf16.msra.mxu0 0
        %2024 = vmatprep.subr.bf16.mxu0 0
        %2025 = vmatpush1.bf16.msra.mxu0 0
        %2026 = vmatprep.subr.bf16.mxu0 0
        %2027 = vmatpush1.bf16.msra.mxu0 0
        %2028 = vmatprep.mubr.bf16.mxu0 0
        %2029 = vmatmul.mubr.bf16.gmra.mrb[0].mxu0 %v1991
        %v2030 = vpop.f32.mrb[0].mxu0
        %v2031 = vadd.f32 0.0, %v2030
        %v2032 = vpop.f32.mrb[0].mxu0
        %v2033 = vpop.f32.mrb[0].mxu0
        %v2034 = vpop.f32.mrb[0].mxu0
        %2035 = vdwg.mxu0
        %v2036 = vrcp.pop %v1986
        %v2037 = vmul.f32 %v2031, %v2036
        %v2038 = vpack.c.bf16 %v2037, %v2037
        %v2039 = vunpack.c.l.bf16 %v1701
        %2040 = vrot.lane.b32.xlu0 %v1697, 104
        %v2041 = vpop.permute.xlu0 %2040
        %2042 = vrot.lane.b32.xlu0 %v1697, 72
        %v2043 = vpop.permute.xlu0 %2042
        %v2045 = vsel %vm1706, %v2041, 0
        %v2048 = vsel %vm1706, %v2043, 0
        %2050 = vmatprep.subr.bf16.mxu0 0
        %2051 = vmatpush1.bf16.xpose.msra.mxu0 %v2048
        %2052 = vmatprep.subr.bf16.mxu0 0
        %2053 = vmatpush1.bf16.xpose.msra.mxu0 0
        %2054 = vmatprep.subr.bf16.mxu0 0
        %2055 = vmatpush1.bf16.xpose.msra.mxu0 0
        %2056 = vmatprep.subr.bf16.mxu0 0
        %2057 = vmatpush1.bf16.xpose.msra.mxu0 0
        %2058 = vmatprep.subr.bf16.mxu0 0
        %2059 = vmatpush1.bf16.xpose.msra.mxu0 0
        %2060 = vmatprep.subr.bf16.mxu0 0
        %2061 = vmatpush1.bf16.xpose.msra.mxu0 0
        %2062 = vmatprep.subr.bf16.mxu0 0
        %2063 = vmatpush1.bf16.xpose.msra.mxu0 0
        %2064 = vmatprep.subr.bf16.mxu0 0
        %2065 = vmatpush1.bf16.xpose.msra.mxu0 0
        %2066 = vmatprep.subr.bf16.mxu0 0
        %2067 = vmatpush1.bf16.xpose.msra.mxu0 0
        %2068 = vmatprep.subr.bf16.mxu0 0
        %2069 = vmatpush1.bf16.xpose.msra.mxu0 0
        %2070 = vmatprep.subr.bf16.mxu0 0
        %2071 = vmatpush1.bf16.xpose.msra.mxu0 0
        %2072 = vmatprep.subr.bf16.mxu0 0
        %2073 = vmatpush1.bf16.xpose.msra.mxu0 0
        %2074 = vmatprep.subr.bf16.mxu0 0
        %2075 = vmatpush1.bf16.xpose.msra.mxu0 0
        %2076 = vmatprep.subr.bf16.mxu0 0
        %2077 = vmatpush1.bf16.xpose.msra.mxu0 0
        %2078 = vmatprep.subr.bf16.mxu0 0
        %2079 = vmatpush1.bf16.xpose.msra.mxu0 0
        %2080 = vmatprep.subr.bf16.mxu0 0
        %2081 = vmatpush1.bf16.xpose.msra.mxu0 0
        %2082 = vmatprep.mubr.bf16.mxu0 0
        %2083 = vmatmul.mubr.bf16.gmra.mrb[0].mxu0 %v2045
        %v2084 = vpop.f32.mrb[0].mxu0
        %v2085 = vadd.f32 %v2039, %v2084
        %v2086 = vpop.f32.mrb[0].mxu0
        %v2087 = vpop.f32.mrb[0].mxu0
        %v2088 = vpop.f32.mrb[0].mxu0
        %2089 = vdwg.mxu0
        %v2090 = vsel %vm1706, %v2085, -inf
        %2091 = vmax.xlane.f32.xlu0 %v2090
        %v2092 = vpop.xlane.xlu0 %2091
        %v2093 = vsub.f32 %v2085, %v2092
        %v2094 = vmul.f32 %v2093, 1.442695
        %v2095 = vpow.pop %v2094
        %v2096 = vsel %vm1706, %v2095, 0.0
        %2097 = vadd.xlane.f32.xlu0 %v2096
        %v2098 = vpop.xlane.xlu0 %2097
        %v2099 = vpack.c.bf16 %v2095, %v2095
        %2100 = vrot.lane.b32.xlu0 %v1697, 40
        %v2101 = vpop.permute.xlu0 %2100
        %v2103 = vsel %vm1706, %v2099, 0
        %v2106 = vsel %vm1768, %v2101, 0
        %2108 = vmatprep.subr.bf16.mxu0 0
        %2109 = vmatpush1.bf16.msra.mxu0 %v2106
        %2110 = vmatprep.subr.bf16.mxu0 0
        %2111 = vmatpush1.bf16.msra.mxu0 0
        %2112 = vmatprep.subr.bf16.mxu0 0
        %2113 = vmatpush1.bf16.msra.mxu0 0
        %2114 = vmatprep.subr.bf16.mxu0 0
        %2115 = vmatpush1.bf16.msra.mxu0 0
        %2116 = vmatprep.subr.bf16.mxu0 0
        %2117 = vmatpush1.bf16.msra.mxu0 0
        %2118 = vmatprep.subr.bf16.mxu0 0
        %2119 = vmatpush1.bf16.msra.mxu0 0
        %2120 = vmatprep.subr.bf16.mxu0 0
        %2121 = vmatpush1.bf16.msra.mxu0 0
        %2122 = vmatprep.subr.bf16.mxu0 0
        %2123 = vmatpush1.bf16.msra.mxu0 0
        %2124 = vmatprep.subr.bf16.mxu0 0
        %2125 = vmatpush1.bf16.msra.mxu0 0
        %2126 = vmatprep.subr.bf16.mxu0 0
        %2127 = vmatpush1.bf16.msra.mxu0 0
        %2128 = vmatprep.subr.bf16.mxu0 0
        %2129 = vmatpush1.bf16.msra.mxu0 0
        %2130 = vmatprep.subr.bf16.mxu0 0
        %2131 = vmatpush1.bf16.msra.mxu0 0
        %2132 = vmatprep.subr.bf16.mxu0 0
        %2133 = vmatpush1.bf16.msra.mxu0 0
        %2134 = vmatprep.subr.bf16.mxu0 0
        %2135 = vmatpush1.bf16.msra.mxu0 0
        %2136 = vmatprep.subr.bf16.mxu0 0
        %2137 = vmatpush1.bf16.msra.mxu0 0
        %2138 = vmatprep.subr.bf16.mxu0 0
        %2139 = vmatpush1.bf16.msra.mxu0 0
        %2140 = vmatprep.mubr.bf16.mxu0 0
        %2141 = vmatmul.mubr.bf16.gmra.mrb[0].mxu0 %v2103
        %v2142 = vpop.f32.mrb[0].mxu0
        %v2143 = vadd.f32 0.0, %v2142
        %v2144 = vpop.f32.mrb[0].mxu0
        %v2145 = vpop.f32.mrb[0].mxu0
        %v2146 = vpop.f32.mrb[0].mxu0
        %2147 = vdwg.mxu0
        %v2148 = vrcp.pop %v2098
        %v2149 = vmul.f32 %v2143, %v2148
        %v2150 = vpack.c.bf16 %v2149, %v2149
        %2152 = vrot.lane.b32.xlu0 %v1926, 8
        %v2153 = vpop.permute.xlu0 %2152
        %2155 = vrot.lane.b32.xlu0 %v2038, 16
        %v2156 = vpop.permute.xlu0 %2155
        %2158 = vrot.lane.b32.xlu0 %v2150, 24
        %v2159 = vpop.permute.xlu0 %2158
        %v2162 = vsel %vm1706, %v1814, %v2153
        %vm2163 = vcmask 130048
        %v2165 = vsel %vm2163, %v2162, %v2156
        %vm2166 = vcmask 195584
        %v2168 = vsel %vm2166, %v2165, %v2159
        %v2169 = vld [vmem:[#allocation28] sm:$0xf]
        %v2170 = vld [vmem:[#allocation28 + $0x4] sm:$0xf]
        %v2171 = vld [vmem:[#allocation28 + $0x8] sm:$0xf]
        %v2172 = vld [vmem:[#allocation28 + $0xc] sm:$0xf]
        %v2177 = vunpack.c.l.b16 %v2169
        %v2178 = vunpack.c.l.b16 %v2170
        %v2179 = vunpack.c.l.b16 %v2171
        %v2180 = vunpack.c.l.b16 %v2172
        %v2181 = vpack.c.b16 %v2178, %v2177
        %v2182 = vpack.c.b16 %v2180, %v2179
        %v2185 = vsel %vm1416, %v2168, 0
        %2187 = vmatprep.subr.bf16.mxu0 0
        %2188 = vmatpush1.bf16.msra.mxu0 %v2181
        %2189 = vmatprep.subr.bf16.mxu0 0
        %2190 = vmatpush1.bf16.msra.mxu0 %v2182
        %2191 = vmatprep.subr.bf16.mxu0 0
        %2192 = vmatpush1.bf16.msra.mxu0 0
        %2193 = vmatprep.subr.bf16.mxu0 0
        %2194 = vmatpush1.bf16.msra.mxu0 0
        %2195 = vmatprep.subr.bf16.mxu0 0
        %2196 = vmatpush1.bf16.msra.mxu0 0
        %2197 = vmatprep.subr.bf16.mxu0 0
        %2198 = vmatpush1.bf16.msra.mxu0 0
        %2199 = vmatprep.subr.bf16.mxu0 0
        %2200 = vmatpush1.bf16.msra.mxu0 0
        %2201 = vmatprep.subr.bf16.mxu0 0
        %2202 = vmatpush1.bf16.msra.mxu0 0
        %2203 = vmatprep.subr.bf16.mxu0 0
        %2204 = vmatpush1.bf16.msra.mxu0 0
        %2205 = vmatprep.subr.bf16.mxu0 0
        %2206 = vmatpush1.bf16.msra.mxu0 0
        %2207 = vmatprep.subr.bf16.mxu0 0
        %2208 = vmatpush1.bf16.msra.mxu0 0
        %2209 = vmatprep.subr.bf16.mxu0 0
        %2210 = vmatpush1.bf16.msra.mxu0 0
        %2211 = vmatprep.subr.bf16.mxu0 0
        %2212 = vmatpush1.bf16.msra.mxu0 0
        %2213 = vmatprep.subr.bf16.mxu0 0
        %2214 = vmatpush1.bf16.msra.mxu0 0
        %2215 = vmatprep.subr.bf16.mxu0 0
        %2216 = vmatpush1.bf16.msra.mxu0 0
        %2217 = vmatprep.subr.bf16.mxu0 0
        %2218 = vmatpush1.bf16.msra.mxu0 0
        %2219 = vmatprep.mubr.bf16.mxu0 0
        %2220 = vmatmul.mubr.bf16.gmra.mrb[0].mxu0 %v2185
        %v2221 = vpop.f32.mrb[0].mxu0
        %v2222 = vadd.f32 0.0, %v2221
        %v2223 = vpop.f32.mrb[0].mxu0
        %v2224 = vpop.f32.mrb[0].mxu0
        %v2225 = vpop.f32.mrb[0].mxu0
        %2226 = vdwg.mxu0
        %v2227 = vadd.f32 %v1600, %v2222
        %v2228 = vld [vmem:[#allocation29] sm:$0x1]
        %v2230 = vlaneseq
        %v2231 = vshrl.u32 %v2230, 7
        %v2232 = vsub.s32 0, %v2231
        %v2233 = vrot.slane %v2228, %v2232
        %v2235 = vadd.f32 %v2227, %v2233
        %v2236 = vsel %vm1416, %v2235, 0.0
        %2237 = vadd.xlane.f32.xlu0 %v2236
        %v2238 = vpop.xlane.xlu0 %2237
        %v2239 = vmul.f32 %v2238, %v1420
        %v2240 = vsub.f32 %v2235, %v2239
        %v2241 = vmul.f32 %v2240, %v2240
        %v2242 = vsel %vm1416, %v2241, 0.0
        %2243 = vadd.xlane.f32.xlu0 %v2242
        %v2244 = vpop.xlane.xlu0 %2243
        %v2245 = vmul.f32 %v2244, %v1420
        %v2246 = vadd.f32 %v2245, 1e-05
        %v2247 = vrsqrt.pop %v2246
        %v2248 = vmul.f32 %v2240, %v2247
        %v2249 = vld [vmem:[#allocation13] sm:$0x1]
        %v2251 = vlaneseq
        %v2252 = vshrl.u32 %v2251, 7
        %v2253 = vsub.s32 0, %v2252
        %v2254 = vrot.slane %v2249, %v2253
        %v2256 = vmul.f32 %v2248, %v2254
        %v2257 = vld [vmem:[#allocation14] sm:$0x1]
        %v2259 = vlaneseq
        %v2260 = vshrl.u32 %v2259, 7
        %v2261 = vsub.s32 0, %v2260
        %v2262 = vrot.slane %v2257, %v2261
        %v2264 = vadd.f32 %v2256, %v2262
        %v2265 = vld [vmem:[#allocation31] sm:$0xf]
        %v2266 = vld [vmem:[#allocation31 + $0x4] sm:$0xf]
        %v2267 = vld [vmem:[#allocation31 + $0x8] sm:$0xf]
        %v2268 = vld [vmem:[#allocation31 + $0xc] sm:$0xf]
        %v2269 = vpack.c.bf16 %v2264, %v2264
        %v2270 = vld [vmem:[#allocation32] sm:$0x1]
        %v2272 = vlaneseq
        %v2273 = vshrl.u32 %v2272, 7
        %v2274 = vsub.s32 0, %v2273
        %v2275 = vrot.slane %v2270, %v2274
        %v2281 = vunpack.c.l.b16 %v2265
        %v2282 = vunpack.c.l.b16 %v2266
        %v2283 = vunpack.c.l.b16 %v2267
        %v2284 = vunpack.c.l.b16 %v2268
        %v2285 = vpack.c.b16 %v2282, %v2281
        %v2286 = vpack.c.b16 %v2284, %v2283
        %v2290 = vsel %vm1416, %v2269, 0
        %2292 = vmatprep.subr.bf16.mxu0 0
        %2293 = vmatpush1.bf16.msra.mxu0 %v2285
        %2294 = vmatprep.subr.bf16.mxu0 0
        %2295 = vmatpush1.bf16.msra.mxu0 %v2286
        %2296 = vmatprep.subr.bf16.mxu0 0
        %2297 = vmatpush1.bf16.msra.mxu0 0
        %2298 = vmatprep.subr.bf16.mxu0 0
        %2299 = vmatpush1.bf16.msra.mxu0 0
        %2300 = vmatprep.subr.bf16.mxu0 0
        %2301 = vmatpush1.bf16.msra.mxu0 0
        %2302 = vmatprep.subr.bf16.mxu0 0
        %2303 = vmatpush1.bf16.msra.mxu0 0
        %2304 = vmatprep.subr.bf16.mxu0 0
        %2305 = vmatpush1.bf16.msra.mxu0 0
        %2306 = vmatprep.subr.bf16.mxu0 0
        %2307 = vmatpush1.bf16.msra.mxu0 0
        %2308 = vmatprep.subr.bf16.mxu0 0
        %2309 = vmatpush1.bf16.msra.mxu0 0
        %2310 = vmatprep.subr.bf16.mxu0 0
        %2311 = vmatpush1.bf16.msra.mxu0 0
        %2312 = vmatprep.subr.bf16.mxu0 0
        %2313 = vmatpush1.bf16.msra.mxu0 0
        %2314 = vmatprep.subr.bf16.mxu0 0
        %2315 = vmatpush1.bf16.msra.mxu0 0
        %2316 = vmatprep.subr.bf16.mxu0 0
        %2317 = vmatpush1.bf16.msra.mxu0 0
        %2318 = vmatprep.subr.bf16.mxu0 0
        %2319 = vmatpush1.bf16.msra.mxu0 0
        %2320 = vmatprep.subr.bf16.mxu0 0
        %2321 = vmatpush1.bf16.msra.mxu0 0
        %2322 = vmatprep.subr.bf16.mxu0 0
        %2323 = vmatpush1.bf16.msra.mxu0 0
        %2324 = vmatprep.mubr.bf16.mxu0 0
        %2325 = vmatmul.mubr.bf16.gmra.mrb[0].mxu0 %v2290
        %v2326 = vpop.f32.mrb[0].mxu0
        %v2327 = vadd.f32 %v2275, %v2326
        %v2328 = vpop.f32.mrb[0].mxu0
        %v2329 = vpop.f32.mrb[0].mxu0
        %v2330 = vpop.f32.mrb[0].mxu0
        %2331 = vdwg.mxu0
        %v2332 = vmax.f32 %v2327, 0.0
        %v2333 = vlaneseq
        %v2334 = vshrl.u32 %v2333, 7
        %vm2335 = vcmp.lt.s32.totalorder %v2334, 0
        %v2336 = vsub.s32 0, %v2334
        %v2337 = vsel %vm2335, %v2336, %v2334
        %v2338 = vshrl.u32 %v2337, 3
        %v2339 = vand.u32 %v2337, 7
        %v2340 = vsub.s32 0, %v2339
        %v2341 = vsel %vm2335, %v2340, %v2339
        %vm2342 = vcmp.ne.s32.totalorder %v2341, 0
        %vm2343 = vcmp.lt.s32.totalorder %v2341, 0
        %vm2344 = vmand %vm2343, %vm2342
        %v2345 = vadd.s32 %v2341, 8
        %v2346 = vsel %vm2344, %v2345, %v2341
        %v2348 = vrot.slane %v2332, 5
        %vm2350 = vcmask 1042432
        %v2351 = vsel %vm2350, 0.0, %v2348
        %v2352 = vadd.s32 %v2346, 4294967293
        %vm2353 = vcmp.ge.s32.totalorder %v2352, 0
        %vm2354 = vcmp.lt.s32.totalorder %v2352, 8
        %vm2355 = vmand %vm2353, %vm2354
        %v2356 = vsel %vm2355, 1, 0
        %vm2357 = vcmp.eq.s32.totalorder %v2356, 1
        %v2358 = vsel %vm2357, %v2351, 0.0
        %v2359 = vrot.slane %v2332, 6
        %vm2361 = vcmask 1041408
        %v2362 = vsel %vm2361, 0.0, %v2359
        %v2363 = vadd.s32 %v2346, 4294967294
        %vm2364 = vcmp.ge.s32.totalorder %v2363, 0
        %vm2365 = vcmp.lt.s32.totalorder %v2363, 8
        %vm2366 = vmand %vm2364, %vm2365
        %v2367 = vsel %vm2366, 1, 0
        %vm2368 = vcmp.eq.s32.totalorder %v2367, 1
        %v2369 = vsel %vm2368, %v2362, 0.0
        %v2370 = vrot.slane %v2332, 7
        %vm2372 = vcmask 1040384
        %v2373 = vsel %vm2372, 0.0, %v2370
        %v2374 = vadd.s32 %v2346, 4294967295
        %vm2375 = vcmp.ge.s32.totalorder %v2374, 0
        %vm2376 = vcmp.lt.s32.totalorder %v2374, 8
        %vm2377 = vmand %vm2375, %vm2376
        %v2378 = vsel %vm2377, 1, 0
        %vm2379 = vcmp.eq.s32.totalorder %v2378, 1
        %v2380 = vsel %vm2379, %v2373, 0.0
        %vm2381 = vcmp.ge.s32.totalorder %v2346, 0
        %vm2382 = vcmp.lt.s32.totalorder %v2346, 8
        %vm2383 = vmand %vm2381, %vm2382
        %v2384 = vsel %vm2383, 1, 0
        %vm2385 = vcmp.eq.s32.totalorder %v2384, 1
        %v2386 = vsel %vm2385, %v2332, 0.0
        %v2387 = vrot.slane %v2332, 1
        %vm2389 = vcmask 1046528
        %v2390 = vsel %vm2389, %v2387, 0.0
        %v2391 = vadd.s32 %v2346, 1
        %vm2392 = vcmp.ge.s32.totalorder %v2391, 0
        %vm2393 = vcmp.lt.s32.totalorder %v2391, 8
        %vm2394 = vmand %vm2392, %vm2393
        %v2395 = vsel %vm2394, 1, 0
        %vm2396 = vcmp.eq.s32.totalorder %v2395, 1
        %v2397 = vsel %vm2396, %v2390, 0.0
        %v2398 = vrot.slane %v2332, 2
        %vm2400 = vcmask 1045504
        %v2401 = vsel %vm2400, %v2398, 0.0
        %v2402 = vadd.s32 %v2346, 2
        %vm2403 = vcmp.ge.s32.totalorder %v2402, 0
        %vm2404 = vcmp.lt.s32.totalorder %v2402, 8
        %vm2405 = vmand %vm2403, %vm2404
        %v2406 = vsel %vm2405, 1, 0
        %vm2407 = vcmp.eq.s32.totalorder %v2406, 1
        %v2408 = vsel %vm2407, %v2401, 0.0
        %v2409 = vrot.slane %v2332, 3
        %vm2411 = vcmask 1044480
        %v2412 = vsel %vm2411, %v2409, 0.0
        %v2413 = vadd.s32 %v2346, 3
        %vm2414 = vcmp.ge.s32.totalorder %v2413, 0
        %vm2415 = vcmp.lt.s32.totalorder %v2413, 8
        %vm2416 = vmand %vm2414, %vm2415
        %v2417 = vsel %vm2416, 1, 0
        %vm2418 = vcmp.eq.s32.totalorder %v2417, 1
        %v2419 = vsel %vm2418, %v2412, 0.0
        %v2420 = vld [vmem:[#allocation34] sm:$0x1]
        %v2421 = vld [vmem:[#allocation34 + $0x1] sm:$0x1]
        %v2422 = vld [vmem:[#allocation34 + $0x2] sm:$0x1]
        %v2423 = vld [vmem:[#allocation35] sm:$0x1]
        %v2425 = vlaneseq
        %v2426 = vshrl.u32 %v2425, 7
        %v2427 = vsub.s32 0, %v2426
        %v2428 = vrot.slane %v2420, %v2427
        %v2430 = vmul.f32 %v2380, %v2428
        %v2431 = vadd.f32 %v2430, 0.0
        %v2433 = vlaneseq
        %v2434 = vshrl.u32 %v2433, 7
        %v2435 = vsub.s32 0, %v2434
        %v2436 = vrot.slane %v2421, %v2435
        %v2438 = vmul.f32 %v2386, %v2436
        %v2439 = vadd.f32 %v2431, %v2438
        %v2441 = vlaneseq
        %v2442 = vshrl.u32 %v2441, 7
        %v2443 = vsub.s32 0, %v2442
        %v2444 = vrot.slane %v2422, %v2443
        %v2446 = vmul.f32 %v2397, %v2444
        %v2447 = vadd.f32 %v2439, %v2446
        %v2449 = vlaneseq
        %v2450 = vshrl.u32 %v2449, 7
        %v2451 = vsub.s32 0, %v2450
        %v2452 = vrot.slane %v2423, %v2451
        %v2454 = vadd.f32 %v2447, %v2452
        %v2455 = vmax.f32 %v2454, 0.0
        %v2456 = vadd.f32 %v2455, 0.0
        %v2457 = vld [vmem:[#allocation37] sm:$0x1]
        %v2458 = vld [vmem:[#allocation37 + $0x1] sm:$0x1]
        %v2459 = vld [vmem:[#allocation37 + $0x2] sm:$0x1]
        %v2460 = vld [vmem:[#allocation37 + $0x3] sm:$0x1]
        %v2461 = vld [vmem:[#allocation37 + $0x4] sm:$0x1]
        %v2462 = vld [vmem:[#allocation38] sm:$0x1]
        %v2464 = vlaneseq
        %v2465 = vshrl.u32 %v2464, 7
        %v2466 = vsub.s32 0, %v2465
        %v2467 = vrot.slane %v2457, %v2466
        %v2469 = vmul.f32 %v2369, %v2467
        %v2470 = vadd.f32 %v2469, 0.0
        %v2472 = vlaneseq
        %v2473 = vshrl.u32 %v2472, 7
        %v2474 = vsub.s32 0, %v2473
        %v2475 = vrot.slane %v2458, %v2474
        %v2477 = vmul.f32 %v2380, %v2475
        %v2478 = vadd.f32 %v2470, %v2477
        %v2480 = vlaneseq
        %v2481 = vshrl.u32 %v2480, 7
        %v2482 = vsub.s32 0, %v2481
        %v2483 = vrot.slane %v2459, %v2482
        %v2485 = vmul.f32 %v2386, %v2483
        %v2486 = vadd.f32 %v2478, %v2485
        %v2488 = vlaneseq
        %v2489 = vshrl.u32 %v2488, 7
        %v2490 = vsub.s32 0, %v2489
        %v2491 = vrot.slane %v2460, %v2490
        %v2493 = vmul.f32 %v2397, %v2491
        %v2494 = vadd.f32 %v2486, %v2493
        %v2496 = vlaneseq
        %v2497 = vshrl.u32 %v2496, 7
        %v2498 = vsub.s32 0, %v2497
        %v2499 = vrot.slane %v2461, %v2498
        %v2501 = vmul.f32 %v2408, %v2499
        %v2502 = vadd.f32 %v2494, %v2501
        %v2504 = vlaneseq
        %v2505 = vshrl.u32 %v2504, 7
        %v2506 = vsub.s32 0, %v2505
        %v2507 = vrot.slane %v2462, %v2506
        %v2509 = vadd.f32 %v2502, %v2507
        %v2510 = vmax.f32 %v2509, 0.0
        %v2511 = vadd.f32 %v2456, %v2510
        %v2512 = vld [vmem:[#allocation40] sm:$0x1]
        %v2513 = vld [vmem:[#allocation40 + $0x1] sm:$0x1]
        %v2514 = vld [vmem:[#allocation40 + $0x2] sm:$0x1]
        %v2515 = vld [vmem:[#allocation40 + $0x3] sm:$0x1]
        %v2516 = vld [vmem:[#allocation40 + $0x4] sm:$0x1]
        %v2517 = vld [vmem:[#allocation40 + $0x5] sm:$0x1]
        %v2518 = vld [vmem:[#allocation40 + $0x6] sm:$0x1]
        %v2519 = vld [vmem:[#allocation41] sm:$0x1]
        %v2521 = vlaneseq
        %v2522 = vshrl.u32 %v2521, 7
        %v2523 = vsub.s32 0, %v2522
        %v2524 = vrot.slane %v2512, %v2523
        %v2526 = vmul.f32 %v2358, %v2524
        %v2527 = vadd.f32 %v2526, 0.0
        %v2529 = vlaneseq
        %v2530 = vshrl.u32 %v2529, 7
        %v2531 = vsub.s32 0, %v2530
        %v2532 = vrot.slane %v2513, %v2531
        %v2534 = vmul.f32 %v2369, %v2532
        %v2535 = vadd.f32 %v2527, %v2534
        %v2537 = vlaneseq
        %v2538 = vshrl.u32 %v2537, 7
        %v2539 = vsub.s32 0, %v2538
        %v2540 = vrot.slane %v2514, %v2539
        %v2542 = vmul.f32 %v2380, %v2540
        %v2543 = vadd.f32 %v2535, %v2542
        %v2545 = vlaneseq
        %v2546 = vshrl.u32 %v2545, 7
        %v2547 = vsub.s32 0, %v2546
        %v2548 = vrot.slane %v2515, %v2547
        %v2550 = vmul.f32 %v2386, %v2548
        %v2551 = vadd.f32 %v2543, %v2550
        %v2553 = vlaneseq
        %v2554 = vshrl.u32 %v2553, 7
        %v2555 = vsub.s32 0, %v2554
        %v2556 = vrot.slane %v2516, %v2555
        %v2558 = vmul.f32 %v2397, %v2556
        %v2559 = vadd.f32 %v2551, %v2558
        %v2561 = vlaneseq
        %v2562 = vshrl.u32 %v2561, 7
        %v2563 = vsub.s32 0, %v2562
        %v2564 = vrot.slane %v2517, %v2563
        %v2566 = vmul.f32 %v2408, %v2564
        %v2567 = vadd.f32 %v2559, %v2566
        %v2569 = vlaneseq
        %v2570 = vshrl.u32 %v2569, 7
        %v2571 = vsub.s32 0, %v2570
        %v2572 = vrot.slane %v2518, %v2571
        %v2574 = vmul.f32 %v2419, %v2572
        %v2575 = vadd.f32 %v2567, %v2574
        %v2577 = vlaneseq
        %v2578 = vshrl.u32 %v2577, 7
        %v2579 = vsub.s32 0, %v2578
        %v2580 = vrot.slane %v2519, %v2579
        %v2582 = vadd.f32 %v2575, %v2580
        %v2583 = vmax.f32 %v2582, 0.0
        %v2584 = vadd.f32 %v2511, %v2583
        %v2585 = vmul.f32 %v2584, 0.33333334
        %v2586 = vld [vmem:[#allocation43] sm:$0xf]
        %v2587 = vld [vmem:[#allocation43 + $0x4] sm:$0xf]
        %v2588 = vpack.c.bf16 %v2585, %v2585
        %v2591 = vunpack.c.l.b16 %v2586
        %v2592 = vunpack.c.l.b16 %v2587
        %v2593 = vpack.c.b16 %v2592, %v2591
        %v2596 = vsel %vm2163, %v2588, 0
        %2598 = vmatprep.subr.bf16.mxu0 0
        %2599 = vmatpush1.bf16.msra.mxu0 %v2593
        %2600 = vmatprep.subr.bf16.mxu0 0
        %2601 = vmatpush1.bf16.msra.mxu0 0
        %2602 = vmatprep.subr.bf16.mxu0 0
        %2603 = vmatpush1.bf16.msra.mxu0 0
        %2604 = vmatprep.subr.bf16.mxu0 0
        %2605 = vmatpush1.bf16.msra.mxu0 0
        %2606 = vmatprep.subr.bf16.mxu0 0
        %2607 = vmatpush1.bf16.msra.mxu0 0
        %2608 = vmatprep.subr.bf16.mxu0 0
        %2609 = vmatpush1.bf16.msra.mxu0 0
        %2610 = vmatprep.subr.bf16.mxu0 0
        %2611 = vmatpush1.bf16.msra.mxu0 0
        %2612 = vmatprep.subr.bf16.mxu0 0
        %2613 = vmatpush1.bf16.msra.mxu0 0
        %2614 = vmatprep.subr.bf16.mxu0 0
        %2615 = vmatpush1.bf16.msra.mxu0 0
        %2616 = vmatprep.subr.bf16.mxu0 0
        %2617 = vmatpush1.bf16.msra.mxu0 0
        %2618 = vmatprep.subr.bf16.mxu0 0
        %2619 = vmatpush1.bf16.msra.mxu0 0
        %2620 = vmatprep.subr.bf16.mxu0 0
        %2621 = vmatpush1.bf16.msra.mxu0 0
        %2622 = vmatprep.subr.bf16.mxu0 0
        %2623 = vmatpush1.bf16.msra.mxu0 0
        %2624 = vmatprep.subr.bf16.mxu0 0
        %2625 = vmatpush1.bf16.msra.mxu0 0
        %2626 = vmatprep.subr.bf16.mxu0 0
        %2627 = vmatpush1.bf16.msra.mxu0 0
        %2628 = vmatprep.subr.bf16.mxu0 0
        %2629 = vmatpush1.bf16.msra.mxu0 0
        %2630 = vmatprep.mubr.bf16.mxu0 0
        %2631 = vmatmul.mubr.bf16.gmra.mrb[0].mxu0 %v2596
        %v2632 = vpop.f32.mrb[0].mxu0
        %v2633 = vadd.f32 0.0, %v2632
        %v2634 = vpop.f32.mrb[0].mxu0
        %v2635 = vpop.f32.mrb[0].mxu0
        %v2636 = vpop.f32.mrb[0].mxu0
        %2637 = vdwg.mxu0
        %v2638 = vadd.f32 %v2235, %v2633
        %v2639 = vld [vmem:[#allocation44] sm:$0x1]
        %v2641 = vlaneseq
        %v2642 = vshrl.u32 %v2641, 7
        %v2643 = vsub.s32 0, %v2642
        %v2644 = vrot.slane %v2639, %v2643
        %v2646 = vadd.f32 %v2638, %v2644
        %v2647 = vsel %vm1416, %v2646, 0.0
        %2648 = vadd.xlane.f32.xlu0 %v2647
        %v2649 = vpop.xlane.xlu0 %2648
        %v2650 = vmul.f32 %v2649, %v1420
        %v2651 = vsub.f32 %v2646, %v2650
        %v2652 = vmul.f32 %v2651, %v2651
        %v2653 = vsel %vm1416, %v2652, 0.0
        %2654 = vadd.xlane.f32.xlu0 %v2653
        %v2655 = vpop.xlane.xlu0 %2654
        %v2656 = vmul.f32 %v2655, %v1420
        %v2657 = vadd.f32 %v2656, 1e-05
        %v2658 = vrsqrt.pop %v2657
        %v2659 = vmul.f32 %v2651, %v2658
        %v2660 = vld [vmem:[#allocation16] sm:$0x1]
        %v2662 = vlaneseq
        %v2663 = vshrl.u32 %v2662, 7
        %v2664 = vsub.s32 0, %v2663
        %v2665 = vrot.slane %v2660, %v2664
        %v2667 = vmul.f32 %v2659, %v2665
        %v2668 = vld [vmem:[#allocation17] sm:$0x1]
        %v2670 = vlaneseq
        %v2671 = vshrl.u32 %v2670, 7
        %v2672 = vsub.s32 0, %v2671
        %v2673 = vrot.slane %v2668, %v2672
        %v2675 = vadd.f32 %v2667, %v2673
        %v2676 = vld [vmem:[#allocation46] sm:$0xf]
        %v2677 = vld [vmem:[#allocation46 + $0x4] sm:$0xf]
        %v2678 = vld [vmem:[#allocation46 + $0x8] sm:$0xf]
        %v2679 = vld [vmem:[#allocation46 + $0xc] sm:$0xf]
        %v2680 = vpack.c.bf16 %v2675, %v2675
        %v2681 = vld [vmem:[#allocation47] sm:$0x1]
        %v2683 = vlaneseq
        %v2684 = vshrl.u32 %v2683, 7
        %v2685 = vsub.s32 0, %v2684
        %v2686 = vrot.slane %v2681, %v2685
        %v2692 = vunpack.c.l.b16 %v2676
        %v2693 = vunpack.c.l.b16 %v2677
        %v2694 = vunpack.c.l.b16 %v2678
        %v2695 = vunpack.c.l.b16 %v2679
        %v2696 = vpack.c.b16 %v2693, %v2692
        %v2697 = vpack.c.b16 %v2695, %v2694
        %v2701 = vsel %vm1416, %v2680, 0
        %2703 = vmatprep.subr.bf16.mxu0 0
        %2704 = vmatpush1.bf16.msra.mxu0 %v2696
        %2705 = vmatprep.subr.bf16.mxu0 0
        %2706 = vmatpush1.bf16.msra.mxu0 %v2697
        %2707 = vmatprep.subr.bf16.mxu0 0
        %2708 = vmatpush1.bf16.msra.mxu0 0
        %2709 = vmatprep.subr.bf16.mxu0 0
        %2710 = vmatpush1.bf16.msra.mxu0 0
        %2711 = vmatprep.subr.bf16.mxu0 0
        %2712 = vmatpush1.bf16.msra.mxu0 0
        %2713 = vmatprep.subr.bf16.mxu0 0
        %2714 = vmatpush1.bf16.msra.mxu0 0
        %2715 = vmatprep.subr.bf16.mxu0 0
        %2716 = vmatpush1.bf16.msra.mxu0 0
        %2717 = vmatprep.subr.bf16.mxu0 0
        %2718 = vmatpush1.bf16.msra.mxu0 0
        %2719 = vmatprep.subr.bf16.mxu0 0
        %2720 = vmatpush1.bf16.msra.mxu0 0
        %2721 = vmatprep.subr.bf16.mxu0 0
        %2722 = vmatpush1.bf16.msra.mxu0 0
        %2723 = vmatprep.subr.bf16.mxu0 0
        %2724 = vmatpush1.bf16.msra.mxu0 0
        %2725 = vmatprep.subr.bf16.mxu0 0
        %2726 = vmatpush1.bf16.msra.mxu0 0
        %2727 = vmatprep.subr.bf16.mxu0 0
        %2728 = vmatpush1.bf16.msra.mxu0 0
        %2729 = vmatprep.subr.bf16.mxu0 0
        %2730 = vmatpush1.bf16.msra.mxu0 0
        %2731 = vmatprep.subr.bf16.mxu0 0
        %2732 = vmatpush1.bf16.msra.mxu0 0
        %2733 = vmatprep.subr.bf16.mxu0 0
        %2734 = vmatpush1.bf16.msra.mxu0 0
        %2735 = vmatprep.mubr.bf16.mxu0 0
        %2736 = vmatmul.mubr.bf16.gmra.mrb[0].mxu0 %v2701
        %v2737 = vpop.f32.mrb[0].mxu0
        %v2738 = vadd.f32 %v2686, %v2737
        %v2739 = vpop.f32.mrb[0].mxu0
        %v2740 = vpop.f32.mrb[0].mxu0
        %v2741 = vpop.f32.mrb[0].mxu0
        %2742 = vdwg.mxu0
        %v2743 = vmax.f32 %v2738, 0.0
        %v2744 = vld [vmem:[#allocation49] sm:$0xf]
        %v2745 = vld [vmem:[#allocation49 + $0x4] sm:$0xf]
        %v2746 = vld [vmem:[#allocation49 + $0x8] sm:$0xf]
        %v2747 = vld [vmem:[#allocation49 + $0xc] sm:$0xf]
        %v2748 = vld [vmem:[#allocation49 + $0x10] sm:$0xf]
        %v2749 = vld [vmem:[#allocation49 + $0x14] sm:$0xf]
        %v2750 = vld [vmem:[#allocation49 + $0x18] sm:$0xf]
        %v2751 = vld [vmem:[#allocation49 + $0x1c] sm:$0xf]
        %v2752 = vpack.c.bf16 %v2743, %v2743
        %v2753 = vld [vmem:[#allocation50] sm:$0x1]
        %v2755 = vlaneseq
        %v2756 = vshrl.u32 %v2755, 7
        %v2757 = vsub.s32 0, %v2756
        %v2758 = vrot.slane %v2753, %v2757
        %v2768 = vunpack.c.l.b16 %v2744
        %v2769 = vunpack.c.l.b16 %v2745
        %v2770 = vunpack.c.l.b16 %v2746
        %v2771 = vunpack.c.l.b16 %v2747
        %v2772 = vunpack.c.l.b16 %v2748
        %v2773 = vunpack.c.l.b16 %v2749
        %v2774 = vunpack.c.l.b16 %v2750
        %v2775 = vunpack.c.l.b16 %v2751
        %v2776 = vpack.c.b16 %v2769, %v2768
        %v2777 = vpack.c.b16 %v2771, %v2770
        %v2778 = vpack.c.b16 %v2773, %v2772
        %v2779 = vpack.c.b16 %v2775, %v2774
        %v2785 = vsel %vm1555, %v2752, 0
        %2787 = vmatprep.subr.bf16.mxu0 0
        %2788 = vmatpush1.bf16.msra.mxu0 %v2776
        %2789 = vmatprep.subr.bf16.mxu0 0
        %2790 = vmatpush1.bf16.msra.mxu0 %v2777
        %2791 = vmatprep.subr.bf16.mxu0 0
        %2792 = vmatpush1.bf16.msra.mxu0 %v2778
        %2793 = vmatprep.subr.bf16.mxu0 0
        %2794 = vmatpush1.bf16.msra.mxu0 %v2779
        %2795 = vmatprep.subr.bf16.mxu0 0
        %2796 = vmatpush1.bf16.msra.mxu0 0
        %2797 = vmatprep.subr.bf16.mxu0 0
        %2798 = vmatpush1.bf16.msra.mxu0 0
        %2799 = vmatprep.subr.bf16.mxu0 0
        %2800 = vmatpush1.bf16.msra.mxu0 0
        %2801 = vmatprep.subr.bf16.mxu0 0
        %2802 = vmatpush1.bf16.msra.mxu0 0
        %2803 = vmatprep.subr.bf16.mxu0 0
        %2804 = vmatpush1.bf16.msra.mxu0 0
        %2805 = vmatprep.subr.bf16.mxu0 0
        %2806 = vmatpush1.bf16.msra.mxu0 0
        %2807 = vmatprep.subr.bf16.mxu0 0
        %2808 = vmatpush1.bf16.msra.mxu0 0
        %2809 = vmatprep.subr.bf16.mxu0 0
        %2810 = vmatpush1.bf16.msra.mxu0 0
        %2811 = vmatprep.subr.bf16.mxu0 0
        %2812 = vmatpush1.bf16.msra.mxu0 0
        %2813 = vmatprep.subr.bf16.mxu0 0
        %2814 = vmatpush1.bf16.msra.mxu0 0
        %2815 = vmatprep.subr.bf16.mxu0 0
        %2816 = vmatpush1.bf16.msra.mxu0 0
        %2817 = vmatprep.subr.bf16.mxu0 0
        %2818 = vmatpush1.bf16.msra.mxu0 0
        %2819 = vmatprep.mubr.bf16.mxu0 0
        %2820 = vmatmul.mubr.bf16.gmra.mrb[0].mxu0 %v2785
        %v2821 = vpop.f32.mrb[0].mxu0
        %v2822 = vadd.f32 %v2758, %v2821
        %v2823 = vpop.f32.mrb[0].mxu0
        %v2824 = vpop.f32.mrb[0].mxu0
        %v2825 = vpop.f32.mrb[0].mxu0
        %2826 = vdwg.mxu0
        %v2827 = vmul.f32 %v2822, 0.5
        %v2828 = vadd.f32 %v2646, %v2827
        %2829 = vst.msk [vmem:[%s1413] sm:$0xff] %vm1416, %v2828
        %s2830 = sand.u32 %s783, 1
        %s2831 = scalar_lea.sflag [#allocation4], %s2830
        %s2832 = sand.u32 %s783, 1
        %s2833 = smul.addr %s2832, 8
        %s2834 = scalar_lea.vmem [#allocation52], %s2833
        // Predicated region
        $region277: #{tpu_custom_call.1} parent=147 // pred_check
          %p2835 = pneg %p793
        $region278: #{tpu_custom_call.1} parent=147 // pred_check_branch
          %2837 = sbr.rel (%p2835) target = $region280
        $region279: #{tpu_custom_call.1} parent=147 // pred_region
          %s2839 = ssub.s32 128, 128
          %2840 = vsyncadd %s2831, %s2839
          %s2841 = smul.addr %s98, 128
          %s2842 = scalar_lea.hbm %s65, %s2841
          %s2844 = sshll.u32 %s2834, 4
          %s2845 = int_to_ptr.vmem [resolvable:$true] %s2844
          %2847 = dma.vmem_to_hbm [thread:$0]  %s2845, 128, %s2842, %s2831
        $region280: #{tpu_custom_call.1} parent=147 // pred_fallthru
          _
      $region148: #{tpu_custom_call.1} parent=5 // pred_fallthru
        _
      %p2848 = scmp.le.s32.totalorder 2, %s93
      // Predicated region
      $region281: #{tpu_custom_call.1} parent=5 // pred_check
        %p2849 = pneg %p2848
      $region282: #{tpu_custom_call.1} parent=5 // pred_check_branch
        %2851 = sbr.rel (%p2849) target = $region284
      $region283: #{tpu_custom_call.1} parent=5 // pred_region
        %s2852 = ssub.s32 %s93, 2
        // Predicated region
        $region285: #{tpu_custom_call.1} parent=283 // pred_check
          %p2853 = pneg %p799
        $region286: #{tpu_custom_call.1} parent=283 // pred_check_branch
          %2855 = sbr.rel (%p2853) target = $region288
        $region287: #{tpu_custom_call.1} parent=283 // pred_region
          %s2856 = sand.u32 %s784, 1
          %s2857 = scalar_lea.sflag [#allocation4], %s2856
          %s2858 = sand.u32 %s784, 1
          %s2859 = smul.addr %s2858, 8
          %s2860 = scalar_lea.vmem [#allocation52], %s2859
          %2861 = dma.done %s2857, 128
        $region288: #{tpu_custom_call.1} parent=283 // pred_fallthru
          _
      $region284: #{tpu_custom_call.1} parent=5 // pred_fallthru
        _
    $region6: #{tpu_custom_call.1} parent=1 // loop_footer
      %s97 = sadd.s32 1, %s93
    $region7: #{tpu_custom_call.1} parent=1 // loop_footer_branch
      %92 = sbr.rel target = $region3
    $region8: #{tpu_custom_call.1} parent=1 // loop_exit
      _
    %2862 = vsyncpa [#allocation3], 1
    %s2863 = scalar_lea.sflag [#allocation3], 1
    %2864 = vsyncpa %s2863, 1
    %2865 = vsyncpa [#allocation6], 1
    %2866 = vsyncpa [#allocation9], 1
    %2867 = vsyncpa [#allocation12], 1
    %2868 = vsyncpa [#allocation15], 1
    %2869 = vsyncpa [#allocation18], 1
    %2870 = vsyncpa [#allocation21], 1
    %2871 = vsyncpa [#allocation24], 1
    %2872 = vsyncpa [#allocation27], 1
    %2873 = vsyncpa [#allocation30], 1
    %2874 = vsyncpa [#allocation33], 1
    %2875 = vsyncpa [#allocation36], 1
    %2876 = vsyncpa [#allocation39], 1
    %2877 = vsyncpa [#allocation42], 1
    %2878 = vsyncpa [#allocation45], 1
    %2879 = vsyncpa [#allocation48], 1
    %2880 = vsyncpa [#allocation51], 1
    %2881 = vsyncpa [#allocation4], 1
    %s2882 = scalar_lea.sflag [#allocation4], 1
    %2883 = vsyncpa %s2882, 1

</llo_original>
